<compile_context>
chip_gen: v7x
topology: tpu7x:2x2x1
jax: 0.10.0
libtpu: 0.0.40
codegen_flags: <defaults>
</compile_context>

<pallas_src>
import functools

import numpy as np

import jax
import jax.numpy as jnp
from jax.experimental import pallas as pl
from jax.experimental.pallas import tpu as pltpu

BN_EPS = 1e-5
VMEM_LIMIT = 32 * 1024 * 1024  # scoped-VMEM budget; safe on v5e/v6e/v7x


def _round_up(x, m):
    return -(-x // m) * m


# ------------------------------ Pallas kernels ------------------------------ #

def _deconv_bn_relu_kernel(x_ref, w_ref, b_ref, mask_ref, fold_ref,
                           gamma_ref, beta_ref, o_ref, *, inv_n):
    """Fused phase-packed deconv GEMM + bias + batch-stats BatchNorm + ReLU.

    Shapes (single grid step, everything resident in VMEM):
      x_ref      (M_pad, Kd) bf16  im2col rows (n, qh, qw), cols (tap, cin)
      w_ref      (Kd,  Fp)   bf16  packed weight, cols (phase_h, phase_w, cout)
      b_ref      (1,   Fp)   f32   packed bias
      mask_ref   (M_pad, Fp) f32   1.0 where the packed element is a real output
                                   pixel (row not padding, phase not cropped)
      fold_ref   (Fp,  Fp)   f32   fold[i,j] = 1 iff columns i, j belong to the
                                   same output channel (sums the s*s phase
                                   columns per channel and broadcasts back)
      gamma/beta (1,  Fp)    f32   BN affine, pre-broadcast to packed columns
      o_ref      (M_pad, Fp) bf16  normalized + ReLU'd packed output
    """
    acc = jnp.dot(x_ref[...], w_ref[...], preferred_element_type=jnp.float32)
    acc = acc + b_ref[...]
    mask = mask_ref[...]
    fold = fold_ref[...]
    # Per-channel batch mean over all valid pixels, broadcast to every column.
    mean = jnp.sum(jnp.dot(acc * mask, fold, preferred_element_type=jnp.float32),
                   axis=0, keepdims=True) * inv_n
    # Mean-subtracted second moment (avoids E[x^2] - mean^2 cancellation).
    d = (acc - mean) * mask
    var = jnp.sum(jnp.dot(d * d, fold, preferred_element_type=jnp.float32),
                  axis=0, keepdims=True) * inv_n
    scale = gamma_ref[...] * jax.lax.rsqrt(var + BN_EPS)
    y = (acc - mean) * scale + beta_ref[...]
    o_ref[...] = jnp.maximum(y, 0.0).astype(o_ref.dtype)


def _deconv_tanh_kernel(w_ref, x_ref, b_ref, o_ref):
    """Final layer, transposed orientation: out^T = W_packed^T @ im2col^T.

    Lanes carry the output pixels (lane-dense tanh + store); the s*s phase rows
    (padded to 8) sit on sublanes.  Bias is an SMEM scalar (cout == 1).
    """
    acc = jnp.dot(w_ref[...], x_ref[...], preferred_element_type=jnp.float32)
    acc = acc + b_ref[0]
    o_ref[...] = jnp.tanh(acc).astype(o_ref.dtype)


# --------------------- static per-layer plan (host side) -------------------- #

def _plan_layer(n, h, w, cin, cout, k, s, p):
    """Phase-decomposition geometry for one ConvTranspose2d(cin,cout,k,s,p)."""
    lohi = k - 1 - p
    assert lohi >= 0, "padding > kernel_size - 1 is not supported"
    ho = (h - 1) * s + k - 2 * p
    wo = (w - 1) * s + k - 2 * p
    k0 = [(lohi - r) % s for r in range(s)]
    taps = [list(range(k0[r], k, s)) for r in range(s)]
    off = [(r + k0[r] - lohi) // s for r in range(s)]
    lpad = -min(off)
    t_win = max(off[r] + len(taps[r]) for r in range(s)) - min(off)
    qh = -(-ho // s)
    qw = -(-wo // s)
    rpad_h = qh + t_win - 1 - lpad - h
    rpad_w = qw + t_win - 1 - lpad - w
    assert lpad >= 0 and rpad_h >= 0 and rpad_w >= 0
    m = n * qh * qw
    return dict(n=n, h=h, w=w, cin=cin, cout=cout, k=k, s=s, p=p,
                ho=ho, wo=wo, k0=k0, taps=taps, off=off, lpad=lpad,
                t_win=t_win, qh=qh, qw=qw, rpad_h=rpad_h, rpad_w=rpad_w,
                m=m, m_pad=_round_up(m, 16), m_lane=_round_up(m, 128),
                kd=t_win * t_win * cin,
                fo=s * s * cout, fp=_round_up(s * s * cout, 128))


# -------------------- host-side packing (numpy, done once) ------------------ #

def _pack_weight(plan, weight, bias):
    """Phase-packed GEMM weight (Kd, Fp) and bias (1, Fp), numpy f32."""
    s, cin, cout = plan["s"], plan["cin"], plan["cout"]
    t, lpad = plan["t_win"], plan["lpad"]
    fo, fp, kd = plan["fo"], plan["fp"], plan["kd"]
    wf = np.flip(np.asarray(weight, np.float32), axis=(2, 3))
    wf = wf.transpose(2, 3, 0, 1)                       # (K, K, Cin, Cout)
    wpack = np.zeros((t, t, cin, s, s, cout), np.float32)
    for rh in range(s):
        for jh, kfh in enumerate(plan["taps"][rh]):
            th = plan["off"][rh] + jh + lpad
            for rw in range(s):
                for jw, kfw in enumerate(plan["taps"][rw]):
                    tw = plan["off"][rw] + jw + lpad
                    wpack[th, tw, :, rh, rw, :] = wf[kfh, kfw]
    w2d = np.zeros((kd, fp), np.float32)
    w2d[:, :fo] = wpack.reshape(kd, fo)
    b = np.zeros((1, fp), np.float32)
    b[0, :fo] = np.tile(np.asarray(bias, np.float32), s * s)
    return w2d, b


def _pack_weight_T(plan, weight, bias):
    """Transposed packed weight (8, Kd) for the final (cout == 1) layer."""
    w2d, _ = _pack_weight(plan, weight, bias)
    fo = plan["fo"]
    wt = np.zeros((8, plan["kd"]), np.float32)
    wt[:fo, :] = w2d[:, :fo].T
    b_scalar = np.asarray(bias, np.float32).reshape(-1)[:1]   # (1,)
    return wt, b_scalar


def _bn_constants(plan, gamma, beta):
    """Validity mask, phase-fold matrix and packed BN affine (numpy f32)."""
    s, cout = plan["s"], plan["cout"]
    qh, qw, ho, wo = plan["qh"], plan["qw"], plan["ho"], plan["wo"]
    n, m, m_pad = plan["n"], plan["m"], plan["m_pad"]
    fo, fp = plan["fo"], plan["fp"]

    rows = np.arange(m_pad)
    qhi = (rows // qw) % qh
    qwi = rows % qw
    row_ok = rows < m
    cols = np.arange(fp)
    rh = (cols // (s * cout)) % s
    rw = (cols // cout) % s
    col_ok = cols < fo
    mask = (row_ok[:, None] & col_ok[None, :]
            & (rh[None, :] + s * qhi[:, None] < ho)
            & (rw[None, :] + s * qwi[:, None] < wo)).astype(np.float32)

    ci = cols % cout
    fold = (col_ok[:, None] & col_ok[None, :]
            & (ci[:, None] == ci[None, :])).astype(np.float32)

    gpk = np.zeros((1, fp), np.float32)
    gpk[0, :fo] = np.tile(np.asarray(gamma, np.float32), s * s)
    bpk = np.zeros((1, fp), np.float32)
    bpk[0, :fo] = np.tile(np.asarray(beta, np.float32), s * s)
    inv_n = 1.0 / float(n * ho * wo)
    return mask, fold, gpk, bpk, inv_n


# ------------------------------ layer wrappers ------------------------------ #

def _final_num_tiles(m_lane):
    """2 lane tiles on dual-TensorCore (v7x-class) chips, 1 elsewhere."""
    try:
        kind = jax.devices()[0].device_kind.lower()
    except Exception:
        return 1
    if ("v7" in kind or "7x" in kind) and m_lane % 256 == 0:
        return 2
    return 1


def deconv_bn_relu(plan, pk, xcol):
    m_pad, kd, fp = plan["m_pad"], plan["kd"], plan["fp"]
    kernel = functools.partial(_deconv_bn_relu_kernel, inv_n=plan["inv_n"])
    return pl.pallas_call(
        kernel,
        out_shape=jax.ShapeDtypeStruct((m_pad, fp), jnp.bfloat16),
        grid=(1,),
        in_specs=[
            pl.BlockSpec((m_pad, kd), lambda i: (0, 0)),
            pl.BlockSpec((kd, fp), lambda i: (0, 0)),
            pl.BlockSpec((1, fp), lambda i: (0, 0)),
            pl.BlockSpec((m_pad, fp), lambda i: (0, 0)),
            pl.BlockSpec((fp, fp), lambda i: (0, 0)),
            pl.BlockSpec((1, fp), lambda i: (0, 0)),
            pl.BlockSpec((1, fp), lambda i: (0, 0)),
        ],
        out_specs=pl.BlockSpec((m_pad, fp), lambda i: (0, 0)),
        compiler_params=pltpu.CompilerParams(
            dimension_semantics=("arbitrary",),
            vmem_limit_bytes=VMEM_LIMIT),
    )(xcol, pk["w2d"], pk["b"], pk["mask"], pk["fold"], pk["gamma"], pk["beta"])


def deconv_tanh(plan, pk, xcol_t):
    kd, m_lane = plan["kd"], plan["m_lane"]
    tiles = _final_num_tiles(m_lane)
    tn = m_lane // tiles
    return pl.pallas_call(
        _deconv_tanh_kernel,
        out_shape=jax.ShapeDtypeStruct((8, m_lane), jnp.bfloat16),
        grid=(tiles,),
        in_specs=[
            pl.BlockSpec((8, kd), lambda i: (0, 0)),
            pl.BlockSpec((kd, tn), lambda i: (0, i)),
            pl.BlockSpec(memory_space=pltpu.MemorySpace.SMEM),
        ],
        out_specs=pl.BlockSpec((8, tn), lambda i: (0, i)),
        compiler_params=pltpu.CompilerParams(
            dimension_semantics=("parallel",),
            vmem_limit_bytes=VMEM_LIMIT),
    )(pk["wT"], xcol_t, pk["b"])


# ------------------------------- XLA-side glue ------------------------------ #

def _im2col(plan, x_nhwc):
    """(N,H,W,Cin) bf16 -> (M_pad, Kd) bf16; rows (n,qh,qw), cols (tap,cin)."""
    t, lpad, qh, qw = plan["t_win"], plan["lpad"], plan["qh"], plan["qw"]
    xp = jnp.pad(x_nhwc, ((0, 0), (lpad, plan["rpad_h"]),
                          (lpad, plan["rpad_w"]), (0, 0)))
    cols = [xp[:, th:th + qh, tw:tw + qw, :]
            for th in range(t) for tw in range(t)]
    xcol = jnp.stack(cols, axis=3).reshape(plan["m"], plan["kd"])
    return jnp.pad(xcol, ((0, plan["m_pad"] - plan["m"]), (0, 0)))


def _im2col_T(plan, x_nhwc):
    """Transposed im2col for the final layer: (Kd, M_lane) bf16 (lanes = M)."""
    t, lpad, qh, qw = plan["t_win"], plan["lpad"], plan["qh"], plan["qw"]
    cin = plan["cin"]
    xp = jnp.pad(x_nhwc, ((0, 0), (lpad, plan["rpad_h"]),
                          (lpad, plan["rpad_w"]), (0, 0)))
    xp = jnp.transpose(xp, (3, 0, 1, 2))                # (Cin, N, Hp, Wp)
    cols = [xp[:, :, th:th + qh, tw:tw + qw].reshape(cin, plan["m"])
            for th in range(t) for tw in range(t)]
    xt = jnp.concatenate(cols, axis=0)                  # (Kd, M)
    return jnp.pad(xt, ((0, 0), (0, plan["m_lane"] - plan["m"])))


def _depth_to_space(plan, y_packed):
    """Packed (M_pad, Fp) output -> (N, Ho, Wo, Cout): interleave phases, crop."""
    n, s, cout = plan["n"], plan["s"], plan["cout"]
    qh, qw = plan["qh"], plan["qw"]
    y = y_packed[:plan["m"], :plan["fo"]].reshape(n, qh, qw, s, s, cout)
    y = y.transpose(0, 1, 3, 2, 4, 5).reshape(n, s * qh, s * qw, cout)
    return y[:, :plan["ho"], :plan["wo"], :]


def _depth_to_space_T(plan, y_t):
    """Transposed packed (8, M_lane) output -> (N, Ho, Wo, Cout)."""
    n, s, cout = plan["n"], plan["s"], plan["cout"]
    qh, qw = plan["qh"], plan["qw"]
    y = y_t[:plan["fo"], :plan["m"]].reshape(s, s, cout, n, qh, qw)
    y = y.transpose(3, 4, 0, 5, 1, 2).reshape(n, s * qh, s * qw, cout)
    return y[:, :plan["ho"], :plan["wo"], :]


# ----------------------------- Generator module ----------------------------- #

def generator_configs(d):
    # (Cin, Cout, K, stride, padding) for deconv1..deconv5
    return [
        (100,   d * 8, 3, 1, 0),
        (d * 8, d * 4, 5, 2, 1),
        (d * 4, d * 2, 5, 2, 1),
        (d * 2, d,     5, 2, 1),
        (d,     1,     5, 2, 1),
    ]


def init_generator_params(key, d=16, mean=0.0, std=0.02):
    """Deterministic init mirroring normal_init(m, 0.0, 0.02) + default BN init."""
    cfgs = generator_configs(d)
    params = []
    for i, (cin, cout, k, _, _) in enumerate(cfgs):
        key, sub = jax.random.split(key)
        layer = {
            "w": mean + std * jax.random.normal(sub, (cin, cout, k, k), jnp.float32),
            "b": jnp.zeros((cout,), jnp.float32),
        }
        if i < len(cfgs) - 1:  # BN after deconv1..deconv4
            layer["gamma"] = jnp.ones((cout,), jnp.float32)
            layer["beta"] = jnp.zeros((cout,), jnp.float32)
        params.append(layer)
    return params, cfgs


def build_generator(params, cfgs, batch):
    """Static plans + device-resident packed constants (hoisted out of forward)."""
    plans, packed = [], []
    h = w = 1
    n_layers = len(cfgs)
    for i, ((cin, cout, k, s, p), layer) in enumerate(zip(cfgs, params)):
        plan = _plan_layer(batch, h, w, cin, cout, k, s, p)
        if i == n_layers - 1:
            wt, b = _pack_weight_T(plan, layer["w"], layer["b"])
            packed.append({"wT": jnp.asarray(wt, jnp.bfloat16),
                           "b": jnp.asarray(b, jnp.float32)})
        else:
            w2d, b = _pack_weight(plan, layer["w"], layer["b"])
            mask, fold, gpk, bpk, inv_n = _bn_constants(
                plan, layer["gamma"], layer["beta"])
            plan["inv_n"] = inv_n
            packed.append({"w2d": jnp.asarray(w2d, jnp.bfloat16),
                           "b": jnp.asarray(b, jnp.float32),
                           "mask": jnp.asarray(mask, jnp.float32),
                           "fold": jnp.asarray(fold, jnp.float32),
                           "gamma": jnp.asarray(gpk, jnp.float32),
                           "beta": jnp.asarray(bpk, jnp.float32)})
        plans.append(plan)
        h, w = plan["ho"], plan["wo"]
    return plans, packed


def generator_forward(plans, packed, x_nchw):
    x = jnp.transpose(x_nchw, (0, 2, 3, 1)).astype(jnp.bfloat16)  # NCHW -> NHWC
    n_layers = len(plans)
    for i, (plan, pk) in enumerate(zip(plans, packed)):
        if i < n_layers - 1:
            y = deconv_bn_relu(plan, pk, _im2col(plan, x))
            x = _depth_to_space(plan, y)            # bf16, feeds next im2col
        else:
            y = deconv_tanh(plan, pk, _im2col_T(plan, x))
            x = _depth_to_space_T(plan, y)
    return jnp.transpose(x, (0, 3, 1, 2)).astype(jnp.float32)     # NHWC -> NCHW


# --------------------------- pure-XLA f32 reference -------------------------- #

def _ref_generator_forward(cfgs, params, x_nchw):
    x = jnp.transpose(x_nchw, (0, 2, 3, 1)).astype(jnp.float32)
    n_layers = len(cfgs)
    for idx, ((_, _, k, s, p), layer) in enumerate(zip(cfgs, params)):
        lo = k - 1 - p
        wf = jnp.flip(layer["w"], axis=(2, 3)).transpose(2, 3, 0, 1)  # HWIO
        x = jax.lax.conv_general_dilated(
            x, wf, window_strides=(1, 1), padding=[(lo, lo), (lo, lo)],
            lhs_dilation=(s, s), dimension_numbers=("NHWC", "HWIO", "NHWC"))
        x = x + layer["b"]
        if idx < n_layers - 1:
            mean = jnp.mean(x, axis=(0, 1, 2), keepdims=True)
            var = jnp.mean(jnp.square(x - mean), axis=(0, 1, 2), keepdims=True)
            x = (x - mean) * jax.lax.rsqrt(var + BN_EPS) * layer["gamma"] + layer["beta"]
            x = jnp.maximum(x, 0.0)
        else:
            x = jnp.tanh(x)
    return jnp.transpose(x, (0, 3, 1, 2))


# ----------------------------------- main ----------------------------------- #

if __name__ == "__main__":
    key = jax.random.PRNGKey(0)
    k_param, k_in = jax.random.split(key)

    d = 16        # small Generator(d=16): identical architecture, scaled widths
    batch = 2
    params, cfgs = init_generator_params(k_param, d=d)

    # DCGAN latent input, PyTorch layout: (batch, 100, 1, 1)
    z = jax.random.normal(k_in, (batch, 100, 1, 1), jnp.float32)

    # All packing is hoisted out of the forward (host-side numpy, done once).
    plans, packed = build_generator(params, cfgs, batch)
    fwd = jax.jit(functools.partial(generator_forward, plans))
    out = jax.block_until_ready(fwd(packed, z))

    # Spatial progression: 1 -> 3 -> 7 -> 15 -> 31 -> 63
    assert out.shape == (batch, 1, 63, 63), out.shape
    assert bool(jnp.all(jnp.isfinite(out)))
    assert bool(jnp.all(jnp.abs(out) <= 1.0 + 1e-6))    # tanh output range

    # Self-check vs a pure-XLA f32 reference with perturbed params so that
    # bias/gamma/beta packing or phase-mask bugs would be visible (tolerance
    # absorbs bf16 MXU rounding through 5 layers).
    leaves, treedef = jax.tree_util.tree_flatten(params)
    keys = jax.random.split(jax.random.PRNGKey(1), len(leaves))
    chk_params = jax.tree_util.tree_unflatten(
        treedef,
        [l + 0.05 * jax.random.normal(kk, l.shape, jnp.float32)
         for l, kk in zip(leaves, keys)])
    _, chk_packed = build_generator(chk_params, cfgs, batch)
    got = jax.block_until_ready(fwd(chk_packed, z))
    ref_fwd = jax.jit(functools.partial(_ref_generator_forward, cfgs))
    want = jax.block_until_ready(ref_fwd(chk_params, z))
    max_err = float(jnp.max(jnp.abs(got - want)))
    assert max_err < 2e-1, f"mismatch vs reference: max abs err {max_err}"

    print("KERNEL_OK")
</pallas_src>

<mosaic_0001>
module attributes {stable_mosaic.version = 11 : i64} {
  func.func @_deconv_bn_relu_kernel(%arg0: i32, %arg1: memref<32x900xbf16, #tpu.memory_space<vmem>>, %arg2: memref<900x128xbf16, #tpu.memory_space<vmem>>, %arg3: memref<1x128xf32, #tpu.memory_space<vmem>>, %arg4: memref<32x128xf32, #tpu.memory_space<vmem>>, %arg5: memref<128x128xf32, #tpu.memory_space<vmem>>, %arg6: memref<1x128xf32, #tpu.memory_space<vmem>>, %arg7: memref<1x128xf32, #tpu.memory_space<vmem>>, %arg8: memref<32x128xbf16, #tpu.memory_space<vmem>>) attributes {dimension_semantics = [#tpu.dimension_semantics<arbitrary>], iteration_bounds = array<i64: 1>, scalar_prefetch = 0 : i64, scratch_operands = 0 : i64, tpu.core_type = #tpu.core_type<tc>, window_params = [{pipeline_mode = #tpu.pipeline_mode<synchronous>, transform_indices = @transform_0, window_bounds = array<i64: 32, 900>}, {pipeline_mode = #tpu.pipeline_mode<synchronous>, transform_indices = @transform_1, window_bounds = array<i64: 900, 128>}, {pipeline_mode = #tpu.pipeline_mode<synchronous>, transform_indices = @transform_2, window_bounds = array<i64: 1, 128>}, {pipeline_mode = #tpu.pipeline_mode<synchronous>, transform_indices = @transform_3, window_bounds = array<i64: 32, 128>}, {pipeline_mode = #tpu.pipeline_mode<synchronous>, transform_indices = @transform_4, window_bounds = array<i64: 128, 128>}, {pipeline_mode = #tpu.pipeline_mode<synchronous>, transform_indices = @transform_5, window_bounds = array<i64: 1, 128>}, {pipeline_mode = #tpu.pipeline_mode<synchronous>, transform_indices = @transform_6, window_bounds = array<i64: 1, 128>}, {pipeline_mode = #tpu.pipeline_mode<synchronous>, transform_indices = @transform_7, window_bounds = array<i64: 32, 128>}]} {
    %c0 = arith.constant 0 : index
    %c0_0 = arith.constant 0 : index
    %0 = vector.load %arg1[%c0, %c0_0] : memref<32x900xbf16, #tpu.memory_space<vmem>>, vector<32x900xbf16>
    %c0_1 = arith.constant 0 : index
    %c0_2 = arith.constant 0 : index
    %1 = vector.load %arg2[%c0_1, %c0_2] : memref<900x128xbf16, #tpu.memory_space<vmem>>, vector<900x128xbf16>
    %cst = arith.constant dense<0.000000e+00> : vector<32x128xf32>
    %2 = tpu.matmul %0, %1, %cst {dimension_numbers = #tpu.dot_dimension_numbers<[1], [0], [0], [1], [0, 0, 1, 1], [], []>} : vector<32x900xbf16>, vector<900x128xbf16>, vector<32x128xf32> -> vector<32x128xf32>
    %c0_3 = arith.constant 0 : index
    %c0_4 = arith.constant 0 : index
    %3 = vector.load %arg3[%c0_3, %c0_4] : memref<1x128xf32, #tpu.memory_space<vmem>>, vector<1x128xf32>
    %4 = vector.broadcast %3 : vector<1x128xf32> to vector<32x128xf32>
    %5 = arith.addf %2, %4 : vector<32x128xf32>
    %c0_5 = arith.constant 0 : index
    %c0_6 = arith.constant 0 : index
    %6 = vector.load %arg4[%c0_5, %c0_6] : memref<32x128xf32, #tpu.memory_space<vmem>>, vector<32x128xf32>
    %c0_7 = arith.constant 0 : index
    %c0_8 = arith.constant 0 : index
    %7 = vector.load %arg5[%c0_7, %c0_8] : memref<128x128xf32, #tpu.memory_space<vmem>>, vector<128x128xf32>
    %8 = arith.mulf %5, %6 : vector<32x128xf32>
    %cst_9 = arith.constant dense<0.000000e+00> : vector<32x128xf32>
    %9 = tpu.matmul %8, %7, %cst_9 {dimension_numbers = #tpu.dot_dimension_numbers<[1], [0], [0], [1], [0, 0, 1, 1], [], []>} : vector<32x128xf32>, vector<128x128xf32>, vector<32x128xf32> -> vector<32x128xf32>
    %cst_10 = arith.constant dense<0.000000e+00> : vector<128xf32>
    %10 = vector.multi_reduction <add>, %9, %cst_10 [0] : vector<32x128xf32> to vector<128xf32>
    %11 = vector.shape_cast %10 : vector<128xf32> to vector<1x128xf32>
    %cst_11 = arith.constant 0.055555556 : f32
    %12 = vector.broadcast %cst_11 : f32 to vector<1x128xf32>
    %13 = arith.mulf %11, %12 : vector<1x128xf32>
    %14 = vector.broadcast %13 : vector<1x128xf32> to vector<32x128xf32>
    %15 = arith.subf %5, %14 : vector<32x128xf32>
    %16 = arith.mulf %15, %6 : vector<32x128xf32>
    %17 = arith.mulf %16, %16 : vector<32x128xf32>
    %cst_12 = arith.constant dense<0.000000e+00> : vector<32x128xf32>
    %18 = tpu.matmul %17, %7, %cst_12 {dimension_numbers = #tpu.dot_dimension_numbers<[1], [0], [0], [1], [0, 0, 1, 1], [], []>} : vector<32x128xf32>, vector<128x128xf32>, vector<32x128xf32> -> vector<32x128xf32>
    %cst_13 = arith.constant dense<0.000000e+00> : vector<128xf32>
    %19 = vector.multi_reduction <add>, %18, %cst_13 [0] : vector<32x128xf32> to vector<128xf32>
    %20 = vector.shape_cast %19 : vector<128xf32> to vector<1x128xf32>
    %cst_14 = arith.constant 0.055555556 : f32
    %21 = vector.broadcast %cst_14 : f32 to vector<1x128xf32>
    %22 = arith.mulf %20, %21 : vector<1x128xf32>
    %c0_15 = arith.constant 0 : index
    %c0_16 = arith.constant 0 : index
    %23 = vector.load %arg6[%c0_15, %c0_16] : memref<1x128xf32, #tpu.memory_space<vmem>>, vector<1x128xf32>
    %cst_17 = arith.constant 9.99999974E-6 : f32
    %24 = vector.broadcast %cst_17 : f32 to vector<1x128xf32>
    %25 = arith.addf %22, %24 : vector<1x128xf32>
    %26 = math.rsqrt %25 : vector<1x128xf32>
    %27 = arith.mulf %23, %26 : vector<1x128xf32>
    %28 = vector.broadcast %13 : vector<1x128xf32> to vector<32x128xf32>
    %29 = arith.subf %5, %28 : vector<32x128xf32>
    %30 = vector.broadcast %27 : vector<1x128xf32> to vector<32x128xf32>
    %31 = arith.mulf %29, %30 : vector<32x128xf32>
    %c0_18 = arith.constant 0 : index
    %c0_19 = arith.constant 0 : index
    %32 = vector.load %arg7[%c0_18, %c0_19] : memref<1x128xf32, #tpu.memory_space<vmem>>, vector<1x128xf32>
    %33 = vector.broadcast %32 : vector<1x128xf32> to vector<32x128xf32>
    %34 = arith.addf %31, %33 : vector<32x128xf32>
    %cst_20 = arith.constant 0.000000e+00 : f32
    %35 = vector.broadcast %cst_20 : f32 to vector<32x128xf32>
    %36 = arith.maximumf %34, %35 : vector<32x128xf32>
    %37 = arith.truncf %36 : vector<32x128xf32> to vector<32x128xbf16>
    %c0_21 = arith.constant 0 : index
    %c0_22 = arith.constant 0 : index
    %38 = vector.load %arg8[%c0_21, %c0_22] : memref<32x128xbf16, #tpu.memory_space<vmem>>, vector<32x128xbf16>
    tpu.vector_store %arg8[%c0_21, %c0_22], %37 {strides = array<i32>} : memref<32x128xbf16, #tpu.memory_space<vmem>>, vector<32x128xbf16>,
    return
  }
  func.func @transform_0(%arg0: i32) -> (i32, i32) {
    %c0_i32 = arith.constant 0 : i32
    %c0_i32_0 = arith.constant 0 : i32
    %c0_i32_1 = arith.constant 0 : i32
    return %c0_i32, %c0_i32_0 : i32, i32
  }
  func.func @transform_1(%arg0: i32) -> (i32, i32) {
    %c0_i32 = arith.constant 0 : i32
    %c0_i32_0 = arith.constant 0 : i32
    %c0_i32_1 = arith.constant 0 : i32
    return %c0_i32, %c0_i32_0 : i32, i32
  }
  func.func @transform_2(%arg0: i32) -> (i32, i32) {
    %c0_i32 = arith.constant 0 : i32
    %c0_i32_0 = arith.constant 0 : i32
    %c0_i32_1 = arith.constant 0 : i32
    return %c0_i32, %c0_i32_0 : i32, i32
  }
  func.func @transform_3(%arg0: i32) -> (i32, i32) {
    %c0_i32 = arith.constant 0 : i32
    %c0_i32_0 = arith.constant 0 : i32
    %c0_i32_1 = arith.constant 0 : i32
    return %c0_i32, %c0_i32_0 : i32, i32
  }
  func.func @transform_4(%arg0: i32) -> (i32, i32) {
    %c0_i32 = arith.constant 0 : i32
    %c0_i32_0 = arith.constant 0 : i32
    %c0_i32_1 = arith.constant 0 : i32
    return %c0_i32, %c0_i32_0 : i32, i32
  }
  func.func @transform_5(%arg0: i32) -> (i32, i32) {
    %c0_i32 = arith.constant 0 : i32
    %c0_i32_0 = arith.constant 0 : i32
    %c0_i32_1 = arith.constant 0 : i32
    return %c0_i32, %c0_i32_0 : i32, i32
  }
  func.func @transform_6(%arg0: i32) -> (i32, i32) {
    %c0_i32 = arith.constant 0 : i32
    %c0_i32_0 = arith.constant 0 : i32
    %c0_i32_1 = arith.constant 0 : i32
    return %c0_i32, %c0_i32_0 : i32, i32
  }
  func.func @transform_7(%arg0: i32) -> (i32, i32) {
    %c0_i32 = arith.constant 0 : i32
    %c0_i32_0 = arith.constant 0 : i32
    %c0_i32_1 = arith.constant 0 : i32
    return %c0_i32, %c0_i32_0 : i32, i32
  }
}

module attributes {stable_mosaic.version = 11 : i64} {
  func.func @_deconv_bn_relu_kernel(%arg0: i32, %arg1: memref<32x1152xbf16, #tpu.memory_space<vmem>>, %arg2: memref<1152x256xbf16, #tpu.memory_space<vmem>>, %arg3: memref<1x256xf32, #tpu.memory_space<vmem>>, %arg4: memref<32x256xf32, #tpu.memory_space<vmem>>, %arg5: memref<256x256xf32, #tpu.memory_space<vmem>>, %arg6: memref<1x256xf32, #tpu.memory_space<vmem>>, %arg7: memref<1x256xf32, #tpu.memory_space<vmem>>, %arg8: memref<32x256xbf16, #tpu.memory_space<vmem>>) attributes {dimension_semantics = [#tpu.dimension_semantics<arbitrary>], iteration_bounds = array<i64: 1>, scalar_prefetch = 0 : i64, scratch_operands = 0 : i64, tpu.core_type = #tpu.core_type<tc>, window_params = [{pipeline_mode = #tpu.pipeline_mode<synchronous>, transform_indices = @transform_0, window_bounds = array<i64: 32, 1152>}, {pipeline_mode = #tpu.pipeline_mode<synchronous>, transform_indices = @transform_1, window_bounds = array<i64: 1152, 256>}, {pipeline_mode = #tpu.pipeline_mode<synchronous>, transform_indices = @transform_2, window_bounds = array<i64: 1, 256>}, {pipeline_mode = #tpu.pipeline_mode<synchronous>, transform_indices = @transform_3, window_bounds = array<i64: 32, 256>}, {pipeline_mode = #tpu.pipeline_mode<synchronous>, transform_indices = @transform_4, window_bounds = array<i64: 256, 256>}, {pipeline_mode = #tpu.pipeline_mode<synchronous>, transform_indices = @transform_5, window_bounds = array<i64: 1, 256>}, {pipeline_mode = #tpu.pipeline_mode<synchronous>, transform_indices = @transform_6, window_bounds = array<i64: 1, 256>}, {pipeline_mode = #tpu.pipeline_mode<synchronous>, transform_indices = @transform_7, window_bounds = array<i64: 32, 256>}]} {
    %c0 = arith.constant 0 : index
    %c0_0 = arith.constant 0 : index
    %0 = vector.load %arg1[%c0, %c0_0] : memref<32x1152xbf16, #tpu.memory_space<vmem>>, vector<32x1152xbf16>
    %c0_1 = arith.constant 0 : index
    %c0_2 = arith.constant 0 : index
    %1 = vector.load %arg2[%c0_1, %c0_2] : memref<1152x256xbf16, #tpu.memory_space<vmem>>, vector<1152x256xbf16>
    %cst = arith.constant dense<0.000000e+00> : vector<32x256xf32>
    %2 = tpu.matmul %0, %1, %cst {dimension_numbers = #tpu.dot_dimension_numbers<[1], [0], [0], [1], [0, 0, 1, 1], [], []>} : vector<32x1152xbf16>, vector<1152x256xbf16>, vector<32x256xf32> -> vector<32x256xf32>
    %c0_3 = arith.constant 0 : index
    %c0_4 = arith.constant 0 : index
    %3 = vector.load %arg3[%c0_3, %c0_4] : memref<1x256xf32, #tpu.memory_space<vmem>>, vector<1x256xf32>
    %4 = vector.broadcast %3 : vector<1x256xf32> to vector<32x256xf32>
    %5 = arith.addf %2, %4 : vector<32x256xf32>
    %c0_5 = arith.constant 0 : index
    %c0_6 = arith.constant 0 : index
    %6 = vector.load %arg4[%c0_5, %c0_6] : memref<32x256xf32, #tpu.memory_space<vmem>>, vector<32x256xf32>
    %c0_7 = arith.constant 0 : index
    %c0_8 = arith.constant 0 : index
    %7 = vector.load %arg5[%c0_7, %c0_8] : memref<256x256xf32, #tpu.memory_space<vmem>>, vector<256x256xf32>
    %8 = arith.mulf %5, %6 : vector<32x256xf32>
    %cst_9 = arith.constant dense<0.000000e+00> : vector<32x256xf32>
    %9 = tpu.matmul %8, %7, %cst_9 {dimension_numbers = #tpu.dot_dimension_numbers<[1], [0], [0], [1], [0, 0, 1, 1], [], []>} : vector<32x256xf32>, vector<256x256xf32>, vector<32x256xf32> -> vector<32x256xf32>
    %cst_10 = arith.constant dense<0.000000e+00> : vector<256xf32>
    %10 = vector.multi_reduction <add>, %9, %cst_10 [0] : vector<32x256xf32> to vector<256xf32>
    %11 = vector.shape_cast %10 : vector<256xf32> to vector<1x256xf32>
    %cst_11 = arith.constant 0.0102040814 : f32
    %12 = vector.broadcast %cst_11 : f32 to vector<1x256xf32>
    %13 = arith.mulf %11, %12 : vector<1x256xf32>
    %14 = vector.broadcast %13 : vector<1x256xf32> to vector<32x256xf32>
    %15 = arith.subf %5, %14 : vector<32x256xf32>
    %16 = arith.mulf %15, %6 : vector<32x256xf32>
    %17 = arith.mulf %16, %16 : vector<32x256xf32>
    %cst_12 = arith.constant dense<0.000000e+00> : vector<32x256xf32>
    %18 = tpu.matmul %17, %7, %cst_12 {dimension_numbers = #tpu.dot_dimension_numbers<[1], [0], [0], [1], [0, 0, 1, 1], [], []>} : vector<32x256xf32>, vector<256x256xf32>, vector<32x256xf32> -> vector<32x256xf32>
    %cst_13 = arith.constant dense<0.000000e+00> : vector<256xf32>
    %19 = vector.multi_reduction <add>, %18, %cst_13 [0] : vector<32x256xf32> to vector<256xf32>
    %20 = vector.shape_cast %19 : vector<256xf32> to vector<1x256xf32>
    %cst_14 = arith.constant 0.0102040814 : f32
    %21 = vector.broadcast %cst_14 : f32 to vector<1x256xf32>
    %22 = arith.mulf %20, %21 : vector<1x256xf32>
    %c0_15 = arith.constant 0 : index
    %c0_16 = arith.constant 0 : index
    %23 = vector.load %arg6[%c0_15, %c0_16] : memref<1x256xf32, #tpu.memory_space<vmem>>, vector<1x256xf32>
    %cst_17 = arith.constant 9.99999974E-6 : f32
    %24 = vector.broadcast %cst_17 : f32 to vector<1x256xf32>
    %25 = arith.addf %22, %24 : vector<1x256xf32>
    %26 = math.rsqrt %25 : vector<1x256xf32>
    %27 = arith.mulf %23, %26 : vector<1x256xf32>
    %28 = vector.broadcast %13 : vector<1x256xf32> to vector<32x256xf32>
    %29 = arith.subf %5, %28 : vector<32x256xf32>
    %30 = vector.broadcast %27 : vector<1x256xf32> to vector<32x256xf32>
    %31 = arith.mulf %29, %30 : vector<32x256xf32>
    %c0_18 = arith.constant 0 : index
    %c0_19 = arith.constant 0 : index
    %32 = vector.load %arg7[%c0_18, %c0_19] : memref<1x256xf32, #tpu.memory_space<vmem>>, vector<1x256xf32>
    %33 = vector.broadcast %32 : vector<1x256xf32> to vector<32x256xf32>
    %34 = arith.addf %31, %33 : vector<32x256xf32>
    %cst_20 = arith.constant 0.000000e+00 : f32
    %35 = vector.broadcast %cst_20 : f32 to vector<32x256xf32>
    %36 = arith.maximumf %34, %35 : vector<32x256xf32>
    %37 = arith.truncf %36 : vector<32x256xf32> to vector<32x256xbf16>
    %c0_21 = arith.constant 0 : index
    %c0_22 = arith.constant 0 : index
    %38 = vector.load %arg8[%c0_21, %c0_22] : memref<32x256xbf16, #tpu.memory_space<vmem>>, vector<32x256xbf16>
    tpu.vector_store %arg8[%c0_21, %c0_22], %37 {strides = array<i32>} : memref<32x256xbf16, #tpu.memory_space<vmem>>, vector<32x256xbf16>,
    return
  }
  func.func @transform_0(%arg0: i32) -> (i32, i32) {
    %c0_i32 = arith.constant 0 : i32
    %c0_i32_0 = arith.constant 0 : i32
    %c0_i32_1 = arith.constant 0 : i32
    return %c0_i32, %c0_i32_0 : i32, i32
  }
  func.func @transform_1(%arg0: i32) -> (i32, i32) {
    %c0_i32 = arith.constant 0 : i32
    %c0_i32_0 = arith.constant 0 : i32
    %c0_i32_1 = arith.constant 0 : i32
    return %c0_i32, %c0_i32_0 : i32, i32
  }
  func.func @transform_2(%arg0: i32) -> (i32, i32) {
    %c0_i32 = arith.constant 0 : i32
    %c0_i32_0 = arith.constant 0 : i32
    %c0_i32_1 = arith.constant 0 : i32
    return %c0_i32, %c0_i32_0 : i32, i32
  }
  func.func @transform_3(%arg0: i32) -> (i32, i32) {
    %c0_i32 = arith.constant 0 : i32
    %c0_i32_0 = arith.constant 0 : i32
    %c0_i32_1 = arith.constant 0 : i32
    return %c0_i32, %c0_i32_0 : i32, i32
  }
  func.func @transform_4(%arg0: i32) -> (i32, i32) {
    %c0_i32 = arith.constant 0 : i32
    %c0_i32_0 = arith.constant 0 : i32
    %c0_i32_1 = arith.constant 0 : i32
    return %c0_i32, %c0_i32_0 : i32, i32
  }
  func.func @transform_5(%arg0: i32) -> (i32, i32) {
    %c0_i32 = arith.constant 0 : i32
    %c0_i32_0 = arith.constant 0 : i32
    %c0_i32_1 = arith.constant 0 : i32
    return %c0_i32, %c0_i32_0 : i32, i32
  }
  func.func @transform_6(%arg0: i32) -> (i32, i32) {
    %c0_i32 = arith.constant 0 : i32
    %c0_i32_0 = arith.constant 0 : i32
    %c0_i32_1 = arith.constant 0 : i32
    return %c0_i32, %c0_i32_0 : i32, i32
  }
  func.func @transform_7(%arg0: i32) -> (i32, i32) {
    %c0_i32 = arith.constant 0 : i32
    %c0_i32_0 = arith.constant 0 : i32
    %c0_i32_1 = arith.constant 0 : i32
    return %c0_i32, %c0_i32_0 : i32, i32
  }
}

module attributes {stable_mosaic.version = 11 : i64} {
  func.func @_deconv_bn_relu_kernel(%arg0: i32, %arg1: memref<128x576xbf16, #tpu.memory_space<vmem>>, %arg2: memref<576x128xbf16, #tpu.memory_space<vmem>>, %arg3: memref<1x128xf32, #tpu.memory_space<vmem>>, %arg4: memref<128x128xf32, #tpu.memory_space<vmem>>, %arg5: memref<128x128xf32, #tpu.memory_space<vmem>>, %arg6: memref<1x128xf32, #tpu.memory_space<vmem>>, %arg7: memref<1x128xf32, #tpu.memory_space<vmem>>, %arg8: memref<128x128xbf16, #tpu.memory_space<vmem>>) attributes {dimension_semantics = [#tpu.dimension_semantics<arbitrary>], iteration_bounds = array<i64: 1>, scalar_prefetch = 0 : i64, scratch_operands = 0 : i64, tpu.core_type = #tpu.core_type<tc>, window_params = [{pipeline_mode = #tpu.pipeline_mode<synchronous>, transform_indices = @transform_0, window_bounds = array<i64: 128, 576>}, {pipeline_mode = #tpu.pipeline_mode<synchronous>, transform_indices = @transform_1, window_bounds = array<i64: 576, 128>}, {pipeline_mode = #tpu.pipeline_mode<synchronous>, transform_indices = @transform_2, window_bounds = array<i64: 1, 128>}, {pipeline_mode = #tpu.pipeline_mode<synchronous>, transform_indices = @transform_3, window_bounds = array<i64: 128, 128>}, {pipeline_mode = #tpu.pipeline_mode<synchronous>, transform_indices = @transform_4, window_bounds = array<i64: 128, 128>}, {pipeline_mode = #tpu.pipeline_mode<synchronous>, transform_indices = @transform_5, window_bounds = array<i64: 1, 128>}, {pipeline_mode = #tpu.pipeline_mode<synchronous>, transform_indices = @transform_6, window_bounds = array<i64: 1, 128>}, {pipeline_mode = #tpu.pipeline_mode<synchronous>, transform_indices = @transform_7, window_bounds = array<i64: 128, 128>}]} {
    %c0 = arith.constant 0 : index
    %c0_0 = arith.constant 0 : index
    %0 = vector.load %arg1[%c0, %c0_0] : memref<128x576xbf16, #tpu.memory_space<vmem>>, vector<128x576xbf16>
    %c0_1 = arith.constant 0 : index
    %c0_2 = arith.constant 0 : index
    %1 = vector.load %arg2[%c0_1, %c0_2] : memref<576x128xbf16, #tpu.memory_space<vmem>>, vector<576x128xbf16>
    %cst = arith.constant dense<0.000000e+00> : vector<128x128xf32>
    %2 = tpu.matmul %0, %1, %cst {dimension_numbers = #tpu.dot_dimension_numbers<[1], [0], [0], [1], [0, 0, 1, 1], [], []>} : vector<128x576xbf16>, vector<576x128xbf16>, vector<128x128xf32> -> vector<128x128xf32>
    %c0_3 = arith.constant 0 : index
    %c0_4 = arith.constant 0 : index
    %3 = vector.load %arg3[%c0_3, %c0_4] : memref<1x128xf32, #tpu.memory_space<vmem>>, vector<1x128xf32>
    %4 = vector.broadcast %3 : vector<1x128xf32> to vector<128x128xf32>
    %5 = arith.addf %2, %4 : vector<128x128xf32>
    %c0_5 = arith.constant 0 : index
    %c0_6 = arith.constant 0 : index
    %6 = vector.load %arg4[%c0_5, %c0_6] : memref<128x128xf32, #tpu.memory_space<vmem>>, vector<128x128xf32>
    %c0_7 = arith.constant 0 : index
    %c0_8 = arith.constant 0 : index
    %7 = vector.load %arg5[%c0_7, %c0_8] : memref<128x128xf32, #tpu.memory_space<vmem>>, vector<128x128xf32>
    %8 = arith.mulf %5, %6 : vector<128x128xf32>
    %cst_9 = arith.constant dense<0.000000e+00> : vector<128x128xf32>
    %9 = tpu.matmul %8, %7, %cst_9 {dimension_numbers = #tpu.dot_dimension_numbers<[1], [0], [0], [1], [0, 0, 1, 1], [], []>} : vector<128x128xf32>, vector<128x128xf32>, vector<128x128xf32> -> vector<128x128xf32>
    %cst_10 = arith.constant dense<0.000000e+00> : vector<128xf32>
    %10 = vector.multi_reduction <add>, %9, %cst_10 [0] : vector<128x128xf32> to vector<128xf32>
    %11 = vector.shape_cast %10 : vector<128xf32> to vector<1x128xf32>
    %cst_11 = arith.constant 0.00222222228 : f32
    %12 = vector.broadcast %cst_11 : f32 to vector<1x128xf32>
    %13 = arith.mulf %11, %12 : vector<1x128xf32>
    %14 = vector.broadcast %13 : vector<1x128xf32> to vector<128x128xf32>
    %15 = arith.subf %5, %14 : vector<128x128xf32>
    %16 = arith.mulf %15, %6 : vector<128x128xf32>
    %17 = arith.mulf %16, %16 : vector<128x128xf32>
    %cst_12 = arith.constant dense<0.000000e+00> : vector<128x128xf32>
    %18 = tpu.matmul %17, %7, %cst_12 {dimension_numbers = #tpu.dot_dimension_numbers<[1], [0], [0], [1], [0, 0, 1, 1], [], []>} : vector<128x128xf32>, vector<128x128xf32>, vector<128x128xf32> -> vector<128x128xf32>
    %cst_13 = arith.constant dense<0.000000e+00> : vector<128xf32>
    %19 = vector.multi_reduction <add>, %18, %cst_13 [0] : vector<128x128xf32> to vector<128xf32>
    %20 = vector.shape_cast %19 : vector<128xf32> to vector<1x128xf32>
    %cst_14 = arith.constant 0.00222222228 : f32
    %21 = vector.broadcast %cst_14 : f32 to vector<1x128xf32>
    %22 = arith.mulf %20, %21 : vector<1x128xf32>
    %c0_15 = arith.constant 0 : index
    %c0_16 = arith.constant 0 : index
    %23 = vector.load %arg6[%c0_15, %c0_16] : memref<1x128xf32, #tpu.memory_space<vmem>>, vector<1x128xf32>
    %cst_17 = arith.constant 9.99999974E-6 : f32
    %24 = vector.broadcast %cst_17 : f32 to vector<1x128xf32>
    %25 = arith.addf %22, %24 : vector<1x128xf32>
    %26 = math.rsqrt %25 : vector<1x128xf32>
    %27 = arith.mulf %23, %26 : vector<1x128xf32>
    %28 = vector.broadcast %13 : vector<1x128xf32> to vector<128x128xf32>
    %29 = arith.subf %5, %28 : vector<128x128xf32>
    %30 = vector.broadcast %27 : vector<1x128xf32> to vector<128x128xf32>
    %31 = arith.mulf %29, %30 : vector<128x128xf32>
    %c0_18 = arith.constant 0 : index
    %c0_19 = arith.constant 0 : index
    %32 = vector.load %arg7[%c0_18, %c0_19] : memref<1x128xf32, #tpu.memory_space<vmem>>, vector<1x128xf32>
    %33 = vector.broadcast %32 : vector<1x128xf32> to vector<128x128xf32>
    %34 = arith.addf %31, %33 : vector<128x128xf32>
    %cst_20 = arith.constant 0.000000e+00 : f32
    %35 = vector.broadcast %cst_20 : f32 to vector<128x128xf32>
    %36 = arith.maximumf %34, %35 : vector<128x128xf32>
    %37 = arith.truncf %36 : vector<128x128xf32> to vector<128x128xbf16>
    %c0_21 = arith.constant 0 : index
    %c0_22 = arith.constant 0 : index
    %38 = vector.load %arg8[%c0_21, %c0_22] : memref<128x128xbf16, #tpu.memory_space<vmem>>, vector<128x128xbf16>
    tpu.vector_store %arg8[%c0_21, %c0_22], %37 {strides = array<i32>} : memref<128x128xbf16, #tpu.memory_space<vmem>>, vector<128x128xbf16>,
    return
  }
  func.func @transform_0(%arg0: i32) -> (i32, i32) {
    %c0_i32 = arith.constant 0 : i32
    %c0_i32_0 = arith.constant 0 : i32
    %c0_i32_1 = arith.constant 0 : i32
    return %c0_i32, %c0_i32_0 : i32, i32
  }
  func.func @transform_1(%arg0: i32) -> (i32, i32) {
    %c0_i32 = arith.constant 0 : i32
    %c0_i32_0 = arith.constant 0 : i32
    %c0_i32_1 = arith.constant 0 : i32
    return %c0_i32, %c0_i32_0 : i32, i32
  }
  func.func @transform_2(%arg0: i32) -> (i32, i32) {
    %c0_i32 = arith.constant 0 : i32
    %c0_i32_0 = arith.constant 0 : i32
    %c0_i32_1 = arith.constant 0 : i32
    return %c0_i32, %c0_i32_0 : i32, i32
  }
  func.func @transform_3(%arg0: i32) -> (i32, i32) {
    %c0_i32 = arith.constant 0 : i32
    %c0_i32_0 = arith.constant 0 : i32
    %c0_i32_1 = arith.constant 0 : i32
    return %c0_i32, %c0_i32_0 : i32, i32
  }
  func.func @transform_4(%arg0: i32) -> (i32, i32) {
    %c0_i32 = arith.constant 0 : i32
    %c0_i32_0 = arith.constant 0 : i32
    %c0_i32_1 = arith.constant 0 : i32
    return %c0_i32, %c0_i32_0 : i32, i32
  }
  func.func @transform_5(%arg0: i32) -> (i32, i32) {
    %c0_i32 = arith.constant 0 : i32
    %c0_i32_0 = arith.constant 0 : i32
    %c0_i32_1 = arith.constant 0 : i32
    return %c0_i32, %c0_i32_0 : i32, i32
  }
  func.func @transform_6(%arg0: i32) -> (i32, i32) {
    %c0_i32 = arith.constant 0 : i32
    %c0_i32_0 = arith.constant 0 : i32
    %c0_i32_1 = arith.constant 0 : i32
    return %c0_i32, %c0_i32_0 : i32, i32
  }
  func.func @transform_7(%arg0: i32) -> (i32, i32) {
    %c0_i32 = arith.constant 0 : i32
    %c0_i32_0 = arith.constant 0 : i32
    %c0_i32_1 = arith.constant 0 : i32
    return %c0_i32, %c0_i32_0 : i32, i32
  }
}

module attributes {stable_mosaic.version = 11 : i64} {
  func.func @_deconv_bn_relu_kernel(%arg0: i32, %arg1: memref<512x288xbf16, #tpu.memory_space<vmem>>, %arg2: memref<288x128xbf16, #tpu.memory_space<vmem>>, %arg3: memref<1x128xf32, #tpu.memory_space<vmem>>, %arg4: memref<512x128xf32, #tpu.memory_space<vmem>>, %arg5: memref<128x128xf32, #tpu.memory_space<vmem>>, %arg6: memref<1x128xf32, #tpu.memory_space<vmem>>, %arg7: memref<1x128xf32, #tpu.memory_space<vmem>>, %arg8: memref<512x128xbf16, #tpu.memory_space<vmem>>) attributes {dimension_semantics = [#tpu.dimension_semantics<arbitrary>], iteration_bounds = array<i64: 1>, scalar_prefetch = 0 : i64, scratch_operands = 0 : i64, tpu.core_type = #tpu.core_type<tc>, window_params = [{pipeline_mode = #tpu.pipeline_mode<synchronous>, transform_indices = @transform_0, window_bounds = array<i64: 512, 288>}, {pipeline_mode = #tpu.pipeline_mode<synchronous>, transform_indices = @transform_1, window_bounds = array<i64: 288, 128>}, {pipeline_mode = #tpu.pipeline_mode<synchronous>, transform_indices = @transform_2, window_bounds = array<i64: 1, 128>}, {pipeline_mode = #tpu.pipeline_mode<synchronous>, transform_indices = @transform_3, window_bounds = array<i64: 512, 128>}, {pipeline_mode = #tpu.pipeline_mode<synchronous>, transform_indices = @transform_4, window_bounds = array<i64: 128, 128>}, {pipeline_mode = #tpu.pipeline_mode<synchronous>, transform_indices = @transform_5, window_bounds = array<i64: 1, 128>}, {pipeline_mode = #tpu.pipeline_mode<synchronous>, transform_indices = @transform_6, window_bounds = array<i64: 1, 128>}, {pipeline_mode = #tpu.pipeline_mode<synchronous>, transform_indices = @transform_7, window_bounds = array<i64: 512, 128>}]} {
    %c0 = arith.constant 0 : index
    %c0_0 = arith.constant 0 : index
    %0 = vector.load %arg1[%c0, %c0_0] : memref<512x288xbf16, #tpu.memory_space<vmem>>, vector<512x288xbf16>
    %c0_1 = arith.constant 0 : index
    %c0_2 = arith.constant 0 : index
    %1 = vector.load %arg2[%c0_1, %c0_2] : memref<288x128xbf16, #tpu.memory_space<vmem>>, vector<288x128xbf16>
    %cst = arith.constant dense<0.000000e+00> : vector<512x128xf32>
    %2 = tpu.matmul %0, %1, %cst {dimension_numbers = #tpu.dot_dimension_numbers<[1], [0], [0], [1], [0, 0, 1, 1], [], []>} : vector<512x288xbf16>, vector<288x128xbf16>, vector<512x128xf32> -> vector<512x128xf32>
    %c0_3 = arith.constant 0 : index
    %c0_4 = arith.constant 0 : index
    %3 = vector.load %arg3[%c0_3, %c0_4] : memref<1x128xf32, #tpu.memory_space<vmem>>, vector<1x128xf32>
    %4 = vector.broadcast %3 : vector<1x128xf32> to vector<512x128xf32>
    %5 = arith.addf %2, %4 : vector<512x128xf32>
    %c0_5 = arith.constant 0 : index
    %c0_6 = arith.constant 0 : index
    %6 = vector.load %arg4[%c0_5, %c0_6] : memref<512x128xf32, #tpu.memory_space<vmem>>, vector<512x128xf32>
    %c0_7 = arith.constant 0 : index
    %c0_8 = arith.constant 0 : index
    %7 = vector.load %arg5[%c0_7, %c0_8] : memref<128x128xf32, #tpu.memory_space<vmem>>, vector<128x128xf32>
    %8 = arith.mulf %5, %6 : vector<512x128xf32>
    %cst_9 = arith.constant dense<0.000000e+00> : vector<512x128xf32>
    %9 = tpu.matmul %8, %7, %cst_9 {dimension_numbers = #tpu.dot_dimension_numbers<[1], [0], [0], [1], [0, 0, 1, 1], [], []>} : vector<512x128xf32>, vector<128x128xf32>, vector<512x128xf32> -> vector<512x128xf32>
    %cst_10 = arith.constant dense<0.000000e+00> : vector<128xf32>
    %10 = vector.multi_reduction <add>, %9, %cst_10 [0] : vector<512x128xf32> to vector<128xf32>
    %11 = vector.shape_cast %10 : vector<128xf32> to vector<1x128xf32>
    %cst_11 = arith.constant 5.20291389E-4 : f32
    %12 = vector.broadcast %cst_11 : f32 to vector<1x128xf32>
    %13 = arith.mulf %11, %12 : vector<1x128xf32>
    %14 = vector.broadcast %13 : vector<1x128xf32> to vector<512x128xf32>
    %15 = arith.subf %5, %14 : vector<512x128xf32>
    %16 = arith.mulf %15, %6 : vector<512x128xf32>
    %17 = arith.mulf %16, %16 : vector<512x128xf32>
    %cst_12 = arith.constant dense<0.000000e+00> : vector<512x128xf32>
    %18 = tpu.matmul %17, %7, %cst_12 {dimension_numbers = #tpu.dot_dimension_numbers<[1], [0], [0], [1], [0, 0, 1, 1], [], []>} : vector<512x128xf32>, vector<128x128xf32>, vector<512x128xf32> -> vector<512x128xf32>
    %cst_13 = arith.constant dense<0.000000e+00> : vector<128xf32>
    %19 = vector.multi_reduction <add>, %18, %cst_13 [0] : vector<512x128xf32> to vector<128xf32>
    %20 = vector.shape_cast %19 : vector<128xf32> to vector<1x128xf32>
    %cst_14 = arith.constant 5.20291389E-4 : f32
    %21 = vector.broadcast %cst_14 : f32 to vector<1x128xf32>
    %22 = arith.mulf %20, %21 : vector<1x128xf32>
    %c0_15 = arith.constant 0 : index
    %c0_16 = arith.constant 0 : index
    %23 = vector.load %arg6[%c0_15, %c0_16] : memref<1x128xf32, #tpu.memory_space<vmem>>, vector<1x128xf32>
    %cst_17 = arith.constant 9.99999974E-6 : f32
    %24 = vector.broadcast %cst_17 : f32 to vector<1x128xf32>
    %25 = arith.addf %22, %24 : vector<1x128xf32>
    %26 = math.rsqrt %25 : vector<1x128xf32>
    %27 = arith.mulf %23, %26 : vector<1x128xf32>
    %28 = vector.broadcast %13 : vector<1x128xf32> to vector<512x128xf32>
    %29 = arith.subf %5, %28 : vector<512x128xf32>
    %30 = vector.broadcast %27 : vector<1x128xf32> to vector<512x128xf32>
    %31 = arith.mulf %29, %30 : vector<512x128xf32>
    %c0_18 = arith.constant 0 : index
    %c0_19 = arith.constant 0 : index
    %32 = vector.load %arg7[%c0_18, %c0_19] : memref<1x128xf32, #tpu.memory_space<vmem>>, vector<1x128xf32>
    %33 = vector.broadcast %32 : vector<1x128xf32> to vector<512x128xf32>
    %34 = arith.addf %31, %33 : vector<512x128xf32>
    %cst_20 = arith.constant 0.000000e+00 : f32
    %35 = vector.broadcast %cst_20 : f32 to vector<512x128xf32>
    %36 = arith.maximumf %34, %35 : vector<512x128xf32>
    %37 = arith.truncf %36 : vector<512x128xf32> to vector<512x128xbf16>
    %c0_21 = arith.constant 0 : index
    %c0_22 = arith.constant 0 : index
    %38 = vector.load %arg8[%c0_21, %c0_22] : memref<512x128xbf16, #tpu.memory_space<vmem>>, vector<512x128xbf16>
    tpu.vector_store %arg8[%c0_21, %c0_22], %37 {strides = array<i32>} : memref<512x128xbf16, #tpu.memory_space<vmem>>, vector<512x128xbf16>,
    return
  }
  func.func @transform_0(%arg0: i32) -> (i32, i32) {
    %c0_i32 = arith.constant 0 : i32
    %c0_i32_0 = arith.constant 0 : i32
    %c0_i32_1 = arith.constant 0 : i32
    return %c0_i32, %c0_i32_0 : i32, i32
  }
  func.func @transform_1(%arg0: i32) -> (i32, i32) {
    %c0_i32 = arith.constant 0 : i32
    %c0_i32_0 = arith.constant 0 : i32
    %c0_i32_1 = arith.constant 0 : i32
    return %c0_i32, %c0_i32_0 : i32, i32
  }
  func.func @transform_2(%arg0: i32) -> (i32, i32) {
    %c0_i32 = arith.constant 0 : i32
    %c0_i32_0 = arith.constant 0 : i32
    %c0_i32_1 = arith.constant 0 : i32
    return %c0_i32, %c0_i32_0 : i32, i32
  }
  func.func @transform_3(%arg0: i32) -> (i32, i32) {
    %c0_i32 = arith.constant 0 : i32
    %c0_i32_0 = arith.constant 0 : i32
    %c0_i32_1 = arith.constant 0 : i32
    return %c0_i32, %c0_i32_0 : i32, i32
  }
  func.func @transform_4(%arg0: i32) -> (i32, i32) {
    %c0_i32 = arith.constant 0 : i32
    %c0_i32_0 = arith.constant 0 : i32
    %c0_i32_1 = arith.constant 0 : i32
    return %c0_i32, %c0_i32_0 : i32, i32
  }
  func.func @transform_5(%arg0: i32) -> (i32, i32) {
    %c0_i32 = arith.constant 0 : i32
    %c0_i32_0 = arith.constant 0 : i32
    %c0_i32_1 = arith.constant 0 : i32
    return %c0_i32, %c0_i32_0 : i32, i32
  }
  func.func @transform_6(%arg0: i32) -> (i32, i32) {
    %c0_i32 = arith.constant 0 : i32
    %c0_i32_0 = arith.constant 0 : i32
    %c0_i32_1 = arith.constant 0 : i32
    return %c0_i32, %c0_i32_0 : i32, i32
  }
  func.func @transform_7(%arg0: i32) -> (i32, i32) {
    %c0_i32 = arith.constant 0 : i32
    %c0_i32_0 = arith.constant 0 : i32
    %c0_i32_1 = arith.constant 0 : i32
    return %c0_i32, %c0_i32_0 : i32, i32
  }
}

module attributes {stable_mosaic.version = 11 : i64} {
  func.func @_deconv_tanh_kernel(%arg0: i32, %arg1: memref<8x144xbf16, #tpu.memory_space<vmem>>, %arg2: memref<144x2048xbf16, #tpu.memory_space<vmem>>, %arg3: memref<1xf32, #tpu.memory_space<smem>>, %arg4: memref<8x2048xbf16, #tpu.memory_space<vmem>>) attributes {dimension_semantics = [#tpu.dimension_semantics<parallel>], iteration_bounds = array<i64: 1>, scalar_prefetch = 0 : i64, scratch_operands = 0 : i64, tpu.core_type = #tpu.core_type<tc>, window_params = [{pipeline_mode = #tpu.pipeline_mode<synchronous>, transform_indices = @transform_0, window_bounds = array<i64: 8, 144>}, {transform_indices = @transform_1, window_bounds = array<i64: 144, 2048>}, {transform_indices = @transform_2, window_bounds = array<i64: 1>}, {transform_indices = @transform_3, window_bounds = array<i64: 8, 2048>}]} {
    %c0 = arith.constant 0 : index
    %c0_0 = arith.constant 0 : index
    %0 = vector.load %arg1[%c0, %c0_0] : memref<8x144xbf16, #tpu.memory_space<vmem>>, vector<8x144xbf16>
    %c0_1 = arith.constant 0 : index
    %c0_2 = arith.constant 0 : index
    %1 = vector.load %arg2[%c0_1, %c0_2] : memref<144x2048xbf16, #tpu.memory_space<vmem>>, vector<144x2048xbf16>
    %cst = arith.constant dense<0.000000e+00> : vector<8x2048xf32>
    %2 = tpu.matmul %0, %1, %cst {dimension_numbers = #tpu.dot_dimension_numbers<[1], [0], [0], [1], [0, 0, 1, 1], [], []>} : vector<8x144xbf16>, vector<144x2048xbf16>, vector<8x2048xf32> -> vector<8x2048xf32>
    %c0_3 = arith.constant 0 : index
    %3 = memref.load %arg3[%c0_3] : memref<1xf32, #tpu.memory_space<smem>>
    %4 = vector.broadcast %3 : f32 to vector<8x2048xf32>
    %5 = arith.addf %2, %4 : vector<8x2048xf32>
    %6 = math.tanh %5 : vector<8x2048xf32>
    %7 = arith.truncf %6 : vector<8x2048xf32> to vector<8x2048xbf16>
    %c0_4 = arith.constant 0 : index
    %c0_5 = arith.constant 0 : index
    %8 = vector.load %arg4[%c0_4, %c0_5] : memref<8x2048xbf16, #tpu.memory_space<vmem>>, vector<8x2048xbf16>
    tpu.vector_store %arg4[%c0_4, %c0_5], %7 {strides = array<i32>} : memref<8x2048xbf16, #tpu.memory_space<vmem>>, vector<8x2048xbf16>,
    return
  }
  func.func @transform_0(%arg0: i32) -> (i32, i32) {
    %c0_i32 = arith.constant 0 : i32
    %c0_i32_0 = arith.constant 0 : i32
    %c0_i32_1 = arith.constant 0 : i32
    return %c0_i32, %c0_i32_0 : i32, i32
  }
  func.func @transform_1(%arg0: i32) -> (i32, i32) {
    %c0_i32 = arith.constant 0 : i32
    %c0_i32_0 = arith.constant 0 : i32
    return %c0_i32, %arg0 : i32, i32
  }
  func.func @transform_2(%arg0: i32) -> i32 {
    %c0_i32 = arith.constant 0 : i32
    %c0_i32_0 = arith.constant 0 : i32
    return %c0_i32 : i32
  }
  func.func @transform_3(%arg0: i32) -> (i32, i32) {
    %c0_i32 = arith.constant 0 : i32
    %c0_i32_0 = arith.constant 0 : i32
    return %c0_i32, %arg0 : i32, i32
  }
}

</mosaic_0001>

<llo_original>
// kernel: generator_forward.5
$region0: #{generator_forward.5}
  #allocation0 [shape = 'u32[]', space=smem, size = 0x4, offset = 0x4, fixed_abs, tag = 'smem constant byte address 0x4 - core index']
  #allocation1 [shape = 'u32[144,128]{1,0:T(1,128)}', space=vmem, size = 0x12000, scoped, tag = 'internal scratch']
  %s0 = inlined_call_operand.vmem [shape: bf16[32,900], index: 0, kind: input, shape index: {}]
  %s1 = inlined_call_operand.hbm [shape: bf16[900,128], index: 1, kind: input, shape index: {}]
  %s2 = inlined_call_operand.hbm [shape: f32[1,128], index: 2, kind: input, shape index: {}]
  %s3 = inlined_call_operand.hbm [shape: f32[32,128], index: 3, kind: input, shape index: {}]
  %s4 = inlined_call_operand.hbm [shape: f32[128,128], index: 4, kind: input, shape index: {}]
  %s5 = inlined_call_operand.hbm [shape: f32[1,128], index: 5, kind: input, shape index: {}]
  %s6 = inlined_call_operand.hbm [shape: f32[1,128], index: 6, kind: input, shape index: {}]
  %s7 = inlined_call_operand.vmem [shape: bf16[32,128], index: 7, kind: output, shape index: {}]
  %s8 = sld [smem:[#allocation0]]
  $region62: #{generator_forward.5} parent=0
    _
  %s10 = ssub.s32 1, %s8
  %s11 = scalar_select 0, %s10, %s8
  $region1: #{generator_forward.5} parent=0
    #allocation2 [shape = 'u8[231424]{0}', space=vmem, size = 0x38800, scoped, tag = 'input window, operand 1, single buffered']
    #allocation3 [shape = 's32[1]{0}', space=sflag, size = 0x4, scoped, tag = 'scoped memory for generator_forward.5']
    #allocation4 [shape = 'u8[512]{0}', space=vmem, size = 0x400, scoped, tag = 'input window, operand 2, single buffered']
    #allocation5 [shape = 's32[1]{0}', space=sflag, size = 0x4, scoped, tag = 'scoped memory for generator_forward.5']
    #allocation6 [shape = 'u8[16384]{0}', space=vmem, size = 0x4000, scoped, tag = 'input window, operand 3, single buffered']
    #allocation7 [shape = 'u8[65536]{0}', space=vmem, size = 0x10000, scoped, tag = 'input window, operand 4, single buffered']
    #allocation8 [shape = 's32[1]{0}', space=sflag, size = 0x4, scoped, tag = 'scoped memory for generator_forward.5']
    #allocation9 [shape = 'u8[512]{0}', space=vmem, size = 0x400, scoped, tag = 'input window, operand 5, single buffered']
    #allocation10 [shape = 'u8[512]{0}', space=vmem, size = 0x400, scoped, tag = 'input window, operand 6, single buffered']
    #allocation11 [shape = 's32[1]{0}', space=sflag, size = 0x4, scoped, tag = 'scoped memory for generator_forward.5']
    %12 = vsyncpa [#allocation3], 0
    %13 = vsyncpa [#allocation5], 0
    %14 = vsyncpa [#allocation8], 0
    %15 = vsyncpa [#allocation11], 0
    // Predicated region
    $region2: #{generator_forward.5} parent=1 // pred_check
      _
    $region3: #{generator_forward.5} parent=1 // pred_check_branch
      %17 = sbr.rel (0) target = $region5
    $region4: #{generator_forward.5} parent=1 // pred_region
      _
    $region5: #{generator_forward.5} parent=1 // pred_fallthru
      _
    // Predicated region
    $region6: #{generator_forward.5} parent=1 // pred_check
      _
    $region7: #{generator_forward.5} parent=1 // pred_check_branch
      %19 = sbr.rel (0) target = $region9
    $region8: #{generator_forward.5} parent=1 // pred_region
      %s21 = ssub.s32 7232, 7232
      %22 = vsyncadd [#allocation3], %s21
      %s23 = sshll.u32 [#allocation2], 4
      %s24 = int_to_ptr.vmem [resolvable:$true] %s23
      %29 = dma.hbm_to_vmem [thread:$0]  %s1, 7232, %s24, [#allocation3], 64, 64, 4
    $region9: #{generator_forward.5} parent=1 // pred_fallthru
      _
    // Predicated region
    $region10: #{generator_forward.5} parent=1 // pred_check
      _
    $region11: #{generator_forward.5} parent=1 // pred_check_branch
      %31 = sbr.rel (0) target = $region13
    $region12: #{generator_forward.5} parent=1 // pred_region
      %s33 = ssub.s32 16, 16
      %34 = vsyncadd [#allocation5], %s33
      %s36 = sshll.u32 [#allocation4], 4
      %s37 = int_to_ptr.vmem [resolvable:$true] %s36
      %39 = dma.hbm_to_vmem [thread:$0]  %s2, 16, %s37, [#allocation5]
    $region13: #{generator_forward.5} parent=1 // pred_fallthru
      _
    // Predicated region
    $region14: #{generator_forward.5} parent=1 // pred_check
      _
    $region15: #{generator_forward.5} parent=1 // pred_check_branch
      %41 = sbr.rel (0) target = $region17
    $region16: #{generator_forward.5} parent=1 // pred_region
      %s43 = ssub.s32 512, 512
      %44 = vsyncadd [#allocation5], %s43
      %s45 = sshll.u32 [#allocation6], 4
      %s46 = int_to_ptr.vmem [resolvable:$true] %s45
      %51 = dma.hbm_to_vmem [thread:$0]  %s3, 512, %s46, [#allocation5], 128, 128, 8
    $region17: #{generator_forward.5} parent=1 // pred_fallthru
      _
    // Predicated region
    $region18: #{generator_forward.5} parent=1 // pred_check
      _
    $region19: #{generator_forward.5} parent=1 // pred_check_branch
      %53 = sbr.rel (0) target = $region21
    $region20: #{generator_forward.5} parent=1 // pred_region
      %s55 = ssub.s32 2048, 2048
      %56 = vsyncadd [#allocation8], %s55
      %s57 = sshll.u32 [#allocation7], 4
      %s58 = int_to_ptr.vmem [resolvable:$true] %s57
      %63 = dma.hbm_to_vmem [thread:$0]  %s4, 2048, %s58, [#allocation8], 128, 128, 8
    $region21: #{generator_forward.5} parent=1 // pred_fallthru
      _
    // Predicated region
    $region22: #{generator_forward.5} parent=1 // pred_check
      _
    $region23: #{generator_forward.5} parent=1 // pred_check_branch
      %65 = sbr.rel (0) target = $region25
    $region24: #{generator_forward.5} parent=1 // pred_region
      %s67 = ssub.s32 16, 16
      %68 = vsyncadd [#allocation8], %s67
      %s70 = sshll.u32 [#allocation9], 4
      %s71 = int_to_ptr.vmem [resolvable:$true] %s70
      %73 = dma.hbm_to_vmem [thread:$0]  %s5, 16, %s71, [#allocation8]
    $region25: #{generator_forward.5} parent=1 // pred_fallthru
      _
    // Predicated region
    $region26: #{generator_forward.5} parent=1 // pred_check
      _
    $region27: #{generator_forward.5} parent=1 // pred_check_branch
      %75 = sbr.rel (0) target = $region29
    $region28: #{generator_forward.5} parent=1 // pred_region
      %s77 = ssub.s32 16, 16
      %78 = vsyncadd [#allocation11], %s77
      %s80 = sshll.u32 [#allocation10], 4
      %s81 = int_to_ptr.vmem [resolvable:$true] %s80
      %83 = dma.hbm_to_vmem [thread:$0]  %s6, 16, %s81, [#allocation11]
    $region29: #{generator_forward.5} parent=1 // pred_fallthru
      _
    // Predicated region
    $region30: #{generator_forward.5} parent=1 // pred_check
      _
    $region31: #{generator_forward.5} parent=1 // pred_check_branch
      %85 = sbr.rel (0) target = $region33
    $region32: #{generator_forward.5} parent=1 // pred_region
      %86 = dma.done [#allocation3], 7232
    $region33: #{generator_forward.5} parent=1 // pred_fallthru
      _
    // Predicated region
    $region34: #{generator_forward.5} parent=1 // pred_check
      _
    $region35: #{generator_forward.5} parent=1 // pred_check_branch
      %88 = sbr.rel (0) target = $region37
    $region36: #{generator_forward.5} parent=1 // pred_region
      %89 = dma.done [#allocation5], 16
    $region37: #{generator_forward.5} parent=1 // pred_fallthru
      _
    // Predicated region
    $region38: #{generator_forward.5} parent=1 // pred_check
      _
    $region39: #{generator_forward.5} parent=1 // pred_check_branch
      %91 = sbr.rel (0) target = $region41
    $region40: #{generator_forward.5} parent=1 // pred_region
      %92 = dma.done [#allocation5], 512
    $region41: #{generator_forward.5} parent=1 // pred_fallthru
      _
    // Predicated region
    $region42: #{generator_forward.5} parent=1 // pred_check
      _
    $region43: #{generator_forward.5} parent=1 // pred_check_branch
      %94 = sbr.rel (0) target = $region45
    $region44: #{generator_forward.5} parent=1 // pred_region
      %95 = dma.done [#allocation8], 2048
    $region45: #{generator_forward.5} parent=1 // pred_fallthru
      _
    // Predicated region
    $region46: #{generator_forward.5} parent=1 // pred_check
      _
    $region47: #{generator_forward.5} parent=1 // pred_check_branch
      %97 = sbr.rel (0) target = $region49
    $region48: #{generator_forward.5} parent=1 // pred_region
      %98 = dma.done [#allocation8], 16
    $region49: #{generator_forward.5} parent=1 // pred_fallthru
      _
    // Predicated region
    $region50: #{generator_forward.5} parent=1 // pred_check
      _
    $region51: #{generator_forward.5} parent=1 // pred_check_branch
      %100 = sbr.rel (0) target = $region53
    $region52: #{generator_forward.5} parent=1 // pred_region
      %101 = dma.done [#allocation11], 16
    $region53: #{generator_forward.5} parent=1 // pred_fallthru
      _
    %v103 = vld [vmem:[%s0] sm:$0xff]
    %v104 = vld [vmem:[%s0 + $0x8] sm:$0xff]
    %v105 = vld [vmem:[%s0 + $0x10] sm:$0xff]
    %v106 = vld [vmem:[%s0 + $0x18] sm:$0xff]
    %v107 = vld [vmem:[%s0 + $0x20] sm:$0xff]
    %v108 = vld [vmem:[%s0 + $0x28] sm:$0xff]
    %v109 = vld [vmem:[%s0 + $0x30] sm:$0xff]
    %v110 = vld [vmem:[%s0 + $0x38] sm:$0xff]
    %v111 = vld [vmem:[%s0 + $0x40] sm:$0xff]
    %v112 = vld [vmem:[%s0 + $0x48] sm:$0xff]
    %v113 = vld [vmem:[%s0 + $0x50] sm:$0xff]
    %v114 = vld [vmem:[%s0 + $0x58] sm:$0xff]
    %v115 = vld [vmem:[%s0 + $0x60] sm:$0xff]
    %v116 = vld [vmem:[%s0 + $0x68] sm:$0xff]
    %v117 = vld [vmem:[%s0 + $0x70] sm:$0xff]
    %v118 = vld [vmem:[%s0 + $0x78] sm:$0xff]
    %v119 = vld [vmem:[#allocation2] sm:$0xf]
    %v120 = vld [vmem:[#allocation2 + $0x4] sm:$0xf]
    %v121 = vld [vmem:[#allocation2 + $0x8] sm:$0xf]
    %v122 = vld [vmem:[#allocation2 + $0xc] sm:$0xf]
    %v123 = vld [vmem:[#allocation2 + $0x10] sm:$0xf]
    %v124 = vld [vmem:[#allocation2 + $0x14] sm:$0xf]
    %v125 = vld [vmem:[#allocation2 + $0x18] sm:$0xf]
    %v126 = vld [vmem:[#allocation2 + $0x1c] sm:$0xf]
    %v127 = vld [vmem:[#allocation2 + $0x20] sm:$0xf]
    %v128 = vld [vmem:[#allocation2 + $0x24] sm:$0xf]
    %v129 = vld [vmem:[#allocation2 + $0x28] sm:$0xf]
    %v130 = vld [vmem:[#allocation2 + $0x2c] sm:$0xf]
    %v131 = vld [vmem:[#allocation2 + $0x30] sm:$0xf]
    %v132 = vld [vmem:[#allocation2 + $0x34] sm:$0xf]
    %v133 = vld [vmem:[#allocation2 + $0x38] sm:$0xf]
    %v134 = vld [vmem:[#allocation2 + $0x3c] sm:$0xf]
    %v135 = vld [vmem:[#allocation2 + $0x40] sm:$0xf]
    %v136 = vld [vmem:[#allocation2 + $0x44] sm:$0xf]
    %v137 = vld [vmem:[#allocation2 + $0x48] sm:$0xf]
    %v138 = vld [vmem:[#allocation2 + $0x4c] sm:$0xf]
    %v139 = vld [vmem:[#allocation2 + $0x50] sm:$0xf]
    %v140 = vld [vmem:[#allocation2 + $0x54] sm:$0xf]
    %v141 = vld [vmem:[#allocation2 + $0x58] sm:$0xf]
    %v142 = vld [vmem:[#allocation2 + $0x5c] sm:$0xf]
    %v143 = vld [vmem:[#allocation2 + $0x60] sm:$0xf]
    %v144 = vld [vmem:[#allocation2 + $0x64] sm:$0xf]
    %v145 = vld [vmem:[#allocation2 + $0x68] sm:$0xf]
    %v146 = vld [vmem:[#allocation2 + $0x6c] sm:$0xf]
    %v147 = vld [vmem:[#allocation2 + $0x70] sm:$0xf]
    %v148 = vld [vmem:[#allocation2 + $0x74] sm:$0xf]
    %v149 = vld [vmem:[#allocation2 + $0x78] sm:$0xf]
    %v150 = vld [vmem:[#allocation2 + $0x7c] sm:$0xf]
    %v151 = vld [vmem:[#allocation2 + $0x80] sm:$0xf]
    %v152 = vld [vmem:[#allocation2 + $0x84] sm:$0xf]
    %v153 = vld [vmem:[#allocation2 + $0x88] sm:$0xf]
    %v154 = vld [vmem:[#allocation2 + $0x8c] sm:$0xf]
    %v155 = vld [vmem:[#allocation2 + $0x90] sm:$0xf]
    %v156 = vld [vmem:[#allocation2 + $0x94] sm:$0xf]
    %v157 = vld [vmem:[#allocation2 + $0x98] sm:$0xf]
    %v158 = vld [vmem:[#allocation2 + $0x9c] sm:$0xf]
    %v159 = vld [vmem:[#allocation2 + $0xa0] sm:$0xf]
    %v160 = vld [vmem:[#allocation2 + $0xa4] sm:$0xf]
    %v161 = vld [vmem:[#allocation2 + $0xa8] sm:$0xf]
    %v162 = vld [vmem:[#allocation2 + $0xac] sm:$0xf]
    %v163 = vld [vmem:[#allocation2 + $0xb0] sm:$0xf]
    %v164 = vld [vmem:[#allocation2 + $0xb4] sm:$0xf]
    %v165 = vld [vmem:[#allocation2 + $0xb8] sm:$0xf]
    %v166 = vld [vmem:[#allocation2 + $0xbc] sm:$0xf]
    %v167 = vld [vmem:[#allocation2 + $0xc0] sm:$0xf]
    %v168 = vld [vmem:[#allocation2 + $0xc4] sm:$0xf]
    %v169 = vld [vmem:[#allocation2 + $0xc8] sm:$0xf]
    %v170 = vld [vmem:[#allocation2 + $0xcc] sm:$0xf]
    %v171 = vld [vmem:[#allocation2 + $0xd0] sm:$0xf]
    %v172 = vld [vmem:[#allocation2 + $0xd4] sm:$0xf]
    %v173 = vld [vmem:[#allocation2 + $0xd8] sm:$0xf]
    %v174 = vld [vmem:[#allocation2 + $0xdc] sm:$0xf]
    %v175 = vld [vmem:[#allocation2 + $0xe0] sm:$0xf]
    %v176 = vld [vmem:[#allocation2 + $0xe4] sm:$0xf]
    %v177 = vld [vmem:[#allocation2 + $0xe8] sm:$0xf]
    %v178 = vld [vmem:[#allocation2 + $0xec] sm:$0xf]
    %v179 = vld [vmem:[#allocation2 + $0xf0] sm:$0xf]
    %v180 = vld [vmem:[#allocation2 + $0xf4] sm:$0xf]
    %v181 = vld [vmem:[#allocation2 + $0xf8] sm:$0xf]
    %v182 = vld [vmem:[#allocation2 + $0xfc] sm:$0xf]
    %v183 = vld [vmem:[#allocation2 + $0x100] sm:$0xf]
    %v184 = vld [vmem:[#allocation2 + $0x104] sm:$0xf]
    %v185 = vld [vmem:[#allocation2 + $0x108] sm:$0xf]
    %v186 = vld [vmem:[#allocation2 + $0x10c] sm:$0xf]
    %v187 = vld [vmem:[#allocation2 + $0x110] sm:$0xf]
    %v188 = vld [vmem:[#allocation2 + $0x114] sm:$0xf]
    %v189 = vld [vmem:[#allocation2 + $0x118] sm:$0xf]
    %v190 = vld [vmem:[#allocation2 + $0x11c] sm:$0xf]
    %v191 = vld [vmem:[#allocation2 + $0x120] sm:$0xf]
    %v192 = vld [vmem:[#allocation2 + $0x124] sm:$0xf]
    %v193 = vld [vmem:[#allocation2 + $0x128] sm:$0xf]
    %v194 = vld [vmem:[#allocation2 + $0x12c] sm:$0xf]
    %v195 = vld [vmem:[#allocation2 + $0x130] sm:$0xf]
    %v196 = vld [vmem:[#allocation2 + $0x134] sm:$0xf]
    %v197 = vld [vmem:[#allocation2 + $0x138] sm:$0xf]
    %v198 = vld [vmem:[#allocation2 + $0x13c] sm:$0xf]
    %v199 = vld [vmem:[#allocation2 + $0x140] sm:$0xf]
    %v200 = vld [vmem:[#allocation2 + $0x144] sm:$0xf]
    %v201 = vld [vmem:[#allocation2 + $0x148] sm:$0xf]
    %v202 = vld [vmem:[#allocation2 + $0x14c] sm:$0xf]
    %v203 = vld [vmem:[#allocation2 + $0x150] sm:$0xf]
    %v204 = vld [vmem:[#allocation2 + $0x154] sm:$0xf]
    %v205 = vld [vmem:[#allocation2 + $0x158] sm:$0xf]
    %v206 = vld [vmem:[#allocation2 + $0x15c] sm:$0xf]
    %v207 = vld [vmem:[#allocation2 + $0x160] sm:$0xf]
    %v208 = vld [vmem:[#allocation2 + $0x164] sm:$0xf]
    %v209 = vld [vmem:[#allocation2 + $0x168] sm:$0xf]
    %v210 = vld [vmem:[#allocation2 + $0x16c] sm:$0xf]
    %v211 = vld [vmem:[#allocation2 + $0x170] sm:$0xf]
    %v212 = vld [vmem:[#allocation2 + $0x174] sm:$0xf]
    %v213 = vld [vmem:[#allocation2 + $0x178] sm:$0xf]
    %v214 = vld [vmem:[#allocation2 + $0x17c] sm:$0xf]
    %v215 = vld [vmem:[#allocation2 + $0x180] sm:$0xf]
    %v216 = vld [vmem:[#allocation2 + $0x184] sm:$0xf]
    %v217 = vld [vmem:[#allocation2 + $0x188] sm:$0xf]
    %v218 = vld [vmem:[#allocation2 + $0x18c] sm:$0xf]
    %v219 = vld [vmem:[#allocation2 + $0x190] sm:$0xf]
    %v220 = vld [vmem:[#allocation2 + $0x194] sm:$0xf]
    %v221 = vld [vmem:[#allocation2 + $0x198] sm:$0xf]
    %v222 = vld [vmem:[#allocation2 + $0x19c] sm:$0xf]
    %v223 = vld [vmem:[#allocation2 + $0x1a0] sm:$0xf]
    %v224 = vld [vmem:[#allocation2 + $0x1a4] sm:$0xf]
    %v225 = vld [vmem:[#allocation2 + $0x1a8] sm:$0xf]
    %v226 = vld [vmem:[#allocation2 + $0x1ac] sm:$0xf]
    %v227 = vld [vmem:[#allocation2 + $0x1b0] sm:$0xf]
    %v228 = vld [vmem:[#allocation2 + $0x1b4] sm:$0xf]
    %v229 = vld [vmem:[#allocation2 + $0x1b8] sm:$0xf]
    %v230 = vld [vmem:[#allocation2 + $0x1bc] sm:$0xf]
    %v231 = vld [vmem:[#allocation2 + $0x1c0] sm:$0x3]
    %v232 = vld [vmem:[#allocation4] sm:$0x1]
    %v234 = vlaneseq
    %v235 = vshrl.u32 %v234, 7
    %v236 = vsub.s32 0, %v235
    %v237 = vrot.slane %v232, %v236
    %v255 = vunpack.c.l.b16 %v103
    %v256 = vunpack.c.h.b16 %v103
    %v257 = vunpack.c.l.b16 %v104
    %v258 = vunpack.c.h.b16 %v104
    %v259 = vunpack.c.l.b16 %v105
    %v260 = vunpack.c.h.b16 %v105
    %v261 = vunpack.c.l.b16 %v106
    %v262 = vunpack.c.h.b16 %v106
    %v263 = vunpack.c.l.b16 %v107
    %v264 = vunpack.c.h.b16 %v107
    %v265 = vunpack.c.l.b16 %v108
    %v266 = vunpack.c.h.b16 %v108
    %v267 = vunpack.c.l.b16 %v109
    %v268 = vunpack.c.h.b16 %v109
    %v269 = vunpack.c.l.b16 %v110
    %v270 = vunpack.c.h.b16 %v110
    %v271 = vunpack.c.l.b16 %v111
    %v272 = vunpack.c.h.b16 %v111
    %v273 = vunpack.c.l.b16 %v112
    %v274 = vunpack.c.h.b16 %v112
    %v275 = vunpack.c.l.b16 %v113
    %v276 = vunpack.c.h.b16 %v113
    %v277 = vunpack.c.l.b16 %v114
    %v278 = vunpack.c.h.b16 %v114
    %v279 = vunpack.c.l.b16 %v115
    %v280 = vunpack.c.h.b16 %v115
    %v281 = vunpack.c.l.b16 %v116
    %v282 = vunpack.c.h.b16 %v116
    %v283 = vunpack.c.l.b16 %v117
    %v284 = vunpack.c.h.b16 %v117
    %v285 = vunpack.c.l.b16 %v118
    %v286 = vunpack.c.h.b16 %v118
    %v287 = vpack.c.b16 %v263, %v255
    %v288 = vpack.c.b16 %v264, %v256
    %v289 = vpack.c.b16 %v265, %v257
    %v290 = vpack.c.b16 %v266, %v258
    %v291 = vpack.c.b16 %v267, %v259
    %v292 = vpack.c.b16 %v268, %v260
    %v293 = vpack.c.b16 %v269, %v261
    %v294 = vpack.c.b16 %v270, %v262
    %v295 = vpack.c.b16 %v279, %v271
    %v296 = vpack.c.b16 %v280, %v272
    %v297 = vpack.c.b16 %v281, %v273
    %v298 = vpack.c.b16 %v282, %v274
    %v299 = vpack.c.b16 %v283, %v275
    %v300 = vpack.c.b16 %v284, %v276
    %v301 = vpack.c.b16 %v285, %v277
    %v302 = vpack.c.b16 %v286, %v278
    %v430 = vunpack.c.l.b16 %v119
    %v431 = vunpack.c.l.b16 %v120
    %v432 = vunpack.c.l.b16 %v121
    %v433 = vunpack.c.l.b16 %v122
    %v434 = vunpack.c.l.b16 %v123
    %v435 = vunpack.c.l.b16 %v124
    %v436 = vunpack.c.l.b16 %v125
    %v437 = vunpack.c.l.b16 %v126
    %v438 = vunpack.c.l.b16 %v127
    %v439 = vunpack.c.l.b16 %v128
    %v440 = vunpack.c.l.b16 %v129
    %v441 = vunpack.c.l.b16 %v130
    %v442 = vunpack.c.l.b16 %v131
    %v443 = vunpack.c.l.b16 %v132
    %v444 = vunpack.c.l.b16 %v133
    %v445 = vunpack.c.l.b16 %v134
    %v446 = vunpack.c.l.b16 %v135
    %v447 = vunpack.c.l.b16 %v136
    %v448 = vunpack.c.l.b16 %v137
    %v449 = vunpack.c.l.b16 %v138
    %v450 = vunpack.c.l.b16 %v139
    %v451 = vunpack.c.l.b16 %v140
    %v452 = vunpack.c.l.b16 %v141
    %v453 = vunpack.c.l.b16 %v142
    %v454 = vunpack.c.l.b16 %v143
    %v455 = vunpack.c.l.b16 %v144
    %v456 = vunpack.c.l.b16 %v145
    %v457 = vunpack.c.l.b16 %v146
    %v458 = vunpack.c.l.b16 %v147
    %v459 = vunpack.c.l.b16 %v148
    %v460 = vunpack.c.l.b16 %v149
    %v461 = vunpack.c.l.b16 %v150
    %v462 = vunpack.c.l.b16 %v151
    %v463 = vunpack.c.l.b16 %v152
    %v464 = vunpack.c.l.b16 %v153
    %v465 = vunpack.c.l.b16 %v154
    %v466 = vunpack.c.l.b16 %v155
    %v467 = vunpack.c.l.b16 %v156
    %v468 = vunpack.c.l.b16 %v157
    %v469 = vunpack.c.l.b16 %v158
    %v470 = vunpack.c.l.b16 %v159
    %v471 = vunpack.c.l.b16 %v160
    %v472 = vunpack.c.l.b16 %v161
    %v473 = vunpack.c.l.b16 %v162
    %v474 = vunpack.c.l.b16 %v163
    %v475 = vunpack.c.l.b16 %v164
    %v476 = vunpack.c.l.b16 %v165
    %v477 = vunpack.c.l.b16 %v166
    %v478 = vunpack.c.l.b16 %v167
    %v479 = vunpack.c.l.b16 %v168
    %v480 = vunpack.c.l.b16 %v169
    %v481 = vunpack.c.l.b16 %v170
    %v482 = vunpack.c.l.b16 %v171
    %v483 = vunpack.c.l.b16 %v172
    %v484 = vunpack.c.l.b16 %v173
    %v485 = vunpack.c.l.b16 %v174
    %v486 = vunpack.c.l.b16 %v175
    %v487 = vunpack.c.l.b16 %v176
    %v488 = vunpack.c.l.b16 %v177
    %v489 = vunpack.c.l.b16 %v178
    %v490 = vunpack.c.l.b16 %v179
    %v491 = vunpack.c.l.b16 %v180
    %v492 = vunpack.c.l.b16 %v181
    %v493 = vunpack.c.l.b16 %v182
    %v494 = vunpack.c.l.b16 %v183
    %v495 = vunpack.c.l.b16 %v184
    %v496 = vunpack.c.l.b16 %v185
    %v497 = vunpack.c.l.b16 %v186
    %v498 = vunpack.c.l.b16 %v187
    %v499 = vunpack.c.l.b16 %v188
    %v500 = vunpack.c.l.b16 %v189
    %v501 = vunpack.c.l.b16 %v190
    %v502 = vunpack.c.l.b16 %v191
    %v503 = vunpack.c.l.b16 %v192
    %v504 = vunpack.c.l.b16 %v193
    %v505 = vunpack.c.l.b16 %v194
    %v506 = vunpack.c.l.b16 %v195
    %v507 = vunpack.c.l.b16 %v196
    %v508 = vunpack.c.l.b16 %v197
    %v509 = vunpack.c.l.b16 %v198
    %v510 = vunpack.c.l.b16 %v199
    %v511 = vunpack.c.l.b16 %v200
    %v512 = vunpack.c.l.b16 %v201
    %v513 = vunpack.c.l.b16 %v202
    %v514 = vunpack.c.l.b16 %v203
    %v515 = vunpack.c.l.b16 %v204
    %v516 = vunpack.c.l.b16 %v205
    %v517 = vunpack.c.l.b16 %v206
    %v518 = vunpack.c.l.b16 %v207
    %v519 = vunpack.c.l.b16 %v208
    %v520 = vunpack.c.l.b16 %v209
    %v521 = vunpack.c.l.b16 %v210
    %v522 = vunpack.c.l.b16 %v211
    %v523 = vunpack.c.l.b16 %v212
    %v524 = vunpack.c.l.b16 %v213
    %v525 = vunpack.c.l.b16 %v214
    %v526 = vunpack.c.l.b16 %v215
    %v527 = vunpack.c.l.b16 %v216
    %v528 = vunpack.c.l.b16 %v217
    %v529 = vunpack.c.l.b16 %v218
    %v530 = vunpack.c.l.b16 %v219
    %v531 = vunpack.c.l.b16 %v220
    %v532 = vunpack.c.l.b16 %v221
    %v533 = vunpack.c.l.b16 %v222
    %v534 = vunpack.c.l.b16 %v223
    %v535 = vunpack.c.l.b16 %v224
    %v536 = vunpack.c.l.b16 %v225
    %v537 = vunpack.c.l.b16 %v226
    %v538 = vunpack.c.l.b16 %v227
    %v539 = vunpack.c.l.b16 %v228
    %v540 = vunpack.c.l.b16 %v229
    %v541 = vunpack.c.l.b16 %v230
    %v542 = vunpack.c.l.b16 %v231
    %v543 = vpack.c.b16 %v431, %v430
    %v544 = vpack.c.b16 %v433, %v432
    %v545 = vpack.c.b16 %v435, %v434
    %v546 = vpack.c.b16 %v437, %v436
    %v547 = vpack.c.b16 %v439, %v438
    %v548 = vpack.c.b16 %v441, %v440
    %v549 = vpack.c.b16 %v443, %v442
    %v550 = vpack.c.b16 %v445, %v444
    %v551 = vpack.c.b16 %v447, %v446
    %v552 = vpack.c.b16 %v449, %v448
    %v553 = vpack.c.b16 %v451, %v450
    %v554 = vpack.c.b16 %v453, %v452
    %v555 = vpack.c.b16 %v455, %v454
    %v556 = vpack.c.b16 %v457, %v456
    %v557 = vpack.c.b16 %v459, %v458
    %v558 = vpack.c.b16 %v461, %v460
    %v559 = vpack.c.b16 %v463, %v462
    %v560 = vpack.c.b16 %v465, %v464
    %v561 = vpack.c.b16 %v467, %v466
    %v562 = vpack.c.b16 %v469, %v468
    %v563 = vpack.c.b16 %v471, %v470
    %v564 = vpack.c.b16 %v473, %v472
    %v565 = vpack.c.b16 %v475, %v474
    %v566 = vpack.c.b16 %v477, %v476
    %v567 = vpack.c.b16 %v479, %v478
    %v568 = vpack.c.b16 %v481, %v480
    %v569 = vpack.c.b16 %v483, %v482
    %v570 = vpack.c.b16 %v485, %v484
    %v571 = vpack.c.b16 %v487, %v486
    %v572 = vpack.c.b16 %v489, %v488
    %v573 = vpack.c.b16 %v491, %v490
    %v574 = vpack.c.b16 %v493, %v492
    %v575 = vpack.c.b16 %v495, %v494
    %v576 = vpack.c.b16 %v497, %v496
    %v577 = vpack.c.b16 %v499, %v498
    %v578 = vpack.c.b16 %v501, %v500
    %v579 = vpack.c.b16 %v503, %v502
    %v580 = vpack.c.b16 %v505, %v504
    %v581 = vpack.c.b16 %v507, %v506
    %v582 = vpack.c.b16 %v509, %v508
    %v583 = vpack.c.b16 %v511, %v510
    %v584 = vpack.c.b16 %v513, %v512
    %v585 = vpack.c.b16 %v515, %v514
    %v586 = vpack.c.b16 %v517, %v516
    %v587 = vpack.c.b16 %v519, %v518
    %v588 = vpack.c.b16 %v521, %v520
    %v589 = vpack.c.b16 %v523, %v522
    %v590 = vpack.c.b16 %v525, %v524
    %v591 = vpack.c.b16 %v527, %v526
    %v592 = vpack.c.b16 %v529, %v528
    %v593 = vpack.c.b16 %v531, %v530
    %v594 = vpack.c.b16 %v533, %v532
    %v595 = vpack.c.b16 %v535, %v534
    %v596 = vpack.c.b16 %v537, %v536
    %v597 = vpack.c.b16 %v539, %v538
    %v598 = vpack.c.b16 %v541, %v540
    %v599 = vpack.c.b16 %v542, %v542
    %vm656 = vcmask 31744
    %v658 = vsel %vm656, %v294, 0
    %v661 = vsel %vm656, %v302, 0
    %vm663 = vcmask 1041408
    %v665 = vsel %vm663, %v599, 0
    %667 = vmatprep.subr.bf16.mxu0 0
    %668 = vmatpush1.bf16.msra.mxu0 %v543
    %669 = vmatprep.subr.bf16.mxu0 0
    %670 = vmatpush1.bf16.msra.mxu0 %v544
    %671 = vmatprep.subr.bf16.mxu0 0
    %672 = vmatpush1.bf16.msra.mxu0 %v545
    %673 = vmatprep.subr.bf16.mxu0 0
    %674 = vmatpush1.bf16.msra.mxu0 %v546
    %675 = vmatprep.subr.bf16.mxu0 0
    %676 = vmatpush1.bf16.msra.mxu0 %v547
    %677 = vmatprep.subr.bf16.mxu0 0
    %678 = vmatpush1.bf16.msra.mxu0 %v548
    %679 = vmatprep.subr.bf16.mxu0 0
    %680 = vmatpush1.bf16.msra.mxu0 %v549
    %681 = vmatprep.subr.bf16.mxu0 0
    %682 = vmatpush1.bf16.msra.mxu0 %v550
    %683 = vmatprep.subr.bf16.mxu0 0
    %684 = vmatpush1.bf16.msra.mxu0 %v551
    %685 = vmatprep.subr.bf16.mxu0 0
    %686 = vmatpush1.bf16.msra.mxu0 %v552
    %687 = vmatprep.subr.bf16.mxu0 0
    %688 = vmatpush1.bf16.msra.mxu0 %v553
    %689 = vmatprep.subr.bf16.mxu0 0
    %690 = vmatpush1.bf16.msra.mxu0 %v554
    %691 = vmatprep.subr.bf16.mxu0 0
    %692 = vmatpush1.bf16.msra.mxu0 %v555
    %693 = vmatprep.subr.bf16.mxu0 0
    %694 = vmatpush1.bf16.msra.mxu0 %v556
    %695 = vmatprep.subr.bf16.mxu0 0
    %696 = vmatpush1.bf16.msra.mxu0 %v557
    %697 = vmatprep.subr.bf16.mxu0 0
    %698 = vmatpush1.bf16.msra.mxu0 %v558
    %699 = vmatprep.mubr.bf16.mxu0 %v288
    %700 = vmatmul.mubr.bf16.gmra.mrb[0].mxu0 %v287
    %v701 = vpop.f32.mrb[0].mxu0
    %v702 = vadd.f32 %v237, %v701
    %v703 = vpop.f32.mrb[0].mxu0
    %v704 = vpop.f32.mrb[0].mxu0
    %v705 = vadd.f32 %v237, %v704
    %v706 = vpop.f32.mrb[0].mxu0
    %707 = vmatprep.mubr.bf16.mxu0 %v296
    %708 = vmatmul.mubr.bf16.gmra.mrb[0].mxu0 %v295
    %v709 = vpop.f32.mrb[0].mxu0
    %v710 = vadd.f32 %v237, %v709
    %v711 = vpop.f32.mrb[0].mxu0
    %v712 = vpop.f32.mrb[0].mxu0
    %v713 = vadd.f32 %v237, %v712
    %v714 = vpop.f32.mrb[0].mxu0
    %715 = vdwg.mxu0
    %716 = vmatprep.subr.bf16.mxu0 0
    %717 = vmatpush1.bf16.msra.mxu0 %v559
    %718 = vmatprep.subr.bf16.mxu0 0
    %719 = vmatpush1.bf16.msra.mxu0 %v560
    %720 = vmatprep.subr.bf16.mxu0 0
    %721 = vmatpush1.bf16.msra.mxu0 %v561
    %722 = vmatprep.subr.bf16.mxu0 0
    %723 = vmatpush1.bf16.msra.mxu0 %v562
    %724 = vmatprep.subr.bf16.mxu0 0
    %725 = vmatpush1.bf16.msra.mxu0 %v563
    %726 = vmatprep.subr.bf16.mxu0 0
    %727 = vmatpush1.bf16.msra.mxu0 %v564
    %728 = vmatprep.subr.bf16.mxu0 0
    %729 = vmatpush1.bf16.msra.mxu0 %v565
    %730 = vmatprep.subr.bf16.mxu0 0
    %731 = vmatpush1.bf16.msra.mxu0 %v566
    %732 = vmatprep.subr.bf16.mxu0 0
    %733 = vmatpush1.bf16.msra.mxu0 %v567
    %734 = vmatprep.subr.bf16.mxu0 0
    %735 = vmatpush1.bf16.msra.mxu0 %v568
    %736 = vmatprep.subr.bf16.mxu0 0
    %737 = vmatpush1.bf16.msra.mxu0 %v569
    %738 = vmatprep.subr.bf16.mxu0 0
    %739 = vmatpush1.bf16.msra.mxu0 %v570
    %740 = vmatprep.subr.bf16.mxu0 0
    %741 = vmatpush1.bf16.msra.mxu0 %v571
    %742 = vmatprep.subr.bf16.mxu0 0
    %743 = vmatpush1.bf16.msra.mxu0 %v572
    %744 = vmatprep.subr.bf16.mxu0 0
    %745 = vmatpush1.bf16.msra.mxu0 %v573
    %746 = vmatprep.subr.bf16.mxu0 0
    %747 = vmatpush1.bf16.msra.mxu0 %v574
    %748 = vmatprep.mubr.bf16.mxu0 %v290
    %749 = vmatmul.mubr.bf16.gmra.mrb[0].mxu0 %v289
    %v750 = vpop.f32.mrb[0].mxu0
    %v751 = vadd.f32 %v702, %v750
    %v752 = vpop.f32.mrb[0].mxu0
    %v753 = vpop.f32.mrb[0].mxu0
    %v754 = vadd.f32 %v705, %v753
    %v755 = vpop.f32.mrb[0].mxu0
    %756 = vmatprep.mubr.bf16.mxu0 %v298
    %757 = vmatmul.mubr.bf16.gmra.mrb[0].mxu0 %v297
    %v758 = vpop.f32.mrb[0].mxu0
    %v759 = vadd.f32 %v710, %v758
    %v760 = vpop.f32.mrb[0].mxu0
    %v761 = vpop.f32.mrb[0].mxu0
    %v762 = vadd.f32 %v713, %v761
    %v763 = vpop.f32.mrb[0].mxu0
    %764 = vdwg.mxu0
    %765 = vmatprep.subr.bf16.mxu0 0
    %766 = vmatpush1.bf16.msra.mxu0 %v575
    %767 = vmatprep.subr.bf16.mxu0 0
    %768 = vmatpush1.bf16.msra.mxu0 %v576
    %769 = vmatprep.subr.bf16.mxu0 0
    %770 = vmatpush1.bf16.msra.mxu0 %v577
    %771 = vmatprep.subr.bf16.mxu0 0
    %772 = vmatpush1.bf16.msra.mxu0 %v578
    %773 = vmatprep.subr.bf16.mxu0 0
    %774 = vmatpush1.bf16.msra.mxu0 %v579
    %775 = vmatprep.subr.bf16.mxu0 0
    %776 = vmatpush1.bf16.msra.mxu0 %v580
    %777 = vmatprep.subr.bf16.mxu0 0
    %778 = vmatpush1.bf16.msra.mxu0 %v581
    %779 = vmatprep.subr.bf16.mxu0 0
    %780 = vmatpush1.bf16.msra.mxu0 %v582
    %781 = vmatprep.subr.bf16.mxu0 0
    %782 = vmatpush1.bf16.msra.mxu0 %v583
    %783 = vmatprep.subr.bf16.mxu0 0
    %784 = vmatpush1.bf16.msra.mxu0 %v584
    %785 = vmatprep.subr.bf16.mxu0 0
    %786 = vmatpush1.bf16.msra.mxu0 %v585
    %787 = vmatprep.subr.bf16.mxu0 0
    %788 = vmatpush1.bf16.msra.mxu0 %v586
    %789 = vmatprep.subr.bf16.mxu0 0
    %790 = vmatpush1.bf16.msra.mxu0 %v587
    %791 = vmatprep.subr.bf16.mxu0 0
    %792 = vmatpush1.bf16.msra.mxu0 %v588
    %793 = vmatprep.subr.bf16.mxu0 0
    %794 = vmatpush1.bf16.msra.mxu0 %v589
    %795 = vmatprep.subr.bf16.mxu0 0
    %796 = vmatpush1.bf16.msra.mxu0 %v590
    %797 = vmatprep.mubr.bf16.mxu0 %v292
    %798 = vmatmul.mubr.bf16.gmra.mrb[0].mxu0 %v291
    %v799 = vpop.f32.mrb[0].mxu0
    %v800 = vadd.f32 %v751, %v799
    %v801 = vpop.f32.mrb[0].mxu0
    %v802 = vpop.f32.mrb[0].mxu0
    %v803 = vadd.f32 %v754, %v802
    %v804 = vpop.f32.mrb[0].mxu0
    %805 = vmatprep.mubr.bf16.mxu0 %v300
    %806 = vmatmul.mubr.bf16.gmra.mrb[0].mxu0 %v299
    %v807 = vpop.f32.mrb[0].mxu0
    %v808 = vadd.f32 %v759, %v807
    %v809 = vpop.f32.mrb[0].mxu0
    %v810 = vpop.f32.mrb[0].mxu0
    %v811 = vadd.f32 %v762, %v810
    %v812 = vpop.f32.mrb[0].mxu0
    %813 = vdwg.mxu0
    %814 = vmatprep.subr.bf16.mxu0 0
    %815 = vmatpush1.bf16.msra.mxu0 %v591
    %816 = vmatprep.subr.bf16.mxu0 0
    %817 = vmatpush1.bf16.msra.mxu0 %v592
    %818 = vmatprep.subr.bf16.mxu0 0
    %819 = vmatpush1.bf16.msra.mxu0 %v593
    %820 = vmatprep.subr.bf16.mxu0 0
    %821 = vmatpush1.bf16.msra.mxu0 %v594
    %822 = vmatprep.subr.bf16.mxu0 0
    %823 = vmatpush1.bf16.msra.mxu0 %v595
    %824 = vmatprep.subr.bf16.mxu0 0
    %825 = vmatpush1.bf16.msra.mxu0 %v596
    %826 = vmatprep.subr.bf16.mxu0 0
    %827 = vmatpush1.bf16.msra.mxu0 %v597
    %828 = vmatprep.subr.bf16.mxu0 0
    %829 = vmatpush1.bf16.msra.mxu0 %v598
    %830 = vmatprep.subr.bf16.mxu0 0
    %831 = vmatpush1.bf16.msra.mxu0 %v665
    %832 = vmatprep.subr.bf16.mxu0 0
    %833 = vmatpush1.bf16.msra.mxu0 0
    %834 = vmatprep.subr.bf16.mxu0 0
    %835 = vmatpush1.bf16.msra.mxu0 0
    %836 = vmatprep.subr.bf16.mxu0 0
    %837 = vmatpush1.bf16.msra.mxu0 0
    %838 = vmatprep.subr.bf16.mxu0 0
    %839 = vmatpush1.bf16.msra.mxu0 0
    %840 = vmatprep.subr.bf16.mxu0 0
    %841 = vmatpush1.bf16.msra.mxu0 0
    %842 = vmatprep.subr.bf16.mxu0 0
    %843 = vmatpush1.bf16.msra.mxu0 0
    %844 = vmatprep.subr.bf16.mxu0 0
    %845 = vmatpush1.bf16.msra.mxu0 0
    %846 = vmatprep.mubr.bf16.mxu0 %v658
    %847 = vmatmul.mubr.bf16.gmra.mrb[0].mxu0 %v293
    %v848 = vpop.f32.mrb[0].mxu0
    %v849 = vadd.f32 %v800, %v848
    %v850 = vpop.f32.mrb[0].mxu0
    %v851 = vpop.f32.mrb[0].mxu0
    %v852 = vadd.f32 %v803, %v851
    %v853 = vpop.f32.mrb[0].mxu0
    %854 = vmatprep.mubr.bf16.mxu0 %v661
    %855 = vmatmul.mubr.bf16.gmra.mrb[0].mxu0 %v301
    %v856 = vpop.f32.mrb[0].mxu0
    %v857 = vadd.f32 %v808, %v856
    %v858 = vpop.f32.mrb[0].mxu0
    %v859 = vpop.f32.mrb[0].mxu0
    %v860 = vadd.f32 %v811, %v859
    %v861 = vpop.f32.mrb[0].mxu0
    %862 = vdwg.mxu0
    %v863 = vld [vmem:[#allocation6] sm:$0xff]
    %v864 = vld [vmem:[#allocation6 + $0x8] sm:$0xff]
    %v865 = vld [vmem:[#allocation6 + $0x10] sm:$0xff]
    %v866 = vld [vmem:[#allocation6 + $0x18] sm:$0xff]
    %v867 = vld [vmem:[#allocation7] sm:$0xff]
    %v868 = vld [vmem:[#allocation7 + $0x8] sm:$0xff]
    %v869 = vld [vmem:[#allocation7 + $0x10] sm:$0xff]
    %v870 = vld [vmem:[#allocation7 + $0x18] sm:$0xff]
    %v871 = vld [vmem:[#allocation7 + $0x20] sm:$0xff]
    %v872 = vld [vmem:[#allocation7 + $0x28] sm:$0xff]
    %v873 = vld [vmem:[#allocation7 + $0x30] sm:$0xff]
    %v874 = vld [vmem:[#allocation7 + $0x38] sm:$0xff]
    %v875 = vld [vmem:[#allocation7 + $0x40] sm:$0xff]
    %v876 = vld [vmem:[#allocation7 + $0x48] sm:$0xff]
    %v877 = vld [vmem:[#allocation7 + $0x50] sm:$0xff]
    %v878 = vld [vmem:[#allocation7 + $0x58] sm:$0xff]
    %v879 = vld [vmem:[#allocation7 + $0x60] sm:$0xff]
    %v880 = vld [vmem:[#allocation7 + $0x68] sm:$0xff]
    %v881 = vld [vmem:[#allocation7 + $0x70] sm:$0xff]
    %v882 = vld [vmem:[#allocation7 + $0x78] sm:$0xff]
    %v883 = vmul.f32 %v849, %v863
    %v884 = vmul.f32 %v852, %v864
    %v885 = vmul.f32 %v857, %v865
    %v886 = vmul.f32 %v860, %v866
    %887 = vmatprep.subr.mxu0 0.0
    %888 = vmatpush1.msra.mxu0 %v867
    %889 = vmatprep.subr.mxu0 0.0
    %890 = vmatpush1.msra.mxu0 %v868
    %891 = vmatprep.subr.mxu0 0.0
    %892 = vmatpush1.msra.mxu0 %v869
    %893 = vmatprep.subr.mxu0 0.0
    %894 = vmatpush1.msra.mxu0 %v870
    %895 = vmatprep.subr.mxu0 0.0
    %896 = vmatpush1.msra.mxu0 %v871
    %897 = vmatprep.subr.mxu0 0.0
    %898 = vmatpush1.msra.mxu0 %v872
    %899 = vmatprep.subr.mxu0 0.0
    %900 = vmatpush1.msra.mxu0 %v873
    %901 = vmatprep.subr.mxu0 0.0
    %902 = vmatpush1.msra.mxu0 %v874
    %903 = vmatprep.subr.mxu0 0.0
    %904 = vmatpush1.msra.mxu0 %v875
    %905 = vmatprep.subr.mxu0 0.0
    %906 = vmatpush1.msra.mxu0 %v876
    %907 = vmatprep.subr.mxu0 0.0
    %908 = vmatpush1.msra.mxu0 %v877
    %909 = vmatprep.subr.mxu0 0.0
    %910 = vmatpush1.msra.mxu0 %v878
    %911 = vmatprep.subr.mxu0 0.0
    %912 = vmatpush1.msra.mxu0 %v879
    %913 = vmatprep.subr.mxu0 0.0
    %914 = vmatpush1.msra.mxu0 %v880
    %915 = vmatprep.subr.mxu0 0.0
    %916 = vmatpush1.msra.mxu0 %v881
    %917 = vmatprep.subr.mxu0 0.0
    %918 = vmatpush1.msra.mxu0 %v882
    %919 = vmatprep.subr.mxu0 0.0
    %920 = vmatpush1.msra.mxu0 0.0
    %921 = vmatprep.subr.mxu0 0.0
    %922 = vmatpush1.msra.mxu0 0.0
    %923 = vmatprep.subr.mxu0 0.0
    %924 = vmatpush1.msra.mxu0 0.0
    %925 = vmatprep.subr.mxu0 0.0
    %926 = vmatpush1.msra.mxu0 0.0
    %927 = vmatprep.subr.mxu0 0.0
    %928 = vmatpush1.msra.mxu0 0.0
    %929 = vmatprep.subr.mxu0 0.0
    %930 = vmatpush1.msra.mxu0 0.0
    %931 = vmatprep.subr.mxu0 0.0
    %932 = vmatpush1.msra.mxu0 0.0
    %933 = vmatprep.subr.mxu0 0.0
    %934 = vmatpush1.msra.mxu0 0.0
    %935 = vmatprep.subr.mxu0 0.0
    %936 = vmatpush1.msra.mxu0 0.0
    %937 = vmatprep.subr.mxu0 0.0
    %938 = vmatpush1.msra.mxu0 0.0
    %939 = vmatprep.subr.mxu0 0.0
    %940 = vmatpush1.msra.mxu0 0.0
    %941 = vmatprep.subr.mxu0 0.0
    %942 = vmatpush1.msra.mxu0 0.0
    %943 = vmatprep.subr.mxu0 0.0
    %944 = vmatpush1.msra.mxu0 0.0
    %945 = vmatprep.subr.mxu0 0.0
    %946 = vmatpush1.msra.mxu0 0.0
    %947 = vmatprep.subr.mxu0 0.0
    %948 = vmatpush1.msra.mxu0 0.0
    %949 = vmatprep.subr.mxu0 0.0
    %950 = vmatpush1.msra.mxu0 0.0
    %951 = vmatprep.mubr.f32.mxu0 0.0
    %952 = vmatmul.mubr.f32.gmra.mrb[0].mxu0 %v883
    %v953 = vpop.f32.mrb[0].mxu0
    %v954 = vadd.f32 0.0, %v953
    %v955 = vpop.f32.mrb[0].mxu0
    %956 = vmatprep.mubr.f32.mxu0 0.0
    %957 = vmatmul.mubr.f32.gmra.mrb[0].mxu0 %v884
    %v958 = vpop.f32.mrb[0].mxu0
    %v959 = vadd.f32 0.0, %v958
    %v960 = vpop.f32.mrb[0].mxu0
    %961 = vmatprep.mubr.f32.mxu0 0.0
    %962 = vmatmul.mubr.f32.gmra.mrb[0].mxu0 %v885
    %v963 = vpop.f32.mrb[0].mxu0
    %v964 = vadd.f32 0.0, %v963
    %v965 = vpop.f32.mrb[0].mxu0
    %966 = vmatprep.mubr.f32.mxu0 0.0
    %967 = vmatmul.mubr.f32.gmra.mrb[0].mxu0 %v886
    %v968 = vpop.f32.mrb[0].mxu0
    %v969 = vadd.f32 0.0, %v968
    %v970 = vpop.f32.mrb[0].mxu0
    %971 = vdwg.mxu0
    %v972 = vadd.f32 %v954, %v959
    %v973 = vadd.f32 %v972, %v964
    %v974 = vadd.f32 %v973, %v969
    %v975 = vrot.slane %v974, 4
    %v976 = vadd.f32 %v974, %v975
    %v977 = vrot.slane %v976, 2
    %v978 = vadd.f32 %v976, %v977
    %v979 = vrot.slane %v978, 1
    %v980 = vadd.f32 %v978, %v979
    %v981 = vmul.f32 %v980, 0.055555556
    %v982 = vsub.f32 %v849, %v981
    %v983 = vsub.f32 %v852, %v981
    %v984 = vsub.f32 %v857, %v981
    %v985 = vsub.f32 %v860, %v981
    %v986 = vmul.f32 %v982, %v863
    %v987 = vmul.f32 %v983, %v864
    %v988 = vmul.f32 %v984, %v865
    %v989 = vmul.f32 %v985, %v866
    %v990 = vmul.f32 %v986, %v986
    %v991 = vmul.f32 %v987, %v987
    %v992 = vmul.f32 %v988, %v988
    %v993 = vmul.f32 %v989, %v989
    %994 = vmatprep.subr.mxu0 0.0
    %995 = vmatpush1.msra.mxu0 %v867
    %996 = vmatprep.subr.mxu0 0.0
    %997 = vmatpush1.msra.mxu0 %v868
    %998 = vmatprep.subr.mxu0 0.0
    %999 = vmatpush1.msra.mxu0 %v869
    %1000 = vmatprep.subr.mxu0 0.0
    %1001 = vmatpush1.msra.mxu0 %v870
    %1002 = vmatprep.subr.mxu0 0.0
    %1003 = vmatpush1.msra.mxu0 %v871
    %1004 = vmatprep.subr.mxu0 0.0
    %1005 = vmatpush1.msra.mxu0 %v872
    %1006 = vmatprep.subr.mxu0 0.0
    %1007 = vmatpush1.msra.mxu0 %v873
    %1008 = vmatprep.subr.mxu0 0.0
    %1009 = vmatpush1.msra.mxu0 %v874
    %1010 = vmatprep.subr.mxu0 0.0
    %1011 = vmatpush1.msra.mxu0 %v875
    %1012 = vmatprep.subr.mxu0 0.0
    %1013 = vmatpush1.msra.mxu0 %v876
    %1014 = vmatprep.subr.mxu0 0.0
    %1015 = vmatpush1.msra.mxu0 %v877
    %1016 = vmatprep.subr.mxu0 0.0
    %1017 = vmatpush1.msra.mxu0 %v878
    %1018 = vmatprep.subr.mxu0 0.0
    %1019 = vmatpush1.msra.mxu0 %v879
    %1020 = vmatprep.subr.mxu0 0.0
    %1021 = vmatpush1.msra.mxu0 %v880
    %1022 = vmatprep.subr.mxu0 0.0
    %1023 = vmatpush1.msra.mxu0 %v881
    %1024 = vmatprep.subr.mxu0 0.0
    %1025 = vmatpush1.msra.mxu0 %v882
    %1026 = vmatprep.subr.mxu0 0.0
    %1027 = vmatpush1.msra.mxu0 0.0
    %1028 = vmatprep.subr.mxu0 0.0
    %1029 = vmatpush1.msra.mxu0 0.0
    %1030 = vmatprep.subr.mxu0 0.0
    %1031 = vmatpush1.msra.mxu0 0.0
    %1032 = vmatprep.subr.mxu0 0.0
    %1033 = vmatpush1.msra.mxu0 0.0
    %1034 = vmatprep.subr.mxu0 0.0
    %1035 = vmatpush1.msra.mxu0 0.0
    %1036 = vmatprep.subr.mxu0 0.0
    %1037 = vmatpush1.msra.mxu0 0.0
    %1038 = vmatprep.subr.mxu0 0.0
    %1039 = vmatpush1.msra.mxu0 0.0
    %1040 = vmatprep.subr.mxu0 0.0
    %1041 = vmatpush1.msra.mxu0 0.0
    %1042 = vmatprep.subr.mxu0 0.0
    %1043 = vmatpush1.msra.mxu0 0.0
    %1044 = vmatprep.subr.mxu0 0.0
    %1045 = vmatpush1.msra.mxu0 0.0
    %1046 = vmatprep.subr.mxu0 0.0
    %1047 = vmatpush1.msra.mxu0 0.0
    %1048 = vmatprep.subr.mxu0 0.0
    %1049 = vmatpush1.msra.mxu0 0.0
    %1050 = vmatprep.subr.mxu0 0.0
    %1051 = vmatpush1.msra.mxu0 0.0
    %1052 = vmatprep.subr.mxu0 0.0
    %1053 = vmatpush1.msra.mxu0 0.0
    %1054 = vmatprep.subr.mxu0 0.0
    %1055 = vmatpush1.msra.mxu0 0.0
    %1056 = vmatprep.subr.mxu0 0.0
    %1057 = vmatpush1.msra.mxu0 0.0
    %1058 = vmatprep.mubr.f32.mxu0 0.0
    %1059 = vmatmul.mubr.f32.gmra.mrb[0].mxu0 %v990
    %v1060 = vpop.f32.mrb[0].mxu0
    %v1061 = vadd.f32 0.0, %v1060
    %v1062 = vpop.f32.mrb[0].mxu0
    %1063 = vmatprep.mubr.f32.mxu0 0.0
    %1064 = vmatmul.mubr.f32.gmra.mrb[0].mxu0 %v991
    %v1065 = vpop.f32.mrb[0].mxu0
    %v1066 = vadd.f32 0.0, %v1065
    %v1067 = vpop.f32.mrb[0].mxu0
    %1068 = vmatprep.mubr.f32.mxu0 0.0
    %1069 = vmatmul.mubr.f32.gmra.mrb[0].mxu0 %v992
    %v1070 = vpop.f32.mrb[0].mxu0
    %v1071 = vadd.f32 0.0, %v1070
    %v1072 = vpop.f32.mrb[0].mxu0
    %1073 = vmatprep.mubr.f32.mxu0 0.0
    %1074 = vmatmul.mubr.f32.gmra.mrb[0].mxu0 %v993
    %v1075 = vpop.f32.mrb[0].mxu0
    %v1076 = vadd.f32 0.0, %v1075
    %v1077 = vpop.f32.mrb[0].mxu0
    %1078 = vdwg.mxu0
    %v1079 = vadd.f32 %v1061, %v1066
    %v1080 = vadd.f32 %v1079, %v1071
    %v1081 = vadd.f32 %v1080, %v1076
    %v1082 = vrot.slane %v1081, 4
    %v1083 = vadd.f32 %v1081, %v1082
    %v1084 = vrot.slane %v1083, 2
    %v1085 = vadd.f32 %v1083, %v1084
    %v1086 = vrot.slane %v1085, 1
    %v1087 = vadd.f32 %v1085, %v1086
    %v1088 = vmul.f32 %v1087, 0.055555556
    %v1089 = vld [vmem:[#allocation9] sm:$0x1]
    %v1090 = vadd.f32 %v1088, 1e-05
    %v1091 = vrsqrt.pop %v1090
    %v1092 = vmul.f32 %v1089, %v1091
    %v1094 = vlaneseq
    %v1095 = vshrl.u32 %v1094, 7
    %v1096 = vsub.s32 0, %v1095
    %v1097 = vrot.slane %v1092, %v1096
    %v1099 = vmul.f32 %v982, %v1097
    %v1100 = vmul.f32 %v983, %v1097
    %v1101 = vmul.f32 %v984, %v1097
    %v1102 = vmul.f32 %v985, %v1097
    %v1103 = vld [vmem:[#allocation10] sm:$0x1]
    %v1105 = vlaneseq
    %v1106 = vshrl.u32 %v1105, 7
    %v1107 = vsub.s32 0, %v1106
    %v1108 = vrot.slane %v1103, %v1107
    %v1110 = vadd.f32 %v1099, %v1108
    %v1111 = vadd.f32 %v1100, %v1108
    %v1112 = vadd.f32 %v1101, %v1108
    %v1113 = vadd.f32 %v1102, %v1108
    %v1114 = vmax.f32 %v1110, 0.0
    %v1115 = vmax.f32 %v1111, 0.0
    %v1116 = vmax.f32 %v1112, 0.0
    %v1117 = vmax.f32 %v1113, 0.0
    %v1118 = vpack.c.bf16 %v1115, %v1114
    %v1119 = vpack.c.bf16 %v1117, %v1116
    %v1122 = vunpack.c.l.b16 %v1118
    %v1123 = vunpack.c.h.b16 %v1118
    %v1124 = vunpack.c.l.b16 %v1119
    %v1125 = vunpack.c.h.b16 %v1119
    %v1126 = vpack.c.b16 %v1122, %v1122
    %v1127 = vpack.c.b16 %v1123, %v1123
    %v1128 = vpack.c.b16 %v1124, %v1124
    %v1129 = vpack.c.b16 %v1125, %v1125
    %1134 = vst [vmem:[%s7] sm:$0xf] %v1126
    %1135 = vst [vmem:[%s7 + $0x4] sm:$0xf] %v1127
    %1136 = vst [vmem:[%s7 + $0x8] sm:$0xf] %v1128
    %1137 = vst [vmem:[%s7 + $0xc] sm:$0xf] %v1129
    // Predicated region
    $region54: #{generator_forward.5} parent=1 // pred_check
      _
    $region55: #{generator_forward.5} parent=1 // pred_check_branch
      %1139 = sbr.rel (0) target = $region57
    $region56: #{generator_forward.5} parent=1 // pred_region
      _
    $region57: #{generator_forward.5} parent=1 // pred_fallthru
      _
    // Predicated region
    $region58: #{generator_forward.5} parent=1 // pred_check
      _
    $region59: #{generator_forward.5} parent=1 // pred_check_branch
      %1141 = sbr.rel (0) target = $region61
    $region60: #{generator_forward.5} parent=1 // pred_region
      _
    $region61: #{generator_forward.5} parent=1 // pred_fallthru
      _
    %1142 = vsyncpa [#allocation3], 1
    %1143 = vsyncpa [#allocation5], 1
    %1144 = vsyncpa [#allocation8], 1
    %1145 = vsyncpa [#allocation11], 1

// kernel: generator_forward.6
$region0: #{generator_forward.6}
  #allocation0 [shape = 'u32[]', space=smem, size = 0x4, offset = 0x4, fixed_abs, tag = 'smem constant byte address 0x4 - core index']
  #allocation1 [shape = 'u32[144,128]{1,0:T(1,128)}', space=vmem, size = 0x12000, scoped, tag = 'internal scratch']
  %s0 = inlined_call_operand.vmem [shape: bf16[32,1152], index: 0, kind: input, shape index: {}]
  %s1 = inlined_call_operand.vmem [shape: bf16[1152,256], index: 1, kind: input, shape index: {}]
  %s2 = inlined_call_operand.vmem [shape: f32[1,256], index: 2, kind: input, shape index: {}]
  %s3 = inlined_call_operand.vmem [shape: f32[32,256], index: 3, kind: input, shape index: {}]
  %s4 = inlined_call_operand.vmem [shape: f32[256,256], index: 4, kind: input, shape index: {}]
  %s5 = inlined_call_operand.vmem [shape: f32[1,256], index: 5, kind: input, shape index: {}]
  %s6 = inlined_call_operand.vmem [shape: f32[1,256], index: 6, kind: input, shape index: {}]
  %s7 = inlined_call_operand.vmem [shape: bf16[32,256], index: 7, kind: output, shape index: {}]
  %s8 = sld [smem:[#allocation0]]
  $region38: #{generator_forward.6} parent=0
    _
  %s10 = ssub.s32 1, %s8
  %s11 = scalar_select 0, %s10, %s8
  // Predicated region
  $region2: #{generator_forward.6} parent=0 // pred_check
    _
  $region3: #{generator_forward.6} parent=0 // pred_check_branch
    %13 = sbr.rel (0) target = $region5
  $region4: #{generator_forward.6} parent=0 // pred_region
    _
  $region5: #{generator_forward.6} parent=0 // pred_fallthru
    _
  // Predicated region
  $region6: #{generator_forward.6} parent=0 // pred_check
    _
  $region7: #{generator_forward.6} parent=0 // pred_check_branch
    %15 = sbr.rel (0) target = $region9
  $region8: #{generator_forward.6} parent=0 // pred_region
    _
  $region9: #{generator_forward.6} parent=0 // pred_fallthru
    _
  // Predicated region
  $region10: #{generator_forward.6} parent=0 // pred_check
    _
  $region11: #{generator_forward.6} parent=0 // pred_check_branch
    %17 = sbr.rel (0) target = $region13
  $region12: #{generator_forward.6} parent=0 // pred_region
    _
  $region13: #{generator_forward.6} parent=0 // pred_fallthru
    _
  // Predicated region
  $region14: #{generator_forward.6} parent=0 // pred_check
    _
  $region15: #{generator_forward.6} parent=0 // pred_check_branch
    %19 = sbr.rel (0) target = $region17
  $region16: #{generator_forward.6} parent=0 // pred_region
    _
  $region17: #{generator_forward.6} parent=0 // pred_fallthru
    _
  // Predicated region
  $region18: #{generator_forward.6} parent=0 // pred_check
    _
  $region19: #{generator_forward.6} parent=0 // pred_check_branch
    %21 = sbr.rel (0) target = $region21
  $region20: #{generator_forward.6} parent=0 // pred_region
    _
  $region21: #{generator_forward.6} parent=0 // pred_fallthru
    _
  // Predicated region
  $region22: #{generator_forward.6} parent=0 // pred_check
    _
  $region23: #{generator_forward.6} parent=0 // pred_check_branch
    %23 = sbr.rel (0) target = $region25
  $region24: #{generator_forward.6} parent=0 // pred_region
    _
  $region25: #{generator_forward.6} parent=0 // pred_fallthru
    _
  // Predicated region
  $region26: #{generator_forward.6} parent=0 // pred_check
    _
  $region27: #{generator_forward.6} parent=0 // pred_check_branch
    %25 = sbr.rel (0) target = $region29
  $region28: #{generator_forward.6} parent=0 // pred_region
    _
  $region29: #{generator_forward.6} parent=0 // pred_fallthru
    _
  %v27 = vld [vmem:[%s0] sm:$0xff]
  %v28 = vld [vmem:[%s0 + $0x8] sm:$0xff]
  %v29 = vld [vmem:[%s0 + $0x10] sm:$0xff]
  %v30 = vld [vmem:[%s0 + $0x18] sm:$0xff]
  %v31 = vld [vmem:[%s0 + $0x20] sm:$0xf]
  %v32 = vld [vmem:[%s0 + $0x24] sm:$0xff]
  %v33 = vld [vmem:[%s0 + $0x2c] sm:$0xff]
  %v34 = vld [vmem:[%s0 + $0x34] sm:$0xff]
  %v35 = vld [vmem:[%s0 + $0x3c] sm:$0xff]
  %v36 = vld [vmem:[%s0 + $0x44] sm:$0xf]
  %v37 = vld [vmem:[%s0 + $0x48] sm:$0xff]
  %v38 = vld [vmem:[%s0 + $0x50] sm:$0xff]
  %v39 = vld [vmem:[%s0 + $0x58] sm:$0xff]
  %v40 = vld [vmem:[%s0 + $0x60] sm:$0xff]
  %v41 = vld [vmem:[%s0 + $0x68] sm:$0xf]
  %v42 = vld [vmem:[%s0 + $0x6c] sm:$0xff]
  %v43 = vld [vmem:[%s0 + $0x74] sm:$0xff]
  %v44 = vld [vmem:[%s0 + $0x7c] sm:$0xff]
  %v45 = vld [vmem:[%s0 + $0x84] sm:$0xff]
  %v46 = vld [vmem:[%s0 + $0x8c] sm:$0xf]
  %v47 = vld [vmem:[%s1] sm:$0xff]
  %v48 = vld [vmem:[%s1 + $0x8] sm:$0xff]
  %v49 = vld [vmem:[%s1 + $0x10] sm:$0xff]
  %v50 = vld [vmem:[%s1 + $0x18] sm:$0xff]
  %v51 = vld [vmem:[%s1 + $0x20] sm:$0xff]
  %v52 = vld [vmem:[%s1 + $0x28] sm:$0xff]
  %v53 = vld [vmem:[%s1 + $0x30] sm:$0xff]
  %v54 = vld [vmem:[%s1 + $0x38] sm:$0xff]
  %v55 = vld [vmem:[%s1 + $0x40] sm:$0xff]
  %v56 = vld [vmem:[%s1 + $0x48] sm:$0xff]
  %v57 = vld [vmem:[%s1 + $0x50] sm:$0xff]
  %v58 = vld [vmem:[%s1 + $0x58] sm:$0xff]
  %v59 = vld [vmem:[%s1 + $0x60] sm:$0xff]
  %v60 = vld [vmem:[%s1 + $0x68] sm:$0xff]
  %v61 = vld [vmem:[%s1 + $0x70] sm:$0xff]
  %v62 = vld [vmem:[%s1 + $0x78] sm:$0xff]
  %v63 = vld [vmem:[%s1 + $0x80] sm:$0xff]
  %v64 = vld [vmem:[%s1 + $0x88] sm:$0xff]
  %v65 = vld [vmem:[%s1 + $0x90] sm:$0xff]
  %v66 = vld [vmem:[%s1 + $0x98] sm:$0xff]
  %v67 = vld [vmem:[%s1 + $0xa0] sm:$0xff]
  %v68 = vld [vmem:[%s1 + $0xa8] sm:$0xff]
  %v69 = vld [vmem:[%s1 + $0xb0] sm:$0xff]
  %v70 = vld [vmem:[%s1 + $0xb8] sm:$0xff]
  %v71 = vld [vmem:[%s1 + $0xc0] sm:$0xff]
  %v72 = vld [vmem:[%s1 + $0xc8] sm:$0xff]
  %v73 = vld [vmem:[%s1 + $0xd0] sm:$0xff]
  %v74 = vld [vmem:[%s1 + $0xd8] sm:$0xff]
  %v75 = vld [vmem:[%s1 + $0xe0] sm:$0xff]
  %v76 = vld [vmem:[%s1 + $0xe8] sm:$0xff]
  %v77 = vld [vmem:[%s1 + $0xf0] sm:$0xff]
  %v78 = vld [vmem:[%s1 + $0xf8] sm:$0xff]
  %v79 = vld [vmem:[%s1 + $0x100] sm:$0xff]
  %v80 = vld [vmem:[%s1 + $0x108] sm:$0xff]
  %v81 = vld [vmem:[%s1 + $0x110] sm:$0xff]
  %v82 = vld [vmem:[%s1 + $0x118] sm:$0xff]
  %v83 = vld [vmem:[%s1 + $0x120] sm:$0xff]
  %v84 = vld [vmem:[%s1 + $0x128] sm:$0xff]
  %v85 = vld [vmem:[%s1 + $0x130] sm:$0xff]
  %v86 = vld [vmem:[%s1 + $0x138] sm:$0xff]
  %v87 = vld [vmem:[%s1 + $0x140] sm:$0xff]
  %v88 = vld [vmem:[%s1 + $0x148] sm:$0xff]
  %v89 = vld [vmem:[%s1 + $0x150] sm:$0xff]
  %v90 = vld [vmem:[%s1 + $0x158] sm:$0xff]
  %v91 = vld [vmem:[%s1 + $0x160] sm:$0xff]
  %v92 = vld [vmem:[%s1 + $0x168] sm:$0xff]
  %v93 = vld [vmem:[%s1 + $0x170] sm:$0xff]
  %v94 = vld [vmem:[%s1 + $0x178] sm:$0xff]
  %v95 = vld [vmem:[%s1 + $0x180] sm:$0xff]
  %v96 = vld [vmem:[%s1 + $0x188] sm:$0xff]
  %v97 = vld [vmem:[%s1 + $0x190] sm:$0xff]
  %v98 = vld [vmem:[%s1 + $0x198] sm:$0xff]
  %v99 = vld [vmem:[%s1 + $0x1a0] sm:$0xff]
  %v100 = vld [vmem:[%s1 + $0x1a8] sm:$0xff]
  %v101 = vld [vmem:[%s1 + $0x1b0] sm:$0xff]
  %v102 = vld [vmem:[%s1 + $0x1b8] sm:$0xff]
  %v103 = vld [vmem:[%s1 + $0x1c0] sm:$0xff]
  %v104 = vld [vmem:[%s1 + $0x1c8] sm:$0xff]
  %v105 = vld [vmem:[%s1 + $0x1d0] sm:$0xff]
  %v106 = vld [vmem:[%s1 + $0x1d8] sm:$0xff]
  %v107 = vld [vmem:[%s1 + $0x1e0] sm:$0xff]
  %v108 = vld [vmem:[%s1 + $0x1e8] sm:$0xff]
  %v109 = vld [vmem:[%s1 + $0x1f0] sm:$0xff]
  %v110 = vld [vmem:[%s1 + $0x1f8] sm:$0xff]
  %v111 = vld [vmem:[%s1 + $0x200] sm:$0xff]
  %v112 = vld [vmem:[%s1 + $0x208] sm:$0xff]
  %v113 = vld [vmem:[%s1 + $0x210] sm:$0xff]
  %v114 = vld [vmem:[%s1 + $0x218] sm:$0xff]
  %v115 = vld [vmem:[%s1 + $0x220] sm:$0xff]
  %v116 = vld [vmem:[%s1 + $0x228] sm:$0xff]
  %v117 = vld [vmem:[%s1 + $0x230] sm:$0xff]
  %v118 = vld [vmem:[%s1 + $0x238] sm:$0xff]
  %v119 = vld [vmem:[%s1 + $0x240] sm:$0xff]
  %v120 = vld [vmem:[%s1 + $0x248] sm:$0xff]
  %v121 = vld [vmem:[%s1 + $0x250] sm:$0xff]
  %v122 = vld [vmem:[%s1 + $0x258] sm:$0xff]
  %v123 = vld [vmem:[%s1 + $0x260] sm:$0xff]
  %v124 = vld [vmem:[%s1 + $0x268] sm:$0xff]
  %v125 = vld [vmem:[%s1 + $0x270] sm:$0xff]
  %v126 = vld [vmem:[%s1 + $0x278] sm:$0xff]
  %v127 = vld [vmem:[%s1 + $0x280] sm:$0xff]
  %v128 = vld [vmem:[%s1 + $0x288] sm:$0xff]
  %v129 = vld [vmem:[%s1 + $0x290] sm:$0xff]
  %v130 = vld [vmem:[%s1 + $0x298] sm:$0xff]
  %v131 = vld [vmem:[%s1 + $0x2a0] sm:$0xff]
  %v132 = vld [vmem:[%s1 + $0x2a8] sm:$0xff]
  %v133 = vld [vmem:[%s1 + $0x2b0] sm:$0xff]
  %v134 = vld [vmem:[%s1 + $0x2b8] sm:$0xff]
  %v135 = vld [vmem:[%s1 + $0x2c0] sm:$0xff]
  %v136 = vld [vmem:[%s1 + $0x2c8] sm:$0xff]
  %v137 = vld [vmem:[%s1 + $0x2d0] sm:$0xff]
  %v138 = vld [vmem:[%s1 + $0x2d8] sm:$0xff]
  %v139 = vld [vmem:[%s1 + $0x2e0] sm:$0xff]
  %v140 = vld [vmem:[%s1 + $0x2e8] sm:$0xff]
  %v141 = vld [vmem:[%s1 + $0x2f0] sm:$0xff]
  %v142 = vld [vmem:[%s1 + $0x2f8] sm:$0xff]
  %v143 = vld [vmem:[%s1 + $0x300] sm:$0xff]
  %v144 = vld [vmem:[%s1 + $0x308] sm:$0xff]
  %v145 = vld [vmem:[%s1 + $0x310] sm:$0xff]
  %v146 = vld [vmem:[%s1 + $0x318] sm:$0xff]
  %v147 = vld [vmem:[%s1 + $0x320] sm:$0xff]
  %v148 = vld [vmem:[%s1 + $0x328] sm:$0xff]
  %v149 = vld [vmem:[%s1 + $0x330] sm:$0xff]
  %v150 = vld [vmem:[%s1 + $0x338] sm:$0xff]
  %v151 = vld [vmem:[%s1 + $0x340] sm:$0xff]
  %v152 = vld [vmem:[%s1 + $0x348] sm:$0xff]
  %v153 = vld [vmem:[%s1 + $0x350] sm:$0xff]
  %v154 = vld [vmem:[%s1 + $0x358] sm:$0xff]
  %v155 = vld [vmem:[%s1 + $0x360] sm:$0xff]
  %v156 = vld [vmem:[%s1 + $0x368] sm:$0xff]
  %v157 = vld [vmem:[%s1 + $0x370] sm:$0xff]
  %v158 = vld [vmem:[%s1 + $0x378] sm:$0xff]
  %v159 = vld [vmem:[%s1 + $0x380] sm:$0xff]
  %v160 = vld [vmem:[%s1 + $0x388] sm:$0xff]
  %v161 = vld [vmem:[%s1 + $0x390] sm:$0xff]
  %v162 = vld [vmem:[%s1 + $0x398] sm:$0xff]
  %v163 = vld [vmem:[%s1 + $0x3a0] sm:$0xff]
  %v164 = vld [vmem:[%s1 + $0x3a8] sm:$0xff]
  %v165 = vld [vmem:[%s1 + $0x3b0] sm:$0xff]
  %v166 = vld [vmem:[%s1 + $0x3b8] sm:$0xff]
  %v167 = vld [vmem:[%s1 + $0x3c0] sm:$0xff]
  %v168 = vld [vmem:[%s1 + $0x3c8] sm:$0xff]
  %v169 = vld [vmem:[%s1 + $0x3d0] sm:$0xff]
  %v170 = vld [vmem:[%s1 + $0x3d8] sm:$0xff]
  %v171 = vld [vmem:[%s1 + $0x3e0] sm:$0xff]
  %v172 = vld [vmem:[%s1 + $0x3e8] sm:$0xff]
  %v173 = vld [vmem:[%s1 + $0x3f0] sm:$0xff]
  %v174 = vld [vmem:[%s1 + $0x3f8] sm:$0xff]
  %v175 = vld [vmem:[%s1 + $0x400] sm:$0xff]
  %v176 = vld [vmem:[%s1 + $0x408] sm:$0xff]
  %v177 = vld [vmem:[%s1 + $0x410] sm:$0xff]
  %v178 = vld [vmem:[%s1 + $0x418] sm:$0xff]
  %v179 = vld [vmem:[%s1 + $0x420] sm:$0xff]
  %v180 = vld [vmem:[%s1 + $0x428] sm:$0xff]
  %v181 = vld [vmem:[%s1 + $0x430] sm:$0xff]
  %v182 = vld [vmem:[%s1 + $0x438] sm:$0xff]
  %v183 = vld [vmem:[%s1 + $0x440] sm:$0xff]
  %v184 = vld [vmem:[%s1 + $0x448] sm:$0xff]
  %v185 = vld [vmem:[%s1 + $0x450] sm:$0xff]
  %v186 = vld [vmem:[%s1 + $0x458] sm:$0xff]
  %v187 = vld [vmem:[%s1 + $0x460] sm:$0xff]
  %v188 = vld [vmem:[%s1 + $0x468] sm:$0xff]
  %v189 = vld [vmem:[%s1 + $0x470] sm:$0xff]
  %v190 = vld [vmem:[%s1 + $0x478] sm:$0xff]
  %v191 = vld [vmem:[%s2] sm:$0x3]
  %v193 = vlaneseq
  %v194 = vshrl.u32 %v193, 7
  %v195 = vsub.s32 0, %v194
  %v196 = vrot.slane %v191, %v195
  %v197 = vlaneseq
  %v198 = vshrl.u32 %v197, 7
  %v199 = vsub.s32 1, %v198
  %v200 = vrot.slane %v191, %v199
  %v223 = vunpack.c.l.b16 %v27
  %v224 = vunpack.c.h.b16 %v27
  %v225 = vunpack.c.l.b16 %v28
  %v226 = vunpack.c.h.b16 %v28
  %v227 = vunpack.c.l.b16 %v29
  %v228 = vunpack.c.h.b16 %v29
  %v229 = vunpack.c.l.b16 %v30
  %v230 = vunpack.c.h.b16 %v30
  %v231 = vunpack.c.l.b16 %v31
  %v232 = vunpack.c.l.b16 %v32
  %v233 = vunpack.c.h.b16 %v32
  %v234 = vunpack.c.l.b16 %v33
  %v235 = vunpack.c.h.b16 %v33
  %v236 = vunpack.c.l.b16 %v34
  %v237 = vunpack.c.h.b16 %v34
  %v238 = vunpack.c.l.b16 %v35
  %v239 = vunpack.c.h.b16 %v35
  %v240 = vunpack.c.l.b16 %v36
  %v241 = vunpack.c.l.b16 %v37
  %v242 = vunpack.c.h.b16 %v37
  %v243 = vunpack.c.l.b16 %v38
  %v244 = vunpack.c.h.b16 %v38
  %v245 = vunpack.c.l.b16 %v39
  %v246 = vunpack.c.h.b16 %v39
  %v247 = vunpack.c.l.b16 %v40
  %v248 = vunpack.c.h.b16 %v40
  %v249 = vunpack.c.l.b16 %v41
  %v250 = vunpack.c.l.b16 %v42
  %v251 = vunpack.c.h.b16 %v42
  %v252 = vunpack.c.l.b16 %v43
  %v253 = vunpack.c.h.b16 %v43
  %v254 = vunpack.c.l.b16 %v44
  %v255 = vunpack.c.h.b16 %v44
  %v256 = vunpack.c.l.b16 %v45
  %v257 = vunpack.c.h.b16 %v45
  %v258 = vunpack.c.l.b16 %v46
  %v259 = vpack.c.b16 %v232, %v223
  %v260 = vpack.c.b16 %v233, %v224
  %v261 = vpack.c.b16 %v234, %v225
  %v262 = vpack.c.b16 %v235, %v226
  %v263 = vpack.c.b16 %v236, %v227
  %v264 = vpack.c.b16 %v237, %v228
  %v265 = vpack.c.b16 %v238, %v229
  %v266 = vpack.c.b16 %v239, %v230
  %v267 = vpack.c.b16 %v240, %v231
  %v268 = vpack.c.b16 %v250, %v241
  %v269 = vpack.c.b16 %v251, %v242
  %v270 = vpack.c.b16 %v252, %v243
  %v271 = vpack.c.b16 %v253, %v244
  %v272 = vpack.c.b16 %v254, %v245
  %v273 = vpack.c.b16 %v255, %v246
  %v274 = vpack.c.b16 %v256, %v247
  %v275 = vpack.c.b16 %v257, %v248
  %v276 = vpack.c.b16 %v258, %v249
  %v439 = vunpack.c.l.b16 %v47
  %v440 = vunpack.c.h.b16 %v47
  %v441 = vunpack.c.l.b16 %v48
  %v442 = vunpack.c.h.b16 %v48
  %v443 = vunpack.c.l.b16 %v49
  %v444 = vunpack.c.h.b16 %v49
  %v445 = vunpack.c.l.b16 %v50
  %v446 = vunpack.c.h.b16 %v50
  %v447 = vunpack.c.l.b16 %v51
  %v448 = vunpack.c.h.b16 %v51
  %v449 = vunpack.c.l.b16 %v52
  %v450 = vunpack.c.h.b16 %v52
  %v451 = vunpack.c.l.b16 %v53
  %v452 = vunpack.c.h.b16 %v53
  %v453 = vunpack.c.l.b16 %v54
  %v454 = vunpack.c.h.b16 %v54
  %v455 = vunpack.c.l.b16 %v55
  %v456 = vunpack.c.h.b16 %v55
  %v457 = vunpack.c.l.b16 %v56
  %v458 = vunpack.c.h.b16 %v56
  %v459 = vunpack.c.l.b16 %v57
  %v460 = vunpack.c.h.b16 %v57
  %v461 = vunpack.c.l.b16 %v58
  %v462 = vunpack.c.h.b16 %v58
  %v463 = vunpack.c.l.b16 %v59
  %v464 = vunpack.c.h.b16 %v59
  %v465 = vunpack.c.l.b16 %v60
  %v466 = vunpack.c.h.b16 %v60
  %v467 = vunpack.c.l.b16 %v61
  %v468 = vunpack.c.h.b16 %v61
  %v469 = vunpack.c.l.b16 %v62
  %v470 = vunpack.c.h.b16 %v62
  %v471 = vunpack.c.l.b16 %v63
  %v472 = vunpack.c.h.b16 %v63
  %v473 = vunpack.c.l.b16 %v64
  %v474 = vunpack.c.h.b16 %v64
  %v475 = vunpack.c.l.b16 %v65
  %v476 = vunpack.c.h.b16 %v65
  %v477 = vunpack.c.l.b16 %v66
  %v478 = vunpack.c.h.b16 %v66
  %v479 = vunpack.c.l.b16 %v67
  %v480 = vunpack.c.h.b16 %v67
  %v481 = vunpack.c.l.b16 %v68
  %v482 = vunpack.c.h.b16 %v68
  %v483 = vunpack.c.l.b16 %v69
  %v484 = vunpack.c.h.b16 %v69
  %v485 = vunpack.c.l.b16 %v70
  %v486 = vunpack.c.h.b16 %v70
  %v487 = vunpack.c.l.b16 %v71
  %v488 = vunpack.c.h.b16 %v71
  %v489 = vunpack.c.l.b16 %v72
  %v490 = vunpack.c.h.b16 %v72
  %v491 = vunpack.c.l.b16 %v73
  %v492 = vunpack.c.h.b16 %v73
  %v493 = vunpack.c.l.b16 %v74
  %v494 = vunpack.c.h.b16 %v74
  %v495 = vunpack.c.l.b16 %v75
  %v496 = vunpack.c.h.b16 %v75
  %v497 = vunpack.c.l.b16 %v76
  %v498 = vunpack.c.h.b16 %v76
  %v499 = vunpack.c.l.b16 %v77
  %v500 = vunpack.c.h.b16 %v77
  %v501 = vunpack.c.l.b16 %v78
  %v502 = vunpack.c.h.b16 %v78
  %v503 = vunpack.c.l.b16 %v79
  %v504 = vunpack.c.h.b16 %v79
  %v505 = vunpack.c.l.b16 %v80
  %v506 = vunpack.c.h.b16 %v80
  %v507 = vunpack.c.l.b16 %v81
  %v508 = vunpack.c.h.b16 %v81
  %v509 = vunpack.c.l.b16 %v82
  %v510 = vunpack.c.h.b16 %v82
  %v511 = vunpack.c.l.b16 %v83
  %v512 = vunpack.c.h.b16 %v83
  %v513 = vunpack.c.l.b16 %v84
  %v514 = vunpack.c.h.b16 %v84
  %v515 = vunpack.c.l.b16 %v85
  %v516 = vunpack.c.h.b16 %v85
  %v517 = vunpack.c.l.b16 %v86
  %v518 = vunpack.c.h.b16 %v86
  %v519 = vunpack.c.l.b16 %v87
  %v520 = vunpack.c.h.b16 %v87
  %v521 = vunpack.c.l.b16 %v88
  %v522 = vunpack.c.h.b16 %v88
  %v523 = vunpack.c.l.b16 %v89
  %v524 = vunpack.c.h.b16 %v89
  %v525 = vunpack.c.l.b16 %v90
  %v526 = vunpack.c.h.b16 %v90
  %v527 = vunpack.c.l.b16 %v91
  %v528 = vunpack.c.h.b16 %v91
  %v529 = vunpack.c.l.b16 %v92
  %v530 = vunpack.c.h.b16 %v92
  %v531 = vunpack.c.l.b16 %v93
  %v532 = vunpack.c.h.b16 %v93
  %v533 = vunpack.c.l.b16 %v94
  %v534 = vunpack.c.h.b16 %v94
  %v535 = vunpack.c.l.b16 %v95
  %v536 = vunpack.c.h.b16 %v95
  %v537 = vunpack.c.l.b16 %v96
  %v538 = vunpack.c.h.b16 %v96
  %v539 = vunpack.c.l.b16 %v97
  %v540 = vunpack.c.h.b16 %v97
  %v541 = vunpack.c.l.b16 %v98
  %v542 = vunpack.c.h.b16 %v98
  %v543 = vunpack.c.l.b16 %v99
  %v544 = vunpack.c.h.b16 %v99
  %v545 = vunpack.c.l.b16 %v100
  %v546 = vunpack.c.h.b16 %v100
  %v547 = vunpack.c.l.b16 %v101
  %v548 = vunpack.c.h.b16 %v101
  %v549 = vunpack.c.l.b16 %v102
  %v550 = vunpack.c.h.b16 %v102
  %v551 = vunpack.c.l.b16 %v103
  %v552 = vunpack.c.h.b16 %v103
  %v553 = vunpack.c.l.b16 %v104
  %v554 = vunpack.c.h.b16 %v104
  %v555 = vunpack.c.l.b16 %v105
  %v556 = vunpack.c.h.b16 %v105
  %v557 = vunpack.c.l.b16 %v106
  %v558 = vunpack.c.h.b16 %v106
  %v559 = vunpack.c.l.b16 %v107
  %v560 = vunpack.c.h.b16 %v107
  %v561 = vunpack.c.l.b16 %v108
  %v562 = vunpack.c.h.b16 %v108
  %v563 = vunpack.c.l.b16 %v109
  %v564 = vunpack.c.h.b16 %v109
  %v565 = vunpack.c.l.b16 %v110
  %v566 = vunpack.c.h.b16 %v110
  %v567 = vunpack.c.l.b16 %v111
  %v568 = vunpack.c.h.b16 %v111
  %v569 = vunpack.c.l.b16 %v112
  %v570 = vunpack.c.h.b16 %v112
  %v571 = vunpack.c.l.b16 %v113
  %v572 = vunpack.c.h.b16 %v113
  %v573 = vunpack.c.l.b16 %v114
  %v574 = vunpack.c.h.b16 %v114
  %v575 = vunpack.c.l.b16 %v115
  %v576 = vunpack.c.h.b16 %v115
  %v577 = vunpack.c.l.b16 %v116
  %v578 = vunpack.c.h.b16 %v116
  %v579 = vunpack.c.l.b16 %v117
  %v580 = vunpack.c.h.b16 %v117
  %v581 = vunpack.c.l.b16 %v118
  %v582 = vunpack.c.h.b16 %v118
  %v583 = vunpack.c.l.b16 %v119
  %v584 = vunpack.c.h.b16 %v119
  %v585 = vunpack.c.l.b16 %v120
  %v586 = vunpack.c.h.b16 %v120
  %v587 = vunpack.c.l.b16 %v121
  %v588 = vunpack.c.h.b16 %v121
  %v589 = vunpack.c.l.b16 %v122
  %v590 = vunpack.c.h.b16 %v122
  %v591 = vunpack.c.l.b16 %v123
  %v592 = vunpack.c.h.b16 %v123
  %v593 = vunpack.c.l.b16 %v124
  %v594 = vunpack.c.h.b16 %v124
  %v595 = vunpack.c.l.b16 %v125
  %v596 = vunpack.c.h.b16 %v125
  %v597 = vunpack.c.l.b16 %v126
  %v598 = vunpack.c.h.b16 %v126
  %v599 = vunpack.c.l.b16 %v127
  %v600 = vunpack.c.h.b16 %v127
  %v601 = vunpack.c.l.b16 %v128
  %v602 = vunpack.c.h.b16 %v128
  %v603 = vunpack.c.l.b16 %v129
  %v604 = vunpack.c.h.b16 %v129
  %v605 = vunpack.c.l.b16 %v130
  %v606 = vunpack.c.h.b16 %v130
  %v607 = vunpack.c.l.b16 %v131
  %v608 = vunpack.c.h.b16 %v131
  %v609 = vunpack.c.l.b16 %v132
  %v610 = vunpack.c.h.b16 %v132
  %v611 = vunpack.c.l.b16 %v133
  %v612 = vunpack.c.h.b16 %v133
  %v613 = vunpack.c.l.b16 %v134
  %v614 = vunpack.c.h.b16 %v134
  %v615 = vunpack.c.l.b16 %v135
  %v616 = vunpack.c.h.b16 %v135
  %v617 = vunpack.c.l.b16 %v136
  %v618 = vunpack.c.h.b16 %v136
  %v619 = vunpack.c.l.b16 %v137
  %v620 = vunpack.c.h.b16 %v137
  %v621 = vunpack.c.l.b16 %v138
  %v622 = vunpack.c.h.b16 %v138
  %v623 = vunpack.c.l.b16 %v139
  %v624 = vunpack.c.h.b16 %v139
  %v625 = vunpack.c.l.b16 %v140
  %v626 = vunpack.c.h.b16 %v140
  %v627 = vunpack.c.l.b16 %v141
  %v628 = vunpack.c.h.b16 %v141
  %v629 = vunpack.c.l.b16 %v142
  %v630 = vunpack.c.h.b16 %v142
  %v631 = vunpack.c.l.b16 %v143
  %v632 = vunpack.c.h.b16 %v143
  %v633 = vunpack.c.l.b16 %v144
  %v634 = vunpack.c.h.b16 %v144
  %v635 = vunpack.c.l.b16 %v145
  %v636 = vunpack.c.h.b16 %v145
  %v637 = vunpack.c.l.b16 %v146
  %v638 = vunpack.c.h.b16 %v146
  %v639 = vunpack.c.l.b16 %v147
  %v640 = vunpack.c.h.b16 %v147
  %v641 = vunpack.c.l.b16 %v148
  %v642 = vunpack.c.h.b16 %v148
  %v643 = vunpack.c.l.b16 %v149
  %v644 = vunpack.c.h.b16 %v149
  %v645 = vunpack.c.l.b16 %v150
  %v646 = vunpack.c.h.b16 %v150
  %v647 = vunpack.c.l.b16 %v151
  %v648 = vunpack.c.h.b16 %v151
  %v649 = vunpack.c.l.b16 %v152
  %v650 = vunpack.c.h.b16 %v152
  %v651 = vunpack.c.l.b16 %v153
  %v652 = vunpack.c.h.b16 %v153
  %v653 = vunpack.c.l.b16 %v154
  %v654 = vunpack.c.h.b16 %v154
  %v655 = vunpack.c.l.b16 %v155
  %v656 = vunpack.c.h.b16 %v155
  %v657 = vunpack.c.l.b16 %v156
  %v658 = vunpack.c.h.b16 %v156
  %v659 = vunpack.c.l.b16 %v157
  %v660 = vunpack.c.h.b16 %v157
  %v661 = vunpack.c.l.b16 %v158
  %v662 = vunpack.c.h.b16 %v158
  %v663 = vunpack.c.l.b16 %v159
  %v664 = vunpack.c.h.b16 %v159
  %v665 = vunpack.c.l.b16 %v160
  %v666 = vunpack.c.h.b16 %v160
  %v667 = vunpack.c.l.b16 %v161
  %v668 = vunpack.c.h.b16 %v161
  %v669 = vunpack.c.l.b16 %v162
  %v670 = vunpack.c.h.b16 %v162
  %v671 = vunpack.c.l.b16 %v163
  %v672 = vunpack.c.h.b16 %v163
  %v673 = vunpack.c.l.b16 %v164
  %v674 = vunpack.c.h.b16 %v164
  %v675 = vunpack.c.l.b16 %v165
  %v676 = vunpack.c.h.b16 %v165
  %v677 = vunpack.c.l.b16 %v166
  %v678 = vunpack.c.h.b16 %v166
  %v679 = vunpack.c.l.b16 %v167
  %v680 = vunpack.c.h.b16 %v167
  %v681 = vunpack.c.l.b16 %v168
  %v682 = vunpack.c.h.b16 %v168
  %v683 = vunpack.c.l.b16 %v169
  %v684 = vunpack.c.h.b16 %v169
  %v685 = vunpack.c.l.b16 %v170
  %v686 = vunpack.c.h.b16 %v170
  %v687 = vunpack.c.l.b16 %v171
  %v688 = vunpack.c.h.b16 %v171
  %v689 = vunpack.c.l.b16 %v172
  %v690 = vunpack.c.h.b16 %v172
  %v691 = vunpack.c.l.b16 %v173
  %v692 = vunpack.c.h.b16 %v173
  %v693 = vunpack.c.l.b16 %v174
  %v694 = vunpack.c.h.b16 %v174
  %v695 = vunpack.c.l.b16 %v175
  %v696 = vunpack.c.h.b16 %v175
  %v697 = vunpack.c.l.b16 %v176
  %v698 = vunpack.c.h.b16 %v176
  %v699 = vunpack.c.l.b16 %v177
  %v700 = vunpack.c.h.b16 %v177
  %v701 = vunpack.c.l.b16 %v178
  %v702 = vunpack.c.h.b16 %v178
  %v703 = vunpack.c.l.b16 %v179
  %v704 = vunpack.c.h.b16 %v179
  %v705 = vunpack.c.l.b16 %v180
  %v706 = vunpack.c.h.b16 %v180
  %v707 = vunpack.c.l.b16 %v181
  %v708 = vunpack.c.h.b16 %v181
  %v709 = vunpack.c.l.b16 %v182
  %v710 = vunpack.c.h.b16 %v182
  %v711 = vunpack.c.l.b16 %v183
  %v712 = vunpack.c.h.b16 %v183
  %v713 = vunpack.c.l.b16 %v184
  %v714 = vunpack.c.h.b16 %v184
  %v715 = vunpack.c.l.b16 %v185
  %v716 = vunpack.c.h.b16 %v185
  %v717 = vunpack.c.l.b16 %v186
  %v718 = vunpack.c.h.b16 %v186
  %v719 = vunpack.c.l.b16 %v187
  %v720 = vunpack.c.h.b16 %v187
  %v721 = vunpack.c.l.b16 %v188
  %v722 = vunpack.c.h.b16 %v188
  %v723 = vunpack.c.l.b16 %v189
  %v724 = vunpack.c.h.b16 %v189
  %v725 = vunpack.c.l.b16 %v190
  %v726 = vunpack.c.h.b16 %v190
  %v727 = vpack.c.b16 %v441, %v439
  %v728 = vpack.c.b16 %v442, %v440
  %v729 = vpack.c.b16 %v445, %v443
  %v730 = vpack.c.b16 %v446, %v444
  %v731 = vpack.c.b16 %v449, %v447
  %v732 = vpack.c.b16 %v450, %v448
  %v733 = vpack.c.b16 %v453, %v451
  %v734 = vpack.c.b16 %v454, %v452
  %v735 = vpack.c.b16 %v457, %v455
  %v736 = vpack.c.b16 %v458, %v456
  %v737 = vpack.c.b16 %v461, %v459
  %v738 = vpack.c.b16 %v462, %v460
  %v739 = vpack.c.b16 %v465, %v463
  %v740 = vpack.c.b16 %v466, %v464
  %v741 = vpack.c.b16 %v469, %v467
  %v742 = vpack.c.b16 %v470, %v468
  %v743 = vpack.c.b16 %v473, %v471
  %v744 = vpack.c.b16 %v474, %v472
  %v745 = vpack.c.b16 %v477, %v475
  %v746 = vpack.c.b16 %v478, %v476
  %v747 = vpack.c.b16 %v481, %v479
  %v748 = vpack.c.b16 %v482, %v480
  %v749 = vpack.c.b16 %v485, %v483
  %v750 = vpack.c.b16 %v486, %v484
  %v751 = vpack.c.b16 %v489, %v487
  %v752 = vpack.c.b16 %v490, %v488
  %v753 = vpack.c.b16 %v493, %v491
  %v754 = vpack.c.b16 %v494, %v492
  %v755 = vpack.c.b16 %v497, %v495
  %v756 = vpack.c.b16 %v498, %v496
  %v757 = vpack.c.b16 %v501, %v499
  %v758 = vpack.c.b16 %v502, %v500
  %v759 = vpack.c.b16 %v505, %v503
  %v760 = vpack.c.b16 %v506, %v504
  %v761 = vpack.c.b16 %v509, %v507
  %v762 = vpack.c.b16 %v510, %v508
  %v763 = vpack.c.b16 %v513, %v511
  %v764 = vpack.c.b16 %v514, %v512
  %v765 = vpack.c.b16 %v517, %v515
  %v766 = vpack.c.b16 %v518, %v516
  %v767 = vpack.c.b16 %v521, %v519
  %v768 = vpack.c.b16 %v522, %v520
  %v769 = vpack.c.b16 %v525, %v523
  %v770 = vpack.c.b16 %v526, %v524
  %v771 = vpack.c.b16 %v529, %v527
  %v772 = vpack.c.b16 %v530, %v528
  %v773 = vpack.c.b16 %v533, %v531
  %v774 = vpack.c.b16 %v534, %v532
  %v775 = vpack.c.b16 %v537, %v535
  %v776 = vpack.c.b16 %v538, %v536
  %v777 = vpack.c.b16 %v541, %v539
  %v778 = vpack.c.b16 %v542, %v540
  %v779 = vpack.c.b16 %v545, %v543
  %v780 = vpack.c.b16 %v546, %v544
  %v781 = vpack.c.b16 %v549, %v547
  %v782 = vpack.c.b16 %v550, %v548
  %v783 = vpack.c.b16 %v553, %v551
  %v784 = vpack.c.b16 %v554, %v552
  %v785 = vpack.c.b16 %v557, %v555
  %v786 = vpack.c.b16 %v558, %v556
  %v787 = vpack.c.b16 %v561, %v559
  %v788 = vpack.c.b16 %v562, %v560
  %v789 = vpack.c.b16 %v565, %v563
  %v790 = vpack.c.b16 %v566, %v564
  %v791 = vpack.c.b16 %v569, %v567
  %v792 = vpack.c.b16 %v570, %v568
  %v793 = vpack.c.b16 %v573, %v571
  %v794 = vpack.c.b16 %v574, %v572
  %v795 = vpack.c.b16 %v577, %v575
  %v796 = vpack.c.b16 %v578, %v576
  %v797 = vpack.c.b16 %v581, %v579
  %v798 = vpack.c.b16 %v582, %v580
  %v799 = vpack.c.b16 %v585, %v583
  %v800 = vpack.c.b16 %v586, %v584
  %v801 = vpack.c.b16 %v589, %v587
  %v802 = vpack.c.b16 %v590, %v588
  %v803 = vpack.c.b16 %v593, %v591
  %v804 = vpack.c.b16 %v594, %v592
  %v805 = vpack.c.b16 %v597, %v595
  %v806 = vpack.c.b16 %v598, %v596
  %v807 = vpack.c.b16 %v601, %v599
  %v808 = vpack.c.b16 %v602, %v600
  %v809 = vpack.c.b16 %v605, %v603
  %v810 = vpack.c.b16 %v606, %v604
  %v811 = vpack.c.b16 %v609, %v607
  %v812 = vpack.c.b16 %v610, %v608
  %v813 = vpack.c.b16 %v613, %v611
  %v814 = vpack.c.b16 %v614, %v612
  %v815 = vpack.c.b16 %v617, %v615
  %v816 = vpack.c.b16 %v618, %v616
  %v817 = vpack.c.b16 %v621, %v619
  %v818 = vpack.c.b16 %v622, %v620
  %v819 = vpack.c.b16 %v625, %v623
  %v820 = vpack.c.b16 %v626, %v624
  %v821 = vpack.c.b16 %v629, %v627
  %v822 = vpack.c.b16 %v630, %v628
  %v823 = vpack.c.b16 %v633, %v631
  %v824 = vpack.c.b16 %v634, %v632
  %v825 = vpack.c.b16 %v637, %v635
  %v826 = vpack.c.b16 %v638, %v636
  %v827 = vpack.c.b16 %v641, %v639
  %v828 = vpack.c.b16 %v642, %v640
  %v829 = vpack.c.b16 %v645, %v643
  %v830 = vpack.c.b16 %v646, %v644
  %v831 = vpack.c.b16 %v649, %v647
  %v832 = vpack.c.b16 %v650, %v648
  %v833 = vpack.c.b16 %v653, %v651
  %v834 = vpack.c.b16 %v654, %v652
  %v835 = vpack.c.b16 %v657, %v655
  %v836 = vpack.c.b16 %v658, %v656
  %v837 = vpack.c.b16 %v661, %v659
  %v838 = vpack.c.b16 %v662, %v660
  %v839 = vpack.c.b16 %v665, %v663
  %v840 = vpack.c.b16 %v666, %v664
  %v841 = vpack.c.b16 %v669, %v667
  %v842 = vpack.c.b16 %v670, %v668
  %v843 = vpack.c.b16 %v673, %v671
  %v844 = vpack.c.b16 %v674, %v672
  %v845 = vpack.c.b16 %v677, %v675
  %v846 = vpack.c.b16 %v678, %v676
  %v847 = vpack.c.b16 %v681, %v679
  %v848 = vpack.c.b16 %v682, %v680
  %v849 = vpack.c.b16 %v685, %v683
  %v850 = vpack.c.b16 %v686, %v684
  %v851 = vpack.c.b16 %v689, %v687
  %v852 = vpack.c.b16 %v690, %v688
  %v853 = vpack.c.b16 %v693, %v691
  %v854 = vpack.c.b16 %v694, %v692
  %v855 = vpack.c.b16 %v697, %v695
  %v856 = vpack.c.b16 %v698, %v696
  %v857 = vpack.c.b16 %v701, %v699
  %v858 = vpack.c.b16 %v702, %v700
  %v859 = vpack.c.b16 %v705, %v703
  %v860 = vpack.c.b16 %v706, %v704
  %v861 = vpack.c.b16 %v709, %v707
  %v862 = vpack.c.b16 %v710, %v708
  %v863 = vpack.c.b16 %v713, %v711
  %v864 = vpack.c.b16 %v714, %v712
  %v865 = vpack.c.b16 %v717, %v715
  %v866 = vpack.c.b16 %v718, %v716
  %v867 = vpack.c.b16 %v721, %v719
  %v868 = vpack.c.b16 %v722, %v720
  %v869 = vpack.c.b16 %v725, %v723
  %v870 = vpack.c.b16 %v726, %v724
  %1015 = vmatprep.subr.bf16.mxu0 %v728
  %1016 = vmatpush1.bf16.msra.mxu0 %v727
  %1017 = vmatprep.subr.bf16.mxu0 %v730
  %1018 = vmatpush1.bf16.msra.mxu0 %v729
  %1019 = vmatprep.subr.bf16.mxu0 %v732
  %1020 = vmatpush1.bf16.msra.mxu0 %v731
  %1021 = vmatprep.subr.bf16.mxu0 %v734
  %1022 = vmatpush1.bf16.msra.mxu0 %v733
  %1023 = vmatprep.subr.bf16.mxu0 %v736
  %1024 = vmatpush1.bf16.msra.mxu0 %v735
  %1025 = vmatprep.subr.bf16.mxu0 %v738
  %1026 = vmatpush1.bf16.msra.mxu0 %v737
  %1027 = vmatprep.subr.bf16.mxu0 %v740
  %1028 = vmatpush1.bf16.msra.mxu0 %v739
  %1029 = vmatprep.subr.bf16.mxu0 %v742
  %1030 = vmatpush1.bf16.msra.mxu0 %v741
  %1031 = vmatprep.subr.bf16.mxu0 %v744
  %1032 = vmatpush1.bf16.msra.mxu0 %v743
  %1033 = vmatprep.subr.bf16.mxu0 %v746
  %1034 = vmatpush1.bf16.msra.mxu0 %v745
  %1035 = vmatprep.subr.bf16.mxu0 %v748
  %1036 = vmatpush1.bf16.msra.mxu0 %v747
  %1037 = vmatprep.subr.bf16.mxu0 %v750
  %1038 = vmatpush1.bf16.msra.mxu0 %v749
  %1039 = vmatprep.subr.bf16.mxu0 %v752
  %1040 = vmatpush1.bf16.msra.mxu0 %v751
  %1041 = vmatprep.subr.bf16.mxu0 %v754
  %1042 = vmatpush1.bf16.msra.mxu0 %v753
  %1043 = vmatprep.subr.bf16.mxu0 %v756
  %1044 = vmatpush1.bf16.msra.mxu0 %v755
  %1045 = vmatprep.subr.bf16.mxu0 %v758
  %1046 = vmatpush1.bf16.msra.mxu0 %v757
  %1047 = vmatprep.mubr.bf16.mxu0 %v260
  %1048 = vmatmul.mubr.bf16.gmra.mrb[0].mxu0 %v259
  %v1049 = vpop.f32.mrb[0].mxu0
  %v1050 = vadd.f32 %v196, %v1049
  %v1051 = vpop.f32.mrb[0].mxu0
  %v1052 = vadd.f32 %v200, %v1051
  %v1053 = vpop.f32.mrb[0].mxu0
  %v1054 = vadd.f32 %v196, %v1053
  %v1055 = vpop.f32.mrb[0].mxu0
  %v1056 = vadd.f32 %v200, %v1055
  %1057 = vmatprep.mubr.bf16.mxu0 %v269
  %1058 = vmatmul.mubr.bf16.gmra.mrb[0].mxu0 %v268
  %v1059 = vpop.f32.mrb[0].mxu0
  %v1060 = vadd.f32 %v196, %v1059
  %v1061 = vpop.f32.mrb[0].mxu0
  %v1062 = vadd.f32 %v200, %v1061
  %v1063 = vpop.f32.mrb[0].mxu0
  %v1064 = vadd.f32 %v196, %v1063
  %v1065 = vpop.f32.mrb[0].mxu0
  %v1066 = vadd.f32 %v200, %v1065
  %1067 = vdwg.mxu0
  %1068 = vmatprep.subr.bf16.mxu0 %v760
  %1069 = vmatpush1.bf16.msra.mxu0 %v759
  %1070 = vmatprep.subr.bf16.mxu0 %v762
  %1071 = vmatpush1.bf16.msra.mxu0 %v761
  %1072 = vmatprep.subr.bf16.mxu0 %v764
  %1073 = vmatpush1.bf16.msra.mxu0 %v763
  %1074 = vmatprep.subr.bf16.mxu0 %v766
  %1075 = vmatpush1.bf16.msra.mxu0 %v765
  %1076 = vmatprep.subr.bf16.mxu0 %v768
  %1077 = vmatpush1.bf16.msra.mxu0 %v767
  %1078 = vmatprep.subr.bf16.mxu0 %v770
  %1079 = vmatpush1.bf16.msra.mxu0 %v769
  %1080 = vmatprep.subr.bf16.mxu0 %v772
  %1081 = vmatpush1.bf16.msra.mxu0 %v771
  %1082 = vmatprep.subr.bf16.mxu0 %v774
  %1083 = vmatpush1.bf16.msra.mxu0 %v773
  %1084 = vmatprep.subr.bf16.mxu0 %v776
  %1085 = vmatpush1.bf16.msra.mxu0 %v775
  %1086 = vmatprep.subr.bf16.mxu0 %v778
  %1087 = vmatpush1.bf16.msra.mxu0 %v777
  %1088 = vmatprep.subr.bf16.mxu0 %v780
  %1089 = vmatpush1.bf16.msra.mxu0 %v779
  %1090 = vmatprep.subr.bf16.mxu0 %v782
  %1091 = vmatpush1.bf16.msra.mxu0 %v781
  %1092 = vmatprep.subr.bf16.mxu0 %v784
  %1093 = vmatpush1.bf16.msra.mxu0 %v783
  %1094 = vmatprep.subr.bf16.mxu0 %v786
  %1095 = vmatpush1.bf16.msra.mxu0 %v785
  %1096 = vmatprep.subr.bf16.mxu0 %v788
  %1097 = vmatpush1.bf16.msra.mxu0 %v787
  %1098 = vmatprep.subr.bf16.mxu0 %v790
  %1099 = vmatpush1.bf16.msra.mxu0 %v789
  %1100 = vmatprep.mubr.bf16.mxu0 %v262
  %1101 = vmatmul.mubr.bf16.gmra.mrb[0].mxu0 %v261
  %v1102 = vpop.f32.mrb[0].mxu0
  %v1103 = vadd.f32 %v1050, %v1102
  %v1104 = vpop.f32.mrb[0].mxu0
  %v1105 = vadd.f32 %v1052, %v1104
  %v1106 = vpop.f32.mrb[0].mxu0
  %v1107 = vadd.f32 %v1054, %v1106
  %v1108 = vpop.f32.mrb[0].mxu0
  %v1109 = vadd.f32 %v1056, %v1108
  %1110 = vmatprep.mubr.bf16.mxu0 %v271
  %1111 = vmatmul.mubr.bf16.gmra.mrb[0].mxu0 %v270
  %v1112 = vpop.f32.mrb[0].mxu0
  %v1113 = vadd.f32 %v1060, %v1112
  %v1114 = vpop.f32.mrb[0].mxu0
  %v1115 = vadd.f32 %v1062, %v1114
  %v1116 = vpop.f32.mrb[0].mxu0
  %v1117 = vadd.f32 %v1064, %v1116
  %v1118 = vpop.f32.mrb[0].mxu0
  %v1119 = vadd.f32 %v1066, %v1118
  %1120 = vdwg.mxu0
  %1121 = vmatprep.subr.bf16.mxu0 %v792
  %1122 = vmatpush1.bf16.msra.mxu0 %v791
  %1123 = vmatprep.subr.bf16.mxu0 %v794
  %1124 = vmatpush1.bf16.msra.mxu0 %v793
  %1125 = vmatprep.subr.bf16.mxu0 %v796
  %1126 = vmatpush1.bf16.msra.mxu0 %v795
  %1127 = vmatprep.subr.bf16.mxu0 %v798
  %1128 = vmatpush1.bf16.msra.mxu0 %v797
  %1129 = vmatprep.subr.bf16.mxu0 %v800
  %1130 = vmatpush1.bf16.msra.mxu0 %v799
  %1131 = vmatprep.subr.bf16.mxu0 %v802
  %1132 = vmatpush1.bf16.msra.mxu0 %v801
  %1133 = vmatprep.subr.bf16.mxu0 %v804
  %1134 = vmatpush1.bf16.msra.mxu0 %v803
  %1135 = vmatprep.subr.bf16.mxu0 %v806
  %1136 = vmatpush1.bf16.msra.mxu0 %v805
  %1137 = vmatprep.subr.bf16.mxu0 %v808
  %1138 = vmatpush1.bf16.msra.mxu0 %v807
  %1139 = vmatprep.subr.bf16.mxu0 %v810
  %1140 = vmatpush1.bf16.msra.mxu0 %v809
  %1141 = vmatprep.subr.bf16.mxu0 %v812
  %1142 = vmatpush1.bf16.msra.mxu0 %v811
  %1143 = vmatprep.subr.bf16.mxu0 %v814
  %1144 = vmatpush1.bf16.msra.mxu0 %v813
  %1145 = vmatprep.subr.bf16.mxu0 %v816
  %1146 = vmatpush1.bf16.msra.mxu0 %v815
  %1147 = vmatprep.subr.bf16.mxu0 %v818
  %1148 = vmatpush1.bf16.msra.mxu0 %v817
  %1149 = vmatprep.subr.bf16.mxu0 %v820
  %1150 = vmatpush1.bf16.msra.mxu0 %v819
  %1151 = vmatprep.subr.bf16.mxu0 %v822
  %1152 = vmatpush1.bf16.msra.mxu0 %v821
  %1153 = vmatprep.mubr.bf16.mxu0 %v264
  %1154 = vmatmul.mubr.bf16.gmra.mrb[0].mxu0 %v263
  %v1155 = vpop.f32.mrb[0].mxu0
  %v1156 = vadd.f32 %v1103, %v1155
  %v1157 = vpop.f32.mrb[0].mxu0
  %v1158 = vadd.f32 %v1105, %v1157
  %v1159 = vpop.f32.mrb[0].mxu0
  %v1160 = vadd.f32 %v1107, %v1159
  %v1161 = vpop.f32.mrb[0].mxu0
  %v1162 = vadd.f32 %v1109, %v1161
  %1163 = vmatprep.mubr.bf16.mxu0 %v273
  %1164 = vmatmul.mubr.bf16.gmra.mrb[0].mxu0 %v272
  %v1165 = vpop.f32.mrb[0].mxu0
  %v1166 = vadd.f32 %v1113, %v1165
  %v1167 = vpop.f32.mrb[0].mxu0
  %v1168 = vadd.f32 %v1115, %v1167
  %v1169 = vpop.f32.mrb[0].mxu0
  %v1170 = vadd.f32 %v1117, %v1169
  %v1171 = vpop.f32.mrb[0].mxu0
  %v1172 = vadd.f32 %v1119, %v1171
  %1173 = vdwg.mxu0
  %1174 = vmatprep.subr.bf16.mxu0 %v824
  %1175 = vmatpush1.bf16.msra.mxu0 %v823
  %1176 = vmatprep.subr.bf16.mxu0 %v826
  %1177 = vmatpush1.bf16.msra.mxu0 %v825
  %1178 = vmatprep.subr.bf16.mxu0 %v828
  %1179 = vmatpush1.bf16.msra.mxu0 %v827
  %1180 = vmatprep.subr.bf16.mxu0 %v830
  %1181 = vmatpush1.bf16.msra.mxu0 %v829
  %1182 = vmatprep.subr.bf16.mxu0 %v832
  %1183 = vmatpush1.bf16.msra.mxu0 %v831
  %1184 = vmatprep.subr.bf16.mxu0 %v834
  %1185 = vmatpush1.bf16.msra.mxu0 %v833
  %1186 = vmatprep.subr.bf16.mxu0 %v836
  %1187 = vmatpush1.bf16.msra.mxu0 %v835
  %1188 = vmatprep.subr.bf16.mxu0 %v838
  %1189 = vmatpush1.bf16.msra.mxu0 %v837
  %1190 = vmatprep.subr.bf16.mxu0 %v840
  %1191 = vmatpush1.bf16.msra.mxu0 %v839
  %1192 = vmatprep.subr.bf16.mxu0 %v842
  %1193 = vmatpush1.bf16.msra.mxu0 %v841
  %1194 = vmatprep.subr.bf16.mxu0 %v844
  %1195 = vmatpush1.bf16.msra.mxu0 %v843
  %1196 = vmatprep.subr.bf16.mxu0 %v846
  %1197 = vmatpush1.bf16.msra.mxu0 %v845
  %1198 = vmatprep.subr.bf16.mxu0 %v848
  %1199 = vmatpush1.bf16.msra.mxu0 %v847
  %1200 = vmatprep.subr.bf16.mxu0 %v850
  %1201 = vmatpush1.bf16.msra.mxu0 %v849
  %1202 = vmatprep.subr.bf16.mxu0 %v852
  %1203 = vmatpush1.bf16.msra.mxu0 %v851
  %1204 = vmatprep.subr.bf16.mxu0 %v854
  %1205 = vmatpush1.bf16.msra.mxu0 %v853
  %1206 = vmatprep.mubr.bf16.mxu0 %v266
  %1207 = vmatmul.mubr.bf16.gmra.mrb[0].mxu0 %v265
  %v1208 = vpop.f32.mrb[0].mxu0
  %v1209 = vadd.f32 %v1156, %v1208
  %v1210 = vpop.f32.mrb[0].mxu0
  %v1211 = vadd.f32 %v1158, %v1210
  %v1212 = vpop.f32.mrb[0].mxu0
  %v1213 = vadd.f32 %v1160, %v1212
  %v1214 = vpop.f32.mrb[0].mxu0
  %v1215 = vadd.f32 %v1162, %v1214
  %1216 = vmatprep.mubr.bf16.mxu0 %v275
  %1217 = vmatmul.mubr.bf16.gmra.mrb[0].mxu0 %v274
  %v1218 = vpop.f32.mrb[0].mxu0
  %v1219 = vadd.f32 %v1166, %v1218
  %v1220 = vpop.f32.mrb[0].mxu0
  %v1221 = vadd.f32 %v1168, %v1220
  %v1222 = vpop.f32.mrb[0].mxu0
  %v1223 = vadd.f32 %v1170, %v1222
  %v1224 = vpop.f32.mrb[0].mxu0
  %v1225 = vadd.f32 %v1172, %v1224
  %1226 = vdwg.mxu0
  %1227 = vmatprep.subr.bf16.mxu0 %v856
  %1228 = vmatpush1.bf16.msra.mxu0 %v855
  %1229 = vmatprep.subr.bf16.mxu0 %v858
  %1230 = vmatpush1.bf16.msra.mxu0 %v857
  %1231 = vmatprep.subr.bf16.mxu0 %v860
  %1232 = vmatpush1.bf16.msra.mxu0 %v859
  %1233 = vmatprep.subr.bf16.mxu0 %v862
  %1234 = vmatpush1.bf16.msra.mxu0 %v861
  %1235 = vmatprep.subr.bf16.mxu0 %v864
  %1236 = vmatpush1.bf16.msra.mxu0 %v863
  %1237 = vmatprep.subr.bf16.mxu0 %v866
  %1238 = vmatpush1.bf16.msra.mxu0 %v865
  %1239 = vmatprep.subr.bf16.mxu0 %v868
  %1240 = vmatpush1.bf16.msra.mxu0 %v867
  %1241 = vmatprep.subr.bf16.mxu0 %v870
  %1242 = vmatpush1.bf16.msra.mxu0 %v869
  %1243 = vmatprep.subr.bf16.mxu0 0
  %1244 = vmatpush1.bf16.msra.mxu0 0
  %1245 = vmatprep.subr.bf16.mxu0 0
  %1246 = vmatpush1.bf16.msra.mxu0 0
  %1247 = vmatprep.subr.bf16.mxu0 0
  %1248 = vmatpush1.bf16.msra.mxu0 0
  %1249 = vmatprep.subr.bf16.mxu0 0
  %1250 = vmatpush1.bf16.msra.mxu0 0
  %1251 = vmatprep.subr.bf16.mxu0 0
  %1252 = vmatpush1.bf16.msra.mxu0 0
  %1253 = vmatprep.subr.bf16.mxu0 0
  %1254 = vmatpush1.bf16.msra.mxu0 0
  %1255 = vmatprep.subr.bf16.mxu0 0
  %1256 = vmatpush1.bf16.msra.mxu0 0
  %1257 = vmatprep.subr.bf16.mxu0 0
  %1258 = vmatpush1.bf16.msra.mxu0 0
  %1259 = vmatprep.mubr.bf16.mxu0 0
  %1260 = vmatmul.mubr.bf16.gmra.mrb[0].mxu0 %v267
  %v1261 = vpop.f32.mrb[0].mxu0
  %v1262 = vadd.f32 %v1209, %v1261
  %v1263 = vpop.f32.mrb[0].mxu0
  %v1264 = vadd.f32 %v1211, %v1263
  %v1265 = vpop.f32.mrb[0].mxu0
  %v1266 = vadd.f32 %v1213, %v1265
  %v1267 = vpop.f32.mrb[0].mxu0
  %v1268 = vadd.f32 %v1215, %v1267
  %1269 = vmatprep.mubr.bf16.mxu0 0
  %1270 = vmatmul.mubr.bf16.gmra.mrb[0].mxu0 %v276
  %v1271 = vpop.f32.mrb[0].mxu0
  %v1272 = vadd.f32 %v1219, %v1271
  %v1273 = vpop.f32.mrb[0].mxu0
  %v1274 = vadd.f32 %v1221, %v1273
  %v1275 = vpop.f32.mrb[0].mxu0
  %v1276 = vadd.f32 %v1223, %v1275
  %v1277 = vpop.f32.mrb[0].mxu0
  %v1278 = vadd.f32 %v1225, %v1277
  %1279 = vdwg.mxu0
  %v1280 = vld [vmem:[%s3] sm:$0xff]
  %v1281 = vld [vmem:[%s3 + $0x8] sm:$0xff]
  %v1282 = vld [vmem:[%s3 + $0x10] sm:$0xff]
  %v1283 = vld [vmem:[%s3 + $0x18] sm:$0xff]
  %v1284 = vld [vmem:[%s3 + $0x20] sm:$0xff]
  %v1285 = vld [vmem:[%s3 + $0x28] sm:$0xff]
  %v1286 = vld [vmem:[%s3 + $0x30] sm:$0xff]
  %v1287 = vld [vmem:[%s3 + $0x38] sm:$0xff]
  %v1288 = vld [vmem:[%s4] sm:$0xff]
  %v1289 = vld [vmem:[%s4 + $0x8] sm:$0xff]
  %v1290 = vld [vmem:[%s4 + $0x10] sm:$0xff]
  %v1291 = vld [vmem:[%s4 + $0x18] sm:$0xff]
  %v1292 = vld [vmem:[%s4 + $0x20] sm:$0xff]
  %v1293 = vld [vmem:[%s4 + $0x28] sm:$0xff]
  %v1294 = vld [vmem:[%s4 + $0x30] sm:$0xff]
  %v1295 = vld [vmem:[%s4 + $0x38] sm:$0xff]
  %v1296 = vld [vmem:[%s4 + $0x40] sm:$0xff]
  %v1297 = vld [vmem:[%s4 + $0x48] sm:$0xff]
  %v1298 = vld [vmem:[%s4 + $0x50] sm:$0xff]
  %v1299 = vld [vmem:[%s4 + $0x58] sm:$0xff]
  %v1300 = vld [vmem:[%s4 + $0x60] sm:$0xff]
  %v1301 = vld [vmem:[%s4 + $0x68] sm:$0xff]
  %v1302 = vld [vmem:[%s4 + $0x70] sm:$0xff]
  %v1303 = vld [vmem:[%s4 + $0x78] sm:$0xff]
  %v1304 = vld [vmem:[%s4 + $0x80] sm:$0xff]
  %v1305 = vld [vmem:[%s4 + $0x88] sm:$0xff]
  %v1306 = vld [vmem:[%s4 + $0x90] sm:$0xff]
  %v1307 = vld [vmem:[%s4 + $0x98] sm:$0xff]
  %v1308 = vld [vmem:[%s4 + $0xa0] sm:$0xff]
  %v1309 = vld [vmem:[%s4 + $0xa8] sm:$0xff]
  %v1310 = vld [vmem:[%s4 + $0xb0] sm:$0xff]
  %v1311 = vld [vmem:[%s4 + $0xb8] sm:$0xff]
  %v1312 = vld [vmem:[%s4 + $0xc0] sm:$0xff]
  %v1313 = vld [vmem:[%s4 + $0xc8] sm:$0xff]
  %v1314 = vld [vmem:[%s4 + $0xd0] sm:$0xff]
  %v1315 = vld [vmem:[%s4 + $0xd8] sm:$0xff]
  %v1316 = vld [vmem:[%s4 + $0xe0] sm:$0xff]
  %v1317 = vld [vmem:[%s4 + $0xe8] sm:$0xff]
  %v1318 = vld [vmem:[%s4 + $0xf0] sm:$0xff]
  %v1319 = vld [vmem:[%s4 + $0xf8] sm:$0xff]
  %v1320 = vld [vmem:[%s4 + $0x100] sm:$0xff]
  %v1321 = vld [vmem:[%s4 + $0x108] sm:$0xff]
  %v1322 = vld [vmem:[%s4 + $0x110] sm:$0xff]
  %v1323 = vld [vmem:[%s4 + $0x118] sm:$0xff]
  %v1324 = vld [vmem:[%s4 + $0x120] sm:$0xff]
  %v1325 = vld [vmem:[%s4 + $0x128] sm:$0xff]
  %v1326 = vld [vmem:[%s4 + $0x130] sm:$0xff]
  %v1327 = vld [vmem:[%s4 + $0x138] sm:$0xff]
  %v1328 = vld [vmem:[%s4 + $0x140] sm:$0xff]
  %v1329 = vld [vmem:[%s4 + $0x148] sm:$0xff]
  %v1330 = vld [vmem:[%s4 + $0x150] sm:$0xff]
  %v1331 = vld [vmem:[%s4 + $0x158] sm:$0xff]
  %v1332 = vld [vmem:[%s4 + $0x160] sm:$0xff]
  %v1333 = vld [vmem:[%s4 + $0x168] sm:$0xff]
  %v1334 = vld [vmem:[%s4 + $0x170] sm:$0xff]
  %v1335 = vld [vmem:[%s4 + $0x178] sm:$0xff]
  %v1336 = vld [vmem:[%s4 + $0x180] sm:$0xff]
  %v1337 = vld [vmem:[%s4 + $0x188] sm:$0xff]
  %v1338 = vld [vmem:[%s4 + $0x190] sm:$0xff]
  %v1339 = vld [vmem:[%s4 + $0x198] sm:$0xff]
  %v1340 = vld [vmem:[%s4 + $0x1a0] sm:$0xff]
  %v1341 = vld [vmem:[%s4 + $0x1a8] sm:$0xff]
  %v1342 = vld [vmem:[%s4 + $0x1b0] sm:$0xff]
  %v1343 = vld [vmem:[%s4 + $0x1b8] sm:$0xff]
  %v1344 = vld [vmem:[%s4 + $0x1c0] sm:$0xff]
  %v1345 = vld [vmem:[%s4 + $0x1c8] sm:$0xff]
  %v1346 = vld [vmem:[%s4 + $0x1d0] sm:$0xff]
  %v1347 = vld [vmem:[%s4 + $0x1d8] sm:$0xff]
  %v1348 = vld [vmem:[%s4 + $0x1e0] sm:$0xff]
  %v1349 = vld [vmem:[%s4 + $0x1e8] sm:$0xff]
  %v1350 = vld [vmem:[%s4 + $0x1f0] sm:$0xff]
  %v1351 = vld [vmem:[%s4 + $0x1f8] sm:$0xff]
  %v1352 = vmul.f32 %v1262, %v1280
  %v1353 = vmul.f32 %v1264, %v1281
  %v1354 = vmul.f32 %v1266, %v1282
  %v1355 = vmul.f32 %v1268, %v1283
  %v1356 = vmul.f32 %v1272, %v1284
  %v1357 = vmul.f32 %v1274, %v1285
  %v1358 = vmul.f32 %v1276, %v1286
  %v1359 = vmul.f32 %v1278, %v1287
  %1360 = vmatprep.subr.mxu0 %v1289
  %1361 = vmatpush1.msra.mxu0 %v1288
  %1362 = vmatprep.subr.mxu0 %v1291
  %1363 = vmatpush1.msra.mxu0 %v1290
  %1364 = vmatprep.subr.mxu0 %v1293
  %1365 = vmatpush1.msra.mxu0 %v1292
  %1366 = vmatprep.subr.mxu0 %v1295
  %1367 = vmatpush1.msra.mxu0 %v1294
  %1368 = vmatprep.subr.mxu0 %v1297
  %1369 = vmatpush1.msra.mxu0 %v1296
  %1370 = vmatprep.subr.mxu0 %v1299
  %1371 = vmatpush1.msra.mxu0 %v1298
  %1372 = vmatprep.subr.mxu0 %v1301
  %1373 = vmatpush1.msra.mxu0 %v1300
  %1374 = vmatprep.subr.mxu0 %v1303
  %1375 = vmatpush1.msra.mxu0 %v1302
  %1376 = vmatprep.subr.mxu0 %v1305
  %1377 = vmatpush1.msra.mxu0 %v1304
  %1378 = vmatprep.subr.mxu0 %v1307
  %1379 = vmatpush1.msra.mxu0 %v1306
  %1380 = vmatprep.subr.mxu0 %v1309
  %1381 = vmatpush1.msra.mxu0 %v1308
  %1382 = vmatprep.subr.mxu0 %v1311
  %1383 = vmatpush1.msra.mxu0 %v1310
  %1384 = vmatprep.subr.mxu0 %v1313
  %1385 = vmatpush1.msra.mxu0 %v1312
  %1386 = vmatprep.subr.mxu0 %v1315
  %1387 = vmatpush1.msra.mxu0 %v1314
  %1388 = vmatprep.subr.mxu0 %v1317
  %1389 = vmatpush1.msra.mxu0 %v1316
  %1390 = vmatprep.subr.mxu0 %v1319
  %1391 = vmatpush1.msra.mxu0 %v1318
  %1392 = vmatprep.subr.mxu0 %v1321
  %1393 = vmatpush1.msra.mxu0 %v1320
  %1394 = vmatprep.subr.mxu0 %v1323
  %1395 = vmatpush1.msra.mxu0 %v1322
  %1396 = vmatprep.subr.mxu0 %v1325
  %1397 = vmatpush1.msra.mxu0 %v1324
  %1398 = vmatprep.subr.mxu0 %v1327
  %1399 = vmatpush1.msra.mxu0 %v1326
  %1400 = vmatprep.subr.mxu0 %v1329
  %1401 = vmatpush1.msra.mxu0 %v1328
  %1402 = vmatprep.subr.mxu0 %v1331
  %1403 = vmatpush1.msra.mxu0 %v1330
  %1404 = vmatprep.subr.mxu0 %v1333
  %1405 = vmatpush1.msra.mxu0 %v1332
  %1406 = vmatprep.subr.mxu0 %v1335
  %1407 = vmatpush1.msra.mxu0 %v1334
  %1408 = vmatprep.subr.mxu0 %v1337
  %1409 = vmatpush1.msra.mxu0 %v1336
  %1410 = vmatprep.subr.mxu0 %v1339
  %1411 = vmatpush1.msra.mxu0 %v1338
  %1412 = vmatprep.subr.mxu0 %v1341
  %1413 = vmatpush1.msra.mxu0 %v1340
  %1414 = vmatprep.subr.mxu0 %v1343
  %1415 = vmatpush1.msra.mxu0 %v1342
  %1416 = vmatprep.subr.mxu0 %v1345
  %1417 = vmatpush1.msra.mxu0 %v1344
  %1418 = vmatprep.subr.mxu0 %v1347
  %1419 = vmatpush1.msra.mxu0 %v1346
  %1420 = vmatprep.subr.mxu0 %v1349
  %1421 = vmatpush1.msra.mxu0 %v1348
  %1422 = vmatprep.subr.mxu0 %v1351
  %1423 = vmatpush1.msra.mxu0 %v1350
  %1424 = vmatprep.mubr.f32.mxu0 %v1353
  %1425 = vmatmul.mubr.f32.gmra.mrb[0].mxu0 %v1352
  %v1426 = vpop.f32.mrb[0].mxu0
  %v1427 = vadd.f32 0.0, %v1426
  %v1428 = vpop.f32.mrb[0].mxu0
  %v1429 = vadd.f32 0.0, %v1428
  %1430 = vmatprep.mubr.f32.mxu0 %v1355
  %1431 = vmatmul.mubr.f32.gmra.mrb[0].mxu0 %v1354
  %v1432 = vpop.f32.mrb[0].mxu0
  %v1433 = vadd.f32 0.0, %v1432
  %v1434 = vpop.f32.mrb[0].mxu0
  %v1435 = vadd.f32 0.0, %v1434
  %1436 = vmatprep.mubr.f32.mxu0 %v1357
  %1437 = vmatmul.mubr.f32.gmra.mrb[0].mxu0 %v1356
  %v1438 = vpop.f32.mrb[0].mxu0
  %v1439 = vadd.f32 0.0, %v1438
  %v1440 = vpop.f32.mrb[0].mxu0
  %v1441 = vadd.f32 0.0, %v1440
  %1442 = vmatprep.mubr.f32.mxu0 %v1359
  %1443 = vmatmul.mubr.f32.gmra.mrb[0].mxu0 %v1358
  %v1444 = vpop.f32.mrb[0].mxu0
  %v1445 = vadd.f32 0.0, %v1444
  %v1446 = vpop.f32.mrb[0].mxu0
  %v1447 = vadd.f32 0.0, %v1446
  %1448 = vdwg.mxu0
  %v1449 = vadd.f32 %v1427, %v1433
  %v1450 = vadd.f32 %v1449, %v1439
  %v1451 = vadd.f32 %v1450, %v1445
  %v1452 = vrot.slane %v1451, 4
  %v1453 = vadd.f32 %v1451, %v1452
  %v1454 = vrot.slane %v1453, 2
  %v1455 = vadd.f32 %v1453, %v1454
  %v1456 = vrot.slane %v1455, 1
  %v1457 = vadd.f32 %v1455, %v1456
  %v1458 = vadd.f32 %v1429, %v1435
  %v1459 = vadd.f32 %v1458, %v1441
  %v1460 = vadd.f32 %v1459, %v1447
  %v1461 = vrot.slane %v1460, 4
  %v1462 = vadd.f32 %v1460, %v1461
  %v1463 = vrot.slane %v1462, 2
  %v1464 = vadd.f32 %v1462, %v1463
  %v1465 = vrot.slane %v1464, 1
  %v1466 = vadd.f32 %v1464, %v1465
  %v1467 = vmul.f32 %v1457, 0.010204081
  %v1468 = vmul.f32 %v1466, 0.010204081
  %v1469 = vsub.f32 %v1262, %v1467
  %v1470 = vsub.f32 %v1264, %v1468
  %v1471 = vsub.f32 %v1266, %v1467
  %v1472 = vsub.f32 %v1268, %v1468
  %v1473 = vsub.f32 %v1272, %v1467
  %v1474 = vsub.f32 %v1274, %v1468
  %v1475 = vsub.f32 %v1276, %v1467
  %v1476 = vsub.f32 %v1278, %v1468
  %v1477 = vmul.f32 %v1469, %v1280
  %v1478 = vmul.f32 %v1470, %v1281
  %v1479 = vmul.f32 %v1471, %v1282
  %v1480 = vmul.f32 %v1472, %v1283
  %v1481 = vmul.f32 %v1473, %v1284
  %v1482 = vmul.f32 %v1474, %v1285
  %v1483 = vmul.f32 %v1475, %v1286
  %v1484 = vmul.f32 %v1476, %v1287
  %v1485 = vmul.f32 %v1477, %v1477
  %v1486 = vmul.f32 %v1478, %v1478
  %v1487 = vmul.f32 %v1479, %v1479
  %v1488 = vmul.f32 %v1480, %v1480
  %v1489 = vmul.f32 %v1481, %v1481
  %v1490 = vmul.f32 %v1482, %v1482
  %v1491 = vmul.f32 %v1483, %v1483
  %v1492 = vmul.f32 %v1484, %v1484
  %1493 = vmatprep.subr.mxu0 %v1289
  %1494 = vmatpush1.msra.mxu0 %v1288
  %1495 = vmatprep.subr.mxu0 %v1291
  %1496 = vmatpush1.msra.mxu0 %v1290
  %1497 = vmatprep.subr.mxu0 %v1293
  %1498 = vmatpush1.msra.mxu0 %v1292
  %1499 = vmatprep.subr.mxu0 %v1295
  %1500 = vmatpush1.msra.mxu0 %v1294
  %1501 = vmatprep.subr.mxu0 %v1297
  %1502 = vmatpush1.msra.mxu0 %v1296
  %1503 = vmatprep.subr.mxu0 %v1299
  %1504 = vmatpush1.msra.mxu0 %v1298
  %1505 = vmatprep.subr.mxu0 %v1301
  %1506 = vmatpush1.msra.mxu0 %v1300
  %1507 = vmatprep.subr.mxu0 %v1303
  %1508 = vmatpush1.msra.mxu0 %v1302
  %1509 = vmatprep.subr.mxu0 %v1305
  %1510 = vmatpush1.msra.mxu0 %v1304
  %1511 = vmatprep.subr.mxu0 %v1307
  %1512 = vmatpush1.msra.mxu0 %v1306
  %1513 = vmatprep.subr.mxu0 %v1309
  %1514 = vmatpush1.msra.mxu0 %v1308
  %1515 = vmatprep.subr.mxu0 %v1311
  %1516 = vmatpush1.msra.mxu0 %v1310
  %1517 = vmatprep.subr.mxu0 %v1313
  %1518 = vmatpush1.msra.mxu0 %v1312
  %1519 = vmatprep.subr.mxu0 %v1315
  %1520 = vmatpush1.msra.mxu0 %v1314
  %1521 = vmatprep.subr.mxu0 %v1317
  %1522 = vmatpush1.msra.mxu0 %v1316
  %1523 = vmatprep.subr.mxu0 %v1319
  %1524 = vmatpush1.msra.mxu0 %v1318
  %1525 = vmatprep.subr.mxu0 %v1321
  %1526 = vmatpush1.msra.mxu0 %v1320
  %1527 = vmatprep.subr.mxu0 %v1323
  %1528 = vmatpush1.msra.mxu0 %v1322
  %1529 = vmatprep.subr.mxu0 %v1325
  %1530 = vmatpush1.msra.mxu0 %v1324
  %1531 = vmatprep.subr.mxu0 %v1327
  %1532 = vmatpush1.msra.mxu0 %v1326
  %1533 = vmatprep.subr.mxu0 %v1329
  %1534 = vmatpush1.msra.mxu0 %v1328
  %1535 = vmatprep.subr.mxu0 %v1331
  %1536 = vmatpush1.msra.mxu0 %v1330
  %1537 = vmatprep.subr.mxu0 %v1333
  %1538 = vmatpush1.msra.mxu0 %v1332
  %1539 = vmatprep.subr.mxu0 %v1335
  %1540 = vmatpush1.msra.mxu0 %v1334
  %1541 = vmatprep.subr.mxu0 %v1337
  %1542 = vmatpush1.msra.mxu0 %v1336
  %1543 = vmatprep.subr.mxu0 %v1339
  %1544 = vmatpush1.msra.mxu0 %v1338
  %1545 = vmatprep.subr.mxu0 %v1341
  %1546 = vmatpush1.msra.mxu0 %v1340
  %1547 = vmatprep.subr.mxu0 %v1343
  %1548 = vmatpush1.msra.mxu0 %v1342
  %1549 = vmatprep.subr.mxu0 %v1345
  %1550 = vmatpush1.msra.mxu0 %v1344
  %1551 = vmatprep.subr.mxu0 %v1347
  %1552 = vmatpush1.msra.mxu0 %v1346
  %1553 = vmatprep.subr.mxu0 %v1349
  %1554 = vmatpush1.msra.mxu0 %v1348
  %1555 = vmatprep.subr.mxu0 %v1351
  %1556 = vmatpush1.msra.mxu0 %v1350
  %1557 = vmatprep.mubr.f32.mxu0 %v1486
  %1558 = vmatmul.mubr.f32.gmra.mrb[0].mxu0 %v1485
  %v1559 = vpop.f32.mrb[0].mxu0
  %v1560 = vadd.f32 0.0, %v1559
  %v1561 = vpop.f32.mrb[0].mxu0
  %v1562 = vadd.f32 0.0, %v1561
  %1563 = vmatprep.mubr.f32.mxu0 %v1488
  %1564 = vmatmul.mubr.f32.gmra.mrb[0].mxu0 %v1487
  %v1565 = vpop.f32.mrb[0].mxu0
  %v1566 = vadd.f32 0.0, %v1565
  %v1567 = vpop.f32.mrb[0].mxu0
  %v1568 = vadd.f32 0.0, %v1567
  %1569 = vmatprep.mubr.f32.mxu0 %v1490
  %1570 = vmatmul.mubr.f32.gmra.mrb[0].mxu0 %v1489
  %v1571 = vpop.f32.mrb[0].mxu0
  %v1572 = vadd.f32 0.0, %v1571
  %v1573 = vpop.f32.mrb[0].mxu0
  %v1574 = vadd.f32 0.0, %v1573
  %1575 = vmatprep.mubr.f32.mxu0 %v1492
  %1576 = vmatmul.mubr.f32.gmra.mrb[0].mxu0 %v1491
  %v1577 = vpop.f32.mrb[0].mxu0
  %v1578 = vadd.f32 0.0, %v1577
  %v1579 = vpop.f32.mrb[0].mxu0
  %v1580 = vadd.f32 0.0, %v1579
  %1581 = vdwg.mxu0
  %v1582 = vadd.f32 %v1560, %v1566
  %v1583 = vadd.f32 %v1582, %v1572
  %v1584 = vadd.f32 %v1583, %v1578
  %v1585 = vrot.slane %v1584, 4
  %v1586 = vadd.f32 %v1584, %v1585
  %v1587 = vrot.slane %v1586, 2
  %v1588 = vadd.f32 %v1586, %v1587
  %v1589 = vrot.slane %v1588, 1
  %v1590 = vadd.f32 %v1588, %v1589
  %v1591 = vadd.f32 %v1562, %v1568
  %v1592 = vadd.f32 %v1591, %v1574
  %v1593 = vadd.f32 %v1592, %v1580
  %v1594 = vrot.slane %v1593, 4
  %v1595 = vadd.f32 %v1593, %v1594
  %v1596 = vrot.slane %v1595, 2
  %v1597 = vadd.f32 %v1595, %v1596
  %v1598 = vrot.slane %v1597, 1
  %v1599 = vadd.f32 %v1597, %v1598
  %v1600 = vmul.f32 %v1590, 0.010204081
  %v1601 = vmul.f32 %v1599, 0.010204081
  %v1602 = vld [vmem:[%s5] sm:$0x3]
  %v1603 = vadd.f32 %v1600, 1e-05
  %v1604 = vadd.f32 %v1601, 1e-05
  %v1605 = vrsqrt.pop %v1603
  %v1606 = vrsqrt.pop %v1604
  %v1609 = vcombine.low %v1605, %v1606
  %v1611 = vunpack.c.l.s4 1966171168
  %v1612 = vunpack.c.0.s8 %v1611
  %v1613 = vlaneseq
  %v1614 = vshrl.u32 %v1613, 7
  %v1615 = vsub.s32 %v1612, %v1614
  %v1616 = vrot.slane %v1609, %v1615
  %v1618 = vunpack.c.l.s4 1966171168
  %v1619 = vunpack.c.0.s8 %v1618
  %v1620 = vlaneseq
  %v1621 = vshrl.u32 %v1620, 7
  %v1622 = vsub.s32 %v1619, %v1621
  %v1623 = vrot.slane %v1616, %v1622
  %v1625 = vmul.f32 %v1602, %v1623
  %v1627 = vlaneseq
  %v1628 = vshrl.u32 %v1627, 7
  %v1629 = vsub.s32 0, %v1628
  %v1630 = vrot.slane %v1625, %v1629
  %v1631 = vlaneseq
  %v1632 = vshrl.u32 %v1631, 7
  %v1633 = vsub.s32 1, %v1632
  %v1634 = vrot.slane %v1625, %v1633
  %v1637 = vmul.f32 %v1469, %v1630
  %v1638 = vmul.f32 %v1470, %v1634
  %v1639 = vmul.f32 %v1471, %v1630
  %v1640 = vmul.f32 %v1472, %v1634
  %v1641 = vmul.f32 %v1473, %v1630
  %v1642 = vmul.f32 %v1474, %v1634
  %v1643 = vmul.f32 %v1475, %v1630
  %v1644 = vmul.f32 %v1476, %v1634
  %v1645 = vld [vmem:[%s6] sm:$0x3]
  %v1647 = vlaneseq
  %v1648 = vshrl.u32 %v1647, 7
  %v1649 = vsub.s32 0, %v1648
  %v1650 = vrot.slane %v1645, %v1649
  %v1651 = vlaneseq
  %v1652 = vshrl.u32 %v1651, 7
  %v1653 = vsub.s32 1, %v1652
  %v1654 = vrot.slane %v1645, %v1653
  %v1657 = vadd.f32 %v1637, %v1650
  %v1658 = vadd.f32 %v1638, %v1654
  %v1659 = vadd.f32 %v1639, %v1650
  %v1660 = vadd.f32 %v1640, %v1654
  %v1661 = vadd.f32 %v1641, %v1650
  %v1662 = vadd.f32 %v1642, %v1654
  %v1663 = vadd.f32 %v1643, %v1650
  %v1664 = vadd.f32 %v1644, %v1654
  %v1665 = vmax.f32 %v1657, 0.0
  %v1666 = vmax.f32 %v1658, 0.0
  %v1667 = vmax.f32 %v1659, 0.0
  %v1668 = vmax.f32 %v1660, 0.0
  %v1669 = vmax.f32 %v1661, 0.0
  %v1670 = vmax.f32 %v1662, 0.0
  %v1671 = vmax.f32 %v1663, 0.0
  %v1672 = vmax.f32 %v1664, 0.0
  %v1673 = vpack.c.bf16 %v1667, %v1665
  %v1674 = vpack.c.bf16 %v1668, %v1666
  %v1675 = vpack.c.bf16 %v1671, %v1669
  %v1676 = vpack.c.bf16 %v1672, %v1670
  %v1681 = vunpack.c.l.b16 %v1673
  %v1682 = vunpack.c.l.b16 %v1674
  %v1683 = vunpack.c.h.b16 %v1673
  %v1684 = vunpack.c.h.b16 %v1674
  %v1685 = vunpack.c.l.b16 %v1675
  %v1686 = vunpack.c.l.b16 %v1676
  %v1687 = vunpack.c.h.b16 %v1675
  %v1688 = vunpack.c.h.b16 %v1676
  %v1689 = vpack.c.b16 %v1682, %v1681
  %v1690 = vpack.c.b16 %v1684, %v1683
  %v1691 = vpack.c.b16 %v1686, %v1685
  %v1692 = vpack.c.b16 %v1688, %v1687
  %1697 = vst [vmem:[%s7] sm:$0xff] %v1689
  %1698 = vst [vmem:[%s7 + $0x8] sm:$0xff] %v1690
  %1699 = vst [vmem:[%s7 + $0x10] sm:$0xff] %v1691
  %1700 = vst [vmem:[%s7 + $0x18] sm:$0xff] %v1692
  // Predicated region
  $region30: #{generator_forward.6} parent=0 // pred_check
    _
  $region31: #{generator_forward.6} parent=0 // pred_check_branch
    %1702 = sbr.rel (0) target = $region33
  $region32: #{generator_forward.6} parent=0 // pred_region
    _
  $region33: #{generator_forward.6} parent=0 // pred_fallthru
    _
  // Predicated region
  $region34: #{generator_forward.6} parent=0 // pred_check
    _
  $region35: #{generator_forward.6} parent=0 // pred_check_branch
    %1704 = sbr.rel (0) target = $region37
  $region36: #{generator_forward.6} parent=0 // pred_region
    _
  $region37: #{generator_forward.6} parent=0 // pred_fallthru
    _

// kernel: generator_forward.7
$region0: #{generator_forward.7}
  #allocation0 [shape = 'u32[]', space=smem, size = 0x4, offset = 0x4, fixed_abs, tag = 'smem constant byte address 0x4 - core index']
  #allocation1 [shape = 'u32[144,128]{1,0:T(1,128)}', space=vmem, size = 0x12000, scoped, tag = 'internal scratch']
  %s0 = inlined_call_operand.vmem [shape: bf16[128,576], index: 0, kind: input, shape index: {}]
  %s1 = inlined_call_operand.vmem [shape: bf16[576,128], index: 1, kind: input, shape index: {}]
  %s2 = inlined_call_operand.vmem [shape: f32[1,128], index: 2, kind: input, shape index: {}]
  %s3 = inlined_call_operand.vmem [shape: f32[128,128], index: 3, kind: input, shape index: {}]
  %s4 = inlined_call_operand.vmem [shape: f32[128,128], index: 4, kind: input, shape index: {}]
  %s5 = inlined_call_operand.vmem [shape: f32[1,128], index: 5, kind: input, shape index: {}]
  %s6 = inlined_call_operand.vmem [shape: f32[1,128], index: 6, kind: input, shape index: {}]
  %s7 = inlined_call_operand.vmem [shape: bf16[128,128], index: 7, kind: output, shape index: {}]
  %s8 = sld [smem:[#allocation0]]
  $region38: #{generator_forward.7} parent=0
    _
  %s10 = ssub.s32 1, %s8
  %s11 = scalar_select 0, %s10, %s8
  // Predicated region
  $region2: #{generator_forward.7} parent=0 // pred_check
    _
  $region3: #{generator_forward.7} parent=0 // pred_check_branch
    %13 = sbr.rel (0) target = $region5
  $region4: #{generator_forward.7} parent=0 // pred_region
    _
  $region5: #{generator_forward.7} parent=0 // pred_fallthru
    _
  // Predicated region
  $region6: #{generator_forward.7} parent=0 // pred_check
    _
  $region7: #{generator_forward.7} parent=0 // pred_check_branch
    %15 = sbr.rel (0) target = $region9
  $region8: #{generator_forward.7} parent=0 // pred_region
    _
  $region9: #{generator_forward.7} parent=0 // pred_fallthru
    _
  // Predicated region
  $region10: #{generator_forward.7} parent=0 // pred_check
    _
  $region11: #{generator_forward.7} parent=0 // pred_check_branch
    %17 = sbr.rel (0) target = $region13
  $region12: #{generator_forward.7} parent=0 // pred_region
    _
  $region13: #{generator_forward.7} parent=0 // pred_fallthru
    _
  // Predicated region
  $region14: #{generator_forward.7} parent=0 // pred_check
    _
  $region15: #{generator_forward.7} parent=0 // pred_check_branch
    %19 = sbr.rel (0) target = $region17
  $region16: #{generator_forward.7} parent=0 // pred_region
    _
  $region17: #{generator_forward.7} parent=0 // pred_fallthru
    _
  // Predicated region
  $region18: #{generator_forward.7} parent=0 // pred_check
    _
  $region19: #{generator_forward.7} parent=0 // pred_check_branch
    %21 = sbr.rel (0) target = $region21
  $region20: #{generator_forward.7} parent=0 // pred_region
    _
  $region21: #{generator_forward.7} parent=0 // pred_fallthru
    _
  // Predicated region
  $region22: #{generator_forward.7} parent=0 // pred_check
    _
  $region23: #{generator_forward.7} parent=0 // pred_check_branch
    %23 = sbr.rel (0) target = $region25
  $region24: #{generator_forward.7} parent=0 // pred_region
    _
  $region25: #{generator_forward.7} parent=0 // pred_fallthru
    _
  // Predicated region
  $region26: #{generator_forward.7} parent=0 // pred_check
    _
  $region27: #{generator_forward.7} parent=0 // pred_check_branch
    %25 = sbr.rel (0) target = $region29
  $region28: #{generator_forward.7} parent=0 // pred_region
    _
  $region29: #{generator_forward.7} parent=0 // pred_fallthru
    _
  %v27 = vld [vmem:[%s0] sm:$0xff]
  %v28 = vld [vmem:[%s0 + $0x8] sm:$0xff]
  %v29 = vld [vmem:[%s0 + $0x10] sm:$0xf]
  %v30 = vld [vmem:[%s0 + $0x14] sm:$0xff]
  %v31 = vld [vmem:[%s0 + $0x1c] sm:$0xff]
  %v32 = vld [vmem:[%s0 + $0x24] sm:$0xf]
  %v33 = vld [vmem:[%s0 + $0x28] sm:$0xff]
  %v34 = vld [vmem:[%s0 + $0x30] sm:$0xff]
  %v35 = vld [vmem:[%s0 + $0x38] sm:$0xf]
  %v36 = vld [vmem:[%s0 + $0x3c] sm:$0xff]
  %v37 = vld [vmem:[%s0 + $0x44] sm:$0xff]
  %v38 = vld [vmem:[%s0 + $0x4c] sm:$0xf]
  %v39 = vld [vmem:[%s0 + $0x50] sm:$0xff]
  %v40 = vld [vmem:[%s0 + $0x58] sm:$0xff]
  %v41 = vld [vmem:[%s0 + $0x60] sm:$0xf]
  %v42 = vld [vmem:[%s0 + $0x64] sm:$0xff]
  %v43 = vld [vmem:[%s0 + $0x6c] sm:$0xff]
  %v44 = vld [vmem:[%s0 + $0x74] sm:$0xf]
  %v45 = vld [vmem:[%s0 + $0x78] sm:$0xff]
  %v46 = vld [vmem:[%s0 + $0x80] sm:$0xff]
  %v47 = vld [vmem:[%s0 + $0x88] sm:$0xf]
  %v48 = vld [vmem:[%s0 + $0x8c] sm:$0xff]
  %v49 = vld [vmem:[%s0 + $0x94] sm:$0xff]
  %v50 = vld [vmem:[%s0 + $0x9c] sm:$0xf]
  %v51 = vld [vmem:[%s0 + $0xa0] sm:$0xff]
  %v52 = vld [vmem:[%s0 + $0xa8] sm:$0xff]
  %v53 = vld [vmem:[%s0 + $0xb0] sm:$0xf]
  %v54 = vld [vmem:[%s0 + $0xb4] sm:$0xff]
  %v55 = vld [vmem:[%s0 + $0xbc] sm:$0xff]
  %v56 = vld [vmem:[%s0 + $0xc4] sm:$0xf]
  %v57 = vld [vmem:[%s0 + $0xc8] sm:$0xff]
  %v58 = vld [vmem:[%s0 + $0xd0] sm:$0xff]
  %v59 = vld [vmem:[%s0 + $0xd8] sm:$0xf]
  %v60 = vld [vmem:[%s0 + $0xdc] sm:$0xff]
  %v61 = vld [vmem:[%s0 + $0xe4] sm:$0xff]
  %v62 = vld [vmem:[%s0 + $0xec] sm:$0xf]
  %v63 = vld [vmem:[%s0 + $0xf0] sm:$0xff]
  %v64 = vld [vmem:[%s0 + $0xf8] sm:$0xff]
  %v65 = vld [vmem:[%s0 + $0x100] sm:$0xf]
  %v66 = vld [vmem:[%s0 + $0x104] sm:$0xff]
  %v67 = vld [vmem:[%s0 + $0x10c] sm:$0xff]
  %v68 = vld [vmem:[%s0 + $0x114] sm:$0xf]
  %v69 = vld [vmem:[%s0 + $0x118] sm:$0xff]
  %v70 = vld [vmem:[%s0 + $0x120] sm:$0xff]
  %v71 = vld [vmem:[%s0 + $0x128] sm:$0xf]
  %v72 = vld [vmem:[%s0 + $0x12c] sm:$0xff]
  %v73 = vld [vmem:[%s0 + $0x134] sm:$0xff]
  %v74 = vld [vmem:[%s0 + $0x13c] sm:$0xf]
  %v75 = vld [vmem:[%s1] sm:$0xf]
  %v76 = vld [vmem:[%s1 + $0x4] sm:$0xf]
  %v77 = vld [vmem:[%s1 + $0x8] sm:$0xf]
  %v78 = vld [vmem:[%s1 + $0xc] sm:$0xf]
  %v79 = vld [vmem:[%s1 + $0x10] sm:$0xf]
  %v80 = vld [vmem:[%s1 + $0x14] sm:$0xf]
  %v81 = vld [vmem:[%s1 + $0x18] sm:$0xf]
  %v82 = vld [vmem:[%s1 + $0x1c] sm:$0xf]
  %v83 = vld [vmem:[%s1 + $0x20] sm:$0xf]
  %v84 = vld [vmem:[%s1 + $0x24] sm:$0xf]
  %v85 = vld [vmem:[%s1 + $0x28] sm:$0xf]
  %v86 = vld [vmem:[%s1 + $0x2c] sm:$0xf]
  %v87 = vld [vmem:[%s1 + $0x30] sm:$0xf]
  %v88 = vld [vmem:[%s1 + $0x34] sm:$0xf]
  %v89 = vld [vmem:[%s1 + $0x38] sm:$0xf]
  %v90 = vld [vmem:[%s1 + $0x3c] sm:$0xf]
  %v91 = vld [vmem:[%s1 + $0x40] sm:$0xf]
  %v92 = vld [vmem:[%s1 + $0x44] sm:$0xf]
  %v93 = vld [vmem:[%s1 + $0x48] sm:$0xf]
  %v94 = vld [vmem:[%s1 + $0x4c] sm:$0xf]
  %v95 = vld [vmem:[%s1 + $0x50] sm:$0xf]
  %v96 = vld [vmem:[%s1 + $0x54] sm:$0xf]
  %v97 = vld [vmem:[%s1 + $0x58] sm:$0xf]
  %v98 = vld [vmem:[%s1 + $0x5c] sm:$0xf]
  %v99 = vld [vmem:[%s1 + $0x60] sm:$0xf]
  %v100 = vld [vmem:[%s1 + $0x64] sm:$0xf]
  %v101 = vld [vmem:[%s1 + $0x68] sm:$0xf]
  %v102 = vld [vmem:[%s1 + $0x6c] sm:$0xf]
  %v103 = vld [vmem:[%s1 + $0x70] sm:$0xf]
  %v104 = vld [vmem:[%s1 + $0x74] sm:$0xf]
  %v105 = vld [vmem:[%s1 + $0x78] sm:$0xf]
  %v106 = vld [vmem:[%s1 + $0x7c] sm:$0xf]
  %v107 = vld [vmem:[%s1 + $0x80] sm:$0xf]
  %v108 = vld [vmem:[%s1 + $0x84] sm:$0xf]
  %v109 = vld [vmem:[%s1 + $0x88] sm:$0xf]
  %v110 = vld [vmem:[%s1 + $0x8c] sm:$0xf]
  %v111 = vld [vmem:[%s1 + $0x90] sm:$0xf]
  %v112 = vld [vmem:[%s1 + $0x94] sm:$0xf]
  %v113 = vld [vmem:[%s1 + $0x98] sm:$0xf]
  %v114 = vld [vmem:[%s1 + $0x9c] sm:$0xf]
  %v115 = vld [vmem:[%s1 + $0xa0] sm:$0xf]
  %v116 = vld [vmem:[%s1 + $0xa4] sm:$0xf]
  %v117 = vld [vmem:[%s1 + $0xa8] sm:$0xf]
  %v118 = vld [vmem:[%s1 + $0xac] sm:$0xf]
  %v119 = vld [vmem:[%s1 + $0xb0] sm:$0xf]
  %v120 = vld [vmem:[%s1 + $0xb4] sm:$0xf]
  %v121 = vld [vmem:[%s1 + $0xb8] sm:$0xf]
  %v122 = vld [vmem:[%s1 + $0xbc] sm:$0xf]
  %v123 = vld [vmem:[%s1 + $0xc0] sm:$0xf]
  %v124 = vld [vmem:[%s1 + $0xc4] sm:$0xf]
  %v125 = vld [vmem:[%s1 + $0xc8] sm:$0xf]
  %v126 = vld [vmem:[%s1 + $0xcc] sm:$0xf]
  %v127 = vld [vmem:[%s1 + $0xd0] sm:$0xf]
  %v128 = vld [vmem:[%s1 + $0xd4] sm:$0xf]
  %v129 = vld [vmem:[%s1 + $0xd8] sm:$0xf]
  %v130 = vld [vmem:[%s1 + $0xdc] sm:$0xf]
  %v131 = vld [vmem:[%s1 + $0xe0] sm:$0xf]
  %v132 = vld [vmem:[%s1 + $0xe4] sm:$0xf]
  %v133 = vld [vmem:[%s1 + $0xe8] sm:$0xf]
  %v134 = vld [vmem:[%s1 + $0xec] sm:$0xf]
  %v135 = vld [vmem:[%s1 + $0xf0] sm:$0xf]
  %v136 = vld [vmem:[%s1 + $0xf4] sm:$0xf]
  %v137 = vld [vmem:[%s1 + $0xf8] sm:$0xf]
  %v138 = vld [vmem:[%s1 + $0xfc] sm:$0xf]
  %v139 = vld [vmem:[%s1 + $0x100] sm:$0xf]
  %v140 = vld [vmem:[%s1 + $0x104] sm:$0xf]
  %v141 = vld [vmem:[%s1 + $0x108] sm:$0xf]
  %v142 = vld [vmem:[%s1 + $0x10c] sm:$0xf]
  %v143 = vld [vmem:[%s1 + $0x110] sm:$0xf]
  %v144 = vld [vmem:[%s1 + $0x114] sm:$0xf]
  %v145 = vld [vmem:[%s1 + $0x118] sm:$0xf]
  %v146 = vld [vmem:[%s1 + $0x11c] sm:$0xf]
  %v147 = vld [vmem:[%s2] sm:$0x1]
  %v149 = vlaneseq
  %v150 = vshrl.u32 %v149, 7
  %v151 = vsub.s32 0, %v150
  %v152 = vrot.slane %v147, %v151
  %v202 = vunpack.c.l.b16 %v27
  %v203 = vunpack.c.h.b16 %v27
  %v204 = vunpack.c.l.b16 %v28
  %v205 = vunpack.c.h.b16 %v28
  %v206 = vunpack.c.l.b16 %v29
  %v207 = vunpack.c.l.b16 %v30
  %v208 = vunpack.c.h.b16 %v30
  %v209 = vunpack.c.l.b16 %v31
  %v210 = vunpack.c.h.b16 %v31
  %v211 = vunpack.c.l.b16 %v32
  %v212 = vunpack.c.l.b16 %v33
  %v213 = vunpack.c.h.b16 %v33
  %v214 = vunpack.c.l.b16 %v34
  %v215 = vunpack.c.h.b16 %v34
  %v216 = vunpack.c.l.b16 %v35
  %v217 = vunpack.c.l.b16 %v36
  %v218 = vunpack.c.h.b16 %v36
  %v219 = vunpack.c.l.b16 %v37
  %v220 = vunpack.c.h.b16 %v37
  %v221 = vunpack.c.l.b16 %v38
  %v222 = vunpack.c.l.b16 %v39
  %v223 = vunpack.c.h.b16 %v39
  %v224 = vunpack.c.l.b16 %v40
  %v225 = vunpack.c.h.b16 %v40
  %v226 = vunpack.c.l.b16 %v41
  %v227 = vunpack.c.l.b16 %v42
  %v228 = vunpack.c.h.b16 %v42
  %v229 = vunpack.c.l.b16 %v43
  %v230 = vunpack.c.h.b16 %v43
  %v231 = vunpack.c.l.b16 %v44
  %v232 = vunpack.c.l.b16 %v45
  %v233 = vunpack.c.h.b16 %v45
  %v234 = vunpack.c.l.b16 %v46
  %v235 = vunpack.c.h.b16 %v46
  %v236 = vunpack.c.l.b16 %v47
  %v237 = vunpack.c.l.b16 %v48
  %v238 = vunpack.c.h.b16 %v48
  %v239 = vunpack.c.l.b16 %v49
  %v240 = vunpack.c.h.b16 %v49
  %v241 = vunpack.c.l.b16 %v50
  %v242 = vunpack.c.l.b16 %v51
  %v243 = vunpack.c.h.b16 %v51
  %v244 = vunpack.c.l.b16 %v52
  %v245 = vunpack.c.h.b16 %v52
  %v246 = vunpack.c.l.b16 %v53
  %v247 = vunpack.c.l.b16 %v54
  %v248 = vunpack.c.h.b16 %v54
  %v249 = vunpack.c.l.b16 %v55
  %v250 = vunpack.c.h.b16 %v55
  %v251 = vunpack.c.l.b16 %v56
  %v252 = vunpack.c.l.b16 %v57
  %v253 = vunpack.c.h.b16 %v57
  %v254 = vunpack.c.l.b16 %v58
  %v255 = vunpack.c.h.b16 %v58
  %v256 = vunpack.c.l.b16 %v59
  %v257 = vunpack.c.l.b16 %v60
  %v258 = vunpack.c.h.b16 %v60
  %v259 = vunpack.c.l.b16 %v61
  %v260 = vunpack.c.h.b16 %v61
  %v261 = vunpack.c.l.b16 %v62
  %v262 = vunpack.c.l.b16 %v63
  %v263 = vunpack.c.h.b16 %v63
  %v264 = vunpack.c.l.b16 %v64
  %v265 = vunpack.c.h.b16 %v64
  %v266 = vunpack.c.l.b16 %v65
  %v267 = vunpack.c.l.b16 %v66
  %v268 = vunpack.c.h.b16 %v66
  %v269 = vunpack.c.l.b16 %v67
  %v270 = vunpack.c.h.b16 %v67
  %v271 = vunpack.c.l.b16 %v68
  %v272 = vunpack.c.l.b16 %v69
  %v273 = vunpack.c.h.b16 %v69
  %v274 = vunpack.c.l.b16 %v70
  %v275 = vunpack.c.h.b16 %v70
  %v276 = vunpack.c.l.b16 %v71
  %v277 = vunpack.c.l.b16 %v72
  %v278 = vunpack.c.h.b16 %v72
  %v279 = vunpack.c.l.b16 %v73
  %v280 = vunpack.c.h.b16 %v73
  %v281 = vunpack.c.l.b16 %v74
  %v282 = vpack.c.b16 %v207, %v202
  %v283 = vpack.c.b16 %v208, %v203
  %v284 = vpack.c.b16 %v209, %v204
  %v285 = vpack.c.b16 %v210, %v205
  %v286 = vpack.c.b16 %v211, %v206
  %v287 = vpack.c.b16 %v217, %v212
  %v288 = vpack.c.b16 %v218, %v213
  %v289 = vpack.c.b16 %v219, %v214
  %v290 = vpack.c.b16 %v220, %v215
  %v291 = vpack.c.b16 %v221, %v216
  %v292 = vpack.c.b16 %v227, %v222
  %v293 = vpack.c.b16 %v228, %v223
  %v294 = vpack.c.b16 %v229, %v224
  %v295 = vpack.c.b16 %v230, %v225
  %v296 = vpack.c.b16 %v231, %v226
  %v297 = vpack.c.b16 %v237, %v232
  %v298 = vpack.c.b16 %v238, %v233
  %v299 = vpack.c.b16 %v239, %v234
  %v300 = vpack.c.b16 %v240, %v235
  %v301 = vpack.c.b16 %v241, %v236
  %v302 = vpack.c.b16 %v247, %v242
  %v303 = vpack.c.b16 %v248, %v243
  %v304 = vpack.c.b16 %v249, %v244
  %v305 = vpack.c.b16 %v250, %v245
  %v306 = vpack.c.b16 %v251, %v246
  %v307 = vpack.c.b16 %v257, %v252
  %v308 = vpack.c.b16 %v258, %v253
  %v309 = vpack.c.b16 %v259, %v254
  %v310 = vpack.c.b16 %v260, %v255
  %v311 = vpack.c.b16 %v261, %v256
  %v312 = vpack.c.b16 %v267, %v262
  %v313 = vpack.c.b16 %v268, %v263
  %v314 = vpack.c.b16 %v269, %v264
  %v315 = vpack.c.b16 %v270, %v265
  %v316 = vpack.c.b16 %v271, %v266
  %v317 = vpack.c.b16 %v277, %v272
  %v318 = vpack.c.b16 %v278, %v273
  %v319 = vpack.c.b16 %v279, %v274
  %v320 = vpack.c.b16 %v280, %v275
  %v321 = vpack.c.b16 %v281, %v276
  %v426 = vunpack.c.l.b16 %v75
  %v427 = vunpack.c.l.b16 %v76
  %v428 = vunpack.c.l.b16 %v77
  %v429 = vunpack.c.l.b16 %v78
  %v430 = vunpack.c.l.b16 %v79
  %v431 = vunpack.c.l.b16 %v80
  %v432 = vunpack.c.l.b16 %v81
  %v433 = vunpack.c.l.b16 %v82
  %v434 = vunpack.c.l.b16 %v83
  %v435 = vunpack.c.l.b16 %v84
  %v436 = vunpack.c.l.b16 %v85
  %v437 = vunpack.c.l.b16 %v86
  %v438 = vunpack.c.l.b16 %v87
  %v439 = vunpack.c.l.b16 %v88
  %v440 = vunpack.c.l.b16 %v89
  %v441 = vunpack.c.l.b16 %v90
  %v442 = vunpack.c.l.b16 %v91
  %v443 = vunpack.c.l.b16 %v92
  %v444 = vunpack.c.l.b16 %v93
  %v445 = vunpack.c.l.b16 %v94
  %v446 = vunpack.c.l.b16 %v95
  %v447 = vunpack.c.l.b16 %v96
  %v448 = vunpack.c.l.b16 %v97
  %v449 = vunpack.c.l.b16 %v98
  %v450 = vunpack.c.l.b16 %v99
  %v451 = vunpack.c.l.b16 %v100
  %v452 = vunpack.c.l.b16 %v101
  %v453 = vunpack.c.l.b16 %v102
  %v454 = vunpack.c.l.b16 %v103
  %v455 = vunpack.c.l.b16 %v104
  %v456 = vunpack.c.l.b16 %v105
  %v457 = vunpack.c.l.b16 %v106
  %v458 = vunpack.c.l.b16 %v107
  %v459 = vunpack.c.l.b16 %v108
  %v460 = vunpack.c.l.b16 %v109
  %v461 = vunpack.c.l.b16 %v110
  %v462 = vunpack.c.l.b16 %v111
  %v463 = vunpack.c.l.b16 %v112
  %v464 = vunpack.c.l.b16 %v113
  %v465 = vunpack.c.l.b16 %v114
  %v466 = vunpack.c.l.b16 %v115
  %v467 = vunpack.c.l.b16 %v116
  %v468 = vunpack.c.l.b16 %v117
  %v469 = vunpack.c.l.b16 %v118
  %v470 = vunpack.c.l.b16 %v119
  %v471 = vunpack.c.l.b16 %v120
  %v472 = vunpack.c.l.b16 %v121
  %v473 = vunpack.c.l.b16 %v122
  %v474 = vunpack.c.l.b16 %v123
  %v475 = vunpack.c.l.b16 %v124
  %v476 = vunpack.c.l.b16 %v125
  %v477 = vunpack.c.l.b16 %v126
  %v478 = vunpack.c.l.b16 %v127
  %v479 = vunpack.c.l.b16 %v128
  %v480 = vunpack.c.l.b16 %v129
  %v481 = vunpack.c.l.b16 %v130
  %v482 = vunpack.c.l.b16 %v131
  %v483 = vunpack.c.l.b16 %v132
  %v484 = vunpack.c.l.b16 %v133
  %v485 = vunpack.c.l.b16 %v134
  %v486 = vunpack.c.l.b16 %v135
  %v487 = vunpack.c.l.b16 %v136
  %v488 = vunpack.c.l.b16 %v137
  %v489 = vunpack.c.l.b16 %v138
  %v490 = vunpack.c.l.b16 %v139
  %v491 = vunpack.c.l.b16 %v140
  %v492 = vunpack.c.l.b16 %v141
  %v493 = vunpack.c.l.b16 %v142
  %v494 = vunpack.c.l.b16 %v143
  %v495 = vunpack.c.l.b16 %v144
  %v496 = vunpack.c.l.b16 %v145
  %v497 = vunpack.c.l.b16 %v146
  %v498 = vpack.c.b16 %v427, %v426
  %v499 = vpack.c.b16 %v429, %v428
  %v500 = vpack.c.b16 %v431, %v430
  %v501 = vpack.c.b16 %v433, %v432
  %v502 = vpack.c.b16 %v435, %v434
  %v503 = vpack.c.b16 %v437, %v436
  %v504 = vpack.c.b16 %v439, %v438
  %v505 = vpack.c.b16 %v441, %v440
  %v506 = vpack.c.b16 %v443, %v442
  %v507 = vpack.c.b16 %v445, %v444
  %v508 = vpack.c.b16 %v447, %v446
  %v509 = vpack.c.b16 %v449, %v448
  %v510 = vpack.c.b16 %v451, %v450
  %v511 = vpack.c.b16 %v453, %v452
  %v512 = vpack.c.b16 %v455, %v454
  %v513 = vpack.c.b16 %v457, %v456
  %v514 = vpack.c.b16 %v459, %v458
  %v515 = vpack.c.b16 %v461, %v460
  %v516 = vpack.c.b16 %v463, %v462
  %v517 = vpack.c.b16 %v465, %v464
  %v518 = vpack.c.b16 %v467, %v466
  %v519 = vpack.c.b16 %v469, %v468
  %v520 = vpack.c.b16 %v471, %v470
  %v521 = vpack.c.b16 %v473, %v472
  %v522 = vpack.c.b16 %v475, %v474
  %v523 = vpack.c.b16 %v477, %v476
  %v524 = vpack.c.b16 %v479, %v478
  %v525 = vpack.c.b16 %v481, %v480
  %v526 = vpack.c.b16 %v483, %v482
  %v527 = vpack.c.b16 %v485, %v484
  %v528 = vpack.c.b16 %v487, %v486
  %v529 = vpack.c.b16 %v489, %v488
  %v530 = vpack.c.b16 %v491, %v490
  %v531 = vpack.c.b16 %v493, %v492
  %v532 = vpack.c.b16 %v495, %v494
  %v533 = vpack.c.b16 %v497, %v496
  %vm570 = vcmask 523264
  %v572 = vsel %vm570, %v286, 0
  %v575 = vsel %vm570, %v291, 0
  %v578 = vsel %vm570, %v296, 0
  %v581 = vsel %vm570, %v301, 0
  %v584 = vsel %vm570, %v306, 0
  %v587 = vsel %vm570, %v311, 0
  %v590 = vsel %vm570, %v316, 0
  %v593 = vsel %vm570, %v321, 0
  %595 = vmatprep.subr.bf16.mxu0 0
  %596 = vmatpush1.bf16.msra.mxu0 %v498
  %597 = vmatprep.subr.bf16.mxu0 0
  %598 = vmatpush1.bf16.msra.mxu0 %v499
  %599 = vmatprep.subr.bf16.mxu0 0
  %600 = vmatpush1.bf16.msra.mxu0 %v500
  %601 = vmatprep.subr.bf16.mxu0 0
  %602 = vmatpush1.bf16.msra.mxu0 %v501
  %603 = vmatprep.subr.bf16.mxu0 0
  %604 = vmatpush1.bf16.msra.mxu0 %v502
  %605 = vmatprep.subr.bf16.mxu0 0
  %606 = vmatpush1.bf16.msra.mxu0 %v503
  %607 = vmatprep.subr.bf16.mxu0 0
  %608 = vmatpush1.bf16.msra.mxu0 %v504
  %609 = vmatprep.subr.bf16.mxu0 0
  %610 = vmatpush1.bf16.msra.mxu0 %v505
  %611 = vmatprep.subr.bf16.mxu0 0
  %612 = vmatpush1.bf16.msra.mxu0 %v506
  %613 = vmatprep.subr.bf16.mxu0 0
  %614 = vmatpush1.bf16.msra.mxu0 %v507
  %615 = vmatprep.subr.bf16.mxu0 0
  %616 = vmatpush1.bf16.msra.mxu0 %v508
  %617 = vmatprep.subr.bf16.mxu0 0
  %618 = vmatpush1.bf16.msra.mxu0 %v509
  %619 = vmatprep.subr.bf16.mxu0 0
  %620 = vmatpush1.bf16.msra.mxu0 %v510
  %621 = vmatprep.subr.bf16.mxu0 0
  %622 = vmatpush1.bf16.msra.mxu0 %v511
  %623 = vmatprep.subr.bf16.mxu0 0
  %624 = vmatpush1.bf16.msra.mxu0 %v512
  %625 = vmatprep.subr.bf16.mxu0 0
  %626 = vmatpush1.bf16.msra.mxu0 %v513
  %627 = vmatprep.mubr.bf16.mxu0 %v283
  %628 = vmatmul.mubr.bf16.gmra.mrb[0].mxu0 %v282
  %v629 = vpop.f32.mrb[0].mxu0
  %v630 = vadd.f32 %v152, %v629
  %v631 = vpop.f32.mrb[0].mxu0
  %v632 = vpop.f32.mrb[0].mxu0
  %v633 = vadd.f32 %v152, %v632
  %v634 = vpop.f32.mrb[0].mxu0
  %635 = vmatprep.mubr.bf16.mxu0 %v288
  %636 = vmatmul.mubr.bf16.gmra.mrb[0].mxu0 %v287
  %v637 = vpop.f32.mrb[0].mxu0
  %v638 = vadd.f32 %v152, %v637
  %v639 = vpop.f32.mrb[0].mxu0
  %v640 = vpop.f32.mrb[0].mxu0
  %v641 = vadd.f32 %v152, %v640
  %v642 = vpop.f32.mrb[0].mxu0
  %643 = vmatprep.mubr.bf16.mxu0 %v293
  %644 = vmatmul.mubr.bf16.gmra.mrb[0].mxu0 %v292
  %v645 = vpop.f32.mrb[0].mxu0
  %v646 = vadd.f32 %v152, %v645
  %v647 = vpop.f32.mrb[0].mxu0
  %v648 = vpop.f32.mrb[0].mxu0
  %v649 = vadd.f32 %v152, %v648
  %v650 = vpop.f32.mrb[0].mxu0
  %651 = vmatprep.mubr.bf16.mxu0 %v298
  %652 = vmatmul.mubr.bf16.gmra.mrb[0].mxu0 %v297
  %v653 = vpop.f32.mrb[0].mxu0
  %v654 = vadd.f32 %v152, %v653
  %v655 = vpop.f32.mrb[0].mxu0
  %v656 = vpop.f32.mrb[0].mxu0
  %v657 = vadd.f32 %v152, %v656
  %v658 = vpop.f32.mrb[0].mxu0
  %659 = vmatprep.mubr.bf16.mxu0 %v303
  %660 = vmatmul.mubr.bf16.gmra.mrb[0].mxu0 %v302
  %v661 = vpop.f32.mrb[0].mxu0
  %v662 = vadd.f32 %v152, %v661
  %v663 = vpop.f32.mrb[0].mxu0
  %v664 = vpop.f32.mrb[0].mxu0
  %v665 = vadd.f32 %v152, %v664
  %v666 = vpop.f32.mrb[0].mxu0
  %667 = vmatprep.mubr.bf16.mxu0 %v308
  %668 = vmatmul.mubr.bf16.gmra.mrb[0].mxu0 %v307
  %v669 = vpop.f32.mrb[0].mxu0
  %v670 = vadd.f32 %v152, %v669
  %v671 = vpop.f32.mrb[0].mxu0
  %v672 = vpop.f32.mrb[0].mxu0
  %v673 = vadd.f32 %v152, %v672
  %v674 = vpop.f32.mrb[0].mxu0
  %675 = vmatprep.mubr.bf16.mxu0 %v313
  %676 = vmatmul.mubr.bf16.gmra.mrb[0].mxu0 %v312
  %v677 = vpop.f32.mrb[0].mxu0
  %v678 = vadd.f32 %v152, %v677
  %v679 = vpop.f32.mrb[0].mxu0
  %v680 = vpop.f32.mrb[0].mxu0
  %v681 = vadd.f32 %v152, %v680
  %v682 = vpop.f32.mrb[0].mxu0
  %683 = vmatprep.mubr.bf16.mxu0 %v318
  %684 = vmatmul.mubr.bf16.gmra.mrb[0].mxu0 %v317
  %v685 = vpop.f32.mrb[0].mxu0
  %v686 = vadd.f32 %v152, %v685
  %v687 = vpop.f32.mrb[0].mxu0
  %v688 = vpop.f32.mrb[0].mxu0
  %v689 = vadd.f32 %v152, %v688
  %v690 = vpop.f32.mrb[0].mxu0
  %691 = vdwg.mxu0
  %692 = vmatprep.subr.bf16.mxu0 0
  %693 = vmatpush1.bf16.msra.mxu0 %v514
  %694 = vmatprep.subr.bf16.mxu0 0
  %695 = vmatpush1.bf16.msra.mxu0 %v515
  %696 = vmatprep.subr.bf16.mxu0 0
  %697 = vmatpush1.bf16.msra.mxu0 %v516
  %698 = vmatprep.subr.bf16.mxu0 0
  %699 = vmatpush1.bf16.msra.mxu0 %v517
  %700 = vmatprep.subr.bf16.mxu0 0
  %701 = vmatpush1.bf16.msra.mxu0 %v518
  %702 = vmatprep.subr.bf16.mxu0 0
  %703 = vmatpush1.bf16.msra.mxu0 %v519
  %704 = vmatprep.subr.bf16.mxu0 0
  %705 = vmatpush1.bf16.msra.mxu0 %v520
  %706 = vmatprep.subr.bf16.mxu0 0
  %707 = vmatpush1.bf16.msra.mxu0 %v521
  %708 = vmatprep.subr.bf16.mxu0 0
  %709 = vmatpush1.bf16.msra.mxu0 %v522
  %710 = vmatprep.subr.bf16.mxu0 0
  %711 = vmatpush1.bf16.msra.mxu0 %v523
  %712 = vmatprep.subr.bf16.mxu0 0
  %713 = vmatpush1.bf16.msra.mxu0 %v524
  %714 = vmatprep.subr.bf16.mxu0 0
  %715 = vmatpush1.bf16.msra.mxu0 %v525
  %716 = vmatprep.subr.bf16.mxu0 0
  %717 = vmatpush1.bf16.msra.mxu0 %v526
  %718 = vmatprep.subr.bf16.mxu0 0
  %719 = vmatpush1.bf16.msra.mxu0 %v527
  %720 = vmatprep.subr.bf16.mxu0 0
  %721 = vmatpush1.bf16.msra.mxu0 %v528
  %722 = vmatprep.subr.bf16.mxu0 0
  %723 = vmatpush1.bf16.msra.mxu0 %v529
  %724 = vmatprep.mubr.bf16.mxu0 %v285
  %725 = vmatmul.mubr.bf16.gmra.mrb[0].mxu0 %v284
  %v726 = vpop.f32.mrb[0].mxu0
  %v727 = vadd.f32 %v630, %v726
  %v728 = vpop.f32.mrb[0].mxu0
  %v729 = vpop.f32.mrb[0].mxu0
  %v730 = vadd.f32 %v633, %v729
  %v731 = vpop.f32.mrb[0].mxu0
  %732 = vmatprep.mubr.bf16.mxu0 %v290
  %733 = vmatmul.mubr.bf16.gmra.mrb[0].mxu0 %v289
  %v734 = vpop.f32.mrb[0].mxu0
  %v735 = vadd.f32 %v638, %v734
  %v736 = vpop.f32.mrb[0].mxu0
  %v737 = vpop.f32.mrb[0].mxu0
  %v738 = vadd.f32 %v641, %v737
  %v739 = vpop.f32.mrb[0].mxu0
  %740 = vmatprep.mubr.bf16.mxu0 %v295
  %741 = vmatmul.mubr.bf16.gmra.mrb[0].mxu0 %v294
  %v742 = vpop.f32.mrb[0].mxu0
  %v743 = vadd.f32 %v646, %v742
  %v744 = vpop.f32.mrb[0].mxu0
  %v745 = vpop.f32.mrb[0].mxu0
  %v746 = vadd.f32 %v649, %v745
  %v747 = vpop.f32.mrb[0].mxu0
  %748 = vmatprep.mubr.bf16.mxu0 %v300
  %749 = vmatmul.mubr.bf16.gmra.mrb[0].mxu0 %v299
  %v750 = vpop.f32.mrb[0].mxu0
  %v751 = vadd.f32 %v654, %v750
  %v752 = vpop.f32.mrb[0].mxu0
  %v753 = vpop.f32.mrb[0].mxu0
  %v754 = vadd.f32 %v657, %v753
  %v755 = vpop.f32.mrb[0].mxu0
  %756 = vmatprep.mubr.bf16.mxu0 %v305
  %757 = vmatmul.mubr.bf16.gmra.mrb[0].mxu0 %v304
  %v758 = vpop.f32.mrb[0].mxu0
  %v759 = vadd.f32 %v662, %v758
  %v760 = vpop.f32.mrb[0].mxu0
  %v761 = vpop.f32.mrb[0].mxu0
  %v762 = vadd.f32 %v665, %v761
  %v763 = vpop.f32.mrb[0].mxu0
  %764 = vmatprep.mubr.bf16.mxu0 %v310
  %765 = vmatmul.mubr.bf16.gmra.mrb[0].mxu0 %v309
  %v766 = vpop.f32.mrb[0].mxu0
  %v767 = vadd.f32 %v670, %v766
  %v768 = vpop.f32.mrb[0].mxu0
  %v769 = vpop.f32.mrb[0].mxu0
  %v770 = vadd.f32 %v673, %v769
  %v771 = vpop.f32.mrb[0].mxu0
  %772 = vmatprep.mubr.bf16.mxu0 %v315
  %773 = vmatmul.mubr.bf16.gmra.mrb[0].mxu0 %v314
  %v774 = vpop.f32.mrb[0].mxu0
  %v775 = vadd.f32 %v678, %v774
  %v776 = vpop.f32.mrb[0].mxu0
  %v777 = vpop.f32.mrb[0].mxu0
  %v778 = vadd.f32 %v681, %v777
  %v779 = vpop.f32.mrb[0].mxu0
  %780 = vmatprep.mubr.bf16.mxu0 %v320
  %781 = vmatmul.mubr.bf16.gmra.mrb[0].mxu0 %v319
  %v782 = vpop.f32.mrb[0].mxu0
  %v783 = vadd.f32 %v686, %v782
  %v784 = vpop.f32.mrb[0].mxu0
  %v785 = vpop.f32.mrb[0].mxu0
  %v786 = vadd.f32 %v689, %v785
  %v787 = vpop.f32.mrb[0].mxu0
  %788 = vdwg.mxu0
  %789 = vmatprep.subr.bf16.mxu0 0
  %790 = vmatpush1.bf16.msra.mxu0 %v530
  %791 = vmatprep.subr.bf16.mxu0 0
  %792 = vmatpush1.bf16.msra.mxu0 %v531
  %793 = vmatprep.subr.bf16.mxu0 0
  %794 = vmatpush1.bf16.msra.mxu0 %v532
  %795 = vmatprep.subr.bf16.mxu0 0
  %796 = vmatpush1.bf16.msra.mxu0 %v533
  %797 = vmatprep.subr.bf16.mxu0 0
  %798 = vmatpush1.bf16.msra.mxu0 0
  %799 = vmatprep.subr.bf16.mxu0 0
  %800 = vmatpush1.bf16.msra.mxu0 0
  %801 = vmatprep.subr.bf16.mxu0 0
  %802 = vmatpush1.bf16.msra.mxu0 0
  %803 = vmatprep.subr.bf16.mxu0 0
  %804 = vmatpush1.bf16.msra.mxu0 0
  %805 = vmatprep.subr.bf16.mxu0 0
  %806 = vmatpush1.bf16.msra.mxu0 0
  %807 = vmatprep.subr.bf16.mxu0 0
  %808 = vmatpush1.bf16.msra.mxu0 0
  %809 = vmatprep.subr.bf16.mxu0 0
  %810 = vmatpush1.bf16.msra.mxu0 0
  %811 = vmatprep.subr.bf16.mxu0 0
  %812 = vmatpush1.bf16.msra.mxu0 0
  %813 = vmatprep.subr.bf16.mxu0 0
  %814 = vmatpush1.bf16.msra.mxu0 0
  %815 = vmatprep.subr.bf16.mxu0 0
  %816 = vmatpush1.bf16.msra.mxu0 0
  %817 = vmatprep.subr.bf16.mxu0 0
  %818 = vmatpush1.bf16.msra.mxu0 0
  %819 = vmatprep.subr.bf16.mxu0 0
  %820 = vmatpush1.bf16.msra.mxu0 0
  %821 = vmatprep.mubr.bf16.mxu0 0
  %822 = vmatmul.mubr.bf16.gmra.mrb[0].mxu0 %v572
  %v823 = vpop.f32.mrb[0].mxu0
  %v824 = vadd.f32 %v727, %v823
  %v825 = vpop.f32.mrb[0].mxu0
  %v826 = vpop.f32.mrb[0].mxu0
  %v827 = vadd.f32 %v730, %v826
  %v828 = vpop.f32.mrb[0].mxu0
  %829 = vmatprep.mubr.bf16.mxu0 0
  %830 = vmatmul.mubr.bf16.gmra.mrb[0].mxu0 %v575
  %v831 = vpop.f32.mrb[0].mxu0
  %v832 = vadd.f32 %v735, %v831
  %v833 = vpop.f32.mrb[0].mxu0
  %v834 = vpop.f32.mrb[0].mxu0
  %v835 = vadd.f32 %v738, %v834
  %v836 = vpop.f32.mrb[0].mxu0
  %837 = vmatprep.mubr.bf16.mxu0 0
  %838 = vmatmul.mubr.bf16.gmra.mrb[0].mxu0 %v578
  %v839 = vpop.f32.mrb[0].mxu0
  %v840 = vadd.f32 %v743, %v839
  %v841 = vpop.f32.mrb[0].mxu0
  %v842 = vpop.f32.mrb[0].mxu0
  %v843 = vadd.f32 %v746, %v842
  %v844 = vpop.f32.mrb[0].mxu0
  %845 = vmatprep.mubr.bf16.mxu0 0
  %846 = vmatmul.mubr.bf16.gmra.mrb[0].mxu0 %v581
  %v847 = vpop.f32.mrb[0].mxu0
  %v848 = vadd.f32 %v751, %v847
  %v849 = vpop.f32.mrb[0].mxu0
  %v850 = vpop.f32.mrb[0].mxu0
  %v851 = vadd.f32 %v754, %v850
  %v852 = vpop.f32.mrb[0].mxu0
  %853 = vmatprep.mubr.bf16.mxu0 0
  %854 = vmatmul.mubr.bf16.gmra.mrb[0].mxu0 %v584
  %v855 = vpop.f32.mrb[0].mxu0
  %v856 = vadd.f32 %v759, %v855
  %v857 = vpop.f32.mrb[0].mxu0
  %v858 = vpop.f32.mrb[0].mxu0
  %v859 = vadd.f32 %v762, %v858
  %v860 = vpop.f32.mrb[0].mxu0
  %861 = vmatprep.mubr.bf16.mxu0 0
  %862 = vmatmul.mubr.bf16.gmra.mrb[0].mxu0 %v587
  %v863 = vpop.f32.mrb[0].mxu0
  %v864 = vadd.f32 %v767, %v863
  %v865 = vpop.f32.mrb[0].mxu0
  %v866 = vpop.f32.mrb[0].mxu0
  %v867 = vadd.f32 %v770, %v866
  %v868 = vpop.f32.mrb[0].mxu0
  %869 = vmatprep.mubr.bf16.mxu0 0
  %870 = vmatmul.mubr.bf16.gmra.mrb[0].mxu0 %v590
  %v871 = vpop.f32.mrb[0].mxu0
  %v872 = vadd.f32 %v775, %v871
  %v873 = vpop.f32.mrb[0].mxu0
  %v874 = vpop.f32.mrb[0].mxu0
  %v875 = vadd.f32 %v778, %v874
  %v876 = vpop.f32.mrb[0].mxu0
  %877 = vmatprep.mubr.bf16.mxu0 0
  %878 = vmatmul.mubr.bf16.gmra.mrb[0].mxu0 %v593
  %v879 = vpop.f32.mrb[0].mxu0
  %v880 = vadd.f32 %v783, %v879
  %v881 = vpop.f32.mrb[0].mxu0
  %v882 = vpop.f32.mrb[0].mxu0
  %v883 = vadd.f32 %v786, %v882
  %v884 = vpop.f32.mrb[0].mxu0
  %885 = vdwg.mxu0
  %v886 = vld [vmem:[%s3] sm:$0xff]
  %v887 = vld [vmem:[%s3 + $0x8] sm:$0xff]
  %v888 = vld [vmem:[%s3 + $0x10] sm:$0xff]
  %v889 = vld [vmem:[%s3 + $0x18] sm:$0xff]
  %v890 = vld [vmem:[%s3 + $0x20] sm:$0xff]
  %v891 = vld [vmem:[%s3 + $0x28] sm:$0xff]
  %v892 = vld [vmem:[%s3 + $0x30] sm:$0xff]
  %v893 = vld [vmem:[%s3 + $0x38] sm:$0xff]
  %v894 = vld [vmem:[%s3 + $0x40] sm:$0xff]
  %v895 = vld [vmem:[%s3 + $0x48] sm:$0xff]
  %v896 = vld [vmem:[%s3 + $0x50] sm:$0xff]
  %v897 = vld [vmem:[%s3 + $0x58] sm:$0xff]
  %v898 = vld [vmem:[%s3 + $0x60] sm:$0xff]
  %v899 = vld [vmem:[%s3 + $0x68] sm:$0xff]
  %v900 = vld [vmem:[%s3 + $0x70] sm:$0xff]
  %v901 = vld [vmem:[%s3 + $0x78] sm:$0xff]
  %v902 = vld [vmem:[%s4] sm:$0xff]
  %v903 = vld [vmem:[%s4 + $0x8] sm:$0xff]
  %v904 = vld [vmem:[%s4 + $0x10] sm:$0xff]
  %v905 = vld [vmem:[%s4 + $0x18] sm:$0xff]
  %v906 = vld [vmem:[%s4 + $0x20] sm:$0xff]
  %v907 = vld [vmem:[%s4 + $0x28] sm:$0xff]
  %v908 = vld [vmem:[%s4 + $0x30] sm:$0xff]
  %v909 = vld [vmem:[%s4 + $0x38] sm:$0xff]
  %v910 = vld [vmem:[%s4 + $0x40] sm:$0xff]
  %v911 = vld [vmem:[%s4 + $0x48] sm:$0xff]
  %v912 = vld [vmem:[%s4 + $0x50] sm:$0xff]
  %v913 = vld [vmem:[%s4 + $0x58] sm:$0xff]
  %v914 = vld [vmem:[%s4 + $0x60] sm:$0xff]
  %v915 = vld [vmem:[%s4 + $0x68] sm:$0xff]
  %v916 = vld [vmem:[%s4 + $0x70] sm:$0xff]
  %v917 = vld [vmem:[%s4 + $0x78] sm:$0xff]
  %v918 = vmul.f32 %v824, %v886
  %v919 = vmul.f32 %v827, %v887
  %v920 = vmul.f32 %v832, %v888
  %v921 = vmul.f32 %v835, %v889
  %v922 = vmul.f32 %v840, %v890
  %v923 = vmul.f32 %v843, %v891
  %v924 = vmul.f32 %v848, %v892
  %v925 = vmul.f32 %v851, %v893
  %v926 = vmul.f32 %v856, %v894
  %v927 = vmul.f32 %v859, %v895
  %v928 = vmul.f32 %v864, %v896
  %v929 = vmul.f32 %v867, %v897
  %v930 = vmul.f32 %v872, %v898
  %v931 = vmul.f32 %v875, %v899
  %v932 = vmul.f32 %v880, %v900
  %v933 = vmul.f32 %v883, %v901
  %934 = vmatprep.subr.mxu0 0.0
  %935 = vmatpush1.msra.mxu0 %v902
  %936 = vmatprep.subr.mxu0 0.0
  %937 = vmatpush1.msra.mxu0 %v903
  %938 = vmatprep.subr.mxu0 0.0
  %939 = vmatpush1.msra.mxu0 %v904
  %940 = vmatprep.subr.mxu0 0.0
  %941 = vmatpush1.msra.mxu0 %v905
  %942 = vmatprep.subr.mxu0 0.0
  %943 = vmatpush1.msra.mxu0 %v906
  %944 = vmatprep.subr.mxu0 0.0
  %945 = vmatpush1.msra.mxu0 %v907
  %946 = vmatprep.subr.mxu0 0.0
  %947 = vmatpush1.msra.mxu0 %v908
  %948 = vmatprep.subr.mxu0 0.0
  %949 = vmatpush1.msra.mxu0 %v909
  %950 = vmatprep.subr.mxu0 0.0
  %951 = vmatpush1.msra.mxu0 %v910
  %952 = vmatprep.subr.mxu0 0.0
  %953 = vmatpush1.msra.mxu0 %v911
  %954 = vmatprep.subr.mxu0 0.0
  %955 = vmatpush1.msra.mxu0 %v912
  %956 = vmatprep.subr.mxu0 0.0
  %957 = vmatpush1.msra.mxu0 %v913
  %958 = vmatprep.subr.mxu0 0.0
  %959 = vmatpush1.msra.mxu0 %v914
  %960 = vmatprep.subr.mxu0 0.0
  %961 = vmatpush1.msra.mxu0 %v915
  %962 = vmatprep.subr.mxu0 0.0
  %963 = vmatpush1.msra.mxu0 %v916
  %964 = vmatprep.subr.mxu0 0.0
  %965 = vmatpush1.msra.mxu0 %v917
  %966 = vmatprep.subr.mxu0 0.0
  %967 = vmatpush1.msra.mxu0 0.0
  %968 = vmatprep.subr.mxu0 0.0
  %969 = vmatpush1.msra.mxu0 0.0
  %970 = vmatprep.subr.mxu0 0.0
  %971 = vmatpush1.msra.mxu0 0.0
  %972 = vmatprep.subr.mxu0 0.0
  %973 = vmatpush1.msra.mxu0 0.0
  %974 = vmatprep.subr.mxu0 0.0
  %975 = vmatpush1.msra.mxu0 0.0
  %976 = vmatprep.subr.mxu0 0.0
  %977 = vmatpush1.msra.mxu0 0.0
  %978 = vmatprep.subr.mxu0 0.0
  %979 = vmatpush1.msra.mxu0 0.0
  %980 = vmatprep.subr.mxu0 0.0
  %981 = vmatpush1.msra.mxu0 0.0
  %982 = vmatprep.subr.mxu0 0.0
  %983 = vmatpush1.msra.mxu0 0.0
  %984 = vmatprep.subr.mxu0 0.0
  %985 = vmatpush1.msra.mxu0 0.0
  %986 = vmatprep.subr.mxu0 0.0
  %987 = vmatpush1.msra.mxu0 0.0
  %988 = vmatprep.subr.mxu0 0.0
  %989 = vmatpush1.msra.mxu0 0.0
  %990 = vmatprep.subr.mxu0 0.0
  %991 = vmatpush1.msra.mxu0 0.0
  %992 = vmatprep.subr.mxu0 0.0
  %993 = vmatpush1.msra.mxu0 0.0
  %994 = vmatprep.subr.mxu0 0.0
  %995 = vmatpush1.msra.mxu0 0.0
  %996 = vmatprep.subr.mxu0 0.0
  %997 = vmatpush1.msra.mxu0 0.0
  %998 = vmatprep.mubr.f32.mxu0 0.0
  %999 = vmatmul.mubr.f32.gmra.mrb[0].mxu0 %v918
  %v1000 = vpop.f32.mrb[0].mxu0
  %v1001 = vadd.f32 0.0, %v1000
  %v1002 = vpop.f32.mrb[0].mxu0
  %1003 = vmatprep.mubr.f32.mxu0 0.0
  %1004 = vmatmul.mubr.f32.gmra.mrb[0].mxu0 %v919
  %v1005 = vpop.f32.mrb[0].mxu0
  %v1006 = vadd.f32 0.0, %v1005
  %v1007 = vpop.f32.mrb[0].mxu0
  %1008 = vmatprep.mubr.f32.mxu0 0.0
  %1009 = vmatmul.mubr.f32.gmra.mrb[0].mxu0 %v920
  %v1010 = vpop.f32.mrb[0].mxu0
  %v1011 = vadd.f32 0.0, %v1010
  %v1012 = vpop.f32.mrb[0].mxu0
  %1013 = vmatprep.mubr.f32.mxu0 0.0
  %1014 = vmatmul.mubr.f32.gmra.mrb[0].mxu0 %v921
  %v1015 = vpop.f32.mrb[0].mxu0
  %v1016 = vadd.f32 0.0, %v1015
  %v1017 = vpop.f32.mrb[0].mxu0
  %1018 = vmatprep.mubr.f32.mxu0 0.0
  %1019 = vmatmul.mubr.f32.gmra.mrb[0].mxu0 %v922
  %v1020 = vpop.f32.mrb[0].mxu0
  %v1021 = vadd.f32 0.0, %v1020
  %v1022 = vpop.f32.mrb[0].mxu0
  %1023 = vmatprep.mubr.f32.mxu0 0.0
  %1024 = vmatmul.mubr.f32.gmra.mrb[0].mxu0 %v923
  %v1025 = vpop.f32.mrb[0].mxu0
  %v1026 = vadd.f32 0.0, %v1025
  %v1027 = vpop.f32.mrb[0].mxu0
  %1028 = vmatprep.mubr.f32.mxu0 0.0
  %1029 = vmatmul.mubr.f32.gmra.mrb[0].mxu0 %v924
  %v1030 = vpop.f32.mrb[0].mxu0
  %v1031 = vadd.f32 0.0, %v1030
  %v1032 = vpop.f32.mrb[0].mxu0
  %1033 = vmatprep.mubr.f32.mxu0 0.0
  %1034 = vmatmul.mubr.f32.gmra.mrb[0].mxu0 %v925
  %v1035 = vpop.f32.mrb[0].mxu0
  %v1036 = vadd.f32 0.0, %v1035
  %v1037 = vpop.f32.mrb[0].mxu0
  %1038 = vmatprep.mubr.f32.mxu0 0.0
  %1039 = vmatmul.mubr.f32.gmra.mrb[0].mxu0 %v926
  %v1040 = vpop.f32.mrb[0].mxu0
  %v1041 = vadd.f32 0.0, %v1040
  %v1042 = vpop.f32.mrb[0].mxu0
  %1043 = vmatprep.mubr.f32.mxu0 0.0
  %1044 = vmatmul.mubr.f32.gmra.mrb[0].mxu0 %v927
  %v1045 = vpop.f32.mrb[0].mxu0
  %v1046 = vadd.f32 0.0, %v1045
  %v1047 = vpop.f32.mrb[0].mxu0
  %1048 = vmatprep.mubr.f32.mxu0 0.0
  %1049 = vmatmul.mubr.f32.gmra.mrb[0].mxu0 %v928
  %v1050 = vpop.f32.mrb[0].mxu0
  %v1051 = vadd.f32 0.0, %v1050
  %v1052 = vpop.f32.mrb[0].mxu0
  %1053 = vmatprep.mubr.f32.mxu0 0.0
  %1054 = vmatmul.mubr.f32.gmra.mrb[0].mxu0 %v929
  %v1055 = vpop.f32.mrb[0].mxu0
  %v1056 = vadd.f32 0.0, %v1055
  %v1057 = vpop.f32.mrb[0].mxu0
  %1058 = vmatprep.mubr.f32.mxu0 0.0
  %1059 = vmatmul.mubr.f32.gmra.mrb[0].mxu0 %v930
  %v1060 = vpop.f32.mrb[0].mxu0
  %v1061 = vadd.f32 0.0, %v1060
  %v1062 = vpop.f32.mrb[0].mxu0
  %1063 = vmatprep.mubr.f32.mxu0 0.0
  %1064 = vmatmul.mubr.f32.gmra.mrb[0].mxu0 %v931
  %v1065 = vpop.f32.mrb[0].mxu0
  %v1066 = vadd.f32 0.0, %v1065
  %v1067 = vpop.f32.mrb[0].mxu0
  %1068 = vmatprep.mubr.f32.mxu0 0.0
  %1069 = vmatmul.mubr.f32.gmra.mrb[0].mxu0 %v932
  %v1070 = vpop.f32.mrb[0].mxu0
  %v1071 = vadd.f32 0.0, %v1070
  %v1072 = vpop.f32.mrb[0].mxu0
  %1073 = vmatprep.mubr.f32.mxu0 0.0
  %1074 = vmatmul.mubr.f32.gmra.mrb[0].mxu0 %v933
  %v1075 = vpop.f32.mrb[0].mxu0
  %v1076 = vadd.f32 0.0, %v1075
  %v1077 = vpop.f32.mrb[0].mxu0
  %1078 = vdwg.mxu0
  %v1079 = vadd.f32 %v1001, %v1006
  %v1080 = vadd.f32 %v1079, %v1011
  %v1081 = vadd.f32 %v1080, %v1016
  %v1082 = vadd.f32 %v1081, %v1021
  %v1083 = vadd.f32 %v1082, %v1026
  %v1084 = vadd.f32 %v1083, %v1031
  %v1085 = vadd.f32 %v1084, %v1036
  %v1086 = vadd.f32 %v1085, %v1041
  %v1087 = vadd.f32 %v1086, %v1046
  %v1088 = vadd.f32 %v1087, %v1051
  %v1089 = vadd.f32 %v1088, %v1056
  %v1090 = vadd.f32 %v1089, %v1061
  %v1091 = vadd.f32 %v1090, %v1066
  %v1092 = vadd.f32 %v1091, %v1071
  %v1093 = vadd.f32 %v1092, %v1076
  %v1094 = vrot.slane %v1093, 4
  %v1095 = vadd.f32 %v1093, %v1094
  %v1096 = vrot.slane %v1095, 2
  %v1097 = vadd.f32 %v1095, %v1096
  %v1098 = vrot.slane %v1097, 1
  %v1099 = vadd.f32 %v1097, %v1098
  %v1100 = vmul.f32 %v1099, 0.0022222223
  %v1101 = vsub.f32 %v824, %v1100
  %v1102 = vsub.f32 %v827, %v1100
  %v1103 = vsub.f32 %v832, %v1100
  %v1104 = vsub.f32 %v835, %v1100
  %v1105 = vsub.f32 %v840, %v1100
  %v1106 = vsub.f32 %v843, %v1100
  %v1107 = vsub.f32 %v848, %v1100
  %v1108 = vsub.f32 %v851, %v1100
  %v1109 = vsub.f32 %v856, %v1100
  %v1110 = vsub.f32 %v859, %v1100
  %v1111 = vsub.f32 %v864, %v1100
  %v1112 = vsub.f32 %v867, %v1100
  %v1113 = vsub.f32 %v872, %v1100
  %v1114 = vsub.f32 %v875, %v1100
  %v1115 = vsub.f32 %v880, %v1100
  %v1116 = vsub.f32 %v883, %v1100
  %v1117 = vmul.f32 %v1101, %v886
  %v1118 = vmul.f32 %v1102, %v887
  %v1119 = vmul.f32 %v1103, %v888
  %v1120 = vmul.f32 %v1104, %v889
  %v1121 = vmul.f32 %v1105, %v890
  %v1122 = vmul.f32 %v1106, %v891
  %v1123 = vmul.f32 %v1107, %v892
  %v1124 = vmul.f32 %v1108, %v893
  %v1125 = vmul.f32 %v1109, %v894
  %v1126 = vmul.f32 %v1110, %v895
  %v1127 = vmul.f32 %v1111, %v896
  %v1128 = vmul.f32 %v1112, %v897
  %v1129 = vmul.f32 %v1113, %v898
  %v1130 = vmul.f32 %v1114, %v899
  %v1131 = vmul.f32 %v1115, %v900
  %v1132 = vmul.f32 %v1116, %v901
  %v1133 = vmul.f32 %v1117, %v1117
  %v1134 = vmul.f32 %v1118, %v1118
  %v1135 = vmul.f32 %v1119, %v1119
  %v1136 = vmul.f32 %v1120, %v1120
  %v1137 = vmul.f32 %v1121, %v1121
  %v1138 = vmul.f32 %v1122, %v1122
  %v1139 = vmul.f32 %v1123, %v1123
  %v1140 = vmul.f32 %v1124, %v1124
  %v1141 = vmul.f32 %v1125, %v1125
  %v1142 = vmul.f32 %v1126, %v1126
  %v1143 = vmul.f32 %v1127, %v1127
  %v1144 = vmul.f32 %v1128, %v1128
  %v1145 = vmul.f32 %v1129, %v1129
  %v1146 = vmul.f32 %v1130, %v1130
  %v1147 = vmul.f32 %v1131, %v1131
  %v1148 = vmul.f32 %v1132, %v1132
  %1149 = vmatprep.subr.mxu0 0.0
  %1150 = vmatpush1.msra.mxu0 %v902
  %1151 = vmatprep.subr.mxu0 0.0
  %1152 = vmatpush1.msra.mxu0 %v903
  %1153 = vmatprep.subr.mxu0 0.0
  %1154 = vmatpush1.msra.mxu0 %v904
  %1155 = vmatprep.subr.mxu0 0.0
  %1156 = vmatpush1.msra.mxu0 %v905
  %1157 = vmatprep.subr.mxu0 0.0
  %1158 = vmatpush1.msra.mxu0 %v906
  %1159 = vmatprep.subr.mxu0 0.0
  %1160 = vmatpush1.msra.mxu0 %v907
  %1161 = vmatprep.subr.mxu0 0.0
  %1162 = vmatpush1.msra.mxu0 %v908
  %1163 = vmatprep.subr.mxu0 0.0
  %1164 = vmatpush1.msra.mxu0 %v909
  %1165 = vmatprep.subr.mxu0 0.0
  %1166 = vmatpush1.msra.mxu0 %v910
  %1167 = vmatprep.subr.mxu0 0.0
  %1168 = vmatpush1.msra.mxu0 %v911
  %1169 = vmatprep.subr.mxu0 0.0
  %1170 = vmatpush1.msra.mxu0 %v912
  %1171 = vmatprep.subr.mxu0 0.0
  %1172 = vmatpush1.msra.mxu0 %v913
  %1173 = vmatprep.subr.mxu0 0.0
  %1174 = vmatpush1.msra.mxu0 %v914
  %1175 = vmatprep.subr.mxu0 0.0
  %1176 = vmatpush1.msra.mxu0 %v915
  %1177 = vmatprep.subr.mxu0 0.0
  %1178 = vmatpush1.msra.mxu0 %v916
  %1179 = vmatprep.subr.mxu0 0.0
  %1180 = vmatpush1.msra.mxu0 %v917
  %1181 = vmatprep.subr.mxu0 0.0
  %1182 = vmatpush1.msra.mxu0 0.0
  %1183 = vmatprep.subr.mxu0 0.0
  %1184 = vmatpush1.msra.mxu0 0.0
  %1185 = vmatprep.subr.mxu0 0.0
  %1186 = vmatpush1.msra.mxu0 0.0
  %1187 = vmatprep.subr.mxu0 0.0
  %1188 = vmatpush1.msra.mxu0 0.0
  %1189 = vmatprep.subr.mxu0 0.0
  %1190 = vmatpush1.msra.mxu0 0.0
  %1191 = vmatprep.subr.mxu0 0.0
  %1192 = vmatpush1.msra.mxu0 0.0
  %1193 = vmatprep.subr.mxu0 0.0
  %1194 = vmatpush1.msra.mxu0 0.0
  %1195 = vmatprep.subr.mxu0 0.0
  %1196 = vmatpush1.msra.mxu0 0.0
  %1197 = vmatprep.subr.mxu0 0.0
  %1198 = vmatpush1.msra.mxu0 0.0
  %1199 = vmatprep.subr.mxu0 0.0
  %1200 = vmatpush1.msra.mxu0 0.0
  %1201 = vmatprep.subr.mxu0 0.0
  %1202 = vmatpush1.msra.mxu0 0.0
  %1203 = vmatprep.subr.mxu0 0.0
  %1204 = vmatpush1.msra.mxu0 0.0
  %1205 = vmatprep.subr.mxu0 0.0
  %1206 = vmatpush1.msra.mxu0 0.0
  %1207 = vmatprep.subr.mxu0 0.0
  %1208 = vmatpush1.msra.mxu0 0.0
  %1209 = vmatprep.subr.mxu0 0.0
  %1210 = vmatpush1.msra.mxu0 0.0
  %1211 = vmatprep.subr.mxu0 0.0
  %1212 = vmatpush1.msra.mxu0 0.0
  %1213 = vmatprep.mubr.f32.mxu0 0.0
  %1214 = vmatmul.mubr.f32.gmra.mrb[0].mxu0 %v1133
  %v1215 = vpop.f32.mrb[0].mxu0
  %v1216 = vadd.f32 0.0, %v1215
  %v1217 = vpop.f32.mrb[0].mxu0
  %1218 = vmatprep.mubr.f32.mxu0 0.0
  %1219 = vmatmul.mubr.f32.gmra.mrb[0].mxu0 %v1134
  %v1220 = vpop.f32.mrb[0].mxu0
  %v1221 = vadd.f32 0.0, %v1220
  %v1222 = vpop.f32.mrb[0].mxu0
  %1223 = vmatprep.mubr.f32.mxu0 0.0
  %1224 = vmatmul.mubr.f32.gmra.mrb[0].mxu0 %v1135
  %v1225 = vpop.f32.mrb[0].mxu0
  %v1226 = vadd.f32 0.0, %v1225
  %v1227 = vpop.f32.mrb[0].mxu0
  %1228 = vmatprep.mubr.f32.mxu0 0.0
  %1229 = vmatmul.mubr.f32.gmra.mrb[0].mxu0 %v1136
  %v1230 = vpop.f32.mrb[0].mxu0
  %v1231 = vadd.f32 0.0, %v1230
  %v1232 = vpop.f32.mrb[0].mxu0
  %1233 = vmatprep.mubr.f32.mxu0 0.0
  %1234 = vmatmul.mubr.f32.gmra.mrb[0].mxu0 %v1137
  %v1235 = vpop.f32.mrb[0].mxu0
  %v1236 = vadd.f32 0.0, %v1235
  %v1237 = vpop.f32.mrb[0].mxu0
  %1238 = vmatprep.mubr.f32.mxu0 0.0
  %1239 = vmatmul.mubr.f32.gmra.mrb[0].mxu0 %v1138
  %v1240 = vpop.f32.mrb[0].mxu0
  %v1241 = vadd.f32 0.0, %v1240
  %v1242 = vpop.f32.mrb[0].mxu0
  %1243 = vmatprep.mubr.f32.mxu0 0.0
  %1244 = vmatmul.mubr.f32.gmra.mrb[0].mxu0 %v1139
  %v1245 = vpop.f32.mrb[0].mxu0
  %v1246 = vadd.f32 0.0, %v1245
  %v1247 = vpop.f32.mrb[0].mxu0
  %1248 = vmatprep.mubr.f32.mxu0 0.0
  %1249 = vmatmul.mubr.f32.gmra.mrb[0].mxu0 %v1140
  %v1250 = vpop.f32.mrb[0].mxu0
  %v1251 = vadd.f32 0.0, %v1250
  %v1252 = vpop.f32.mrb[0].mxu0
  %1253 = vmatprep.mubr.f32.mxu0 0.0
  %1254 = vmatmul.mubr.f32.gmra.mrb[0].mxu0 %v1141
  %v1255 = vpop.f32.mrb[0].mxu0
  %v1256 = vadd.f32 0.0, %v1255
  %v1257 = vpop.f32.mrb[0].mxu0
  %1258 = vmatprep.mubr.f32.mxu0 0.0
  %1259 = vmatmul.mubr.f32.gmra.mrb[0].mxu0 %v1142
  %v1260 = vpop.f32.mrb[0].mxu0
  %v1261 = vadd.f32 0.0, %v1260
  %v1262 = vpop.f32.mrb[0].mxu0
  %1263 = vmatprep.mubr.f32.mxu0 0.0
  %1264 = vmatmul.mubr.f32.gmra.mrb[0].mxu0 %v1143
  %v1265 = vpop.f32.mrb[0].mxu0
  %v1266 = vadd.f32 0.0, %v1265
  %v1267 = vpop.f32.mrb[0].mxu0
  %1268 = vmatprep.mubr.f32.mxu0 0.0
  %1269 = vmatmul.mubr.f32.gmra.mrb[0].mxu0 %v1144
  %v1270 = vpop.f32.mrb[0].mxu0
  %v1271 = vadd.f32 0.0, %v1270
  %v1272 = vpop.f32.mrb[0].mxu0
  %1273 = vmatprep.mubr.f32.mxu0 0.0
  %1274 = vmatmul.mubr.f32.gmra.mrb[0].mxu0 %v1145
  %v1275 = vpop.f32.mrb[0].mxu0
  %v1276 = vadd.f32 0.0, %v1275
  %v1277 = vpop.f32.mrb[0].mxu0
  %1278 = vmatprep.mubr.f32.mxu0 0.0
  %1279 = vmatmul.mubr.f32.gmra.mrb[0].mxu0 %v1146
  %v1280 = vpop.f32.mrb[0].mxu0
  %v1281 = vadd.f32 0.0, %v1280
  %v1282 = vpop.f32.mrb[0].mxu0
  %1283 = vmatprep.mubr.f32.mxu0 0.0
  %1284 = vmatmul.mubr.f32.gmra.mrb[0].mxu0 %v1147
  %v1285 = vpop.f32.mrb[0].mxu0
  %v1286 = vadd.f32 0.0, %v1285
  %v1287 = vpop.f32.mrb[0].mxu0
  %1288 = vmatprep.mubr.f32.mxu0 0.0
  %1289 = vmatmul.mubr.f32.gmra.mrb[0].mxu0 %v1148
  %v1290 = vpop.f32.mrb[0].mxu0
  %v1291 = vadd.f32 0.0, %v1290
  %v1292 = vpop.f32.mrb[0].mxu0
  %1293 = vdwg.mxu0
  %v1294 = vadd.f32 %v1216, %v1221
  %v1295 = vadd.f32 %v1294, %v1226
  %v1296 = vadd.f32 %v1295, %v1231
  %v1297 = vadd.f32 %v1296, %v1236
  %v1298 = vadd.f32 %v1297, %v1241
  %v1299 = vadd.f32 %v1298, %v1246
  %v1300 = vadd.f32 %v1299, %v1251
  %v1301 = vadd.f32 %v1300, %v1256
  %v1302 = vadd.f32 %v1301, %v1261
  %v1303 = vadd.f32 %v1302, %v1266
  %v1304 = vadd.f32 %v1303, %v1271
  %v1305 = vadd.f32 %v1304, %v1276
  %v1306 = vadd.f32 %v1305, %v1281
  %v1307 = vadd.f32 %v1306, %v1286
  %v1308 = vadd.f32 %v1307, %v1291
  %v1309 = vrot.slane %v1308, 4
  %v1310 = vadd.f32 %v1308, %v1309
  %v1311 = vrot.slane %v1310, 2
  %v1312 = vadd.f32 %v1310, %v1311
  %v1313 = vrot.slane %v1312, 1
  %v1314 = vadd.f32 %v1312, %v1313
  %v1315 = vmul.f32 %v1314, 0.0022222223
  %v1316 = vld [vmem:[%s5] sm:$0x1]
  %v1317 = vadd.f32 %v1315, 1e-05
  %v1318 = vrsqrt.pop %v1317
  %v1319 = vmul.f32 %v1316, %v1318
  %v1321 = vlaneseq
  %v1322 = vshrl.u32 %v1321, 7
  %v1323 = vsub.s32 0, %v1322
  %v1324 = vrot.slane %v1319, %v1323
  %v1326 = vmul.f32 %v1101, %v1324
  %v1327 = vmul.f32 %v1102, %v1324
  %v1328 = vmul.f32 %v1103, %v1324
  %v1329 = vmul.f32 %v1104, %v1324
  %v1330 = vmul.f32 %v1105, %v1324
  %v1331 = vmul.f32 %v1106, %v1324
  %v1332 = vmul.f32 %v1107, %v1324
  %v1333 = vmul.f32 %v1108, %v1324
  %v1334 = vmul.f32 %v1109, %v1324
  %v1335 = vmul.f32 %v1110, %v1324
  %v1336 = vmul.f32 %v1111, %v1324
  %v1337 = vmul.f32 %v1112, %v1324
  %v1338 = vmul.f32 %v1113, %v1324
  %v1339 = vmul.f32 %v1114, %v1324
  %v1340 = vmul.f32 %v1115, %v1324
  %v1341 = vmul.f32 %v1116, %v1324
  %v1342 = vld [vmem:[%s6] sm:$0x1]
  %v1344 = vlaneseq
  %v1345 = vshrl.u32 %v1344, 7
  %v1346 = vsub.s32 0, %v1345
  %v1347 = vrot.slane %v1342, %v1346
  %v1349 = vadd.f32 %v1326, %v1347
  %v1350 = vadd.f32 %v1327, %v1347
  %v1351 = vadd.f32 %v1328, %v1347
  %v1352 = vadd.f32 %v1329, %v1347
  %v1353 = vadd.f32 %v1330, %v1347
  %v1354 = vadd.f32 %v1331, %v1347
  %v1355 = vadd.f32 %v1332, %v1347
  %v1356 = vadd.f32 %v1333, %v1347
  %v1357 = vadd.f32 %v1334, %v1347
  %v1358 = vadd.f32 %v1335, %v1347
  %v1359 = vadd.f32 %v1336, %v1347
  %v1360 = vadd.f32 %v1337, %v1347
  %v1361 = vadd.f32 %v1338, %v1347
  %v1362 = vadd.f32 %v1339, %v1347
  %v1363 = vadd.f32 %v1340, %v1347
  %v1364 = vadd.f32 %v1341, %v1347
  %v1365 = vmax.f32 %v1349, 0.0
  %v1366 = vmax.f32 %v1350, 0.0
  %v1367 = vmax.f32 %v1351, 0.0
  %v1368 = vmax.f32 %v1352, 0.0
  %v1369 = vmax.f32 %v1353, 0.0
  %v1370 = vmax.f32 %v1354, 0.0
  %v1371 = vmax.f32 %v1355, 0.0
  %v1372 = vmax.f32 %v1356, 0.0
  %v1373 = vmax.f32 %v1357, 0.0
  %v1374 = vmax.f32 %v1358, 0.0
  %v1375 = vmax.f32 %v1359, 0.0
  %v1376 = vmax.f32 %v1360, 0.0
  %v1377 = vmax.f32 %v1361, 0.0
  %v1378 = vmax.f32 %v1362, 0.0
  %v1379 = vmax.f32 %v1363, 0.0
  %v1380 = vmax.f32 %v1364, 0.0
  %v1381 = vpack.c.bf16 %v1366, %v1365
  %v1382 = vpack.c.bf16 %v1368, %v1367
  %v1383 = vpack.c.bf16 %v1370, %v1369
  %v1384 = vpack.c.bf16 %v1372, %v1371
  %v1385 = vpack.c.bf16 %v1374, %v1373
  %v1386 = vpack.c.bf16 %v1376, %v1375
  %v1387 = vpack.c.bf16 %v1378, %v1377
  %v1388 = vpack.c.bf16 %v1380, %v1379
  %v1397 = vunpack.c.l.b16 %v1381
  %v1398 = vunpack.c.h.b16 %v1381
  %v1399 = vunpack.c.l.b16 %v1382
  %v1400 = vunpack.c.h.b16 %v1382
  %v1401 = vunpack.c.l.b16 %v1383
  %v1402 = vunpack.c.h.b16 %v1383
  %v1403 = vunpack.c.l.b16 %v1384
  %v1404 = vunpack.c.h.b16 %v1384
  %v1405 = vunpack.c.l.b16 %v1385
  %v1406 = vunpack.c.h.b16 %v1385
  %v1407 = vunpack.c.l.b16 %v1386
  %v1408 = vunpack.c.h.b16 %v1386
  %v1409 = vunpack.c.l.b16 %v1387
  %v1410 = vunpack.c.h.b16 %v1387
  %v1411 = vunpack.c.l.b16 %v1388
  %v1412 = vunpack.c.h.b16 %v1388
  %v1413 = vpack.c.b16 %v1397, %v1397
  %v1414 = vpack.c.b16 %v1398, %v1398
  %v1415 = vpack.c.b16 %v1399, %v1399
  %v1416 = vpack.c.b16 %v1400, %v1400
  %v1417 = vpack.c.b16 %v1401, %v1401
  %v1418 = vpack.c.b16 %v1402, %v1402
  %v1419 = vpack.c.b16 %v1403, %v1403
  %v1420 = vpack.c.b16 %v1404, %v1404
  %v1421 = vpack.c.b16 %v1405, %v1405
  %v1422 = vpack.c.b16 %v1406, %v1406
  %v1423 = vpack.c.b16 %v1407, %v1407
  %v1424 = vpack.c.b16 %v1408, %v1408
  %v1425 = vpack.c.b16 %v1409, %v1409
  %v1426 = vpack.c.b16 %v1410, %v1410
  %v1427 = vpack.c.b16 %v1411, %v1411
  %v1428 = vpack.c.b16 %v1412, %v1412
  %1445 = vst [vmem:[%s7] sm:$0xf] %v1413
  %1446 = vst [vmem:[%s7 + $0x4] sm:$0xf] %v1414
  %1447 = vst [vmem:[%s7 + $0x8] sm:$0xf] %v1415
  %1448 = vst [vmem:[%s7 + $0xc] sm:$0xf] %v1416
  %1449 = vst [vmem:[%s7 + $0x10] sm:$0xf] %v1417
  %1450 = vst [vmem:[%s7 + $0x14] sm:$0xf] %v1418
  %1451 = vst [vmem:[%s7 + $0x18] sm:$0xf] %v1419
  %1452 = vst [vmem:[%s7 + $0x1c] sm:$0xf] %v1420
  %1453 = vst [vmem:[%s7 + $0x20] sm:$0xf] %v1421
  %1454 = vst [vmem:[%s7 + $0x24] sm:$0xf] %v1422
  %1455 = vst [vmem:[%s7 + $0x28] sm:$0xf] %v1423
  %1456 = vst [vmem:[%s7 + $0x2c] sm:$0xf] %v1424
  %1457 = vst [vmem:[%s7 + $0x30] sm:$0xf] %v1425
  %1458 = vst [vmem:[%s7 + $0x34] sm:$0xf] %v1426
  %1459 = vst [vmem:[%s7 + $0x38] sm:$0xf] %v1427
  %1460 = vst [vmem:[%s7 + $0x3c] sm:$0xf] %v1428
  // Predicated region
  $region30: #{generator_forward.7} parent=0 // pred_check
    _
  $region31: #{generator_forward.7} parent=0 // pred_check_branch
    %1462 = sbr.rel (0) target = $region33
  $region32: #{generator_forward.7} parent=0 // pred_region
    _
  $region33: #{generator_forward.7} parent=0 // pred_fallthru
    _
  // Predicated region
  $region34: #{generator_forward.7} parent=0 // pred_check
    _
  $region35: #{generator_forward.7} parent=0 // pred_check_branch
    %1464 = sbr.rel (0) target = $region37
  $region36: #{generator_forward.7} parent=0 // pred_region
    _
  $region37: #{generator_forward.7} parent=0 // pred_fallthru
    _

// kernel: generator_forward.8
$region0: #{generator_forward.8}
  #allocation0 [shape = 'u32[]', space=smem, size = 0x4, offset = 0x4, fixed_abs, tag = 'smem constant byte address 0x4 - core index']
  #allocation1 [shape = 'u32[144,128]{1,0:T(1,128)}', space=vmem, size = 0x12000, scoped, tag = 'internal scratch']
  %s0 = inlined_call_operand.vmem [shape: bf16[512,288], index: 0, kind: input, shape index: {}]
  %s1 = inlined_call_operand.vmem [shape: bf16[288,128], index: 1, kind: input, shape index: {}]
  %s2 = inlined_call_operand.vmem [shape: f32[1,128], index: 2, kind: input, shape index: {}]
  %s3 = inlined_call_operand.vmem [shape: f32[512,128], index: 3, kind: input, shape index: {}]
  %s4 = inlined_call_operand.vmem [shape: f32[128,128], index: 4, kind: input, shape index: {}]
  %s5 = inlined_call_operand.vmem [shape: f32[1,128], index: 5, kind: input, shape index: {}]
  %s6 = inlined_call_operand.vmem [shape: f32[1,128], index: 6, kind: input, shape index: {}]
  %s7 = inlined_call_operand.vmem [shape: bf16[512,128], index: 7, kind: output, shape index: {}]
  %s8 = sld [smem:[#allocation0]]
  $region38: #{generator_forward.8} parent=0
    _
  %s10 = ssub.s32 1, %s8
  %s11 = scalar_select 0, %s10, %s8
  // Predicated region
  $region2: #{generator_forward.8} parent=0 // pred_check
    _
  $region3: #{generator_forward.8} parent=0 // pred_check_branch
    %13 = sbr.rel (0) target = $region5
  $region4: #{generator_forward.8} parent=0 // pred_region
    _
  $region5: #{generator_forward.8} parent=0 // pred_fallthru
    _
  // Predicated region
  $region6: #{generator_forward.8} parent=0 // pred_check
    _
  $region7: #{generator_forward.8} parent=0 // pred_check_branch
    %15 = sbr.rel (0) target = $region9
  $region8: #{generator_forward.8} parent=0 // pred_region
    _
  $region9: #{generator_forward.8} parent=0 // pred_fallthru
    _
  // Predicated region
  $region10: #{generator_forward.8} parent=0 // pred_check
    _
  $region11: #{generator_forward.8} parent=0 // pred_check_branch
    %17 = sbr.rel (0) target = $region13
  $region12: #{generator_forward.8} parent=0 // pred_region
    _
  $region13: #{generator_forward.8} parent=0 // pred_fallthru
    _
  // Predicated region
  $region14: #{generator_forward.8} parent=0 // pred_check
    _
  $region15: #{generator_forward.8} parent=0 // pred_check_branch
    %19 = sbr.rel (0) target = $region17
  $region16: #{generator_forward.8} parent=0 // pred_region
    _
  $region17: #{generator_forward.8} parent=0 // pred_fallthru
    _
  // Predicated region
  $region18: #{generator_forward.8} parent=0 // pred_check
    _
  $region19: #{generator_forward.8} parent=0 // pred_check_branch
    %21 = sbr.rel (0) target = $region21
  $region20: #{generator_forward.8} parent=0 // pred_region
    _
  $region21: #{generator_forward.8} parent=0 // pred_fallthru
    _
  // Predicated region
  $region22: #{generator_forward.8} parent=0 // pred_check
    _
  $region23: #{generator_forward.8} parent=0 // pred_check_branch
    %23 = sbr.rel (0) target = $region25
  $region24: #{generator_forward.8} parent=0 // pred_region
    _
  $region25: #{generator_forward.8} parent=0 // pred_fallthru
    _
  // Predicated region
  $region26: #{generator_forward.8} parent=0 // pred_check
    _
  $region27: #{generator_forward.8} parent=0 // pred_check_branch
    %25 = sbr.rel (0) target = $region29
  $region28: #{generator_forward.8} parent=0 // pred_region
    _
  $region29: #{generator_forward.8} parent=0 // pred_fallthru
    _
  %v27 = vld [vmem:[%s0] sm:$0xff]
  %v28 = vld [vmem:[%s0 + $0x8] sm:$0xf]
  %v29 = vld [vmem:[%s0 + $0xc] sm:$0xff]
  %v30 = vld [vmem:[%s0 + $0x14] sm:$0xf]
  %v31 = vld [vmem:[%s0 + $0x18] sm:$0xff]
  %v32 = vld [vmem:[%s0 + $0x20] sm:$0xf]
  %v33 = vld [vmem:[%s0 + $0x24] sm:$0xff]
  %v34 = vld [vmem:[%s0 + $0x2c] sm:$0xf]
  %v35 = vld [vmem:[%s0 + $0x30] sm:$0xff]
  %v36 = vld [vmem:[%s0 + $0x38] sm:$0xf]
  %v37 = vld [vmem:[%s0 + $0x3c] sm:$0xff]
  %v38 = vld [vmem:[%s0 + $0x44] sm:$0xf]
  %v39 = vld [vmem:[%s0 + $0x48] sm:$0xff]
  %v40 = vld [vmem:[%s0 + $0x50] sm:$0xf]
  %v41 = vld [vmem:[%s0 + $0x54] sm:$0xff]
  %v42 = vld [vmem:[%s0 + $0x5c] sm:$0xf]
  %v43 = vld [vmem:[%s0 + $0x60] sm:$0xff]
  %v44 = vld [vmem:[%s0 + $0x68] sm:$0xf]
  %v45 = vld [vmem:[%s0 + $0x6c] sm:$0xff]
  %v46 = vld [vmem:[%s0 + $0x74] sm:$0xf]
  %v47 = vld [vmem:[%s0 + $0x78] sm:$0xff]
  %v48 = vld [vmem:[%s0 + $0x80] sm:$0xf]
  %v49 = vld [vmem:[%s0 + $0x84] sm:$0xff]
  %v50 = vld [vmem:[%s0 + $0x8c] sm:$0xf]
  %v51 = vld [vmem:[%s0 + $0x90] sm:$0xff]
  %v52 = vld [vmem:[%s0 + $0x98] sm:$0xf]
  %v53 = vld [vmem:[%s0 + $0x9c] sm:$0xff]
  %v54 = vld [vmem:[%s0 + $0xa4] sm:$0xf]
  %v55 = vld [vmem:[%s0 + $0xa8] sm:$0xff]
  %v56 = vld [vmem:[%s0 + $0xb0] sm:$0xf]
  %v57 = vld [vmem:[%s0 + $0xb4] sm:$0xff]
  %v58 = vld [vmem:[%s0 + $0xbc] sm:$0xf]
  %v59 = vld [vmem:[%s0 + $0xc0] sm:$0xff]
  %v60 = vld [vmem:[%s0 + $0xc8] sm:$0xf]
  %v61 = vld [vmem:[%s0 + $0xcc] sm:$0xff]
  %v62 = vld [vmem:[%s0 + $0xd4] sm:$0xf]
  %v63 = vld [vmem:[%s0 + $0xd8] sm:$0xff]
  %v64 = vld [vmem:[%s0 + $0xe0] sm:$0xf]
  %v65 = vld [vmem:[%s0 + $0xe4] sm:$0xff]
  %v66 = vld [vmem:[%s0 + $0xec] sm:$0xf]
  %v67 = vld [vmem:[%s0 + $0xf0] sm:$0xff]
  %v68 = vld [vmem:[%s0 + $0xf8] sm:$0xf]
  %v69 = vld [vmem:[%s0 + $0xfc] sm:$0xff]
  %v70 = vld [vmem:[%s0 + $0x104] sm:$0xf]
  %v71 = vld [vmem:[%s0 + $0x108] sm:$0xff]
  %v72 = vld [vmem:[%s0 + $0x110] sm:$0xf]
  %v73 = vld [vmem:[%s0 + $0x114] sm:$0xff]
  %v74 = vld [vmem:[%s0 + $0x11c] sm:$0xf]
  %v75 = vld [vmem:[%s0 + $0x120] sm:$0xff]
  %v76 = vld [vmem:[%s0 + $0x128] sm:$0xf]
  %v77 = vld [vmem:[%s0 + $0x12c] sm:$0xff]
  %v78 = vld [vmem:[%s0 + $0x134] sm:$0xf]
  %v79 = vld [vmem:[%s0 + $0x138] sm:$0xff]
  %v80 = vld [vmem:[%s0 + $0x140] sm:$0xf]
  %v81 = vld [vmem:[%s0 + $0x144] sm:$0xff]
  %v82 = vld [vmem:[%s0 + $0x14c] sm:$0xf]
  %v83 = vld [vmem:[%s0 + $0x150] sm:$0xff]
  %v84 = vld [vmem:[%s0 + $0x158] sm:$0xf]
  %v85 = vld [vmem:[%s0 + $0x15c] sm:$0xff]
  %v86 = vld [vmem:[%s0 + $0x164] sm:$0xf]
  %v87 = vld [vmem:[%s0 + $0x168] sm:$0xff]
  %v88 = vld [vmem:[%s0 + $0x170] sm:$0xf]
  %v89 = vld [vmem:[%s0 + $0x174] sm:$0xff]
  %v90 = vld [vmem:[%s0 + $0x17c] sm:$0xf]
  %v91 = vld [vmem:[%s0 + $0x180] sm:$0xff]
  %v92 = vld [vmem:[%s0 + $0x188] sm:$0xf]
  %v93 = vld [vmem:[%s0 + $0x18c] sm:$0xff]
  %v94 = vld [vmem:[%s0 + $0x194] sm:$0xf]
  %v95 = vld [vmem:[%s0 + $0x198] sm:$0xff]
  %v96 = vld [vmem:[%s0 + $0x1a0] sm:$0xf]
  %v97 = vld [vmem:[%s0 + $0x1a4] sm:$0xff]
  %v98 = vld [vmem:[%s0 + $0x1ac] sm:$0xf]
  %v99 = vld [vmem:[%s0 + $0x1b0] sm:$0xff]
  %v100 = vld [vmem:[%s0 + $0x1b8] sm:$0xf]
  %v101 = vld [vmem:[%s0 + $0x1bc] sm:$0xff]
  %v102 = vld [vmem:[%s0 + $0x1c4] sm:$0xf]
  %v103 = vld [vmem:[%s0 + $0x1c8] sm:$0xff]
  %v104 = vld [vmem:[%s0 + $0x1d0] sm:$0xf]
  %v105 = vld [vmem:[%s0 + $0x1d4] sm:$0xff]
  %v106 = vld [vmem:[%s0 + $0x1dc] sm:$0xf]
  %v107 = vld [vmem:[%s0 + $0x1e0] sm:$0xff]
  %v108 = vld [vmem:[%s0 + $0x1e8] sm:$0xf]
  %v109 = vld [vmem:[%s0 + $0x1ec] sm:$0xff]
  %v110 = vld [vmem:[%s0 + $0x1f4] sm:$0xf]
  %v111 = vld [vmem:[%s0 + $0x1f8] sm:$0xff]
  %v112 = vld [vmem:[%s0 + $0x200] sm:$0xf]
  %v113 = vld [vmem:[%s0 + $0x204] sm:$0xff]
  %v114 = vld [vmem:[%s0 + $0x20c] sm:$0xf]
  %v115 = vld [vmem:[%s0 + $0x210] sm:$0xff]
  %v116 = vld [vmem:[%s0 + $0x218] sm:$0xf]
  %v117 = vld [vmem:[%s0 + $0x21c] sm:$0xff]
  %v118 = vld [vmem:[%s0 + $0x224] sm:$0xf]
  %v119 = vld [vmem:[%s0 + $0x228] sm:$0xff]
  %v120 = vld [vmem:[%s0 + $0x230] sm:$0xf]
  %v121 = vld [vmem:[%s0 + $0x234] sm:$0xff]
  %v122 = vld [vmem:[%s0 + $0x23c] sm:$0xf]
  %v123 = vld [vmem:[%s0 + $0x240] sm:$0xff]
  %v124 = vld [vmem:[%s0 + $0x248] sm:$0xf]
  %v125 = vld [vmem:[%s0 + $0x24c] sm:$0xff]
  %v126 = vld [vmem:[%s0 + $0x254] sm:$0xf]
  %v127 = vld [vmem:[%s0 + $0x258] sm:$0xff]
  %v128 = vld [vmem:[%s0 + $0x260] sm:$0xf]
  %v129 = vld [vmem:[%s0 + $0x264] sm:$0xff]
  %v130 = vld [vmem:[%s0 + $0x26c] sm:$0xf]
  %v131 = vld [vmem:[%s0 + $0x270] sm:$0xff]
  %v132 = vld [vmem:[%s0 + $0x278] sm:$0xf]
  %v133 = vld [vmem:[%s0 + $0x27c] sm:$0xff]
  %v134 = vld [vmem:[%s0 + $0x284] sm:$0xf]
  %v135 = vld [vmem:[%s0 + $0x288] sm:$0xff]
  %v136 = vld [vmem:[%s0 + $0x290] sm:$0xf]
  %v137 = vld [vmem:[%s0 + $0x294] sm:$0xff]
  %v138 = vld [vmem:[%s0 + $0x29c] sm:$0xf]
  %v139 = vld [vmem:[%s0 + $0x2a0] sm:$0xff]
  %v140 = vld [vmem:[%s0 + $0x2a8] sm:$0xf]
  %v141 = vld [vmem:[%s0 + $0x2ac] sm:$0xff]
  %v142 = vld [vmem:[%s0 + $0x2b4] sm:$0xf]
  %v143 = vld [vmem:[%s0 + $0x2b8] sm:$0xff]
  %v144 = vld [vmem:[%s0 + $0x2c0] sm:$0xf]
  %v145 = vld [vmem:[%s0 + $0x2c4] sm:$0xff]
  %v146 = vld [vmem:[%s0 + $0x2cc] sm:$0xf]
  %v147 = vld [vmem:[%s0 + $0x2d0] sm:$0xff]
  %v148 = vld [vmem:[%s0 + $0x2d8] sm:$0xf]
  %v149 = vld [vmem:[%s0 + $0x2dc] sm:$0xff]
  %v150 = vld [vmem:[%s0 + $0x2e4] sm:$0xf]
  %v151 = vld [vmem:[%s0 + $0x2e8] sm:$0xff]
  %v152 = vld [vmem:[%s0 + $0x2f0] sm:$0xf]
  %v153 = vld [vmem:[%s0 + $0x2f4] sm:$0xff]
  %v154 = vld [vmem:[%s0 + $0x2fc] sm:$0xf]
  %v155 = vld [vmem:[%s1] sm:$0xf]
  %v156 = vld [vmem:[%s1 + $0x4] sm:$0xf]
  %v157 = vld [vmem:[%s1 + $0x8] sm:$0xf]
  %v158 = vld [vmem:[%s1 + $0xc] sm:$0xf]
  %v159 = vld [vmem:[%s1 + $0x10] sm:$0xf]
  %v160 = vld [vmem:[%s1 + $0x14] sm:$0xf]
  %v161 = vld [vmem:[%s1 + $0x18] sm:$0xf]
  %v162 = vld [vmem:[%s1 + $0x1c] sm:$0xf]
  %v163 = vld [vmem:[%s1 + $0x20] sm:$0xf]
  %v164 = vld [vmem:[%s1 + $0x24] sm:$0xf]
  %v165 = vld [vmem:[%s1 + $0x28] sm:$0xf]
  %v166 = vld [vmem:[%s1 + $0x2c] sm:$0xf]
  %v167 = vld [vmem:[%s1 + $0x30] sm:$0xf]
  %v168 = vld [vmem:[%s1 + $0x34] sm:$0xf]
  %v169 = vld [vmem:[%s1 + $0x38] sm:$0xf]
  %v170 = vld [vmem:[%s1 + $0x3c] sm:$0xf]
  %v171 = vld [vmem:[%s1 + $0x40] sm:$0xf]
  %v172 = vld [vmem:[%s1 + $0x44] sm:$0xf]
  %v173 = vld [vmem:[%s1 + $0x48] sm:$0xf]
  %v174 = vld [vmem:[%s1 + $0x4c] sm:$0xf]
  %v175 = vld [vmem:[%s1 + $0x50] sm:$0xf]
  %v176 = vld [vmem:[%s1 + $0x54] sm:$0xf]
  %v177 = vld [vmem:[%s1 + $0x58] sm:$0xf]
  %v178 = vld [vmem:[%s1 + $0x5c] sm:$0xf]
  %v179 = vld [vmem:[%s1 + $0x60] sm:$0xf]
  %v180 = vld [vmem:[%s1 + $0x64] sm:$0xf]
  %v181 = vld [vmem:[%s1 + $0x68] sm:$0xf]
  %v182 = vld [vmem:[%s1 + $0x6c] sm:$0xf]
  %v183 = vld [vmem:[%s1 + $0x70] sm:$0xf]
  %v184 = vld [vmem:[%s1 + $0x74] sm:$0xf]
  %v185 = vld [vmem:[%s1 + $0x78] sm:$0xf]
  %v186 = vld [vmem:[%s1 + $0x7c] sm:$0xf]
  %v187 = vld [vmem:[%s1 + $0x80] sm:$0xf]
  %v188 = vld [vmem:[%s1 + $0x84] sm:$0xf]
  %v189 = vld [vmem:[%s1 + $0x88] sm:$0xf]
  %v190 = vld [vmem:[%s1 + $0x8c] sm:$0xf]
  %v191 = vld [vmem:[%s2] sm:$0x1]
  %v193 = vlaneseq
  %v194 = vshrl.u32 %v193, 7
  %v195 = vsub.s32 0, %v194
  %v196 = vrot.slane %v191, %v195
  %v326 = vunpack.c.l.b16 %v27
  %v327 = vunpack.c.h.b16 %v27
  %v328 = vunpack.c.l.b16 %v28
  %v329 = vunpack.c.l.b16 %v29
  %v330 = vunpack.c.h.b16 %v29
  %v331 = vunpack.c.l.b16 %v30
  %v332 = vunpack.c.l.b16 %v31
  %v333 = vunpack.c.h.b16 %v31
  %v334 = vunpack.c.l.b16 %v32
  %v335 = vunpack.c.l.b16 %v33
  %v336 = vunpack.c.h.b16 %v33
  %v337 = vunpack.c.l.b16 %v34
  %v338 = vunpack.c.l.b16 %v35
  %v339 = vunpack.c.h.b16 %v35
  %v340 = vunpack.c.l.b16 %v36
  %v341 = vunpack.c.l.b16 %v37
  %v342 = vunpack.c.h.b16 %v37
  %v343 = vunpack.c.l.b16 %v38
  %v344 = vunpack.c.l.b16 %v39
  %v345 = vunpack.c.h.b16 %v39
  %v346 = vunpack.c.l.b16 %v40
  %v347 = vunpack.c.l.b16 %v41
  %v348 = vunpack.c.h.b16 %v41
  %v349 = vunpack.c.l.b16 %v42
  %v350 = vunpack.c.l.b16 %v43
  %v351 = vunpack.c.h.b16 %v43
  %v352 = vunpack.c.l.b16 %v44
  %v353 = vunpack.c.l.b16 %v45
  %v354 = vunpack.c.h.b16 %v45
  %v355 = vunpack.c.l.b16 %v46
  %v356 = vunpack.c.l.b16 %v47
  %v357 = vunpack.c.h.b16 %v47
  %v358 = vunpack.c.l.b16 %v48
  %v359 = vunpack.c.l.b16 %v49
  %v360 = vunpack.c.h.b16 %v49
  %v361 = vunpack.c.l.b16 %v50
  %v362 = vunpack.c.l.b16 %v51
  %v363 = vunpack.c.h.b16 %v51
  %v364 = vunpack.c.l.b16 %v52
  %v365 = vunpack.c.l.b16 %v53
  %v366 = vunpack.c.h.b16 %v53
  %v367 = vunpack.c.l.b16 %v54
  %v368 = vunpack.c.l.b16 %v55
  %v369 = vunpack.c.h.b16 %v55
  %v370 = vunpack.c.l.b16 %v56
  %v371 = vunpack.c.l.b16 %v57
  %v372 = vunpack.c.h.b16 %v57
  %v373 = vunpack.c.l.b16 %v58
  %v374 = vunpack.c.l.b16 %v59
  %v375 = vunpack.c.h.b16 %v59
  %v376 = vunpack.c.l.b16 %v60
  %v377 = vunpack.c.l.b16 %v61
  %v378 = vunpack.c.h.b16 %v61
  %v379 = vunpack.c.l.b16 %v62
  %v380 = vunpack.c.l.b16 %v63
  %v381 = vunpack.c.h.b16 %v63
  %v382 = vunpack.c.l.b16 %v64
  %v383 = vunpack.c.l.b16 %v65
  %v384 = vunpack.c.h.b16 %v65
  %v385 = vunpack.c.l.b16 %v66
  %v386 = vunpack.c.l.b16 %v67
  %v387 = vunpack.c.h.b16 %v67
  %v388 = vunpack.c.l.b16 %v68
  %v389 = vunpack.c.l.b16 %v69
  %v390 = vunpack.c.h.b16 %v69
  %v391 = vunpack.c.l.b16 %v70
  %v392 = vunpack.c.l.b16 %v71
  %v393 = vunpack.c.h.b16 %v71
  %v394 = vunpack.c.l.b16 %v72
  %v395 = vunpack.c.l.b16 %v73
  %v396 = vunpack.c.h.b16 %v73
  %v397 = vunpack.c.l.b16 %v74
  %v398 = vunpack.c.l.b16 %v75
  %v399 = vunpack.c.h.b16 %v75
  %v400 = vunpack.c.l.b16 %v76
  %v401 = vunpack.c.l.b16 %v77
  %v402 = vunpack.c.h.b16 %v77
  %v403 = vunpack.c.l.b16 %v78
  %v404 = vunpack.c.l.b16 %v79
  %v405 = vunpack.c.h.b16 %v79
  %v406 = vunpack.c.l.b16 %v80
  %v407 = vunpack.c.l.b16 %v81
  %v408 = vunpack.c.h.b16 %v81
  %v409 = vunpack.c.l.b16 %v82
  %v410 = vunpack.c.l.b16 %v83
  %v411 = vunpack.c.h.b16 %v83
  %v412 = vunpack.c.l.b16 %v84
  %v413 = vunpack.c.l.b16 %v85
  %v414 = vunpack.c.h.b16 %v85
  %v415 = vunpack.c.l.b16 %v86
  %v416 = vunpack.c.l.b16 %v87
  %v417 = vunpack.c.h.b16 %v87
  %v418 = vunpack.c.l.b16 %v88
  %v419 = vunpack.c.l.b16 %v89
  %v420 = vunpack.c.h.b16 %v89
  %v421 = vunpack.c.l.b16 %v90
  %v422 = vunpack.c.l.b16 %v91
  %v423 = vunpack.c.h.b16 %v91
  %v424 = vunpack.c.l.b16 %v92
  %v425 = vunpack.c.l.b16 %v93
  %v426 = vunpack.c.h.b16 %v93
  %v427 = vunpack.c.l.b16 %v94
  %v428 = vunpack.c.l.b16 %v95
  %v429 = vunpack.c.h.b16 %v95
  %v430 = vunpack.c.l.b16 %v96
  %v431 = vunpack.c.l.b16 %v97
  %v432 = vunpack.c.h.b16 %v97
  %v433 = vunpack.c.l.b16 %v98
  %v434 = vunpack.c.l.b16 %v99
  %v435 = vunpack.c.h.b16 %v99
  %v436 = vunpack.c.l.b16 %v100
  %v437 = vunpack.c.l.b16 %v101
  %v438 = vunpack.c.h.b16 %v101
  %v439 = vunpack.c.l.b16 %v102
  %v440 = vunpack.c.l.b16 %v103
  %v441 = vunpack.c.h.b16 %v103
  %v442 = vunpack.c.l.b16 %v104
  %v443 = vunpack.c.l.b16 %v105
  %v444 = vunpack.c.h.b16 %v105
  %v445 = vunpack.c.l.b16 %v106
  %v446 = vunpack.c.l.b16 %v107
  %v447 = vunpack.c.h.b16 %v107
  %v448 = vunpack.c.l.b16 %v108
  %v449 = vunpack.c.l.b16 %v109
  %v450 = vunpack.c.h.b16 %v109
  %v451 = vunpack.c.l.b16 %v110
  %v452 = vunpack.c.l.b16 %v111
  %v453 = vunpack.c.h.b16 %v111
  %v454 = vunpack.c.l.b16 %v112
  %v455 = vunpack.c.l.b16 %v113
  %v456 = vunpack.c.h.b16 %v113
  %v457 = vunpack.c.l.b16 %v114
  %v458 = vunpack.c.l.b16 %v115
  %v459 = vunpack.c.h.b16 %v115
  %v460 = vunpack.c.l.b16 %v116
  %v461 = vunpack.c.l.b16 %v117
  %v462 = vunpack.c.h.b16 %v117
  %v463 = vunpack.c.l.b16 %v118
  %v464 = vunpack.c.l.b16 %v119
  %v465 = vunpack.c.h.b16 %v119
  %v466 = vunpack.c.l.b16 %v120
  %v467 = vunpack.c.l.b16 %v121
  %v468 = vunpack.c.h.b16 %v121
  %v469 = vunpack.c.l.b16 %v122
  %v470 = vunpack.c.l.b16 %v123
  %v471 = vunpack.c.h.b16 %v123
  %v472 = vunpack.c.l.b16 %v124
  %v473 = vunpack.c.l.b16 %v125
  %v474 = vunpack.c.h.b16 %v125
  %v475 = vunpack.c.l.b16 %v126
  %v476 = vunpack.c.l.b16 %v127
  %v477 = vunpack.c.h.b16 %v127
  %v478 = vunpack.c.l.b16 %v128
  %v479 = vunpack.c.l.b16 %v129
  %v480 = vunpack.c.h.b16 %v129
  %v481 = vunpack.c.l.b16 %v130
  %v482 = vunpack.c.l.b16 %v131
  %v483 = vunpack.c.h.b16 %v131
  %v484 = vunpack.c.l.b16 %v132
  %v485 = vunpack.c.l.b16 %v133
  %v486 = vunpack.c.h.b16 %v133
  %v487 = vunpack.c.l.b16 %v134
  %v488 = vunpack.c.l.b16 %v135
  %v489 = vunpack.c.h.b16 %v135
  %v490 = vunpack.c.l.b16 %v136
  %v491 = vunpack.c.l.b16 %v137
  %v492 = vunpack.c.h.b16 %v137
  %v493 = vunpack.c.l.b16 %v138
  %v494 = vunpack.c.l.b16 %v139
  %v495 = vunpack.c.h.b16 %v139
  %v496 = vunpack.c.l.b16 %v140
  %v497 = vunpack.c.l.b16 %v141
  %v498 = vunpack.c.h.b16 %v141
  %v499 = vunpack.c.l.b16 %v142
  %v500 = vunpack.c.l.b16 %v143
  %v501 = vunpack.c.h.b16 %v143
  %v502 = vunpack.c.l.b16 %v144
  %v503 = vunpack.c.l.b16 %v145
  %v504 = vunpack.c.h.b16 %v145
  %v505 = vunpack.c.l.b16 %v146
  %v506 = vunpack.c.l.b16 %v147
  %v507 = vunpack.c.h.b16 %v147
  %v508 = vunpack.c.l.b16 %v148
  %v509 = vunpack.c.l.b16 %v149
  %v510 = vunpack.c.h.b16 %v149
  %v511 = vunpack.c.l.b16 %v150
  %v512 = vunpack.c.l.b16 %v151
  %v513 = vunpack.c.h.b16 %v151
  %v514 = vunpack.c.l.b16 %v152
  %v515 = vunpack.c.l.b16 %v153
  %v516 = vunpack.c.h.b16 %v153
  %v517 = vunpack.c.l.b16 %v154
  %v518 = vpack.c.b16 %v329, %v326
  %v519 = vpack.c.b16 %v330, %v327
  %v520 = vpack.c.b16 %v331, %v328
  %v521 = vpack.c.b16 %v335, %v332
  %v522 = vpack.c.b16 %v336, %v333
  %v523 = vpack.c.b16 %v337, %v334
  %v524 = vpack.c.b16 %v341, %v338
  %v525 = vpack.c.b16 %v342, %v339
  %v526 = vpack.c.b16 %v343, %v340
  %v527 = vpack.c.b16 %v347, %v344
  %v528 = vpack.c.b16 %v348, %v345
  %v529 = vpack.c.b16 %v349, %v346
  %v530 = vpack.c.b16 %v353, %v350
  %v531 = vpack.c.b16 %v354, %v351
  %v532 = vpack.c.b16 %v355, %v352
  %v533 = vpack.c.b16 %v359, %v356
  %v534 = vpack.c.b16 %v360, %v357
  %v535 = vpack.c.b16 %v361, %v358
  %v536 = vpack.c.b16 %v365, %v362
  %v537 = vpack.c.b16 %v366, %v363
  %v538 = vpack.c.b16 %v367, %v364
  %v539 = vpack.c.b16 %v371, %v368
  %v540 = vpack.c.b16 %v372, %v369
  %v541 = vpack.c.b16 %v373, %v370
  %v542 = vpack.c.b16 %v377, %v374
  %v543 = vpack.c.b16 %v378, %v375
  %v544 = vpack.c.b16 %v379, %v376
  %v545 = vpack.c.b16 %v383, %v380
  %v546 = vpack.c.b16 %v384, %v381
  %v547 = vpack.c.b16 %v385, %v382
  %v548 = vpack.c.b16 %v389, %v386
  %v549 = vpack.c.b16 %v390, %v387
  %v550 = vpack.c.b16 %v391, %v388
  %v551 = vpack.c.b16 %v395, %v392
  %v552 = vpack.c.b16 %v396, %v393
  %v553 = vpack.c.b16 %v397, %v394
  %v554 = vpack.c.b16 %v401, %v398
  %v555 = vpack.c.b16 %v402, %v399
  %v556 = vpack.c.b16 %v403, %v400
  %v557 = vpack.c.b16 %v407, %v404
  %v558 = vpack.c.b16 %v408, %v405
  %v559 = vpack.c.b16 %v409, %v406
  %v560 = vpack.c.b16 %v413, %v410
  %v561 = vpack.c.b16 %v414, %v411
  %v562 = vpack.c.b16 %v415, %v412
  %v563 = vpack.c.b16 %v419, %v416
  %v564 = vpack.c.b16 %v420, %v417
  %v565 = vpack.c.b16 %v421, %v418
  %v566 = vpack.c.b16 %v425, %v422
  %v567 = vpack.c.b16 %v426, %v423
  %v568 = vpack.c.b16 %v427, %v424
  %v569 = vpack.c.b16 %v431, %v428
  %v570 = vpack.c.b16 %v432, %v429
  %v571 = vpack.c.b16 %v433, %v430
  %v572 = vpack.c.b16 %v437, %v434
  %v573 = vpack.c.b16 %v438, %v435
  %v574 = vpack.c.b16 %v439, %v436
  %v575 = vpack.c.b16 %v443, %v440
  %v576 = vpack.c.b16 %v444, %v441
  %v577 = vpack.c.b16 %v445, %v442
  %v578 = vpack.c.b16 %v449, %v446
  %v579 = vpack.c.b16 %v450, %v447
  %v580 = vpack.c.b16 %v451, %v448
  %v581 = vpack.c.b16 %v455, %v452
  %v582 = vpack.c.b16 %v456, %v453
  %v583 = vpack.c.b16 %v457, %v454
  %v584 = vpack.c.b16 %v461, %v458
  %v585 = vpack.c.b16 %v462, %v459
  %v586 = vpack.c.b16 %v463, %v460
  %v587 = vpack.c.b16 %v467, %v464
  %v588 = vpack.c.b16 %v468, %v465
  %v589 = vpack.c.b16 %v469, %v466
  %v590 = vpack.c.b16 %v473, %v470
  %v591 = vpack.c.b16 %v474, %v471
  %v592 = vpack.c.b16 %v475, %v472
  %v593 = vpack.c.b16 %v479, %v476
  %v594 = vpack.c.b16 %v480, %v477
  %v595 = vpack.c.b16 %v481, %v478
  %v596 = vpack.c.b16 %v485, %v482
  %v597 = vpack.c.b16 %v486, %v483
  %v598 = vpack.c.b16 %v487, %v484
  %v599 = vpack.c.b16 %v491, %v488
  %v600 = vpack.c.b16 %v492, %v489
  %v601 = vpack.c.b16 %v493, %v490
  %v602 = vpack.c.b16 %v497, %v494
  %v603 = vpack.c.b16 %v498, %v495
  %v604 = vpack.c.b16 %v499, %v496
  %v605 = vpack.c.b16 %v503, %v500
  %v606 = vpack.c.b16 %v504, %v501
  %v607 = vpack.c.b16 %v505, %v502
  %v608 = vpack.c.b16 %v509, %v506
  %v609 = vpack.c.b16 %v510, %v507
  %v610 = vpack.c.b16 %v511, %v508
  %v611 = vpack.c.b16 %v515, %v512
  %v612 = vpack.c.b16 %v516, %v513
  %v613 = vpack.c.b16 %v517, %v514
  %v714 = vunpack.c.l.b16 %v155
  %v715 = vunpack.c.l.b16 %v156
  %v716 = vunpack.c.l.b16 %v157
  %v717 = vunpack.c.l.b16 %v158
  %v718 = vunpack.c.l.b16 %v159
  %v719 = vunpack.c.l.b16 %v160
  %v720 = vunpack.c.l.b16 %v161
  %v721 = vunpack.c.l.b16 %v162
  %v722 = vunpack.c.l.b16 %v163
  %v723 = vunpack.c.l.b16 %v164
  %v724 = vunpack.c.l.b16 %v165
  %v725 = vunpack.c.l.b16 %v166
  %v726 = vunpack.c.l.b16 %v167
  %v727 = vunpack.c.l.b16 %v168
  %v728 = vunpack.c.l.b16 %v169
  %v729 = vunpack.c.l.b16 %v170
  %v730 = vunpack.c.l.b16 %v171
  %v731 = vunpack.c.l.b16 %v172
  %v732 = vunpack.c.l.b16 %v173
  %v733 = vunpack.c.l.b16 %v174
  %v734 = vunpack.c.l.b16 %v175
  %v735 = vunpack.c.l.b16 %v176
  %v736 = vunpack.c.l.b16 %v177
  %v737 = vunpack.c.l.b16 %v178
  %v738 = vunpack.c.l.b16 %v179
  %v739 = vunpack.c.l.b16 %v180
  %v740 = vunpack.c.l.b16 %v181
  %v741 = vunpack.c.l.b16 %v182
  %v742 = vunpack.c.l.b16 %v183
  %v743 = vunpack.c.l.b16 %v184
  %v744 = vunpack.c.l.b16 %v185
  %v745 = vunpack.c.l.b16 %v186
  %v746 = vunpack.c.l.b16 %v187
  %v747 = vunpack.c.l.b16 %v188
  %v748 = vunpack.c.l.b16 %v189
  %v749 = vunpack.c.l.b16 %v190
  %v750 = vpack.c.b16 %v715, %v714
  %v751 = vpack.c.b16 %v717, %v716
  %v752 = vpack.c.b16 %v719, %v718
  %v753 = vpack.c.b16 %v721, %v720
  %v754 = vpack.c.b16 %v723, %v722
  %v755 = vpack.c.b16 %v725, %v724
  %v756 = vpack.c.b16 %v727, %v726
  %v757 = vpack.c.b16 %v729, %v728
  %v758 = vpack.c.b16 %v731, %v730
  %v759 = vpack.c.b16 %v733, %v732
  %v760 = vpack.c.b16 %v735, %v734
  %v761 = vpack.c.b16 %v737, %v736
  %v762 = vpack.c.b16 %v739, %v738
  %v763 = vpack.c.b16 %v741, %v740
  %v764 = vpack.c.b16 %v743, %v742
  %v765 = vpack.c.b16 %v745, %v744
  %v766 = vpack.c.b16 %v747, %v746
  %v767 = vpack.c.b16 %v749, %v748
  %vm786 = vcmask 261120
  %v788 = vsel %vm786, %v520, 0
  %v791 = vsel %vm786, %v523, 0
  %v794 = vsel %vm786, %v526, 0
  %v797 = vsel %vm786, %v529, 0
  %v800 = vsel %vm786, %v532, 0
  %v803 = vsel %vm786, %v535, 0
  %v806 = vsel %vm786, %v538, 0
  %v809 = vsel %vm786, %v541, 0
  %v812 = vsel %vm786, %v544, 0
  %v815 = vsel %vm786, %v547, 0
  %v818 = vsel %vm786, %v550, 0
  %v821 = vsel %vm786, %v553, 0
  %v824 = vsel %vm786, %v556, 0
  %v827 = vsel %vm786, %v559, 0
  %v830 = vsel %vm786, %v562, 0
  %v833 = vsel %vm786, %v565, 0
  %v836 = vsel %vm786, %v568, 0
  %v839 = vsel %vm786, %v571, 0
  %v842 = vsel %vm786, %v574, 0
  %v845 = vsel %vm786, %v577, 0
  %v848 = vsel %vm786, %v580, 0
  %v851 = vsel %vm786, %v583, 0
  %v854 = vsel %vm786, %v586, 0
  %v857 = vsel %vm786, %v589, 0
  %v860 = vsel %vm786, %v592, 0
  %v863 = vsel %vm786, %v595, 0
  %v866 = vsel %vm786, %v598, 0
  %v869 = vsel %vm786, %v601, 0
  %v872 = vsel %vm786, %v604, 0
  %v875 = vsel %vm786, %v607, 0
  %v878 = vsel %vm786, %v610, 0
  %v881 = vsel %vm786, %v613, 0
  %883 = vmatprep.subr.bf16.mxu0 0
  %884 = vmatpush1.bf16.msra.mxu0 %v750
  %885 = vmatprep.subr.bf16.mxu0 0
  %886 = vmatpush1.bf16.msra.mxu0 %v751
  %887 = vmatprep.subr.bf16.mxu0 0
  %888 = vmatpush1.bf16.msra.mxu0 %v752
  %889 = vmatprep.subr.bf16.mxu0 0
  %890 = vmatpush1.bf16.msra.mxu0 %v753
  %891 = vmatprep.subr.bf16.mxu0 0
  %892 = vmatpush1.bf16.msra.mxu0 %v754
  %893 = vmatprep.subr.bf16.mxu0 0
  %894 = vmatpush1.bf16.msra.mxu0 %v755
  %895 = vmatprep.subr.bf16.mxu0 0
  %896 = vmatpush1.bf16.msra.mxu0 %v756
  %897 = vmatprep.subr.bf16.mxu0 0
  %898 = vmatpush1.bf16.msra.mxu0 %v757
  %899 = vmatprep.subr.bf16.mxu0 0
  %900 = vmatpush1.bf16.msra.mxu0 %v758
  %901 = vmatprep.subr.bf16.mxu0 0
  %902 = vmatpush1.bf16.msra.mxu0 %v759
  %903 = vmatprep.subr.bf16.mxu0 0
  %904 = vmatpush1.bf16.msra.mxu0 %v760
  %905 = vmatprep.subr.bf16.mxu0 0
  %906 = vmatpush1.bf16.msra.mxu0 %v761
  %907 = vmatprep.subr.bf16.mxu0 0
  %908 = vmatpush1.bf16.msra.mxu0 %v762
  %909 = vmatprep.subr.bf16.mxu0 0
  %910 = vmatpush1.bf16.msra.mxu0 %v763
  %911 = vmatprep.subr.bf16.mxu0 0
  %912 = vmatpush1.bf16.msra.mxu0 %v764
  %913 = vmatprep.subr.bf16.mxu0 0
  %914 = vmatpush1.bf16.msra.mxu0 %v765
  %915 = vmatprep.mubr.bf16.mxu0 %v519
  %916 = vmatmul.mubr.bf16.gmra.mrb[0].mxu0 %v518
  %v917 = vpop.f32.mrb[0].mxu0
  %v918 = vadd.f32 %v196, %v917
  %v919 = vpop.f32.mrb[0].mxu0
  %v920 = vpop.f32.mrb[0].mxu0
  %v921 = vadd.f32 %v196, %v920
  %v922 = vpop.f32.mrb[0].mxu0
  %923 = vmatprep.mubr.bf16.mxu0 %v522
  %924 = vmatmul.mubr.bf16.gmra.mrb[0].mxu0 %v521
  %v925 = vpop.f32.mrb[0].mxu0
  %v926 = vadd.f32 %v196, %v925
  %v927 = vpop.f32.mrb[0].mxu0
  %v928 = vpop.f32.mrb[0].mxu0
  %v929 = vadd.f32 %v196, %v928
  %v930 = vpop.f32.mrb[0].mxu0
  %931 = vmatprep.mubr.bf16.mxu0 %v525
  %932 = vmatmul.mubr.bf16.gmra.mrb[0].mxu0 %v524
  %v933 = vpop.f32.mrb[0].mxu0
  %v934 = vadd.f32 %v196, %v933
  %v935 = vpop.f32.mrb[0].mxu0
  %v936 = vpop.f32.mrb[0].mxu0
  %v937 = vadd.f32 %v196, %v936
  %v938 = vpop.f32.mrb[0].mxu0
  %939 = vmatprep.mubr.bf16.mxu0 %v528
  %940 = vmatmul.mubr.bf16.gmra.mrb[0].mxu0 %v527
  %v941 = vpop.f32.mrb[0].mxu0
  %v942 = vadd.f32 %v196, %v941
  %v943 = vpop.f32.mrb[0].mxu0
  %v944 = vpop.f32.mrb[0].mxu0
  %v945 = vadd.f32 %v196, %v944
  %v946 = vpop.f32.mrb[0].mxu0
  %947 = vmatprep.mubr.bf16.mxu0 %v531
  %948 = vmatmul.mubr.bf16.gmra.mrb[0].mxu0 %v530
  %v949 = vpop.f32.mrb[0].mxu0
  %v950 = vadd.f32 %v196, %v949
  %v951 = vpop.f32.mrb[0].mxu0
  %v952 = vpop.f32.mrb[0].mxu0
  %v953 = vadd.f32 %v196, %v952
  %v954 = vpop.f32.mrb[0].mxu0
  %955 = vmatprep.mubr.bf16.mxu0 %v534
  %956 = vmatmul.mubr.bf16.gmra.mrb[0].mxu0 %v533
  %v957 = vpop.f32.mrb[0].mxu0
  %v958 = vadd.f32 %v196, %v957
  %v959 = vpop.f32.mrb[0].mxu0
  %v960 = vpop.f32.mrb[0].mxu0
  %v961 = vadd.f32 %v196, %v960
  %v962 = vpop.f32.mrb[0].mxu0
  %963 = vmatprep.mubr.bf16.mxu0 %v537
  %964 = vmatmul.mubr.bf16.gmra.mrb[0].mxu0 %v536
  %v965 = vpop.f32.mrb[0].mxu0
  %v966 = vadd.f32 %v196, %v965
  %v967 = vpop.f32.mrb[0].mxu0
  %v968 = vpop.f32.mrb[0].mxu0
  %v969 = vadd.f32 %v196, %v968
  %v970 = vpop.f32.mrb[0].mxu0
  %971 = vmatprep.mubr.bf16.mxu0 %v540
  %972 = vmatmul.mubr.bf16.gmra.mrb[0].mxu0 %v539
  %v973 = vpop.f32.mrb[0].mxu0
  %v974 = vadd.f32 %v196, %v973
  %v975 = vpop.f32.mrb[0].mxu0
  %v976 = vpop.f32.mrb[0].mxu0
  %v977 = vadd.f32 %v196, %v976
  %v978 = vpop.f32.mrb[0].mxu0
  %979 = vmatprep.mubr.bf16.mxu0 %v543
  %980 = vmatmul.mubr.bf16.gmra.mrb[0].mxu0 %v542
  %v981 = vpop.f32.mrb[0].mxu0
  %v982 = vadd.f32 %v196, %v981
  %v983 = vpop.f32.mrb[0].mxu0
  %v984 = vpop.f32.mrb[0].mxu0
  %v985 = vadd.f32 %v196, %v984
  %v986 = vpop.f32.mrb[0].mxu0
  %987 = vmatprep.mubr.bf16.mxu0 %v546
  %988 = vmatmul.mubr.bf16.gmra.mrb[0].mxu0 %v545
  %v989 = vpop.f32.mrb[0].mxu0
  %v990 = vadd.f32 %v196, %v989
  %v991 = vpop.f32.mrb[0].mxu0
  %v992 = vpop.f32.mrb[0].mxu0
  %v993 = vadd.f32 %v196, %v992
  %v994 = vpop.f32.mrb[0].mxu0
  %995 = vmatprep.mubr.bf16.mxu0 %v549
  %996 = vmatmul.mubr.bf16.gmra.mrb[0].mxu0 %v548
  %v997 = vpop.f32.mrb[0].mxu0
  %v998 = vadd.f32 %v196, %v997
  %v999 = vpop.f32.mrb[0].mxu0
  %v1000 = vpop.f32.mrb[0].mxu0
  %v1001 = vadd.f32 %v196, %v1000
  %v1002 = vpop.f32.mrb[0].mxu0
  %1003 = vmatprep.mubr.bf16.mxu0 %v552
  %1004 = vmatmul.mubr.bf16.gmra.mrb[0].mxu0 %v551
  %v1005 = vpop.f32.mrb[0].mxu0
  %v1006 = vadd.f32 %v196, %v1005
  %v1007 = vpop.f32.mrb[0].mxu0
  %v1008 = vpop.f32.mrb[0].mxu0
  %v1009 = vadd.f32 %v196, %v1008
  %v1010 = vpop.f32.mrb[0].mxu0
  %1011 = vmatprep.mubr.bf16.mxu0 %v555
  %1012 = vmatmul.mubr.bf16.gmra.mrb[0].mxu0 %v554
  %v1013 = vpop.f32.mrb[0].mxu0
  %v1014 = vadd.f32 %v196, %v1013
  %v1015 = vpop.f32.mrb[0].mxu0
  %v1016 = vpop.f32.mrb[0].mxu0
  %v1017 = vadd.f32 %v196, %v1016
  %v1018 = vpop.f32.mrb[0].mxu0
  %1019 = vmatprep.mubr.bf16.mxu0 %v558
  %1020 = vmatmul.mubr.bf16.gmra.mrb[0].mxu0 %v557
  %v1021 = vpop.f32.mrb[0].mxu0
  %v1022 = vadd.f32 %v196, %v1021
  %v1023 = vpop.f32.mrb[0].mxu0
  %v1024 = vpop.f32.mrb[0].mxu0
  %v1025 = vadd.f32 %v196, %v1024
  %v1026 = vpop.f32.mrb[0].mxu0
  %1027 = vmatprep.mubr.bf16.mxu0 %v561
  %1028 = vmatmul.mubr.bf16.gmra.mrb[0].mxu0 %v560
  %v1029 = vpop.f32.mrb[0].mxu0
  %v1030 = vadd.f32 %v196, %v1029
  %v1031 = vpop.f32.mrb[0].mxu0
  %v1032 = vpop.f32.mrb[0].mxu0
  %v1033 = vadd.f32 %v196, %v1032
  %v1034 = vpop.f32.mrb[0].mxu0
  %1035 = vmatprep.mubr.bf16.mxu0 %v564
  %1036 = vmatmul.mubr.bf16.gmra.mrb[0].mxu0 %v563
  %v1037 = vpop.f32.mrb[0].mxu0
  %v1038 = vadd.f32 %v196, %v1037
  %v1039 = vpop.f32.mrb[0].mxu0
  %v1040 = vpop.f32.mrb[0].mxu0
  %v1041 = vadd.f32 %v196, %v1040
  %v1042 = vpop.f32.mrb[0].mxu0
  %1043 = vmatprep.mubr.bf16.mxu0 %v567
  %1044 = vmatmul.mubr.bf16.gmra.mrb[0].mxu0 %v566
  %v1045 = vpop.f32.mrb[0].mxu0
  %v1046 = vadd.f32 %v196, %v1045
  %v1047 = vpop.f32.mrb[0].mxu0
  %v1048 = vpop.f32.mrb[0].mxu0
  %v1049 = vadd.f32 %v196, %v1048
  %v1050 = vpop.f32.mrb[0].mxu0
  %1051 = vmatprep.mubr.bf16.mxu0 %v570
  %1052 = vmatmul.mubr.bf16.gmra.mrb[0].mxu0 %v569
  %v1053 = vpop.f32.mrb[0].mxu0
  %v1054 = vadd.f32 %v196, %v1053
  %v1055 = vpop.f32.mrb[0].mxu0
  %v1056 = vpop.f32.mrb[0].mxu0
  %v1057 = vadd.f32 %v196, %v1056
  %v1058 = vpop.f32.mrb[0].mxu0
  %1059 = vmatprep.mubr.bf16.mxu0 %v573
  %1060 = vmatmul.mubr.bf16.gmra.mrb[0].mxu0 %v572
  %v1061 = vpop.f32.mrb[0].mxu0
  %v1062 = vadd.f32 %v196, %v1061
  %v1063 = vpop.f32.mrb[0].mxu0
  %v1064 = vpop.f32.mrb[0].mxu0
  %v1065 = vadd.f32 %v196, %v1064
  %v1066 = vpop.f32.mrb[0].mxu0
  %1067 = vmatprep.mubr.bf16.mxu0 %v576
  %1068 = vmatmul.mubr.bf16.gmra.mrb[0].mxu0 %v575
  %v1069 = vpop.f32.mrb[0].mxu0
  %v1070 = vadd.f32 %v196, %v1069
  %v1071 = vpop.f32.mrb[0].mxu0
  %v1072 = vpop.f32.mrb[0].mxu0
  %v1073 = vadd.f32 %v196, %v1072
  %v1074 = vpop.f32.mrb[0].mxu0
  %1075 = vmatprep.mubr.bf16.mxu0 %v579
  %1076 = vmatmul.mubr.bf16.gmra.mrb[0].mxu0 %v578
  %v1077 = vpop.f32.mrb[0].mxu0
  %v1078 = vadd.f32 %v196, %v1077
  %v1079 = vpop.f32.mrb[0].mxu0
  %v1080 = vpop.f32.mrb[0].mxu0
  %v1081 = vadd.f32 %v196, %v1080
  %v1082 = vpop.f32.mrb[0].mxu0
  %1083 = vmatprep.mubr.bf16.mxu0 %v582
  %1084 = vmatmul.mubr.bf16.gmra.mrb[0].mxu0 %v581
  %v1085 = vpop.f32.mrb[0].mxu0
  %v1086 = vadd.f32 %v196, %v1085
  %v1087 = vpop.f32.mrb[0].mxu0
  %v1088 = vpop.f32.mrb[0].mxu0
  %v1089 = vadd.f32 %v196, %v1088
  %v1090 = vpop.f32.mrb[0].mxu0
  %1091 = vmatprep.mubr.bf16.mxu0 %v585
  %1092 = vmatmul.mubr.bf16.gmra.mrb[0].mxu0 %v584
  %v1093 = vpop.f32.mrb[0].mxu0
  %v1094 = vadd.f32 %v196, %v1093
  %v1095 = vpop.f32.mrb[0].mxu0
  %v1096 = vpop.f32.mrb[0].mxu0
  %v1097 = vadd.f32 %v196, %v1096
  %v1098 = vpop.f32.mrb[0].mxu0
  %1099 = vmatprep.mubr.bf16.mxu0 %v588
  %1100 = vmatmul.mubr.bf16.gmra.mrb[0].mxu0 %v587
  %v1101 = vpop.f32.mrb[0].mxu0
  %v1102 = vadd.f32 %v196, %v1101
  %v1103 = vpop.f32.mrb[0].mxu0
  %v1104 = vpop.f32.mrb[0].mxu0
  %v1105 = vadd.f32 %v196, %v1104
  %v1106 = vpop.f32.mrb[0].mxu0
  %1107 = vmatprep.mubr.bf16.mxu0 %v591
  %1108 = vmatmul.mubr.bf16.gmra.mrb[0].mxu0 %v590
  %v1109 = vpop.f32.mrb[0].mxu0
  %v1110 = vadd.f32 %v196, %v1109
  %v1111 = vpop.f32.mrb[0].mxu0
  %v1112 = vpop.f32.mrb[0].mxu0
  %v1113 = vadd.f32 %v196, %v1112
  %v1114 = vpop.f32.mrb[0].mxu0
  %1115 = vmatprep.mubr.bf16.mxu0 %v594
  %1116 = vmatmul.mubr.bf16.gmra.mrb[0].mxu0 %v593
  %v1117 = vpop.f32.mrb[0].mxu0
  %v1118 = vadd.f32 %v196, %v1117
  %v1119 = vpop.f32.mrb[0].mxu0
  %v1120 = vpop.f32.mrb[0].mxu0
  %v1121 = vadd.f32 %v196, %v1120
  %v1122 = vpop.f32.mrb[0].mxu0
  %1123 = vmatprep.mubr.bf16.mxu0 %v597
  %1124 = vmatmul.mubr.bf16.gmra.mrb[0].mxu0 %v596
  %v1125 = vpop.f32.mrb[0].mxu0
  %v1126 = vadd.f32 %v196, %v1125
  %v1127 = vpop.f32.mrb[0].mxu0
  %v1128 = vpop.f32.mrb[0].mxu0
  %v1129 = vadd.f32 %v196, %v1128
  %v1130 = vpop.f32.mrb[0].mxu0
  %1131 = vmatprep.mubr.bf16.mxu0 %v600
  %1132 = vmatmul.mubr.bf16.gmra.mrb[0].mxu0 %v599
  %v1133 = vpop.f32.mrb[0].mxu0
  %v1134 = vadd.f32 %v196, %v1133
  %v1135 = vpop.f32.mrb[0].mxu0
  %v1136 = vpop.f32.mrb[0].mxu0
  %v1137 = vadd.f32 %v196, %v1136
  %v1138 = vpop.f32.mrb[0].mxu0
  %1139 = vmatprep.mubr.bf16.mxu0 %v603
  %1140 = vmatmul.mubr.bf16.gmra.mrb[0].mxu0 %v602
  %v1141 = vpop.f32.mrb[0].mxu0
  %v1142 = vadd.f32 %v196, %v1141
  %v1143 = vpop.f32.mrb[0].mxu0
  %v1144 = vpop.f32.mrb[0].mxu0
  %v1145 = vadd.f32 %v196, %v1144
  %v1146 = vpop.f32.mrb[0].mxu0
  %1147 = vmatprep.mubr.bf16.mxu0 %v606
  %1148 = vmatmul.mubr.bf16.gmra.mrb[0].mxu0 %v605
  %v1149 = vpop.f32.mrb[0].mxu0
  %v1150 = vadd.f32 %v196, %v1149
  %v1151 = vpop.f32.mrb[0].mxu0
  %v1152 = vpop.f32.mrb[0].mxu0
  %v1153 = vadd.f32 %v196, %v1152
  %v1154 = vpop.f32.mrb[0].mxu0
  %1155 = vmatprep.mubr.bf16.mxu0 %v609
  %1156 = vmatmul.mubr.bf16.gmra.mrb[0].mxu0 %v608
  %v1157 = vpop.f32.mrb[0].mxu0
  %v1158 = vadd.f32 %v196, %v1157
  %v1159 = vpop.f32.mrb[0].mxu0
  %v1160 = vpop.f32.mrb[0].mxu0
  %v1161 = vadd.f32 %v196, %v1160
  %v1162 = vpop.f32.mrb[0].mxu0
  %1163 = vmatprep.mubr.bf16.mxu0 %v612
  %1164 = vmatmul.mubr.bf16.gmra.mrb[0].mxu0 %v611
  %v1165 = vpop.f32.mrb[0].mxu0
  %v1166 = vadd.f32 %v196, %v1165
  %v1167 = vpop.f32.mrb[0].mxu0
  %v1168 = vpop.f32.mrb[0].mxu0
  %v1169 = vadd.f32 %v196, %v1168
  %v1170 = vpop.f32.mrb[0].mxu0
  %1171 = vdwg.mxu0
  %1172 = vmatprep.subr.bf16.mxu0 0
  %1173 = vmatpush1.bf16.msra.mxu0 %v766
  %1174 = vmatprep.subr.bf16.mxu0 0
  %1175 = vmatpush1.bf16.msra.mxu0 %v767
  %1176 = vmatprep.subr.bf16.mxu0 0
  %1177 = vmatpush1.bf16.msra.mxu0 0
  %1178 = vmatprep.subr.bf16.mxu0 0
  %1179 = vmatpush1.bf16.msra.mxu0 0
  %1180 = vmatprep.subr.bf16.mxu0 0
  %1181 = vmatpush1.bf16.msra.mxu0 0
  %1182 = vmatprep.subr.bf16.mxu0 0
  %1183 = vmatpush1.bf16.msra.mxu0 0
  %1184 = vmatprep.subr.bf16.mxu0 0
  %1185 = vmatpush1.bf16.msra.mxu0 0
  %1186 = vmatprep.subr.bf16.mxu0 0
  %1187 = vmatpush1.bf16.msra.mxu0 0
  %1188 = vmatprep.subr.bf16.mxu0 0
  %1189 = vmatpush1.bf16.msra.mxu0 0
  %1190 = vmatprep.subr.bf16.mxu0 0
  %1191 = vmatpush1.bf16.msra.mxu0 0
  %1192 = vmatprep.subr.bf16.mxu0 0
  %1193 = vmatpush1.bf16.msra.mxu0 0
  %1194 = vmatprep.subr.bf16.mxu0 0
  %1195 = vmatpush1.bf16.msra.mxu0 0
  %1196 = vmatprep.subr.bf16.mxu0 0
  %1197 = vmatpush1.bf16.msra.mxu0 0
  %1198 = vmatprep.subr.bf16.mxu0 0
  %1199 = vmatpush1.bf16.msra.mxu0 0
  %1200 = vmatprep.subr.bf16.mxu0 0
  %1201 = vmatpush1.bf16.msra.mxu0 0
  %1202 = vmatprep.subr.bf16.mxu0 0
  %1203 = vmatpush1.bf16.msra.mxu0 0
  %1204 = vmatprep.mubr.bf16.mxu0 0
  %1205 = vmatmul.mubr.bf16.gmra.mrb[0].mxu0 %v788
  %v1206 = vpop.f32.mrb[0].mxu0
  %v1207 = vadd.f32 %v918, %v1206
  %v1208 = vpop.f32.mrb[0].mxu0
  %v1209 = vpop.f32.mrb[0].mxu0
  %v1210 = vadd.f32 %v921, %v1209
  %v1211 = vpop.f32.mrb[0].mxu0
  %1212 = vmatprep.mubr.bf16.mxu0 0
  %1213 = vmatmul.mubr.bf16.gmra.mrb[0].mxu0 %v791
  %v1214 = vpop.f32.mrb[0].mxu0
  %v1215 = vadd.f32 %v926, %v1214
  %v1216 = vpop.f32.mrb[0].mxu0
  %v1217 = vpop.f32.mrb[0].mxu0
  %v1218 = vadd.f32 %v929, %v1217
  %v1219 = vpop.f32.mrb[0].mxu0
  %1220 = vmatprep.mubr.bf16.mxu0 0
  %1221 = vmatmul.mubr.bf16.gmra.mrb[0].mxu0 %v794
  %v1222 = vpop.f32.mrb[0].mxu0
  %v1223 = vadd.f32 %v934, %v1222
  %v1224 = vpop.f32.mrb[0].mxu0
  %v1225 = vpop.f32.mrb[0].mxu0
  %v1226 = vadd.f32 %v937, %v1225
  %v1227 = vpop.f32.mrb[0].mxu0
  %1228 = vmatprep.mubr.bf16.mxu0 0
  %1229 = vmatmul.mubr.bf16.gmra.mrb[0].mxu0 %v797
  %v1230 = vpop.f32.mrb[0].mxu0
  %v1231 = vadd.f32 %v942, %v1230
  %v1232 = vpop.f32.mrb[0].mxu0
  %v1233 = vpop.f32.mrb[0].mxu0
  %v1234 = vadd.f32 %v945, %v1233
  %v1235 = vpop.f32.mrb[0].mxu0
  %1236 = vmatprep.mubr.bf16.mxu0 0
  %1237 = vmatmul.mubr.bf16.gmra.mrb[0].mxu0 %v800
  %v1238 = vpop.f32.mrb[0].mxu0
  %v1239 = vadd.f32 %v950, %v1238
  %v1240 = vpop.f32.mrb[0].mxu0
  %v1241 = vpop.f32.mrb[0].mxu0
  %v1242 = vadd.f32 %v953, %v1241
  %v1243 = vpop.f32.mrb[0].mxu0
  %1244 = vmatprep.mubr.bf16.mxu0 0
  %1245 = vmatmul.mubr.bf16.gmra.mrb[0].mxu0 %v803
  %v1246 = vpop.f32.mrb[0].mxu0
  %v1247 = vadd.f32 %v958, %v1246
  %v1248 = vpop.f32.mrb[0].mxu0
  %v1249 = vpop.f32.mrb[0].mxu0
  %v1250 = vadd.f32 %v961, %v1249
  %v1251 = vpop.f32.mrb[0].mxu0
  %1252 = vmatprep.mubr.bf16.mxu0 0
  %1253 = vmatmul.mubr.bf16.gmra.mrb[0].mxu0 %v806
  %v1254 = vpop.f32.mrb[0].mxu0
  %v1255 = vadd.f32 %v966, %v1254
  %v1256 = vpop.f32.mrb[0].mxu0
  %v1257 = vpop.f32.mrb[0].mxu0
  %v1258 = vadd.f32 %v969, %v1257
  %v1259 = vpop.f32.mrb[0].mxu0
  %1260 = vmatprep.mubr.bf16.mxu0 0
  %1261 = vmatmul.mubr.bf16.gmra.mrb[0].mxu0 %v809
  %v1262 = vpop.f32.mrb[0].mxu0
  %v1263 = vadd.f32 %v974, %v1262
  %v1264 = vpop.f32.mrb[0].mxu0
  %v1265 = vpop.f32.mrb[0].mxu0
  %v1266 = vadd.f32 %v977, %v1265
  %v1267 = vpop.f32.mrb[0].mxu0
  %1268 = vmatprep.mubr.bf16.mxu0 0
  %1269 = vmatmul.mubr.bf16.gmra.mrb[0].mxu0 %v812
  %v1270 = vpop.f32.mrb[0].mxu0
  %v1271 = vadd.f32 %v982, %v1270
  %v1272 = vpop.f32.mrb[0].mxu0
  %v1273 = vpop.f32.mrb[0].mxu0
  %v1274 = vadd.f32 %v985, %v1273
  %v1275 = vpop.f32.mrb[0].mxu0
  %1276 = vmatprep.mubr.bf16.mxu0 0
  %1277 = vmatmul.mubr.bf16.gmra.mrb[0].mxu0 %v815
  %v1278 = vpop.f32.mrb[0].mxu0
  %v1279 = vadd.f32 %v990, %v1278
  %v1280 = vpop.f32.mrb[0].mxu0
  %v1281 = vpop.f32.mrb[0].mxu0
  %v1282 = vadd.f32 %v993, %v1281
  %v1283 = vpop.f32.mrb[0].mxu0
  %1284 = vmatprep.mubr.bf16.mxu0 0
  %1285 = vmatmul.mubr.bf16.gmra.mrb[0].mxu0 %v818
  %v1286 = vpop.f32.mrb[0].mxu0
  %v1287 = vadd.f32 %v998, %v1286
  %v1288 = vpop.f32.mrb[0].mxu0
  %v1289 = vpop.f32.mrb[0].mxu0
  %v1290 = vadd.f32 %v1001, %v1289
  %v1291 = vpop.f32.mrb[0].mxu0
  %1292 = vmatprep.mubr.bf16.mxu0 0
  %1293 = vmatmul.mubr.bf16.gmra.mrb[0].mxu0 %v821
  %v1294 = vpop.f32.mrb[0].mxu0
  %v1295 = vadd.f32 %v1006, %v1294
  %v1296 = vpop.f32.mrb[0].mxu0
  %v1297 = vpop.f32.mrb[0].mxu0
  %v1298 = vadd.f32 %v1009, %v1297
  %v1299 = vpop.f32.mrb[0].mxu0
  %1300 = vmatprep.mubr.bf16.mxu0 0
  %1301 = vmatmul.mubr.bf16.gmra.mrb[0].mxu0 %v824
  %v1302 = vpop.f32.mrb[0].mxu0
  %v1303 = vadd.f32 %v1014, %v1302
  %v1304 = vpop.f32.mrb[0].mxu0
  %v1305 = vpop.f32.mrb[0].mxu0
  %v1306 = vadd.f32 %v1017, %v1305
  %v1307 = vpop.f32.mrb[0].mxu0
  %1308 = vmatprep.mubr.bf16.mxu0 0
  %1309 = vmatmul.mubr.bf16.gmra.mrb[0].mxu0 %v827
  %v1310 = vpop.f32.mrb[0].mxu0
  %v1311 = vadd.f32 %v1022, %v1310
  %v1312 = vpop.f32.mrb[0].mxu0
  %v1313 = vpop.f32.mrb[0].mxu0
  %v1314 = vadd.f32 %v1025, %v1313
  %v1315 = vpop.f32.mrb[0].mxu0
  %1316 = vmatprep.mubr.bf16.mxu0 0
  %1317 = vmatmul.mubr.bf16.gmra.mrb[0].mxu0 %v830
  %v1318 = vpop.f32.mrb[0].mxu0
  %v1319 = vadd.f32 %v1030, %v1318
  %v1320 = vpop.f32.mrb[0].mxu0
  %v1321 = vpop.f32.mrb[0].mxu0
  %v1322 = vadd.f32 %v1033, %v1321
  %v1323 = vpop.f32.mrb[0].mxu0
  %1324 = vmatprep.mubr.bf16.mxu0 0
  %1325 = vmatmul.mubr.bf16.gmra.mrb[0].mxu0 %v833
  %v1326 = vpop.f32.mrb[0].mxu0
  %v1327 = vadd.f32 %v1038, %v1326
  %v1328 = vpop.f32.mrb[0].mxu0
  %v1329 = vpop.f32.mrb[0].mxu0
  %v1330 = vadd.f32 %v1041, %v1329
  %v1331 = vpop.f32.mrb[0].mxu0
  %1332 = vmatprep.mubr.bf16.mxu0 0
  %1333 = vmatmul.mubr.bf16.gmra.mrb[0].mxu0 %v836
  %v1334 = vpop.f32.mrb[0].mxu0
  %v1335 = vadd.f32 %v1046, %v1334
  %v1336 = vpop.f32.mrb[0].mxu0
  %v1337 = vpop.f32.mrb[0].mxu0
  %v1338 = vadd.f32 %v1049, %v1337
  %v1339 = vpop.f32.mrb[0].mxu0
  %1340 = vmatprep.mubr.bf16.mxu0 0
  %1341 = vmatmul.mubr.bf16.gmra.mrb[0].mxu0 %v839
  %v1342 = vpop.f32.mrb[0].mxu0
  %v1343 = vadd.f32 %v1054, %v1342
  %v1344 = vpop.f32.mrb[0].mxu0
  %v1345 = vpop.f32.mrb[0].mxu0
  %v1346 = vadd.f32 %v1057, %v1345
  %v1347 = vpop.f32.mrb[0].mxu0
  %1348 = vmatprep.mubr.bf16.mxu0 0
  %1349 = vmatmul.mubr.bf16.gmra.mrb[0].mxu0 %v842
  %v1350 = vpop.f32.mrb[0].mxu0
  %v1351 = vadd.f32 %v1062, %v1350
  %v1352 = vpop.f32.mrb[0].mxu0
  %v1353 = vpop.f32.mrb[0].mxu0
  %v1354 = vadd.f32 %v1065, %v1353
  %v1355 = vpop.f32.mrb[0].mxu0
  %1356 = vmatprep.mubr.bf16.mxu0 0
  %1357 = vmatmul.mubr.bf16.gmra.mrb[0].mxu0 %v845
  %v1358 = vpop.f32.mrb[0].mxu0
  %v1359 = vadd.f32 %v1070, %v1358
  %v1360 = vpop.f32.mrb[0].mxu0
  %v1361 = vpop.f32.mrb[0].mxu0
  %v1362 = vadd.f32 %v1073, %v1361
  %v1363 = vpop.f32.mrb[0].mxu0
  %1364 = vmatprep.mubr.bf16.mxu0 0
  %1365 = vmatmul.mubr.bf16.gmra.mrb[0].mxu0 %v848
  %v1366 = vpop.f32.mrb[0].mxu0
  %v1367 = vadd.f32 %v1078, %v1366
  %v1368 = vpop.f32.mrb[0].mxu0
  %v1369 = vpop.f32.mrb[0].mxu0
  %v1370 = vadd.f32 %v1081, %v1369
  %v1371 = vpop.f32.mrb[0].mxu0
  %1372 = vmatprep.mubr.bf16.mxu0 0
  %1373 = vmatmul.mubr.bf16.gmra.mrb[0].mxu0 %v851
  %v1374 = vpop.f32.mrb[0].mxu0
  %v1375 = vadd.f32 %v1086, %v1374
  %v1376 = vpop.f32.mrb[0].mxu0
  %v1377 = vpop.f32.mrb[0].mxu0
  %v1378 = vadd.f32 %v1089, %v1377
  %v1379 = vpop.f32.mrb[0].mxu0
  %1380 = vmatprep.mubr.bf16.mxu0 0
  %1381 = vmatmul.mubr.bf16.gmra.mrb[0].mxu0 %v854
  %v1382 = vpop.f32.mrb[0].mxu0
  %v1383 = vadd.f32 %v1094, %v1382
  %v1384 = vpop.f32.mrb[0].mxu0
  %v1385 = vpop.f32.mrb[0].mxu0
  %v1386 = vadd.f32 %v1097, %v1385
  %v1387 = vpop.f32.mrb[0].mxu0
  %1388 = vmatprep.mubr.bf16.mxu0 0
  %1389 = vmatmul.mubr.bf16.gmra.mrb[0].mxu0 %v857
  %v1390 = vpop.f32.mrb[0].mxu0
  %v1391 = vadd.f32 %v1102, %v1390
  %v1392 = vpop.f32.mrb[0].mxu0
  %v1393 = vpop.f32.mrb[0].mxu0
  %v1394 = vadd.f32 %v1105, %v1393
  %v1395 = vpop.f32.mrb[0].mxu0
  %1396 = vmatprep.mubr.bf16.mxu0 0
  %1397 = vmatmul.mubr.bf16.gmra.mrb[0].mxu0 %v860
  %v1398 = vpop.f32.mrb[0].mxu0
  %v1399 = vadd.f32 %v1110, %v1398
  %v1400 = vpop.f32.mrb[0].mxu0
  %v1401 = vpop.f32.mrb[0].mxu0
  %v1402 = vadd.f32 %v1113, %v1401
  %v1403 = vpop.f32.mrb[0].mxu0
  %1404 = vmatprep.mubr.bf16.mxu0 0
  %1405 = vmatmul.mubr.bf16.gmra.mrb[0].mxu0 %v863
  %v1406 = vpop.f32.mrb[0].mxu0
  %v1407 = vadd.f32 %v1118, %v1406
  %v1408 = vpop.f32.mrb[0].mxu0
  %v1409 = vpop.f32.mrb[0].mxu0
  %v1410 = vadd.f32 %v1121, %v1409
  %v1411 = vpop.f32.mrb[0].mxu0
  %1412 = vmatprep.mubr.bf16.mxu0 0
  %1413 = vmatmul.mubr.bf16.gmra.mrb[0].mxu0 %v866
  %v1414 = vpop.f32.mrb[0].mxu0
  %v1415 = vadd.f32 %v1126, %v1414
  %v1416 = vpop.f32.mrb[0].mxu0
  %v1417 = vpop.f32.mrb[0].mxu0
  %v1418 = vadd.f32 %v1129, %v1417
  %v1419 = vpop.f32.mrb[0].mxu0
  %1420 = vmatprep.mubr.bf16.mxu0 0
  %1421 = vmatmul.mubr.bf16.gmra.mrb[0].mxu0 %v869
  %v1422 = vpop.f32.mrb[0].mxu0
  %v1423 = vadd.f32 %v1134, %v1422
  %v1424 = vpop.f32.mrb[0].mxu0
  %v1425 = vpop.f32.mrb[0].mxu0
  %v1426 = vadd.f32 %v1137, %v1425
  %v1427 = vpop.f32.mrb[0].mxu0
  %1428 = vmatprep.mubr.bf16.mxu0 0
  %1429 = vmatmul.mubr.bf16.gmra.mrb[0].mxu0 %v872
  %v1430 = vpop.f32.mrb[0].mxu0
  %v1431 = vadd.f32 %v1142, %v1430
  %v1432 = vpop.f32.mrb[0].mxu0
  %v1433 = vpop.f32.mrb[0].mxu0
  %v1434 = vadd.f32 %v1145, %v1433
  %v1435 = vpop.f32.mrb[0].mxu0
  %1436 = vmatprep.mubr.bf16.mxu0 0
  %1437 = vmatmul.mubr.bf16.gmra.mrb[0].mxu0 %v875
  %v1438 = vpop.f32.mrb[0].mxu0
  %v1439 = vadd.f32 %v1150, %v1438
  %v1440 = vpop.f32.mrb[0].mxu0
  %v1441 = vpop.f32.mrb[0].mxu0
  %v1442 = vadd.f32 %v1153, %v1441
  %v1443 = vpop.f32.mrb[0].mxu0
  %1444 = vmatprep.mubr.bf16.mxu0 0
  %1445 = vmatmul.mubr.bf16.gmra.mrb[0].mxu0 %v878
  %v1446 = vpop.f32.mrb[0].mxu0
  %v1447 = vadd.f32 %v1158, %v1446
  %v1448 = vpop.f32.mrb[0].mxu0
  %v1449 = vpop.f32.mrb[0].mxu0
  %v1450 = vadd.f32 %v1161, %v1449
  %v1451 = vpop.f32.mrb[0].mxu0
  %1452 = vmatprep.mubr.bf16.mxu0 0
  %1453 = vmatmul.mubr.bf16.gmra.mrb[0].mxu0 %v881
  %v1454 = vpop.f32.mrb[0].mxu0
  %v1455 = vadd.f32 %v1166, %v1454
  %v1456 = vpop.f32.mrb[0].mxu0
  %v1457 = vpop.f32.mrb[0].mxu0
  %v1458 = vadd.f32 %v1169, %v1457
  %v1459 = vpop.f32.mrb[0].mxu0
  %1460 = vdwg.mxu0
  %v1461 = vld [vmem:[%s3] sm:$0xff]
  %v1462 = vld [vmem:[%s3 + $0x8] sm:$0xff]
  %v1463 = vld [vmem:[%s3 + $0x10] sm:$0xff]
  %v1464 = vld [vmem:[%s3 + $0x18] sm:$0xff]
  %v1465 = vld [vmem:[%s3 + $0x20] sm:$0xff]
  %v1466 = vld [vmem:[%s3 + $0x28] sm:$0xff]
  %v1467 = vld [vmem:[%s3 + $0x30] sm:$0xff]
  %v1468 = vld [vmem:[%s3 + $0x38] sm:$0xff]
  %v1469 = vld [vmem:[%s3 + $0x40] sm:$0xff]
  %v1470 = vld [vmem:[%s3 + $0x48] sm:$0xff]
  %v1471 = vld [vmem:[%s3 + $0x50] sm:$0xff]
  %v1472 = vld [vmem:[%s3 + $0x58] sm:$0xff]
  %v1473 = vld [vmem:[%s3 + $0x60] sm:$0xff]
  %v1474 = vld [vmem:[%s3 + $0x68] sm:$0xff]
  %v1475 = vld [vmem:[%s3 + $0x70] sm:$0xff]
  %v1476 = vld [vmem:[%s3 + $0x78] sm:$0xff]
  %v1477 = vld [vmem:[%s3 + $0x80] sm:$0xff]
  %v1478 = vld [vmem:[%s3 + $0x88] sm:$0xff]
  %v1479 = vld [vmem:[%s3 + $0x90] sm:$0xff]
  %v1480 = vld [vmem:[%s3 + $0x98] sm:$0xff]
  %v1481 = vld [vmem:[%s3 + $0xa0] sm:$0xff]
  %v1482 = vld [vmem:[%s3 + $0xa8] sm:$0xff]
  %v1483 = vld [vmem:[%s3 + $0xb0] sm:$0xff]
  %v1484 = vld [vmem:[%s3 + $0xb8] sm:$0xff]
  %v1485 = vld [vmem:[%s3 + $0xc0] sm:$0xff]
  %v1486 = vld [vmem:[%s3 + $0xc8] sm:$0xff]
  %v1487 = vld [vmem:[%s3 + $0xd0] sm:$0xff]
  %v1488 = vld [vmem:[%s3 + $0xd8] sm:$0xff]
  %v1489 = vld [vmem:[%s3 + $0xe0] sm:$0xff]
  %v1490 = vld [vmem:[%s3 + $0xe8] sm:$0xff]
  %v1491 = vld [vmem:[%s3 + $0xf0] sm:$0xff]
  %v1492 = vld [vmem:[%s3 + $0xf8] sm:$0xff]
  %v1493 = vld [vmem:[%s3 + $0x100] sm:$0xff]
  %v1494 = vld [vmem:[%s3 + $0x108] sm:$0xff]
  %v1495 = vld [vmem:[%s3 + $0x110] sm:$0xff]
  %v1496 = vld [vmem:[%s3 + $0x118] sm:$0xff]
  %v1497 = vld [vmem:[%s3 + $0x120] sm:$0xff]
  %v1498 = vld [vmem:[%s3 + $0x128] sm:$0xff]
  %v1499 = vld [vmem:[%s3 + $0x130] sm:$0xff]
  %v1500 = vld [vmem:[%s3 + $0x138] sm:$0xff]
  %v1501 = vld [vmem:[%s3 + $0x140] sm:$0xff]
  %v1502 = vld [vmem:[%s3 + $0x148] sm:$0xff]
  %v1503 = vld [vmem:[%s3 + $0x150] sm:$0xff]
  %v1504 = vld [vmem:[%s3 + $0x158] sm:$0xff]
  %v1505 = vld [vmem:[%s3 + $0x160] sm:$0xff]
  %v1506 = vld [vmem:[%s3 + $0x168] sm:$0xff]
  %v1507 = vld [vmem:[%s3 + $0x170] sm:$0xff]
  %v1508 = vld [vmem:[%s3 + $0x178] sm:$0xff]
  %v1509 = vld [vmem:[%s3 + $0x180] sm:$0xff]
  %v1510 = vld [vmem:[%s3 + $0x188] sm:$0xff]
  %v1511 = vld [vmem:[%s3 + $0x190] sm:$0xff]
  %v1512 = vld [vmem:[%s3 + $0x198] sm:$0xff]
  %v1513 = vld [vmem:[%s3 + $0x1a0] sm:$0xff]
  %v1514 = vld [vmem:[%s3 + $0x1a8] sm:$0xff]
  %v1515 = vld [vmem:[%s3 + $0x1b0] sm:$0xff]
  %v1516 = vld [vmem:[%s3 + $0x1b8] sm:$0xff]
  %v1517 = vld [vmem:[%s3 + $0x1c0] sm:$0xff]
  %v1518 = vld [vmem:[%s3 + $0x1c8] sm:$0xff]
  %v1519 = vld [vmem:[%s3 + $0x1d0] sm:$0xff]
  %v1520 = vld [vmem:[%s3 + $0x1d8] sm:$0xff]
  %v1521 = vld [vmem:[%s3 + $0x1e0] sm:$0xff]
  %v1522 = vld [vmem:[%s3 + $0x1e8] sm:$0xff]
  %v1523 = vld [vmem:[%s3 + $0x1f0] sm:$0xff]
  %v1524 = vld [vmem:[%s3 + $0x1f8] sm:$0xff]
  %v1525 = vld [vmem:[%s4] sm:$0xff]
  %v1526 = vld [vmem:[%s4 + $0x8] sm:$0xff]
  %v1527 = vld [vmem:[%s4 + $0x10] sm:$0xff]
  %v1528 = vld [vmem:[%s4 + $0x18] sm:$0xff]
  %v1529 = vld [vmem:[%s4 + $0x20] sm:$0xff]
  %v1530 = vld [vmem:[%s4 + $0x28] sm:$0xff]
  %v1531 = vld [vmem:[%s4 + $0x30] sm:$0xff]
  %v1532 = vld [vmem:[%s4 + $0x38] sm:$0xff]
  %v1533 = vld [vmem:[%s4 + $0x40] sm:$0xff]
  %v1534 = vld [vmem:[%s4 + $0x48] sm:$0xff]
  %v1535 = vld [vmem:[%s4 + $0x50] sm:$0xff]
  %v1536 = vld [vmem:[%s4 + $0x58] sm:$0xff]
  %v1537 = vld [vmem:[%s4 + $0x60] sm:$0xff]
  %v1538 = vld [vmem:[%s4 + $0x68] sm:$0xff]
  %v1539 = vld [vmem:[%s4 + $0x70] sm:$0xff]
  %v1540 = vld [vmem:[%s4 + $0x78] sm:$0xff]
  %v1541 = vmul.f32 %v1207, %v1461
  %v1542 = vmul.f32 %v1210, %v1462
  %v1543 = vmul.f32 %v1215, %v1463
  %v1544 = vmul.f32 %v1218, %v1464
  %v1545 = vmul.f32 %v1223, %v1465
  %v1546 = vmul.f32 %v1226, %v1466
  %v1547 = vmul.f32 %v1231, %v1467
  %v1548 = vmul.f32 %v1234, %v1468
  %v1549 = vmul.f32 %v1239, %v1469
  %v1550 = vmul.f32 %v1242, %v1470
  %v1551 = vmul.f32 %v1247, %v1471
  %v1552 = vmul.f32 %v1250, %v1472
  %v1553 = vmul.f32 %v1255, %v1473
  %v1554 = vmul.f32 %v1258, %v1474
  %v1555 = vmul.f32 %v1263, %v1475
  %v1556 = vmul.f32 %v1266, %v1476
  %v1557 = vmul.f32 %v1271, %v1477
  %v1558 = vmul.f32 %v1274, %v1478
  %v1559 = vmul.f32 %v1279, %v1479
  %v1560 = vmul.f32 %v1282, %v1480
  %v1561 = vmul.f32 %v1287, %v1481
  %v1562 = vmul.f32 %v1290, %v1482
  %v1563 = vmul.f32 %v1295, %v1483
  %v1564 = vmul.f32 %v1298, %v1484
  %v1565 = vmul.f32 %v1303, %v1485
  %v1566 = vmul.f32 %v1306, %v1486
  %v1567 = vmul.f32 %v1311, %v1487
  %v1568 = vmul.f32 %v1314, %v1488
  %v1569 = vmul.f32 %v1319, %v1489
  %v1570 = vmul.f32 %v1322, %v1490
  %v1571 = vmul.f32 %v1327, %v1491
  %v1572 = vmul.f32 %v1330, %v1492
  %v1573 = vmul.f32 %v1335, %v1493
  %v1574 = vmul.f32 %v1338, %v1494
  %v1575 = vmul.f32 %v1343, %v1495
  %v1576 = vmul.f32 %v1346, %v1496
  %v1577 = vmul.f32 %v1351, %v1497
  %v1578 = vmul.f32 %v1354, %v1498
  %v1579 = vmul.f32 %v1359, %v1499
  %v1580 = vmul.f32 %v1362, %v1500
  %v1581 = vmul.f32 %v1367, %v1501
  %v1582 = vmul.f32 %v1370, %v1502
  %v1583 = vmul.f32 %v1375, %v1503
  %v1584 = vmul.f32 %v1378, %v1504
  %v1585 = vmul.f32 %v1383, %v1505
  %v1586 = vmul.f32 %v1386, %v1506
  %v1587 = vmul.f32 %v1391, %v1507
  %v1588 = vmul.f32 %v1394, %v1508
  %v1589 = vmul.f32 %v1399, %v1509
  %v1590 = vmul.f32 %v1402, %v1510
  %v1591 = vmul.f32 %v1407, %v1511
  %v1592 = vmul.f32 %v1410, %v1512
  %v1593 = vmul.f32 %v1415, %v1513
  %v1594 = vmul.f32 %v1418, %v1514
  %v1595 = vmul.f32 %v1423, %v1515
  %v1596 = vmul.f32 %v1426, %v1516
  %v1597 = vmul.f32 %v1431, %v1517
  %v1598 = vmul.f32 %v1434, %v1518
  %v1599 = vmul.f32 %v1439, %v1519
  %v1600 = vmul.f32 %v1442, %v1520
  %v1601 = vmul.f32 %v1447, %v1521
  %v1602 = vmul.f32 %v1450, %v1522
  %v1603 = vmul.f32 %v1455, %v1523
  %v1604 = vmul.f32 %v1458, %v1524
  %1605 = vmatprep.subr.mxu0 0.0
  %1606 = vmatpush1.msra.mxu0 %v1525
  %1607 = vmatprep.subr.mxu0 0.0
  %1608 = vmatpush1.msra.mxu0 %v1526
  %1609 = vmatprep.subr.mxu0 0.0
  %1610 = vmatpush1.msra.mxu0 %v1527
  %1611 = vmatprep.subr.mxu0 0.0
  %1612 = vmatpush1.msra.mxu0 %v1528
  %1613 = vmatprep.subr.mxu0 0.0
  %1614 = vmatpush1.msra.mxu0 %v1529
  %1615 = vmatprep.subr.mxu0 0.0
  %1616 = vmatpush1.msra.mxu0 %v1530
  %1617 = vmatprep.subr.mxu0 0.0
  %1618 = vmatpush1.msra.mxu0 %v1531
  %1619 = vmatprep.subr.mxu0 0.0
  %1620 = vmatpush1.msra.mxu0 %v1532
  %1621 = vmatprep.subr.mxu0 0.0
  %1622 = vmatpush1.msra.mxu0 %v1533
  %1623 = vmatprep.subr.mxu0 0.0
  %1624 = vmatpush1.msra.mxu0 %v1534
  %1625 = vmatprep.subr.mxu0 0.0
  %1626 = vmatpush1.msra.mxu0 %v1535
  %1627 = vmatprep.subr.mxu0 0.0
  %1628 = vmatpush1.msra.mxu0 %v1536
  %1629 = vmatprep.subr.mxu0 0.0
  %1630 = vmatpush1.msra.mxu0 %v1537
  %1631 = vmatprep.subr.mxu0 0.0
  %1632 = vmatpush1.msra.mxu0 %v1538
  %1633 = vmatprep.subr.mxu0 0.0
  %1634 = vmatpush1.msra.mxu0 %v1539
  %1635 = vmatprep.subr.mxu0 0.0
  %1636 = vmatpush1.msra.mxu0 %v1540
  %1637 = vmatprep.subr.mxu0 0.0
  %1638 = vmatpush1.msra.mxu0 0.0
  %1639 = vmatprep.subr.mxu0 0.0
  %1640 = vmatpush1.msra.mxu0 0.0
  %1641 = vmatprep.subr.mxu0 0.0
  %1642 = vmatpush1.msra.mxu0 0.0
  %1643 = vmatprep.subr.mxu0 0.0
  %1644 = vmatpush1.msra.mxu0 0.0
  %1645 = vmatprep.subr.mxu0 0.0
  %1646 = vmatpush1.msra.mxu0 0.0
  %1647 = vmatprep.subr.mxu0 0.0
  %1648 = vmatpush1.msra.mxu0 0.0
  %1649 = vmatprep.subr.mxu0 0.0
  %1650 = vmatpush1.msra.mxu0 0.0
  %1651 = vmatprep.subr.mxu0 0.0
  %1652 = vmatpush1.msra.mxu0 0.0
  %1653 = vmatprep.subr.mxu0 0.0
  %1654 = vmatpush1.msra.mxu0 0.0
  %1655 = vmatprep.subr.mxu0 0.0
  %1656 = vmatpush1.msra.mxu0 0.0
  %1657 = vmatprep.subr.mxu0 0.0
  %1658 = vmatpush1.msra.mxu0 0.0
  %1659 = vmatprep.subr.mxu0 0.0
  %1660 = vmatpush1.msra.mxu0 0.0
  %1661 = vmatprep.subr.mxu0 0.0
  %1662 = vmatpush1.msra.mxu0 0.0
  %1663 = vmatprep.subr.mxu0 0.0
  %1664 = vmatpush1.msra.mxu0 0.0
  %1665 = vmatprep.subr.mxu0 0.0
  %1666 = vmatpush1.msra.mxu0 0.0
  %1667 = vmatprep.subr.mxu0 0.0
  %1668 = vmatpush1.msra.mxu0 0.0
  %1669 = vmatprep.mubr.f32.mxu0 0.0
  %1670 = vmatmul.mubr.f32.gmra.mrb[0].mxu0 %v1541
  %v1671 = vpop.f32.mrb[0].mxu0
  %v1672 = vadd.f32 0.0, %v1671
  %v1673 = vpop.f32.mrb[0].mxu0
  %1674 = vmatprep.mubr.f32.mxu0 0.0
  %1675 = vmatmul.mubr.f32.gmra.mrb[0].mxu0 %v1542
  %v1676 = vpop.f32.mrb[0].mxu0
  %v1677 = vadd.f32 0.0, %v1676
  %v1678 = vpop.f32.mrb[0].mxu0
  %1679 = vmatprep.mubr.f32.mxu0 0.0
  %1680 = vmatmul.mubr.f32.gmra.mrb[0].mxu0 %v1543
  %v1681 = vpop.f32.mrb[0].mxu0
  %v1682 = vadd.f32 0.0, %v1681
  %v1683 = vpop.f32.mrb[0].mxu0
  %1684 = vmatprep.mubr.f32.mxu0 0.0
  %1685 = vmatmul.mubr.f32.gmra.mrb[0].mxu0 %v1544
  %v1686 = vpop.f32.mrb[0].mxu0
  %v1687 = vadd.f32 0.0, %v1686
  %v1688 = vpop.f32.mrb[0].mxu0
  %1689 = vmatprep.mubr.f32.mxu0 0.0
  %1690 = vmatmul.mubr.f32.gmra.mrb[0].mxu0 %v1545
  %v1691 = vpop.f32.mrb[0].mxu0
  %v1692 = vadd.f32 0.0, %v1691
  %v1693 = vpop.f32.mrb[0].mxu0
  %1694 = vmatprep.mubr.f32.mxu0 0.0
  %1695 = vmatmul.mubr.f32.gmra.mrb[0].mxu0 %v1546
  %v1696 = vpop.f32.mrb[0].mxu0
  %v1697 = vadd.f32 0.0, %v1696
  %v1698 = vpop.f32.mrb[0].mxu0
  %1699 = vmatprep.mubr.f32.mxu0 0.0
  %1700 = vmatmul.mubr.f32.gmra.mrb[0].mxu0 %v1547
  %v1701 = vpop.f32.mrb[0].mxu0
  %v1702 = vadd.f32 0.0, %v1701
  %v1703 = vpop.f32.mrb[0].mxu0
  %1704 = vmatprep.mubr.f32.mxu0 0.0
  %1705 = vmatmul.mubr.f32.gmra.mrb[0].mxu0 %v1548
  %v1706 = vpop.f32.mrb[0].mxu0
  %v1707 = vadd.f32 0.0, %v1706
  %v1708 = vpop.f32.mrb[0].mxu0
  %1709 = vmatprep.mubr.f32.mxu0 0.0
  %1710 = vmatmul.mubr.f32.gmra.mrb[0].mxu0 %v1549
  %v1711 = vpop.f32.mrb[0].mxu0
  %v1712 = vadd.f32 0.0, %v1711
  %v1713 = vpop.f32.mrb[0].mxu0
  %1714 = vmatprep.mubr.f32.mxu0 0.0
  %1715 = vmatmul.mubr.f32.gmra.mrb[0].mxu0 %v1550
  %v1716 = vpop.f32.mrb[0].mxu0
  %v1717 = vadd.f32 0.0, %v1716
  %v1718 = vpop.f32.mrb[0].mxu0
  %1719 = vmatprep.mubr.f32.mxu0 0.0
  %1720 = vmatmul.mubr.f32.gmra.mrb[0].mxu0 %v1551
  %v1721 = vpop.f32.mrb[0].mxu0
  %v1722 = vadd.f32 0.0, %v1721
  %v1723 = vpop.f32.mrb[0].mxu0
  %1724 = vmatprep.mubr.f32.mxu0 0.0
  %1725 = vmatmul.mubr.f32.gmra.mrb[0].mxu0 %v1552
  %v1726 = vpop.f32.mrb[0].mxu0
  %v1727 = vadd.f32 0.0, %v1726
  %v1728 = vpop.f32.mrb[0].mxu0
  %1729 = vmatprep.mubr.f32.mxu0 0.0
  %1730 = vmatmul.mubr.f32.gmra.mrb[0].mxu0 %v1553
  %v1731 = vpop.f32.mrb[0].mxu0
  %v1732 = vadd.f32 0.0, %v1731
  %v1733 = vpop.f32.mrb[0].mxu0
  %1734 = vmatprep.mubr.f32.mxu0 0.0
  %1735 = vmatmul.mubr.f32.gmra.mrb[0].mxu0 %v1554
  %v1736 = vpop.f32.mrb[0].mxu0
  %v1737 = vadd.f32 0.0, %v1736
  %v1738 = vpop.f32.mrb[0].mxu0
  %1739 = vmatprep.mubr.f32.mxu0 0.0
  %1740 = vmatmul.mubr.f32.gmra.mrb[0].mxu0 %v1555
  %v1741 = vpop.f32.mrb[0].mxu0
  %v1742 = vadd.f32 0.0, %v1741
  %v1743 = vpop.f32.mrb[0].mxu0
  %1744 = vmatprep.mubr.f32.mxu0 0.0
  %1745 = vmatmul.mubr.f32.gmra.mrb[0].mxu0 %v1556
  %v1746 = vpop.f32.mrb[0].mxu0
  %v1747 = vadd.f32 0.0, %v1746
  %v1748 = vpop.f32.mrb[0].mxu0
  %1749 = vmatprep.mubr.f32.mxu0 0.0
  %1750 = vmatmul.mubr.f32.gmra.mrb[0].mxu0 %v1557
  %v1751 = vpop.f32.mrb[0].mxu0
  %v1752 = vadd.f32 0.0, %v1751
  %v1753 = vpop.f32.mrb[0].mxu0
  %1754 = vmatprep.mubr.f32.mxu0 0.0
  %1755 = vmatmul.mubr.f32.gmra.mrb[0].mxu0 %v1558
  %v1756 = vpop.f32.mrb[0].mxu0
  %v1757 = vadd.f32 0.0, %v1756
  %v1758 = vpop.f32.mrb[0].mxu0
  %1759 = vmatprep.mubr.f32.mxu0 0.0
  %1760 = vmatmul.mubr.f32.gmra.mrb[0].mxu0 %v1559
  %v1761 = vpop.f32.mrb[0].mxu0
  %v1762 = vadd.f32 0.0, %v1761
  %v1763 = vpop.f32.mrb[0].mxu0
  %1764 = vmatprep.mubr.f32.mxu0 0.0
  %1765 = vmatmul.mubr.f32.gmra.mrb[0].mxu0 %v1560
  %v1766 = vpop.f32.mrb[0].mxu0
  %v1767 = vadd.f32 0.0, %v1766
  %v1768 = vpop.f32.mrb[0].mxu0
  %1769 = vmatprep.mubr.f32.mxu0 0.0
  %1770 = vmatmul.mubr.f32.gmra.mrb[0].mxu0 %v1561
  %v1771 = vpop.f32.mrb[0].mxu0
  %v1772 = vadd.f32 0.0, %v1771
  %v1773 = vpop.f32.mrb[0].mxu0
  %1774 = vmatprep.mubr.f32.mxu0 0.0
  %1775 = vmatmul.mubr.f32.gmra.mrb[0].mxu0 %v1562
  %v1776 = vpop.f32.mrb[0].mxu0
  %v1777 = vadd.f32 0.0, %v1776
  %v1778 = vpop.f32.mrb[0].mxu0
  %1779 = vmatprep.mubr.f32.mxu0 0.0
  %1780 = vmatmul.mubr.f32.gmra.mrb[0].mxu0 %v1563
  %v1781 = vpop.f32.mrb[0].mxu0
  %v1782 = vadd.f32 0.0, %v1781
  %v1783 = vpop.f32.mrb[0].mxu0
  %1784 = vmatprep.mubr.f32.mxu0 0.0
  %1785 = vmatmul.mubr.f32.gmra.mrb[0].mxu0 %v1564
  %v1786 = vpop.f32.mrb[0].mxu0
  %v1787 = vadd.f32 0.0, %v1786
  %v1788 = vpop.f32.mrb[0].mxu0
  %1789 = vmatprep.mubr.f32.mxu0 0.0
  %1790 = vmatmul.mubr.f32.gmra.mrb[0].mxu0 %v1565
  %v1791 = vpop.f32.mrb[0].mxu0
  %v1792 = vadd.f32 0.0, %v1791
  %v1793 = vpop.f32.mrb[0].mxu0
  %1794 = vmatprep.mubr.f32.mxu0 0.0
  %1795 = vmatmul.mubr.f32.gmra.mrb[0].mxu0 %v1566
  %v1796 = vpop.f32.mrb[0].mxu0
  %v1797 = vadd.f32 0.0, %v1796
  %v1798 = vpop.f32.mrb[0].mxu0
  %1799 = vmatprep.mubr.f32.mxu0 0.0
  %1800 = vmatmul.mubr.f32.gmra.mrb[0].mxu0 %v1567
  %v1801 = vpop.f32.mrb[0].mxu0
  %v1802 = vadd.f32 0.0, %v1801
  %v1803 = vpop.f32.mrb[0].mxu0
  %1804 = vmatprep.mubr.f32.mxu0 0.0
  %1805 = vmatmul.mubr.f32.gmra.mrb[0].mxu0 %v1568
  %v1806 = vpop.f32.mrb[0].mxu0
  %v1807 = vadd.f32 0.0, %v1806
  %v1808 = vpop.f32.mrb[0].mxu0
  %1809 = vmatprep.mubr.f32.mxu0 0.0
  %1810 = vmatmul.mubr.f32.gmra.mrb[0].mxu0 %v1569
  %v1811 = vpop.f32.mrb[0].mxu0
  %v1812 = vadd.f32 0.0, %v1811
  %v1813 = vpop.f32.mrb[0].mxu0
  %1814 = vmatprep.mubr.f32.mxu0 0.0
  %1815 = vmatmul.mubr.f32.gmra.mrb[0].mxu0 %v1570
  %v1816 = vpop.f32.mrb[0].mxu0
  %v1817 = vadd.f32 0.0, %v1816
  %v1818 = vpop.f32.mrb[0].mxu0
  %1819 = vmatprep.mubr.f32.mxu0 0.0
  %1820 = vmatmul.mubr.f32.gmra.mrb[0].mxu0 %v1571
  %v1821 = vpop.f32.mrb[0].mxu0
  %v1822 = vadd.f32 0.0, %v1821
  %v1823 = vpop.f32.mrb[0].mxu0
  %1824 = vmatprep.mubr.f32.mxu0 0.0
  %1825 = vmatmul.mubr.f32.gmra.mrb[0].mxu0 %v1572
  %v1826 = vpop.f32.mrb[0].mxu0
  %v1827 = vadd.f32 0.0, %v1826
  %v1828 = vpop.f32.mrb[0].mxu0
  %1829 = vmatprep.mubr.f32.mxu0 0.0
  %1830 = vmatmul.mubr.f32.gmra.mrb[0].mxu0 %v1573
  %v1831 = vpop.f32.mrb[0].mxu0
  %v1832 = vadd.f32 0.0, %v1831
  %v1833 = vpop.f32.mrb[0].mxu0
  %1834 = vmatprep.mubr.f32.mxu0 0.0
  %1835 = vmatmul.mubr.f32.gmra.mrb[0].mxu0 %v1574
  %v1836 = vpop.f32.mrb[0].mxu0
  %v1837 = vadd.f32 0.0, %v1836
  %v1838 = vpop.f32.mrb[0].mxu0
  %1839 = vmatprep.mubr.f32.mxu0 0.0
  %1840 = vmatmul.mubr.f32.gmra.mrb[0].mxu0 %v1575
  %v1841 = vpop.f32.mrb[0].mxu0
  %v1842 = vadd.f32 0.0, %v1841
  %v1843 = vpop.f32.mrb[0].mxu0
  %1844 = vmatprep.mubr.f32.mxu0 0.0
  %1845 = vmatmul.mubr.f32.gmra.mrb[0].mxu0 %v1576
  %v1846 = vpop.f32.mrb[0].mxu0
  %v1847 = vadd.f32 0.0, %v1846
  %v1848 = vpop.f32.mrb[0].mxu0
  %1849 = vmatprep.mubr.f32.mxu0 0.0
  %1850 = vmatmul.mubr.f32.gmra.mrb[0].mxu0 %v1577
  %v1851 = vpop.f32.mrb[0].mxu0
  %v1852 = vadd.f32 0.0, %v1851
  %v1853 = vpop.f32.mrb[0].mxu0
  %1854 = vmatprep.mubr.f32.mxu0 0.0
  %1855 = vmatmul.mubr.f32.gmra.mrb[0].mxu0 %v1578
  %v1856 = vpop.f32.mrb[0].mxu0
  %v1857 = vadd.f32 0.0, %v1856
  %v1858 = vpop.f32.mrb[0].mxu0
  %1859 = vmatprep.mubr.f32.mxu0 0.0
  %1860 = vmatmul.mubr.f32.gmra.mrb[0].mxu0 %v1579
  %v1861 = vpop.f32.mrb[0].mxu0
  %v1862 = vadd.f32 0.0, %v1861
  %v1863 = vpop.f32.mrb[0].mxu0
  %1864 = vmatprep.mubr.f32.mxu0 0.0
  %1865 = vmatmul.mubr.f32.gmra.mrb[0].mxu0 %v1580
  %v1866 = vpop.f32.mrb[0].mxu0
  %v1867 = vadd.f32 0.0, %v1866
  %v1868 = vpop.f32.mrb[0].mxu0
  %1869 = vmatprep.mubr.f32.mxu0 0.0
  %1870 = vmatmul.mubr.f32.gmra.mrb[0].mxu0 %v1581
  %v1871 = vpop.f32.mrb[0].mxu0
  %v1872 = vadd.f32 0.0, %v1871
  %v1873 = vpop.f32.mrb[0].mxu0
  %1874 = vmatprep.mubr.f32.mxu0 0.0
  %1875 = vmatmul.mubr.f32.gmra.mrb[0].mxu0 %v1582
  %v1876 = vpop.f32.mrb[0].mxu0
  %v1877 = vadd.f32 0.0, %v1876
  %v1878 = vpop.f32.mrb[0].mxu0
  %1879 = vmatprep.mubr.f32.mxu0 0.0
  %1880 = vmatmul.mubr.f32.gmra.mrb[0].mxu0 %v1583
  %v1881 = vpop.f32.mrb[0].mxu0
  %v1882 = vadd.f32 0.0, %v1881
  %v1883 = vpop.f32.mrb[0].mxu0
  %1884 = vmatprep.mubr.f32.mxu0 0.0
  %1885 = vmatmul.mubr.f32.gmra.mrb[0].mxu0 %v1584
  %v1886 = vpop.f32.mrb[0].mxu0
  %v1887 = vadd.f32 0.0, %v1886
  %v1888 = vpop.f32.mrb[0].mxu0
  %1889 = vmatprep.mubr.f32.mxu0 0.0
  %1890 = vmatmul.mubr.f32.gmra.mrb[0].mxu0 %v1585
  %v1891 = vpop.f32.mrb[0].mxu0
  %v1892 = vadd.f32 0.0, %v1891
  %v1893 = vpop.f32.mrb[0].mxu0
  %1894 = vmatprep.mubr.f32.mxu0 0.0
  %1895 = vmatmul.mubr.f32.gmra.mrb[0].mxu0 %v1586
  %v1896 = vpop.f32.mrb[0].mxu0
  %v1897 = vadd.f32 0.0, %v1896
  %v1898 = vpop.f32.mrb[0].mxu0
  %1899 = vmatprep.mubr.f32.mxu0 0.0
  %1900 = vmatmul.mubr.f32.gmra.mrb[0].mxu0 %v1587
  %v1901 = vpop.f32.mrb[0].mxu0
  %v1902 = vadd.f32 0.0, %v1901
  %v1903 = vpop.f32.mrb[0].mxu0
  %1904 = vmatprep.mubr.f32.mxu0 0.0
  %1905 = vmatmul.mubr.f32.gmra.mrb[0].mxu0 %v1588
  %v1906 = vpop.f32.mrb[0].mxu0
  %v1907 = vadd.f32 0.0, %v1906
  %v1908 = vpop.f32.mrb[0].mxu0
  %1909 = vmatprep.mubr.f32.mxu0 0.0
  %1910 = vmatmul.mubr.f32.gmra.mrb[0].mxu0 %v1589
  %v1911 = vpop.f32.mrb[0].mxu0
  %v1912 = vadd.f32 0.0, %v1911
  %v1913 = vpop.f32.mrb[0].mxu0
  %1914 = vmatprep.mubr.f32.mxu0 0.0
  %1915 = vmatmul.mubr.f32.gmra.mrb[0].mxu0 %v1590
  %v1916 = vpop.f32.mrb[0].mxu0
  %v1917 = vadd.f32 0.0, %v1916
  %v1918 = vpop.f32.mrb[0].mxu0
  %1919 = vmatprep.mubr.f32.mxu0 0.0
  %1920 = vmatmul.mubr.f32.gmra.mrb[0].mxu0 %v1591
  %v1921 = vpop.f32.mrb[0].mxu0
  %v1922 = vadd.f32 0.0, %v1921
  %v1923 = vpop.f32.mrb[0].mxu0
  %1924 = vmatprep.mubr.f32.mxu0 0.0
  %1925 = vmatmul.mubr.f32.gmra.mrb[0].mxu0 %v1592
  %v1926 = vpop.f32.mrb[0].mxu0
  %v1927 = vadd.f32 0.0, %v1926
  %v1928 = vpop.f32.mrb[0].mxu0
  %1929 = vmatprep.mubr.f32.mxu0 0.0
  %1930 = vmatmul.mubr.f32.gmra.mrb[0].mxu0 %v1593
  %v1931 = vpop.f32.mrb[0].mxu0
  %v1932 = vadd.f32 0.0, %v1931
  %v1933 = vpop.f32.mrb[0].mxu0
  %1934 = vmatprep.mubr.f32.mxu0 0.0
  %1935 = vmatmul.mubr.f32.gmra.mrb[0].mxu0 %v1594
  %v1936 = vpop.f32.mrb[0].mxu0
  %v1937 = vadd.f32 0.0, %v1936
  %v1938 = vpop.f32.mrb[0].mxu0
  %1939 = vmatprep.mubr.f32.mxu0 0.0
  %1940 = vmatmul.mubr.f32.gmra.mrb[0].mxu0 %v1595
  %v1941 = vpop.f32.mrb[0].mxu0
  %v1942 = vadd.f32 0.0, %v1941
  %v1943 = vpop.f32.mrb[0].mxu0
  %1944 = vmatprep.mubr.f32.mxu0 0.0
  %1945 = vmatmul.mubr.f32.gmra.mrb[0].mxu0 %v1596
  %v1946 = vpop.f32.mrb[0].mxu0
  %v1947 = vadd.f32 0.0, %v1946
  %v1948 = vpop.f32.mrb[0].mxu0
  %1949 = vmatprep.mubr.f32.mxu0 0.0
  %1950 = vmatmul.mubr.f32.gmra.mrb[0].mxu0 %v1597
  %v1951 = vpop.f32.mrb[0].mxu0
  %v1952 = vadd.f32 0.0, %v1951
  %v1953 = vpop.f32.mrb[0].mxu0
  %1954 = vmatprep.mubr.f32.mxu0 0.0
  %1955 = vmatmul.mubr.f32.gmra.mrb[0].mxu0 %v1598
  %v1956 = vpop.f32.mrb[0].mxu0
  %v1957 = vadd.f32 0.0, %v1956
  %v1958 = vpop.f32.mrb[0].mxu0
  %1959 = vmatprep.mubr.f32.mxu0 0.0
  %1960 = vmatmul.mubr.f32.gmra.mrb[0].mxu0 %v1599
  %v1961 = vpop.f32.mrb[0].mxu0
  %v1962 = vadd.f32 0.0, %v1961
  %v1963 = vpop.f32.mrb[0].mxu0
  %1964 = vmatprep.mubr.f32.mxu0 0.0
  %1965 = vmatmul.mubr.f32.gmra.mrb[0].mxu0 %v1600
  %v1966 = vpop.f32.mrb[0].mxu0
  %v1967 = vadd.f32 0.0, %v1966
  %v1968 = vpop.f32.mrb[0].mxu0
  %1969 = vmatprep.mubr.f32.mxu0 0.0
  %1970 = vmatmul.mubr.f32.gmra.mrb[0].mxu0 %v1601
  %v1971 = vpop.f32.mrb[0].mxu0
  %v1972 = vadd.f32 0.0, %v1971
  %v1973 = vpop.f32.mrb[0].mxu0
  %1974 = vmatprep.mubr.f32.mxu0 0.0
  %1975 = vmatmul.mubr.f32.gmra.mrb[0].mxu0 %v1602
  %v1976 = vpop.f32.mrb[0].mxu0
  %v1977 = vadd.f32 0.0, %v1976
  %v1978 = vpop.f32.mrb[0].mxu0
  %1979 = vmatprep.mubr.f32.mxu0 0.0
  %1980 = vmatmul.mubr.f32.gmra.mrb[0].mxu0 %v1603
  %v1981 = vpop.f32.mrb[0].mxu0
  %v1982 = vadd.f32 0.0, %v1981
  %v1983 = vpop.f32.mrb[0].mxu0
  %1984 = vmatprep.mubr.f32.mxu0 0.0
  %1985 = vmatmul.mubr.f32.gmra.mrb[0].mxu0 %v1604
  %v1986 = vpop.f32.mrb[0].mxu0
  %v1987 = vadd.f32 0.0, %v1986
  %v1988 = vpop.f32.mrb[0].mxu0
  %1989 = vdwg.mxu0
  %v1990 = vadd.f32 %v1672, %v1677
  %v1991 = vadd.f32 %v1990, %v1682
  %v1992 = vadd.f32 %v1991, %v1687
  %v1993 = vadd.f32 %v1992, %v1692
  %v1994 = vadd.f32 %v1993, %v1697
  %v1995 = vadd.f32 %v1994, %v1702
  %v1996 = vadd.f32 %v1995, %v1707
  %v1997 = vadd.f32 %v1996, %v1712
  %v1998 = vadd.f32 %v1997, %v1717
  %v1999 = vadd.f32 %v1998, %v1722
  %v2000 = vadd.f32 %v1999, %v1727
  %v2001 = vadd.f32 %v2000, %v1732
  %v2002 = vadd.f32 %v2001, %v1737
  %v2003 = vadd.f32 %v2002, %v1742
  %v2004 = vadd.f32 %v2003, %v1747
  %v2005 = vadd.f32 %v2004, %v1752
  %v2006 = vadd.f32 %v2005, %v1757
  %v2007 = vadd.f32 %v2006, %v1762
  %v2008 = vadd.f32 %v2007, %v1767
  %v2009 = vadd.f32 %v2008, %v1772
  %v2010 = vadd.f32 %v2009, %v1777
  %v2011 = vadd.f32 %v2010, %v1782
  %v2012 = vadd.f32 %v2011, %v1787
  %v2013 = vadd.f32 %v2012, %v1792
  %v2014 = vadd.f32 %v2013, %v1797
  %v2015 = vadd.f32 %v2014, %v1802
  %v2016 = vadd.f32 %v2015, %v1807
  %v2017 = vadd.f32 %v2016, %v1812
  %v2018 = vadd.f32 %v2017, %v1817
  %v2019 = vadd.f32 %v2018, %v1822
  %v2020 = vadd.f32 %v2019, %v1827
  %v2021 = vadd.f32 %v2020, %v1832
  %v2022 = vadd.f32 %v2021, %v1837
  %v2023 = vadd.f32 %v2022, %v1842
  %v2024 = vadd.f32 %v2023, %v1847
  %v2025 = vadd.f32 %v2024, %v1852
  %v2026 = vadd.f32 %v2025, %v1857
  %v2027 = vadd.f32 %v2026, %v1862
  %v2028 = vadd.f32 %v2027, %v1867
  %v2029 = vadd.f32 %v2028, %v1872
  %v2030 = vadd.f32 %v2029, %v1877
  %v2031 = vadd.f32 %v2030, %v1882
  %v2032 = vadd.f32 %v2031, %v1887
  %v2033 = vadd.f32 %v2032, %v1892
  %v2034 = vadd.f32 %v2033, %v1897
  %v2035 = vadd.f32 %v2034, %v1902
  %v2036 = vadd.f32 %v2035, %v1907
  %v2037 = vadd.f32 %v2036, %v1912
  %v2038 = vadd.f32 %v2037, %v1917
  %v2039 = vadd.f32 %v2038, %v1922
  %v2040 = vadd.f32 %v2039, %v1927
  %v2041 = vadd.f32 %v2040, %v1932
  %v2042 = vadd.f32 %v2041, %v1937
  %v2043 = vadd.f32 %v2042, %v1942
  %v2044 = vadd.f32 %v2043, %v1947
  %v2045 = vadd.f32 %v2044, %v1952
  %v2046 = vadd.f32 %v2045, %v1957
  %v2047 = vadd.f32 %v2046, %v1962
  %v2048 = vadd.f32 %v2047, %v1967
  %v2049 = vadd.f32 %v2048, %v1972
  %v2050 = vadd.f32 %v2049, %v1977
  %v2051 = vadd.f32 %v2050, %v1982
  %v2052 = vadd.f32 %v2051, %v1987
  %v2053 = vrot.slane %v2052, 4
  %v2054 = vadd.f32 %v2052, %v2053
  %v2055 = vrot.slane %v2054, 2
  %v2056 = vadd.f32 %v2054, %v2055
  %v2057 = vrot.slane %v2056, 1
  %v2058 = vadd.f32 %v2056, %v2057
  %v2059 = vmul.f32 %v2058, 0.0005202914
  %v2060 = vsub.f32 %v1207, %v2059
  %v2061 = vsub.f32 %v1210, %v2059
  %v2062 = vsub.f32 %v1215, %v2059
  %v2063 = vsub.f32 %v1218, %v2059
  %v2064 = vsub.f32 %v1223, %v2059
  %v2065 = vsub.f32 %v1226, %v2059
  %v2066 = vsub.f32 %v1231, %v2059
  %v2067 = vsub.f32 %v1234, %v2059
  %v2068 = vsub.f32 %v1239, %v2059
  %v2069 = vsub.f32 %v1242, %v2059
  %v2070 = vsub.f32 %v1247, %v2059
  %v2071 = vsub.f32 %v1250, %v2059
  %v2072 = vsub.f32 %v1255, %v2059
  %v2073 = vsub.f32 %v1258, %v2059
  %v2074 = vsub.f32 %v1263, %v2059
  %v2075 = vsub.f32 %v1266, %v2059
  %v2076 = vsub.f32 %v1271, %v2059
  %v2077 = vsub.f32 %v1274, %v2059
  %v2078 = vsub.f32 %v1279, %v2059
  %v2079 = vsub.f32 %v1282, %v2059
  %v2080 = vsub.f32 %v1287, %v2059
  %v2081 = vsub.f32 %v1290, %v2059
  %v2082 = vsub.f32 %v1295, %v2059
  %v2083 = vsub.f32 %v1298, %v2059
  %v2084 = vsub.f32 %v1303, %v2059
  %v2085 = vsub.f32 %v1306, %v2059
  %v2086 = vsub.f32 %v1311, %v2059
  %v2087 = vsub.f32 %v1314, %v2059
  %v2088 = vsub.f32 %v1319, %v2059
  %v2089 = vsub.f32 %v1322, %v2059
  %v2090 = vsub.f32 %v1327, %v2059
  %v2091 = vsub.f32 %v1330, %v2059
  %v2092 = vsub.f32 %v1335, %v2059
  %v2093 = vsub.f32 %v1338, %v2059
  %v2094 = vsub.f32 %v1343, %v2059
  %v2095 = vsub.f32 %v1346, %v2059
  %v2096 = vsub.f32 %v1351, %v2059
  %v2097 = vsub.f32 %v1354, %v2059
  %v2098 = vsub.f32 %v1359, %v2059
  %v2099 = vsub.f32 %v1362, %v2059
  %v2100 = vsub.f32 %v1367, %v2059
  %v2101 = vsub.f32 %v1370, %v2059
  %v2102 = vsub.f32 %v1375, %v2059
  %v2103 = vsub.f32 %v1378, %v2059
  %v2104 = vsub.f32 %v1383, %v2059
  %v2105 = vsub.f32 %v1386, %v2059
  %v2106 = vsub.f32 %v1391, %v2059
  %v2107 = vsub.f32 %v1394, %v2059
  %v2108 = vsub.f32 %v1399, %v2059
  %v2109 = vsub.f32 %v1402, %v2059
  %v2110 = vsub.f32 %v1407, %v2059
  %v2111 = vsub.f32 %v1410, %v2059
  %v2112 = vsub.f32 %v1415, %v2059
  %v2113 = vsub.f32 %v1418, %v2059
  %v2114 = vsub.f32 %v1423, %v2059
  %v2115 = vsub.f32 %v1426, %v2059
  %v2116 = vsub.f32 %v1431, %v2059
  %v2117 = vsub.f32 %v1434, %v2059
  %v2118 = vsub.f32 %v1439, %v2059
  %v2119 = vsub.f32 %v1442, %v2059
  %v2120 = vsub.f32 %v1447, %v2059
  %v2121 = vsub.f32 %v1450, %v2059
  %v2122 = vsub.f32 %v1455, %v2059
  %v2123 = vsub.f32 %v1458, %v2059
  %v2124 = vmul.f32 %v2060, %v1461
  %v2125 = vmul.f32 %v2061, %v1462
  %v2126 = vmul.f32 %v2062, %v1463
  %v2127 = vmul.f32 %v2063, %v1464
  %v2128 = vmul.f32 %v2064, %v1465
  %v2129 = vmul.f32 %v2065, %v1466
  %v2130 = vmul.f32 %v2066, %v1467
  %v2131 = vmul.f32 %v2067, %v1468
  %v2132 = vmul.f32 %v2068, %v1469
  %v2133 = vmul.f32 %v2069, %v1470
  %v2134 = vmul.f32 %v2070, %v1471
  %v2135 = vmul.f32 %v2071, %v1472
  %v2136 = vmul.f32 %v2072, %v1473
  %v2137 = vmul.f32 %v2073, %v1474
  %v2138 = vmul.f32 %v2074, %v1475
  %v2139 = vmul.f32 %v2075, %v1476
  %v2140 = vmul.f32 %v2076, %v1477
  %v2141 = vmul.f32 %v2077, %v1478
  %v2142 = vmul.f32 %v2078, %v1479
  %v2143 = vmul.f32 %v2079, %v1480
  %v2144 = vmul.f32 %v2080, %v1481
  %v2145 = vmul.f32 %v2081, %v1482
  %v2146 = vmul.f32 %v2082, %v1483
  %v2147 = vmul.f32 %v2083, %v1484
  %v2148 = vmul.f32 %v2084, %v1485
  %v2149 = vmul.f32 %v2085, %v1486
  %v2150 = vmul.f32 %v2086, %v1487
  %v2151 = vmul.f32 %v2087, %v1488
  %v2152 = vmul.f32 %v2088, %v1489
  %v2153 = vmul.f32 %v2089, %v1490
  %v2154 = vmul.f32 %v2090, %v1491
  %v2155 = vmul.f32 %v2091, %v1492
  %v2156 = vmul.f32 %v2092, %v1493
  %v2157 = vmul.f32 %v2093, %v1494
  %v2158 = vmul.f32 %v2094, %v1495
  %v2159 = vmul.f32 %v2095, %v1496
  %v2160 = vmul.f32 %v2096, %v1497
  %v2161 = vmul.f32 %v2097, %v1498
  %v2162 = vmul.f32 %v2098, %v1499
  %v2163 = vmul.f32 %v2099, %v1500
  %v2164 = vmul.f32 %v2100, %v1501
  %v2165 = vmul.f32 %v2101, %v1502
  %v2166 = vmul.f32 %v2102, %v1503
  %v2167 = vmul.f32 %v2103, %v1504
  %v2168 = vmul.f32 %v2104, %v1505
  %v2169 = vmul.f32 %v2105, %v1506
  %v2170 = vmul.f32 %v2106, %v1507
  %v2171 = vmul.f32 %v2107, %v1508
  %v2172 = vmul.f32 %v2108, %v1509
  %v2173 = vmul.f32 %v2109, %v1510
  %v2174 = vmul.f32 %v2110, %v1511
  %v2175 = vmul.f32 %v2111, %v1512
  %v2176 = vmul.f32 %v2112, %v1513
  %v2177 = vmul.f32 %v2113, %v1514
  %v2178 = vmul.f32 %v2114, %v1515
  %v2179 = vmul.f32 %v2115, %v1516
  %v2180 = vmul.f32 %v2116, %v1517
  %v2181 = vmul.f32 %v2117, %v1518
  %v2182 = vmul.f32 %v2118, %v1519
  %v2183 = vmul.f32 %v2119, %v1520
  %v2184 = vmul.f32 %v2120, %v1521
  %v2185 = vmul.f32 %v2121, %v1522
  %v2186 = vmul.f32 %v2122, %v1523
  %v2187 = vmul.f32 %v2123, %v1524
  %v2188 = vmul.f32 %v2124, %v2124
  %v2189 = vmul.f32 %v2125, %v2125
  %v2190 = vmul.f32 %v2126, %v2126
  %v2191 = vmul.f32 %v2127, %v2127
  %v2192 = vmul.f32 %v2128, %v2128
  %v2193 = vmul.f32 %v2129, %v2129
  %v2194 = vmul.f32 %v2130, %v2130
  %v2195 = vmul.f32 %v2131, %v2131
  %v2196 = vmul.f32 %v2132, %v2132
  %v2197 = vmul.f32 %v2133, %v2133
  %v2198 = vmul.f32 %v2134, %v2134
  %v2199 = vmul.f32 %v2135, %v2135
  %v2200 = vmul.f32 %v2136, %v2136
  %v2201 = vmul.f32 %v2137, %v2137
  %v2202 = vmul.f32 %v2138, %v2138
  %v2203 = vmul.f32 %v2139, %v2139
  %v2204 = vmul.f32 %v2140, %v2140
  %v2205 = vmul.f32 %v2141, %v2141
  %v2206 = vmul.f32 %v2142, %v2142
  %v2207 = vmul.f32 %v2143, %v2143
  %v2208 = vmul.f32 %v2144, %v2144
  %v2209 = vmul.f32 %v2145, %v2145
  %v2210 = vmul.f32 %v2146, %v2146
  %v2211 = vmul.f32 %v2147, %v2147
  %v2212 = vmul.f32 %v2148, %v2148
  %v2213 = vmul.f32 %v2149, %v2149
  %v2214 = vmul.f32 %v2150, %v2150
  %v2215 = vmul.f32 %v2151, %v2151
  %v2216 = vmul.f32 %v2152, %v2152
  %v2217 = vmul.f32 %v2153, %v2153
  %v2218 = vmul.f32 %v2154, %v2154
  %v2219 = vmul.f32 %v2155, %v2155
  %v2220 = vmul.f32 %v2156, %v2156
  %v2221 = vmul.f32 %v2157, %v2157
  %v2222 = vmul.f32 %v2158, %v2158
  %v2223 = vmul.f32 %v2159, %v2159
  %v2224 = vmul.f32 %v2160, %v2160
  %v2225 = vmul.f32 %v2161, %v2161
  %v2226 = vmul.f32 %v2162, %v2162
  %v2227 = vmul.f32 %v2163, %v2163
  %v2228 = vmul.f32 %v2164, %v2164
  %v2229 = vmul.f32 %v2165, %v2165
  %v2230 = vmul.f32 %v2166, %v2166
  %v2231 = vmul.f32 %v2167, %v2167
  %v2232 = vmul.f32 %v2168, %v2168
  %v2233 = vmul.f32 %v2169, %v2169
  %v2234 = vmul.f32 %v2170, %v2170
  %v2235 = vmul.f32 %v2171, %v2171
  %v2236 = vmul.f32 %v2172, %v2172
  %v2237 = vmul.f32 %v2173, %v2173
  %v2238 = vmul.f32 %v2174, %v2174
  %v2239 = vmul.f32 %v2175, %v2175
  %v2240 = vmul.f32 %v2176, %v2176
  %v2241 = vmul.f32 %v2177, %v2177
  %v2242 = vmul.f32 %v2178, %v2178
  %v2243 = vmul.f32 %v2179, %v2179
  %v2244 = vmul.f32 %v2180, %v2180
  %v2245 = vmul.f32 %v2181, %v2181
  %v2246 = vmul.f32 %v2182, %v2182
  %v2247 = vmul.f32 %v2183, %v2183
  %v2248 = vmul.f32 %v2184, %v2184
  %v2249 = vmul.f32 %v2185, %v2185
  %v2250 = vmul.f32 %v2186, %v2186
  %v2251 = vmul.f32 %v2187, %v2187
  %2252 = vmatprep.subr.mxu0 0.0
  %2253 = vmatpush1.msra.mxu0 %v1525
  %2254 = vmatprep.subr.mxu0 0.0
  %2255 = vmatpush1.msra.mxu0 %v1526
  %2256 = vmatprep.subr.mxu0 0.0
  %2257 = vmatpush1.msra.mxu0 %v1527
  %2258 = vmatprep.subr.mxu0 0.0
  %2259 = vmatpush1.msra.mxu0 %v1528
  %2260 = vmatprep.subr.mxu0 0.0
  %2261 = vmatpush1.msra.mxu0 %v1529
  %2262 = vmatprep.subr.mxu0 0.0
  %2263 = vmatpush1.msra.mxu0 %v1530
  %2264 = vmatprep.subr.mxu0 0.0
  %2265 = vmatpush1.msra.mxu0 %v1531
  %2266 = vmatprep.subr.mxu0 0.0
  %2267 = vmatpush1.msra.mxu0 %v1532
  %2268 = vmatprep.subr.mxu0 0.0
  %2269 = vmatpush1.msra.mxu0 %v1533
  %2270 = vmatprep.subr.mxu0 0.0
  %2271 = vmatpush1.msra.mxu0 %v1534
  %2272 = vmatprep.subr.mxu0 0.0
  %2273 = vmatpush1.msra.mxu0 %v1535
  %2274 = vmatprep.subr.mxu0 0.0
  %2275 = vmatpush1.msra.mxu0 %v1536
  %2276 = vmatprep.subr.mxu0 0.0
  %2277 = vmatpush1.msra.mxu0 %v1537
  %2278 = vmatprep.subr.mxu0 0.0
  %2279 = vmatpush1.msra.mxu0 %v1538
  %2280 = vmatprep.subr.mxu0 0.0
  %2281 = vmatpush1.msra.mxu0 %v1539
  %2282 = vmatprep.subr.mxu0 0.0
  %2283 = vmatpush1.msra.mxu0 %v1540
  %2284 = vmatprep.subr.mxu0 0.0
  %2285 = vmatpush1.msra.mxu0 0.0
  %2286 = vmatprep.subr.mxu0 0.0
  %2287 = vmatpush1.msra.mxu0 0.0
  %2288 = vmatprep.subr.mxu0 0.0
  %2289 = vmatpush1.msra.mxu0 0.0
  %2290 = vmatprep.subr.mxu0 0.0
  %2291 = vmatpush1.msra.mxu0 0.0
  %2292 = vmatprep.subr.mxu0 0.0
  %2293 = vmatpush1.msra.mxu0 0.0
  %2294 = vmatprep.subr.mxu0 0.0
  %2295 = vmatpush1.msra.mxu0 0.0
  %2296 = vmatprep.subr.mxu0 0.0
  %2297 = vmatpush1.msra.mxu0 0.0
  %2298 = vmatprep.subr.mxu0 0.0
  %2299 = vmatpush1.msra.mxu0 0.0
  %2300 = vmatprep.subr.mxu0 0.0
  %2301 = vmatpush1.msra.mxu0 0.0
  %2302 = vmatprep.subr.mxu0 0.0
  %2303 = vmatpush1.msra.mxu0 0.0
  %2304 = vmatprep.subr.mxu0 0.0
  %2305 = vmatpush1.msra.mxu0 0.0
  %2306 = vmatprep.subr.mxu0 0.0
  %2307 = vmatpush1.msra.mxu0 0.0
  %2308 = vmatprep.subr.mxu0 0.0
  %2309 = vmatpush1.msra.mxu0 0.0
  %2310 = vmatprep.subr.mxu0 0.0
  %2311 = vmatpush1.msra.mxu0 0.0
  %2312 = vmatprep.subr.mxu0 0.0
  %2313 = vmatpush1.msra.mxu0 0.0
  %2314 = vmatprep.subr.mxu0 0.0
  %2315 = vmatpush1.msra.mxu0 0.0
  %2316 = vmatprep.mubr.f32.mxu0 0.0
  %2317 = vmatmul.mubr.f32.gmra.mrb[0].mxu0 %v2188
  %v2318 = vpop.f32.mrb[0].mxu0
  %v2319 = vadd.f32 0.0, %v2318
  %v2320 = vpop.f32.mrb[0].mxu0
  %2321 = vmatprep.mubr.f32.mxu0 0.0
  %2322 = vmatmul.mubr.f32.gmra.mrb[0].mxu0 %v2189
  %v2323 = vpop.f32.mrb[0].mxu0
  %v2324 = vadd.f32 0.0, %v2323
  %v2325 = vpop.f32.mrb[0].mxu0
  %2326 = vmatprep.mubr.f32.mxu0 0.0
  %2327 = vmatmul.mubr.f32.gmra.mrb[0].mxu0 %v2190
  %v2328 = vpop.f32.mrb[0].mxu0
  %v2329 = vadd.f32 0.0, %v2328
  %v2330 = vpop.f32.mrb[0].mxu0
  %2331 = vmatprep.mubr.f32.mxu0 0.0
  %2332 = vmatmul.mubr.f32.gmra.mrb[0].mxu0 %v2191
  %v2333 = vpop.f32.mrb[0].mxu0
  %v2334 = vadd.f32 0.0, %v2333
  %v2335 = vpop.f32.mrb[0].mxu0
  %2336 = vmatprep.mubr.f32.mxu0 0.0
  %2337 = vmatmul.mubr.f32.gmra.mrb[0].mxu0 %v2192
  %v2338 = vpop.f32.mrb[0].mxu0
  %v2339 = vadd.f32 0.0, %v2338
  %v2340 = vpop.f32.mrb[0].mxu0
  %2341 = vmatprep.mubr.f32.mxu0 0.0
  %2342 = vmatmul.mubr.f32.gmra.mrb[0].mxu0 %v2193
  %v2343 = vpop.f32.mrb[0].mxu0
  %v2344 = vadd.f32 0.0, %v2343
  %v2345 = vpop.f32.mrb[0].mxu0
  %2346 = vmatprep.mubr.f32.mxu0 0.0
  %2347 = vmatmul.mubr.f32.gmra.mrb[0].mxu0 %v2194
  %v2348 = vpop.f32.mrb[0].mxu0
  %v2349 = vadd.f32 0.0, %v2348
  %v2350 = vpop.f32.mrb[0].mxu0
  %2351 = vmatprep.mubr.f32.mxu0 0.0
  %2352 = vmatmul.mubr.f32.gmra.mrb[0].mxu0 %v2195
  %v2353 = vpop.f32.mrb[0].mxu0
  %v2354 = vadd.f32 0.0, %v2353
  %v2355 = vpop.f32.mrb[0].mxu0
  %2356 = vmatprep.mubr.f32.mxu0 0.0
  %2357 = vmatmul.mubr.f32.gmra.mrb[0].mxu0 %v2196
  %v2358 = vpop.f32.mrb[0].mxu0
  %v2359 = vadd.f32 0.0, %v2358
  %v2360 = vpop.f32.mrb[0].mxu0
  %2361 = vmatprep.mubr.f32.mxu0 0.0
  %2362 = vmatmul.mubr.f32.gmra.mrb[0].mxu0 %v2197
  %v2363 = vpop.f32.mrb[0].mxu0
  %v2364 = vadd.f32 0.0, %v2363
  %v2365 = vpop.f32.mrb[0].mxu0
  %2366 = vmatprep.mubr.f32.mxu0 0.0
  %2367 = vmatmul.mubr.f32.gmra.mrb[0].mxu0 %v2198
  %v2368 = vpop.f32.mrb[0].mxu0
  %v2369 = vadd.f32 0.0, %v2368
  %v2370 = vpop.f32.mrb[0].mxu0
  %2371 = vmatprep.mubr.f32.mxu0 0.0
  %2372 = vmatmul.mubr.f32.gmra.mrb[0].mxu0 %v2199
  %v2373 = vpop.f32.mrb[0].mxu0
  %v2374 = vadd.f32 0.0, %v2373
  %v2375 = vpop.f32.mrb[0].mxu0
  %2376 = vmatprep.mubr.f32.mxu0 0.0
  %2377 = vmatmul.mubr.f32.gmra.mrb[0].mxu0 %v2200
  %v2378 = vpop.f32.mrb[0].mxu0
  %v2379 = vadd.f32 0.0, %v2378
  %v2380 = vpop.f32.mrb[0].mxu0
  %2381 = vmatprep.mubr.f32.mxu0 0.0
  %2382 = vmatmul.mubr.f32.gmra.mrb[0].mxu0 %v2201
  %v2383 = vpop.f32.mrb[0].mxu0
  %v2384 = vadd.f32 0.0, %v2383
  %v2385 = vpop.f32.mrb[0].mxu0
  %2386 = vmatprep.mubr.f32.mxu0 0.0
  %2387 = vmatmul.mubr.f32.gmra.mrb[0].mxu0 %v2202
  %v2388 = vpop.f32.mrb[0].mxu0
  %v2389 = vadd.f32 0.0, %v2388
  %v2390 = vpop.f32.mrb[0].mxu0
  %2391 = vmatprep.mubr.f32.mxu0 0.0
  %2392 = vmatmul.mubr.f32.gmra.mrb[0].mxu0 %v2203
  %v2393 = vpop.f32.mrb[0].mxu0
  %v2394 = vadd.f32 0.0, %v2393
  %v2395 = vpop.f32.mrb[0].mxu0
  %2396 = vmatprep.mubr.f32.mxu0 0.0
  %2397 = vmatmul.mubr.f32.gmra.mrb[0].mxu0 %v2204
  %v2398 = vpop.f32.mrb[0].mxu0
  %v2399 = vadd.f32 0.0, %v2398
  %v2400 = vpop.f32.mrb[0].mxu0
  %2401 = vmatprep.mubr.f32.mxu0 0.0
  %2402 = vmatmul.mubr.f32.gmra.mrb[0].mxu0 %v2205
  %v2403 = vpop.f32.mrb[0].mxu0
  %v2404 = vadd.f32 0.0, %v2403
  %v2405 = vpop.f32.mrb[0].mxu0
  %2406 = vmatprep.mubr.f32.mxu0 0.0
  %2407 = vmatmul.mubr.f32.gmra.mrb[0].mxu0 %v2206
  %v2408 = vpop.f32.mrb[0].mxu0
  %v2409 = vadd.f32 0.0, %v2408
  %v2410 = vpop.f32.mrb[0].mxu0
  %2411 = vmatprep.mubr.f32.mxu0 0.0
  %2412 = vmatmul.mubr.f32.gmra.mrb[0].mxu0 %v2207
  %v2413 = vpop.f32.mrb[0].mxu0
  %v2414 = vadd.f32 0.0, %v2413
  %v2415 = vpop.f32.mrb[0].mxu0
  %2416 = vmatprep.mubr.f32.mxu0 0.0
  %2417 = vmatmul.mubr.f32.gmra.mrb[0].mxu0 %v2208
  %v2418 = vpop.f32.mrb[0].mxu0
  %v2419 = vadd.f32 0.0, %v2418
  %v2420 = vpop.f32.mrb[0].mxu0
  %2421 = vmatprep.mubr.f32.mxu0 0.0
  %2422 = vmatmul.mubr.f32.gmra.mrb[0].mxu0 %v2209
  %v2423 = vpop.f32.mrb[0].mxu0
  %v2424 = vadd.f32 0.0, %v2423
  %v2425 = vpop.f32.mrb[0].mxu0
  %2426 = vmatprep.mubr.f32.mxu0 0.0
  %2427 = vmatmul.mubr.f32.gmra.mrb[0].mxu0 %v2210
  %v2428 = vpop.f32.mrb[0].mxu0
  %v2429 = vadd.f32 0.0, %v2428
  %v2430 = vpop.f32.mrb[0].mxu0
  %2431 = vmatprep.mubr.f32.mxu0 0.0
  %2432 = vmatmul.mubr.f32.gmra.mrb[0].mxu0 %v2211
  %v2433 = vpop.f32.mrb[0].mxu0
  %v2434 = vadd.f32 0.0, %v2433
  %v2435 = vpop.f32.mrb[0].mxu0
  %2436 = vmatprep.mubr.f32.mxu0 0.0
  %2437 = vmatmul.mubr.f32.gmra.mrb[0].mxu0 %v2212
  %v2438 = vpop.f32.mrb[0].mxu0
  %v2439 = vadd.f32 0.0, %v2438
  %v2440 = vpop.f32.mrb[0].mxu0
  %2441 = vmatprep.mubr.f32.mxu0 0.0
  %2442 = vmatmul.mubr.f32.gmra.mrb[0].mxu0 %v2213
  %v2443 = vpop.f32.mrb[0].mxu0
  %v2444 = vadd.f32 0.0, %v2443
  %v2445 = vpop.f32.mrb[0].mxu0
  %2446 = vmatprep.mubr.f32.mxu0 0.0
  %2447 = vmatmul.mubr.f32.gmra.mrb[0].mxu0 %v2214
  %v2448 = vpop.f32.mrb[0].mxu0
  %v2449 = vadd.f32 0.0, %v2448
  %v2450 = vpop.f32.mrb[0].mxu0
  %2451 = vmatprep.mubr.f32.mxu0 0.0
  %2452 = vmatmul.mubr.f32.gmra.mrb[0].mxu0 %v2215
  %v2453 = vpop.f32.mrb[0].mxu0
  %v2454 = vadd.f32 0.0, %v2453
  %v2455 = vpop.f32.mrb[0].mxu0
  %2456 = vmatprep.mubr.f32.mxu0 0.0
  %2457 = vmatmul.mubr.f32.gmra.mrb[0].mxu0 %v2216
  %v2458 = vpop.f32.mrb[0].mxu0
  %v2459 = vadd.f32 0.0, %v2458
  %v2460 = vpop.f32.mrb[0].mxu0
  %2461 = vmatprep.mubr.f32.mxu0 0.0
  %2462 = vmatmul.mubr.f32.gmra.mrb[0].mxu0 %v2217
  %v2463 = vpop.f32.mrb[0].mxu0
  %v2464 = vadd.f32 0.0, %v2463
  %v2465 = vpop.f32.mrb[0].mxu0
  %2466 = vmatprep.mubr.f32.mxu0 0.0
  %2467 = vmatmul.mubr.f32.gmra.mrb[0].mxu0 %v2218
  %v2468 = vpop.f32.mrb[0].mxu0
  %v2469 = vadd.f32 0.0, %v2468
  %v2470 = vpop.f32.mrb[0].mxu0
  %2471 = vmatprep.mubr.f32.mxu0 0.0
  %2472 = vmatmul.mubr.f32.gmra.mrb[0].mxu0 %v2219
  %v2473 = vpop.f32.mrb[0].mxu0
  %v2474 = vadd.f32 0.0, %v2473
  %v2475 = vpop.f32.mrb[0].mxu0
  %2476 = vmatprep.mubr.f32.mxu0 0.0
  %2477 = vmatmul.mubr.f32.gmra.mrb[0].mxu0 %v2220
  %v2478 = vpop.f32.mrb[0].mxu0
  %v2479 = vadd.f32 0.0, %v2478
  %v2480 = vpop.f32.mrb[0].mxu0
  %2481 = vmatprep.mubr.f32.mxu0 0.0
  %2482 = vmatmul.mubr.f32.gmra.mrb[0].mxu0 %v2221
  %v2483 = vpop.f32.mrb[0].mxu0
  %v2484 = vadd.f32 0.0, %v2483
  %v2485 = vpop.f32.mrb[0].mxu0
  %2486 = vmatprep.mubr.f32.mxu0 0.0
  %2487 = vmatmul.mubr.f32.gmra.mrb[0].mxu0 %v2222
  %v2488 = vpop.f32.mrb[0].mxu0
  %v2489 = vadd.f32 0.0, %v2488
  %v2490 = vpop.f32.mrb[0].mxu0
  %2491 = vmatprep.mubr.f32.mxu0 0.0
  %2492 = vmatmul.mubr.f32.gmra.mrb[0].mxu0 %v2223
  %v2493 = vpop.f32.mrb[0].mxu0
  %v2494 = vadd.f32 0.0, %v2493
  %v2495 = vpop.f32.mrb[0].mxu0
  %2496 = vmatprep.mubr.f32.mxu0 0.0
  %2497 = vmatmul.mubr.f32.gmra.mrb[0].mxu0 %v2224
  %v2498 = vpop.f32.mrb[0].mxu0
  %v2499 = vadd.f32 0.0, %v2498
  %v2500 = vpop.f32.mrb[0].mxu0
  %2501 = vmatprep.mubr.f32.mxu0 0.0
  %2502 = vmatmul.mubr.f32.gmra.mrb[0].mxu0 %v2225
  %v2503 = vpop.f32.mrb[0].mxu0
  %v2504 = vadd.f32 0.0, %v2503
  %v2505 = vpop.f32.mrb[0].mxu0
  %2506 = vmatprep.mubr.f32.mxu0 0.0
  %2507 = vmatmul.mubr.f32.gmra.mrb[0].mxu0 %v2226
  %v2508 = vpop.f32.mrb[0].mxu0
  %v2509 = vadd.f32 0.0, %v2508
  %v2510 = vpop.f32.mrb[0].mxu0
  %2511 = vmatprep.mubr.f32.mxu0 0.0
  %2512 = vmatmul.mubr.f32.gmra.mrb[0].mxu0 %v2227
  %v2513 = vpop.f32.mrb[0].mxu0
  %v2514 = vadd.f32 0.0, %v2513
  %v2515 = vpop.f32.mrb[0].mxu0
  %2516 = vmatprep.mubr.f32.mxu0 0.0
  %2517 = vmatmul.mubr.f32.gmra.mrb[0].mxu0 %v2228
  %v2518 = vpop.f32.mrb[0].mxu0
  %v2519 = vadd.f32 0.0, %v2518
  %v2520 = vpop.f32.mrb[0].mxu0
  %2521 = vmatprep.mubr.f32.mxu0 0.0
  %2522 = vmatmul.mubr.f32.gmra.mrb[0].mxu0 %v2229
  %v2523 = vpop.f32.mrb[0].mxu0
  %v2524 = vadd.f32 0.0, %v2523
  %v2525 = vpop.f32.mrb[0].mxu0
  %2526 = vmatprep.mubr.f32.mxu0 0.0
  %2527 = vmatmul.mubr.f32.gmra.mrb[0].mxu0 %v2230
  %v2528 = vpop.f32.mrb[0].mxu0
  %v2529 = vadd.f32 0.0, %v2528
  %v2530 = vpop.f32.mrb[0].mxu0
  %2531 = vmatprep.mubr.f32.mxu0 0.0
  %2532 = vmatmul.mubr.f32.gmra.mrb[0].mxu0 %v2231
  %v2533 = vpop.f32.mrb[0].mxu0
  %v2534 = vadd.f32 0.0, %v2533
  %v2535 = vpop.f32.mrb[0].mxu0
  %2536 = vmatprep.mubr.f32.mxu0 0.0
  %2537 = vmatmul.mubr.f32.gmra.mrb[0].mxu0 %v2232
  %v2538 = vpop.f32.mrb[0].mxu0
  %v2539 = vadd.f32 0.0, %v2538
  %v2540 = vpop.f32.mrb[0].mxu0
  %2541 = vmatprep.mubr.f32.mxu0 0.0
  %2542 = vmatmul.mubr.f32.gmra.mrb[0].mxu0 %v2233
  %v2543 = vpop.f32.mrb[0].mxu0
  %v2544 = vadd.f32 0.0, %v2543
  %v2545 = vpop.f32.mrb[0].mxu0
  %2546 = vmatprep.mubr.f32.mxu0 0.0
  %2547 = vmatmul.mubr.f32.gmra.mrb[0].mxu0 %v2234
  %v2548 = vpop.f32.mrb[0].mxu0
  %v2549 = vadd.f32 0.0, %v2548
  %v2550 = vpop.f32.mrb[0].mxu0
  %2551 = vmatprep.mubr.f32.mxu0 0.0
  %2552 = vmatmul.mubr.f32.gmra.mrb[0].mxu0 %v2235
  %v2553 = vpop.f32.mrb[0].mxu0
  %v2554 = vadd.f32 0.0, %v2553
  %v2555 = vpop.f32.mrb[0].mxu0
  %2556 = vmatprep.mubr.f32.mxu0 0.0
  %2557 = vmatmul.mubr.f32.gmra.mrb[0].mxu0 %v2236
  %v2558 = vpop.f32.mrb[0].mxu0
  %v2559 = vadd.f32 0.0, %v2558
  %v2560 = vpop.f32.mrb[0].mxu0
  %2561 = vmatprep.mubr.f32.mxu0 0.0
  %2562 = vmatmul.mubr.f32.gmra.mrb[0].mxu0 %v2237
  %v2563 = vpop.f32.mrb[0].mxu0
  %v2564 = vadd.f32 0.0, %v2563
  %v2565 = vpop.f32.mrb[0].mxu0
  %2566 = vmatprep.mubr.f32.mxu0 0.0
  %2567 = vmatmul.mubr.f32.gmra.mrb[0].mxu0 %v2238
  %v2568 = vpop.f32.mrb[0].mxu0
  %v2569 = vadd.f32 0.0, %v2568
  %v2570 = vpop.f32.mrb[0].mxu0
  %2571 = vmatprep.mubr.f32.mxu0 0.0
  %2572 = vmatmul.mubr.f32.gmra.mrb[0].mxu0 %v2239
  %v2573 = vpop.f32.mrb[0].mxu0
  %v2574 = vadd.f32 0.0, %v2573
  %v2575 = vpop.f32.mrb[0].mxu0
  %2576 = vmatprep.mubr.f32.mxu0 0.0
  %2577 = vmatmul.mubr.f32.gmra.mrb[0].mxu0 %v2240
  %v2578 = vpop.f32.mrb[0].mxu0
  %v2579 = vadd.f32 0.0, %v2578
  %v2580 = vpop.f32.mrb[0].mxu0
  %2581 = vmatprep.mubr.f32.mxu0 0.0
  %2582 = vmatmul.mubr.f32.gmra.mrb[0].mxu0 %v2241
  %v2583 = vpop.f32.mrb[0].mxu0
  %v2584 = vadd.f32 0.0, %v2583
  %v2585 = vpop.f32.mrb[0].mxu0
  %2586 = vmatprep.mubr.f32.mxu0 0.0
  %2587 = vmatmul.mubr.f32.gmra.mrb[0].mxu0 %v2242
  %v2588 = vpop.f32.mrb[0].mxu0
  %v2589 = vadd.f32 0.0, %v2588
  %v2590 = vpop.f32.mrb[0].mxu0
  %2591 = vmatprep.mubr.f32.mxu0 0.0
  %2592 = vmatmul.mubr.f32.gmra.mrb[0].mxu0 %v2243
  %v2593 = vpop.f32.mrb[0].mxu0
  %v2594 = vadd.f32 0.0, %v2593
  %v2595 = vpop.f32.mrb[0].mxu0
  %2596 = vmatprep.mubr.f32.mxu0 0.0
  %2597 = vmatmul.mubr.f32.gmra.mrb[0].mxu0 %v2244
  %v2598 = vpop.f32.mrb[0].mxu0
  %v2599 = vadd.f32 0.0, %v2598
  %v2600 = vpop.f32.mrb[0].mxu0
  %2601 = vmatprep.mubr.f32.mxu0 0.0
  %2602 = vmatmul.mubr.f32.gmra.mrb[0].mxu0 %v2245
  %v2603 = vpop.f32.mrb[0].mxu0
  %v2604 = vadd.f32 0.0, %v2603
  %v2605 = vpop.f32.mrb[0].mxu0
  %2606 = vmatprep.mubr.f32.mxu0 0.0
  %2607 = vmatmul.mubr.f32.gmra.mrb[0].mxu0 %v2246
  %v2608 = vpop.f32.mrb[0].mxu0
  %v2609 = vadd.f32 0.0, %v2608
  %v2610 = vpop.f32.mrb[0].mxu0
  %2611 = vmatprep.mubr.f32.mxu0 0.0
  %2612 = vmatmul.mubr.f32.gmra.mrb[0].mxu0 %v2247
  %v2613 = vpop.f32.mrb[0].mxu0
  %v2614 = vadd.f32 0.0, %v2613
  %v2615 = vpop.f32.mrb[0].mxu0
  %2616 = vmatprep.mubr.f32.mxu0 0.0
  %2617 = vmatmul.mubr.f32.gmra.mrb[0].mxu0 %v2248
  %v2618 = vpop.f32.mrb[0].mxu0
  %v2619 = vadd.f32 0.0, %v2618
  %v2620 = vpop.f32.mrb[0].mxu0
  %2621 = vmatprep.mubr.f32.mxu0 0.0
  %2622 = vmatmul.mubr.f32.gmra.mrb[0].mxu0 %v2249
  %v2623 = vpop.f32.mrb[0].mxu0
  %v2624 = vadd.f32 0.0, %v2623
  %v2625 = vpop.f32.mrb[0].mxu0
  %2626 = vmatprep.mubr.f32.mxu0 0.0
  %2627 = vmatmul.mubr.f32.gmra.mrb[0].mxu0 %v2250
  %v2628 = vpop.f32.mrb[0].mxu0
  %v2629 = vadd.f32 0.0, %v2628
  %v2630 = vpop.f32.mrb[0].mxu0
  %2631 = vmatprep.mubr.f32.mxu0 0.0
  %2632 = vmatmul.mubr.f32.gmra.mrb[0].mxu0 %v2251
  %v2633 = vpop.f32.mrb[0].mxu0
  %v2634 = vadd.f32 0.0, %v2633
  %v2635 = vpop.f32.mrb[0].mxu0
  %2636 = vdwg.mxu0
  %v2637 = vadd.f32 %v2319, %v2324
  %v2638 = vadd.f32 %v2637, %v2329
  %v2639 = vadd.f32 %v2638, %v2334
  %v2640 = vadd.f32 %v2639, %v2339
  %v2641 = vadd.f32 %v2640, %v2344
  %v2642 = vadd.f32 %v2641, %v2349
  %v2643 = vadd.f32 %v2642, %v2354
  %v2644 = vadd.f32 %v2643, %v2359
  %v2645 = vadd.f32 %v2644, %v2364
  %v2646 = vadd.f32 %v2645, %v2369
  %v2647 = vadd.f32 %v2646, %v2374
  %v2648 = vadd.f32 %v2647, %v2379
  %v2649 = vadd.f32 %v2648, %v2384
  %v2650 = vadd.f32 %v2649, %v2389
  %v2651 = vadd.f32 %v2650, %v2394
  %v2652 = vadd.f32 %v2651, %v2399
  %v2653 = vadd.f32 %v2652, %v2404
  %v2654 = vadd.f32 %v2653, %v2409
  %v2655 = vadd.f32 %v2654, %v2414
  %v2656 = vadd.f32 %v2655, %v2419
  %v2657 = vadd.f32 %v2656, %v2424
  %v2658 = vadd.f32 %v2657, %v2429
  %v2659 = vadd.f32 %v2658, %v2434
  %v2660 = vadd.f32 %v2659, %v2439
  %v2661 = vadd.f32 %v2660, %v2444
  %v2662 = vadd.f32 %v2661, %v2449
  %v2663 = vadd.f32 %v2662, %v2454
  %v2664 = vadd.f32 %v2663, %v2459
  %v2665 = vadd.f32 %v2664, %v2464
  %v2666 = vadd.f32 %v2665, %v2469
  %v2667 = vadd.f32 %v2666, %v2474
  %v2668 = vadd.f32 %v2667, %v2479
  %v2669 = vadd.f32 %v2668, %v2484
  %v2670 = vadd.f32 %v2669, %v2489
  %v2671 = vadd.f32 %v2670, %v2494
  %v2672 = vadd.f32 %v2671, %v2499
  %v2673 = vadd.f32 %v2672, %v2504
  %v2674 = vadd.f32 %v2673, %v2509
  %v2675 = vadd.f32 %v2674, %v2514
  %v2676 = vadd.f32 %v2675, %v2519
  %v2677 = vadd.f32 %v2676, %v2524
  %v2678 = vadd.f32 %v2677, %v2529
  %v2679 = vadd.f32 %v2678, %v2534
  %v2680 = vadd.f32 %v2679, %v2539
  %v2681 = vadd.f32 %v2680, %v2544
  %v2682 = vadd.f32 %v2681, %v2549
  %v2683 = vadd.f32 %v2682, %v2554
  %v2684 = vadd.f32 %v2683, %v2559
  %v2685 = vadd.f32 %v2684, %v2564
  %v2686 = vadd.f32 %v2685, %v2569
  %v2687 = vadd.f32 %v2686, %v2574
  %v2688 = vadd.f32 %v2687, %v2579
  %v2689 = vadd.f32 %v2688, %v2584
  %v2690 = vadd.f32 %v2689, %v2589
  %v2691 = vadd.f32 %v2690, %v2594
  %v2692 = vadd.f32 %v2691, %v2599
  %v2693 = vadd.f32 %v2692, %v2604
  %v2694 = vadd.f32 %v2693, %v2609
  %v2695 = vadd.f32 %v2694, %v2614
  %v2696 = vadd.f32 %v2695, %v2619
  %v2697 = vadd.f32 %v2696, %v2624
  %v2698 = vadd.f32 %v2697, %v2629
  %v2699 = vadd.f32 %v2698, %v2634
  %v2700 = vrot.slane %v2699, 4
  %v2701 = vadd.f32 %v2699, %v2700
  %v2702 = vrot.slane %v2701, 2
  %v2703 = vadd.f32 %v2701, %v2702
  %v2704 = vrot.slane %v2703, 1
  %v2705 = vadd.f32 %v2703, %v2704
  %v2706 = vmul.f32 %v2705, 0.0005202914
  %v2707 = vld [vmem:[%s5] sm:$0x1]
  %v2708 = vadd.f32 %v2706, 1e-05
  %v2709 = vrsqrt.pop %v2708
  %v2710 = vmul.f32 %v2707, %v2709
  %v2712 = vlaneseq
  %v2713 = vshrl.u32 %v2712, 7
  %v2714 = vsub.s32 0, %v2713
  %v2715 = vrot.slane %v2710, %v2714
  %v2717 = vmul.f32 %v2060, %v2715
  %v2718 = vmul.f32 %v2061, %v2715
  %v2719 = vmul.f32 %v2062, %v2715
  %v2720 = vmul.f32 %v2063, %v2715
  %v2721 = vmul.f32 %v2064, %v2715
  %v2722 = vmul.f32 %v2065, %v2715
  %v2723 = vmul.f32 %v2066, %v2715
  %v2724 = vmul.f32 %v2067, %v2715
  %v2725 = vmul.f32 %v2068, %v2715
  %v2726 = vmul.f32 %v2069, %v2715
  %v2727 = vmul.f32 %v2070, %v2715
  %v2728 = vmul.f32 %v2071, %v2715
  %v2729 = vmul.f32 %v2072, %v2715
  %v2730 = vmul.f32 %v2073, %v2715
  %v2731 = vmul.f32 %v2074, %v2715
  %v2732 = vmul.f32 %v2075, %v2715
  %v2733 = vmul.f32 %v2076, %v2715
  %v2734 = vmul.f32 %v2077, %v2715
  %v2735 = vmul.f32 %v2078, %v2715
  %v2736 = vmul.f32 %v2079, %v2715
  %v2737 = vmul.f32 %v2080, %v2715
  %v2738 = vmul.f32 %v2081, %v2715
  %v2739 = vmul.f32 %v2082, %v2715
  %v2740 = vmul.f32 %v2083, %v2715
  %v2741 = vmul.f32 %v2084, %v2715
  %v2742 = vmul.f32 %v2085, %v2715
  %v2743 = vmul.f32 %v2086, %v2715
  %v2744 = vmul.f32 %v2087, %v2715
  %v2745 = vmul.f32 %v2088, %v2715
  %v2746 = vmul.f32 %v2089, %v2715
  %v2747 = vmul.f32 %v2090, %v2715
  %v2748 = vmul.f32 %v2091, %v2715
  %v2749 = vmul.f32 %v2092, %v2715
  %v2750 = vmul.f32 %v2093, %v2715
  %v2751 = vmul.f32 %v2094, %v2715
  %v2752 = vmul.f32 %v2095, %v2715
  %v2753 = vmul.f32 %v2096, %v2715
  %v2754 = vmul.f32 %v2097, %v2715
  %v2755 = vmul.f32 %v2098, %v2715
  %v2756 = vmul.f32 %v2099, %v2715
  %v2757 = vmul.f32 %v2100, %v2715
  %v2758 = vmul.f32 %v2101, %v2715
  %v2759 = vmul.f32 %v2102, %v2715
  %v2760 = vmul.f32 %v2103, %v2715
  %v2761 = vmul.f32 %v2104, %v2715
  %v2762 = vmul.f32 %v2105, %v2715
  %v2763 = vmul.f32 %v2106, %v2715
  %v2764 = vmul.f32 %v2107, %v2715
  %v2765 = vmul.f32 %v2108, %v2715
  %v2766 = vmul.f32 %v2109, %v2715
  %v2767 = vmul.f32 %v2110, %v2715
  %v2768 = vmul.f32 %v2111, %v2715
  %v2769 = vmul.f32 %v2112, %v2715
  %v2770 = vmul.f32 %v2113, %v2715
  %v2771 = vmul.f32 %v2114, %v2715
  %v2772 = vmul.f32 %v2115, %v2715
  %v2773 = vmul.f32 %v2116, %v2715
  %v2774 = vmul.f32 %v2117, %v2715
  %v2775 = vmul.f32 %v2118, %v2715
  %v2776 = vmul.f32 %v2119, %v2715
  %v2777 = vmul.f32 %v2120, %v2715
  %v2778 = vmul.f32 %v2121, %v2715
  %v2779 = vmul.f32 %v2122, %v2715
  %v2780 = vmul.f32 %v2123, %v2715
  %v2781 = vld [vmem:[%s6] sm:$0x1]
  %v2783 = vlaneseq
  %v2784 = vshrl.u32 %v2783, 7
  %v2785 = vsub.s32 0, %v2784
  %v2786 = vrot.slane %v2781, %v2785
  %v2788 = vadd.f32 %v2717, %v2786
  %v2789 = vadd.f32 %v2718, %v2786
  %v2790 = vadd.f32 %v2719, %v2786
  %v2791 = vadd.f32 %v2720, %v2786
  %v2792 = vadd.f32 %v2721, %v2786
  %v2793 = vadd.f32 %v2722, %v2786
  %v2794 = vadd.f32 %v2723, %v2786
  %v2795 = vadd.f32 %v2724, %v2786
  %v2796 = vadd.f32 %v2725, %v2786
  %v2797 = vadd.f32 %v2726, %v2786
  %v2798 = vadd.f32 %v2727, %v2786
  %v2799 = vadd.f32 %v2728, %v2786
  %v2800 = vadd.f32 %v2729, %v2786
  %v2801 = vadd.f32 %v2730, %v2786
  %v2802 = vadd.f32 %v2731, %v2786
  %v2803 = vadd.f32 %v2732, %v2786
  %v2804 = vadd.f32 %v2733, %v2786
  %v2805 = vadd.f32 %v2734, %v2786
  %v2806 = vadd.f32 %v2735, %v2786
  %v2807 = vadd.f32 %v2736, %v2786
  %v2808 = vadd.f32 %v2737, %v2786
  %v2809 = vadd.f32 %v2738, %v2786
  %v2810 = vadd.f32 %v2739, %v2786
  %v2811 = vadd.f32 %v2740, %v2786
  %v2812 = vadd.f32 %v2741, %v2786
  %v2813 = vadd.f32 %v2742, %v2786
  %v2814 = vadd.f32 %v2743, %v2786
  %v2815 = vadd.f32 %v2744, %v2786
  %v2816 = vadd.f32 %v2745, %v2786
  %v2817 = vadd.f32 %v2746, %v2786
  %v2818 = vadd.f32 %v2747, %v2786
  %v2819 = vadd.f32 %v2748, %v2786
  %v2820 = vadd.f32 %v2749, %v2786
  %v2821 = vadd.f32 %v2750, %v2786
  %v2822 = vadd.f32 %v2751, %v2786
  %v2823 = vadd.f32 %v2752, %v2786
  %v2824 = vadd.f32 %v2753, %v2786
  %v2825 = vadd.f32 %v2754, %v2786
  %v2826 = vadd.f32 %v2755, %v2786
  %v2827 = vadd.f32 %v2756, %v2786
  %v2828 = vadd.f32 %v2757, %v2786
  %v2829 = vadd.f32 %v2758, %v2786
  %v2830 = vadd.f32 %v2759, %v2786
  %v2831 = vadd.f32 %v2760, %v2786
  %v2832 = vadd.f32 %v2761, %v2786
  %v2833 = vadd.f32 %v2762, %v2786
  %v2834 = vadd.f32 %v2763, %v2786
  %v2835 = vadd.f32 %v2764, %v2786
  %v2836 = vadd.f32 %v2765, %v2786
  %v2837 = vadd.f32 %v2766, %v2786
  %v2838 = vadd.f32 %v2767, %v2786
  %v2839 = vadd.f32 %v2768, %v2786
  %v2840 = vadd.f32 %v2769, %v2786
  %v2841 = vadd.f32 %v2770, %v2786
  %v2842 = vadd.f32 %v2771, %v2786
  %v2843 = vadd.f32 %v2772, %v2786
  %v2844 = vadd.f32 %v2773, %v2786
  %v2845 = vadd.f32 %v2774, %v2786
  %v2846 = vadd.f32 %v2775, %v2786
  %v2847 = vadd.f32 %v2776, %v2786
  %v2848 = vadd.f32 %v2777, %v2786
  %v2849 = vadd.f32 %v2778, %v2786
  %v2850 = vadd.f32 %v2779, %v2786
  %v2851 = vadd.f32 %v2780, %v2786
  %v2852 = vmax.f32 %v2788, 0.0
  %v2853 = vmax.f32 %v2789, 0.0
  %v2854 = vmax.f32 %v2790, 0.0
  %v2855 = vmax.f32 %v2791, 0.0
  %v2856 = vmax.f32 %v2792, 0.0
  %v2857 = vmax.f32 %v2793, 0.0
  %v2858 = vmax.f32 %v2794, 0.0
  %v2859 = vmax.f32 %v2795, 0.0
  %v2860 = vmax.f32 %v2796, 0.0
  %v2861 = vmax.f32 %v2797, 0.0
  %v2862 = vmax.f32 %v2798, 0.0
  %v2863 = vmax.f32 %v2799, 0.0
  %v2864 = vmax.f32 %v2800, 0.0
  %v2865 = vmax.f32 %v2801, 0.0
  %v2866 = vmax.f32 %v2802, 0.0
  %v2867 = vmax.f32 %v2803, 0.0
  %v2868 = vmax.f32 %v2804, 0.0
  %v2869 = vmax.f32 %v2805, 0.0
  %v2870 = vmax.f32 %v2806, 0.0
  %v2871 = vmax.f32 %v2807, 0.0
  %v2872 = vmax.f32 %v2808, 0.0
  %v2873 = vmax.f32 %v2809, 0.0
  %v2874 = vmax.f32 %v2810, 0.0
  %v2875 = vmax.f32 %v2811, 0.0
  %v2876 = vmax.f32 %v2812, 0.0
  %v2877 = vmax.f32 %v2813, 0.0
  %v2878 = vmax.f32 %v2814, 0.0
  %v2879 = vmax.f32 %v2815, 0.0
  %v2880 = vmax.f32 %v2816, 0.0
  %v2881 = vmax.f32 %v2817, 0.0
  %v2882 = vmax.f32 %v2818, 0.0
  %v2883 = vmax.f32 %v2819, 0.0
  %v2884 = vmax.f32 %v2820, 0.0
  %v2885 = vmax.f32 %v2821, 0.0
  %v2886 = vmax.f32 %v2822, 0.0
  %v2887 = vmax.f32 %v2823, 0.0
  %v2888 = vmax.f32 %v2824, 0.0
  %v2889 = vmax.f32 %v2825, 0.0
  %v2890 = vmax.f32 %v2826, 0.0
  %v2891 = vmax.f32 %v2827, 0.0
  %v2892 = vmax.f32 %v2828, 0.0
  %v2893 = vmax.f32 %v2829, 0.0
  %v2894 = vmax.f32 %v2830, 0.0
  %v2895 = vmax.f32 %v2831, 0.0
  %v2896 = vmax.f32 %v2832, 0.0
  %v2897 = vmax.f32 %v2833, 0.0
  %v2898 = vmax.f32 %v2834, 0.0
  %v2899 = vmax.f32 %v2835, 0.0
  %v2900 = vmax.f32 %v2836, 0.0
  %v2901 = vmax.f32 %v2837, 0.0
  %v2902 = vmax.f32 %v2838, 0.0
  %v2903 = vmax.f32 %v2839, 0.0
  %v2904 = vmax.f32 %v2840, 0.0
  %v2905 = vmax.f32 %v2841, 0.0
  %v2906 = vmax.f32 %v2842, 0.0
  %v2907 = vmax.f32 %v2843, 0.0
  %v2908 = vmax.f32 %v2844, 0.0
  %v2909 = vmax.f32 %v2845, 0.0
  %v2910 = vmax.f32 %v2846, 0.0
  %v2911 = vmax.f32 %v2847, 0.0
  %v2912 = vmax.f32 %v2848, 0.0
  %v2913 = vmax.f32 %v2849, 0.0
  %v2914 = vmax.f32 %v2850, 0.0
  %v2915 = vmax.f32 %v2851, 0.0
  %v2916 = vpack.c.bf16 %v2853, %v2852
  %v2917 = vpack.c.bf16 %v2855, %v2854
  %v2918 = vpack.c.bf16 %v2857, %v2856
  %v2919 = vpack.c.bf16 %v2859, %v2858
  %v2920 = vpack.c.bf16 %v2861, %v2860
  %v2921 = vpack.c.bf16 %v2863, %v2862
  %v2922 = vpack.c.bf16 %v2865, %v2864
  %v2923 = vpack.c.bf16 %v2867, %v2866
  %v2924 = vpack.c.bf16 %v2869, %v2868
  %v2925 = vpack.c.bf16 %v2871, %v2870
  %v2926 = vpack.c.bf16 %v2873, %v2872
  %v2927 = vpack.c.bf16 %v2875, %v2874
  %v2928 = vpack.c.bf16 %v2877, %v2876
  %v2929 = vpack.c.bf16 %v2879, %v2878
  %v2930 = vpack.c.bf16 %v2881, %v2880
  %v2931 = vpack.c.bf16 %v2883, %v2882
  %v2932 = vpack.c.bf16 %v2885, %v2884
  %v2933 = vpack.c.bf16 %v2887, %v2886
  %v2934 = vpack.c.bf16 %v2889, %v2888
  %v2935 = vpack.c.bf16 %v2891, %v2890
  %v2936 = vpack.c.bf16 %v2893, %v2892
  %v2937 = vpack.c.bf16 %v2895, %v2894
  %v2938 = vpack.c.bf16 %v2897, %v2896
  %v2939 = vpack.c.bf16 %v2899, %v2898
  %v2940 = vpack.c.bf16 %v2901, %v2900
  %v2941 = vpack.c.bf16 %v2903, %v2902
  %v2942 = vpack.c.bf16 %v2905, %v2904
  %v2943 = vpack.c.bf16 %v2907, %v2906
  %v2944 = vpack.c.bf16 %v2909, %v2908
  %v2945 = vpack.c.bf16 %v2911, %v2910
  %v2946 = vpack.c.bf16 %v2913, %v2912
  %v2947 = vpack.c.bf16 %v2915, %v2914
  %v2980 = vunpack.c.l.b16 %v2916
  %v2981 = vunpack.c.h.b16 %v2916
  %v2982 = vunpack.c.l.b16 %v2917
  %v2983 = vunpack.c.h.b16 %v2917
  %v2984 = vunpack.c.l.b16 %v2918
  %v2985 = vunpack.c.h.b16 %v2918
  %v2986 = vunpack.c.l.b16 %v2919
  %v2987 = vunpack.c.h.b16 %v2919
  %v2988 = vunpack.c.l.b16 %v2920
  %v2989 = vunpack.c.h.b16 %v2920
  %v2990 = vunpack.c.l.b16 %v2921
  %v2991 = vunpack.c.h.b16 %v2921
  %v2992 = vunpack.c.l.b16 %v2922
  %v2993 = vunpack.c.h.b16 %v2922
  %v2994 = vunpack.c.l.b16 %v2923
  %v2995 = vunpack.c.h.b16 %v2923
  %v2996 = vunpack.c.l.b16 %v2924
  %v2997 = vunpack.c.h.b16 %v2924
  %v2998 = vunpack.c.l.b16 %v2925
  %v2999 = vunpack.c.h.b16 %v2925
  %v3000 = vunpack.c.l.b16 %v2926
  %v3001 = vunpack.c.h.b16 %v2926
  %v3002 = vunpack.c.l.b16 %v2927
  %v3003 = vunpack.c.h.b16 %v2927
  %v3004 = vunpack.c.l.b16 %v2928
  %v3005 = vunpack.c.h.b16 %v2928
  %v3006 = vunpack.c.l.b16 %v2929
  %v3007 = vunpack.c.h.b16 %v2929
  %v3008 = vunpack.c.l.b16 %v2930
  %v3009 = vunpack.c.h.b16 %v2930
  %v3010 = vunpack.c.l.b16 %v2931
  %v3011 = vunpack.c.h.b16 %v2931
  %v3012 = vunpack.c.l.b16 %v2932
  %v3013 = vunpack.c.h.b16 %v2932
  %v3014 = vunpack.c.l.b16 %v2933
  %v3015 = vunpack.c.h.b16 %v2933
  %v3016 = vunpack.c.l.b16 %v2934
  %v3017 = vunpack.c.h.b16 %v2934
  %v3018 = vunpack.c.l.b16 %v2935
  %v3019 = vunpack.c.h.b16 %v2935
  %v3020 = vunpack.c.l.b16 %v2936
  %v3021 = vunpack.c.h.b16 %v2936
  %v3022 = vunpack.c.l.b16 %v2937
  %v3023 = vunpack.c.h.b16 %v2937
  %v3024 = vunpack.c.l.b16 %v2938
  %v3025 = vunpack.c.h.b16 %v2938
  %v3026 = vunpack.c.l.b16 %v2939
  %v3027 = vunpack.c.h.b16 %v2939
  %v3028 = vunpack.c.l.b16 %v2940
  %v3029 = vunpack.c.h.b16 %v2940
  %v3030 = vunpack.c.l.b16 %v2941
  %v3031 = vunpack.c.h.b16 %v2941
  %v3032 = vunpack.c.l.b16 %v2942
  %v3033 = vunpack.c.h.b16 %v2942
  %v3034 = vunpack.c.l.b16 %v2943
  %v3035 = vunpack.c.h.b16 %v2943
  %v3036 = vunpack.c.l.b16 %v2944
  %v3037 = vunpack.c.h.b16 %v2944
  %v3038 = vunpack.c.l.b16 %v2945
  %v3039 = vunpack.c.h.b16 %v2945
  %v3040 = vunpack.c.l.b16 %v2946
  %v3041 = vunpack.c.h.b16 %v2946
  %v3042 = vunpack.c.l.b16 %v2947
  %v3043 = vunpack.c.h.b16 %v2947
  %v3044 = vpack.c.b16 %v2980, %v2980
  %v3045 = vpack.c.b16 %v2981, %v2981
  %v3046 = vpack.c.b16 %v2982, %v2982
  %v3047 = vpack.c.b16 %v2983, %v2983
  %v3048 = vpack.c.b16 %v2984, %v2984
  %v3049 = vpack.c.b16 %v2985, %v2985
  %v3050 = vpack.c.b16 %v2986, %v2986
  %v3051 = vpack.c.b16 %v2987, %v2987
  %v3052 = vpack.c.b16 %v2988, %v2988
  %v3053 = vpack.c.b16 %v2989, %v2989
  %v3054 = vpack.c.b16 %v2990, %v2990
  %v3055 = vpack.c.b16 %v2991, %v2991
  %v3056 = vpack.c.b16 %v2992, %v2992
  %v3057 = vpack.c.b16 %v2993, %v2993
  %v3058 = vpack.c.b16 %v2994, %v2994
  %v3059 = vpack.c.b16 %v2995, %v2995
  %v3060 = vpack.c.b16 %v2996, %v2996
  %v3061 = vpack.c.b16 %v2997, %v2997
  %v3062 = vpack.c.b16 %v2998, %v2998
  %v3063 = vpack.c.b16 %v2999, %v2999
  %v3064 = vpack.c.b16 %v3000, %v3000
  %v3065 = vpack.c.b16 %v3001, %v3001
  %v3066 = vpack.c.b16 %v3002, %v3002
  %v3067 = vpack.c.b16 %v3003, %v3003
  %v3068 = vpack.c.b16 %v3004, %v3004
  %v3069 = vpack.c.b16 %v3005, %v3005
  %v3070 = vpack.c.b16 %v3006, %v3006
  %v3071 = vpack.c.b16 %v3007, %v3007
  %v3072 = vpack.c.b16 %v3008, %v3008
  %v3073 = vpack.c.b16 %v3009, %v3009
  %v3074 = vpack.c.b16 %v3010, %v3010
  %v3075 = vpack.c.b16 %v3011, %v3011
  %v3076 = vpack.c.b16 %v3012, %v3012
  %v3077 = vpack.c.b16 %v3013, %v3013
  %v3078 = vpack.c.b16 %v3014, %v3014
  %v3079 = vpack.c.b16 %v3015, %v3015
  %v3080 = vpack.c.b16 %v3016, %v3016
  %v3081 = vpack.c.b16 %v3017, %v3017
  %v3082 = vpack.c.b16 %v3018, %v3018
  %v3083 = vpack.c.b16 %v3019, %v3019
  %v3084 = vpack.c.b16 %v3020, %v3020
  %v3085 = vpack.c.b16 %v3021, %v3021
  %v3086 = vpack.c.b16 %v3022, %v3022
  %v3087 = vpack.c.b16 %v3023, %v3023
  %v3088 = vpack.c.b16 %v3024, %v3024
  %v3089 = vpack.c.b16 %v3025, %v3025
  %v3090 = vpack.c.b16 %v3026, %v3026
  %v3091 = vpack.c.b16 %v3027, %v3027
  %v3092 = vpack.c.b16 %v3028, %v3028
  %v3093 = vpack.c.b16 %v3029, %v3029
  %v3094 = vpack.c.b16 %v3030, %v3030
  %v3095 = vpack.c.b16 %v3031, %v3031
  %v3096 = vpack.c.b16 %v3032, %v3032
  %v3097 = vpack.c.b16 %v3033, %v3033
  %v3098 = vpack.c.b16 %v3034, %v3034
  %v3099 = vpack.c.b16 %v3035, %v3035
  %v3100 = vpack.c.b16 %v3036, %v3036
  %v3101 = vpack.c.b16 %v3037, %v3037
  %v3102 = vpack.c.b16 %v3038, %v3038
  %v3103 = vpack.c.b16 %v3039, %v3039
  %v3104 = vpack.c.b16 %v3040, %v3040
  %v3105 = vpack.c.b16 %v3041, %v3041
  %v3106 = vpack.c.b16 %v3042, %v3042
  %v3107 = vpack.c.b16 %v3043, %v3043
  %3172 = vst [vmem:[%s7] sm:$0xf] %v3044
  %3173 = vst [vmem:[%s7 + $0x4] sm:$0xf] %v3045
  %3174 = vst [vmem:[%s7 + $0x8] sm:$0xf] %v3046
  %3175 = vst [vmem:[%s7 + $0xc] sm:$0xf] %v3047
  %3176 = vst [vmem:[%s7 + $0x10] sm:$0xf] %v3048
  %3177 = vst [vmem:[%s7 + $0x14] sm:$0xf] %v3049
  %3178 = vst [vmem:[%s7 + $0x18] sm:$0xf] %v3050
  %3179 = vst [vmem:[%s7 + $0x1c] sm:$0xf] %v3051
  %3180 = vst [vmem:[%s7 + $0x20] sm:$0xf] %v3052
  %3181 = vst [vmem:[%s7 + $0x24] sm:$0xf] %v3053
  %3182 = vst [vmem:[%s7 + $0x28] sm:$0xf] %v3054
  %3183 = vst [vmem:[%s7 + $0x2c] sm:$0xf] %v3055
  %3184 = vst [vmem:[%s7 + $0x30] sm:$0xf] %v3056
  %3185 = vst [vmem:[%s7 + $0x34] sm:$0xf] %v3057
  %3186 = vst [vmem:[%s7 + $0x38] sm:$0xf] %v3058
  %3187 = vst [vmem:[%s7 + $0x3c] sm:$0xf] %v3059
  %3188 = vst [vmem:[%s7 + $0x40] sm:$0xf] %v3060
  %3189 = vst [vmem:[%s7 + $0x44] sm:$0xf] %v3061
  %3190 = vst [vmem:[%s7 + $0x48] sm:$0xf] %v3062
  %3191 = vst [vmem:[%s7 + $0x4c] sm:$0xf] %v3063
  %3192 = vst [vmem:[%s7 + $0x50] sm:$0xf] %v3064
  %3193 = vst [vmem:[%s7 + $0x54] sm:$0xf] %v3065
  %3194 = vst [vmem:[%s7 + $0x58] sm:$0xf] %v3066
  %3195 = vst [vmem:[%s7 + $0x5c] sm:$0xf] %v3067
  %3196 = vst [vmem:[%s7 + $0x60] sm:$0xf] %v3068
  %3197 = vst [vmem:[%s7 + $0x64] sm:$0xf] %v3069
  %3198 = vst [vmem:[%s7 + $0x68] sm:$0xf] %v3070
  %3199 = vst [vmem:[%s7 + $0x6c] sm:$0xf] %v3071
  %3200 = vst [vmem:[%s7 + $0x70] sm:$0xf] %v3072
  %3201 = vst [vmem:[%s7 + $0x74] sm:$0xf] %v3073
  %3202 = vst [vmem:[%s7 + $0x78] sm:$0xf] %v3074
  %3203 = vst [vmem:[%s7 + $0x7c] sm:$0xf] %v3075
  %3204 = vst [vmem:[%s7 + $0x80] sm:$0xf] %v3076
  %3205 = vst [vmem:[%s7 + $0x84] sm:$0xf] %v3077
  %3206 = vst [vmem:[%s7 + $0x88] sm:$0xf] %v3078
  %3207 = vst [vmem:[%s7 + $0x8c] sm:$0xf] %v3079
  %3208 = vst [vmem:[%s7 + $0x90] sm:$0xf] %v3080
  %3209 = vst [vmem:[%s7 + $0x94] sm:$0xf] %v3081
  %3210 = vst [vmem:[%s7 + $0x98] sm:$0xf] %v3082
  %3211 = vst [vmem:[%s7 + $0x9c] sm:$0xf] %v3083
  %3212 = vst [vmem:[%s7 + $0xa0] sm:$0xf] %v3084
  %3213 = vst [vmem:[%s7 + $0xa4] sm:$0xf] %v3085
  %3214 = vst [vmem:[%s7 + $0xa8] sm:$0xf] %v3086
  %3215 = vst [vmem:[%s7 + $0xac] sm:$0xf] %v3087
  %3216 = vst [vmem:[%s7 + $0xb0] sm:$0xf] %v3088
  %3217 = vst [vmem:[%s7 + $0xb4] sm:$0xf] %v3089
  %3218 = vst [vmem:[%s7 + $0xb8] sm:$0xf] %v3090
  %3219 = vst [vmem:[%s7 + $0xbc] sm:$0xf] %v3091
  %3220 = vst [vmem:[%s7 + $0xc0] sm:$0xf] %v3092
  %3221 = vst [vmem:[%s7 + $0xc4] sm:$0xf] %v3093
  %3222 = vst [vmem:[%s7 + $0xc8] sm:$0xf] %v3094
  %3223 = vst [vmem:[%s7 + $0xcc] sm:$0xf] %v3095
  %3224 = vst [vmem:[%s7 + $0xd0] sm:$0xf] %v3096
  %3225 = vst [vmem:[%s7 + $0xd4] sm:$0xf] %v3097
  %3226 = vst [vmem:[%s7 + $0xd8] sm:$0xf] %v3098
  %3227 = vst [vmem:[%s7 + $0xdc] sm:$0xf] %v3099
  %3228 = vst [vmem:[%s7 + $0xe0] sm:$0xf] %v3100
  %3229 = vst [vmem:[%s7 + $0xe4] sm:$0xf] %v3101
  %3230 = vst [vmem:[%s7 + $0xe8] sm:$0xf] %v3102
  %3231 = vst [vmem:[%s7 + $0xec] sm:$0xf] %v3103
  %3232 = vst [vmem:[%s7 + $0xf0] sm:$0xf] %v3104
  %3233 = vst [vmem:[%s7 + $0xf4] sm:$0xf] %v3105
  %3234 = vst [vmem:[%s7 + $0xf8] sm:$0xf] %v3106
  %3235 = vst [vmem:[%s7 + $0xfc] sm:$0xf] %v3107
  // Predicated region
  $region30: #{generator_forward.8} parent=0 // pred_check
    _
  $region31: #{generator_forward.8} parent=0 // pred_check_branch
    %3237 = sbr.rel (0) target = $region33
  $region32: #{generator_forward.8} parent=0 // pred_region
    _
  $region33: #{generator_forward.8} parent=0 // pred_fallthru
    _
  // Predicated region
  $region34: #{generator_forward.8} parent=0 // pred_check
    _
  $region35: #{generator_forward.8} parent=0 // pred_check_branch
    %3239 = sbr.rel (0) target = $region37
  $region36: #{generator_forward.8} parent=0 // pred_region
    _
  $region37: #{generator_forward.8} parent=0 // pred_fallthru
    _

// kernel: generator_forward.9
$region0: #{generator_forward.9}
  #allocation0 [shape = 'u32[]', space=smem, size = 0x4, offset = 0x4, fixed_abs, tag = 'smem constant byte address 0x4 - core index']
  #allocation1 [shape = 'u32[144,128]{1,0:T(1,128)}', space=vmem, size = 0x12000, scoped, tag = 'internal scratch']
  #allocation2 [shape = 'f32[1]{0:T(128)S(6)}', space=smem, size = 0x200, scoped, tag = 'scoped memory for generator_forward.9']
  %s0 = inlined_call_operand.vmem [shape: bf16[8,144], index: 0, kind: input, shape index: {}]
  %s1 = inlined_call_operand.vmem [shape: bf16[144,2048], index: 1, kind: input, shape index: {}]
  %s2 = inlined_call_operand.<no memory space> [shape: f32[1], index: 2, kind: input, shape index: {}]
  %s3 = inlined_call_operand.vmem [shape: bf16[8,2048], index: 3, kind: output, shape index: {}]
  %s4 = sld [smem:[#allocation0]]
  $region22: #{generator_forward.9} parent=0
    _
  %s6 = ssub.s32 1, %s4
  %s7 = scalar_select 0, %s6, %s4
  %8 = sst [smem:[#allocation2]] %s2
  // Predicated region
  $region2: #{generator_forward.9} parent=0 // pred_check
    _
  $region3: #{generator_forward.9} parent=0 // pred_check_branch
    %10 = sbr.rel (0) target = $region5
  $region4: #{generator_forward.9} parent=0 // pred_region
    _
  $region5: #{generator_forward.9} parent=0 // pred_fallthru
    _
  // Predicated region
  $region6: #{generator_forward.9} parent=0 // pred_check
    _
  $region7: #{generator_forward.9} parent=0 // pred_check_branch
    %12 = sbr.rel (0) target = $region9
  $region8: #{generator_forward.9} parent=0 // pred_region
    _
  $region9: #{generator_forward.9} parent=0 // pred_fallthru
    _
  // Predicated region
  $region10: #{generator_forward.9} parent=0 // pred_check
    _
  $region11: #{generator_forward.9} parent=0 // pred_check_branch
    %14 = sbr.rel (0) target = $region13
  $region12: #{generator_forward.9} parent=0 // pred_region
    _
  $region13: #{generator_forward.9} parent=0 // pred_fallthru
    _
  %v16 = vld [vmem:[%s0] sm:$0xff]
  %v17 = vld [vmem:[%s1] sm:$0xff]
  %v18 = vld [vmem:[%s1 + $0x8] sm:$0xff]
  %v19 = vld [vmem:[%s1 + $0x10] sm:$0xff]
  %v20 = vld [vmem:[%s1 + $0x18] sm:$0xff]
  %v21 = vld [vmem:[%s1 + $0x20] sm:$0xff]
  %v22 = vld [vmem:[%s1 + $0x28] sm:$0xff]
  %v23 = vld [vmem:[%s1 + $0x30] sm:$0xff]
  %v24 = vld [vmem:[%s1 + $0x38] sm:$0xff]
  %v25 = vld [vmem:[%s1 + $0x40] sm:$0xff]
  %v26 = vld [vmem:[%s1 + $0x48] sm:$0xff]
  %v27 = vld [vmem:[%s1 + $0x50] sm:$0xff]
  %v28 = vld [vmem:[%s1 + $0x58] sm:$0xff]
  %v29 = vld [vmem:[%s1 + $0x60] sm:$0xff]
  %v30 = vld [vmem:[%s1 + $0x68] sm:$0xff]
  %v31 = vld [vmem:[%s1 + $0x70] sm:$0xff]
  %v32 = vld [vmem:[%s1 + $0x78] sm:$0xff]
  %v33 = vld [vmem:[%s1 + $0x80] sm:$0xff]
  %v34 = vld [vmem:[%s1 + $0x88] sm:$0xff]
  %v35 = vld [vmem:[%s1 + $0x90] sm:$0xff]
  %v36 = vld [vmem:[%s1 + $0x98] sm:$0xff]
  %v37 = vld [vmem:[%s1 + $0xa0] sm:$0xff]
  %v38 = vld [vmem:[%s1 + $0xa8] sm:$0xff]
  %v39 = vld [vmem:[%s1 + $0xb0] sm:$0xff]
  %v40 = vld [vmem:[%s1 + $0xb8] sm:$0xff]
  %v41 = vld [vmem:[%s1 + $0xc0] sm:$0xff]
  %v42 = vld [vmem:[%s1 + $0xc8] sm:$0xff]
  %v43 = vld [vmem:[%s1 + $0xd0] sm:$0xff]
  %v44 = vld [vmem:[%s1 + $0xd8] sm:$0xff]
  %v45 = vld [vmem:[%s1 + $0xe0] sm:$0xff]
  %v46 = vld [vmem:[%s1 + $0xe8] sm:$0xff]
  %v47 = vld [vmem:[%s1 + $0xf0] sm:$0xff]
  %v48 = vld [vmem:[%s1 + $0xf8] sm:$0xff]
  %v49 = vld [vmem:[%s1 + $0x100] sm:$0xff]
  %v50 = vld [vmem:[%s1 + $0x108] sm:$0xff]
  %v51 = vld [vmem:[%s1 + $0x110] sm:$0xff]
  %v52 = vld [vmem:[%s1 + $0x118] sm:$0xff]
  %v53 = vld [vmem:[%s1 + $0x120] sm:$0xff]
  %v54 = vld [vmem:[%s1 + $0x128] sm:$0xff]
  %v55 = vld [vmem:[%s1 + $0x130] sm:$0xff]
  %v56 = vld [vmem:[%s1 + $0x138] sm:$0xff]
  %v57 = vld [vmem:[%s1 + $0x140] sm:$0xff]
  %v58 = vld [vmem:[%s1 + $0x148] sm:$0xff]
  %v59 = vld [vmem:[%s1 + $0x150] sm:$0xff]
  %v60 = vld [vmem:[%s1 + $0x158] sm:$0xff]
  %v61 = vld [vmem:[%s1 + $0x160] sm:$0xff]
  %v62 = vld [vmem:[%s1 + $0x168] sm:$0xff]
  %v63 = vld [vmem:[%s1 + $0x170] sm:$0xff]
  %v64 = vld [vmem:[%s1 + $0x178] sm:$0xff]
  %v65 = vld [vmem:[%s1 + $0x180] sm:$0xff]
  %v66 = vld [vmem:[%s1 + $0x188] sm:$0xff]
  %v67 = vld [vmem:[%s1 + $0x190] sm:$0xff]
  %v68 = vld [vmem:[%s1 + $0x198] sm:$0xff]
  %v69 = vld [vmem:[%s1 + $0x1a0] sm:$0xff]
  %v70 = vld [vmem:[%s1 + $0x1a8] sm:$0xff]
  %v71 = vld [vmem:[%s1 + $0x1b0] sm:$0xff]
  %v72 = vld [vmem:[%s1 + $0x1b8] sm:$0xff]
  %v73 = vld [vmem:[%s1 + $0x1c0] sm:$0xff]
  %v74 = vld [vmem:[%s1 + $0x1c8] sm:$0xff]
  %v75 = vld [vmem:[%s1 + $0x1d0] sm:$0xff]
  %v76 = vld [vmem:[%s1 + $0x1d8] sm:$0xff]
  %v77 = vld [vmem:[%s1 + $0x1e0] sm:$0xff]
  %v78 = vld [vmem:[%s1 + $0x1e8] sm:$0xff]
  %v79 = vld [vmem:[%s1 + $0x1f0] sm:$0xff]
  %v80 = vld [vmem:[%s1 + $0x1f8] sm:$0xff]
  %v81 = vld [vmem:[%s1 + $0x200] sm:$0xff]
  %v82 = vld [vmem:[%s1 + $0x208] sm:$0xff]
  %v83 = vld [vmem:[%s1 + $0x210] sm:$0xff]
  %v84 = vld [vmem:[%s1 + $0x218] sm:$0xff]
  %v85 = vld [vmem:[%s1 + $0x220] sm:$0xff]
  %v86 = vld [vmem:[%s1 + $0x228] sm:$0xff]
  %v87 = vld [vmem:[%s1 + $0x230] sm:$0xff]
  %v88 = vld [vmem:[%s1 + $0x238] sm:$0xff]
  %v89 = vld [vmem:[%s1 + $0x240] sm:$0xff]
  %v90 = vld [vmem:[%s1 + $0x248] sm:$0xff]
  %v91 = vld [vmem:[%s1 + $0x250] sm:$0xff]
  %v92 = vld [vmem:[%s1 + $0x258] sm:$0xff]
  %v93 = vld [vmem:[%s1 + $0x260] sm:$0xff]
  %v94 = vld [vmem:[%s1 + $0x268] sm:$0xff]
  %v95 = vld [vmem:[%s1 + $0x270] sm:$0xff]
  %v96 = vld [vmem:[%s1 + $0x278] sm:$0xff]
  %v97 = vld [vmem:[%s1 + $0x280] sm:$0xff]
  %v98 = vld [vmem:[%s1 + $0x288] sm:$0xff]
  %v99 = vld [vmem:[%s1 + $0x290] sm:$0xff]
  %v100 = vld [vmem:[%s1 + $0x298] sm:$0xff]
  %v101 = vld [vmem:[%s1 + $0x2a0] sm:$0xff]
  %v102 = vld [vmem:[%s1 + $0x2a8] sm:$0xff]
  %v103 = vld [vmem:[%s1 + $0x2b0] sm:$0xff]
  %v104 = vld [vmem:[%s1 + $0x2b8] sm:$0xff]
  %v105 = vld [vmem:[%s1 + $0x2c0] sm:$0xff]
  %v106 = vld [vmem:[%s1 + $0x2c8] sm:$0xff]
  %v107 = vld [vmem:[%s1 + $0x2d0] sm:$0xff]
  %v108 = vld [vmem:[%s1 + $0x2d8] sm:$0xff]
  %v109 = vld [vmem:[%s1 + $0x2e0] sm:$0xff]
  %v110 = vld [vmem:[%s1 + $0x2e8] sm:$0xff]
  %v111 = vld [vmem:[%s1 + $0x2f0] sm:$0xff]
  %v112 = vld [vmem:[%s1 + $0x2f8] sm:$0xff]
  %v113 = vld [vmem:[%s1 + $0x300] sm:$0xff]
  %v114 = vld [vmem:[%s1 + $0x308] sm:$0xff]
  %v115 = vld [vmem:[%s1 + $0x310] sm:$0xff]
  %v116 = vld [vmem:[%s1 + $0x318] sm:$0xff]
  %v117 = vld [vmem:[%s1 + $0x320] sm:$0xff]
  %v118 = vld [vmem:[%s1 + $0x328] sm:$0xff]
  %v119 = vld [vmem:[%s1 + $0x330] sm:$0xff]
  %v120 = vld [vmem:[%s1 + $0x338] sm:$0xff]
  %v121 = vld [vmem:[%s1 + $0x340] sm:$0xff]
  %v122 = vld [vmem:[%s1 + $0x348] sm:$0xff]
  %v123 = vld [vmem:[%s1 + $0x350] sm:$0xff]
  %v124 = vld [vmem:[%s1 + $0x358] sm:$0xff]
  %v125 = vld [vmem:[%s1 + $0x360] sm:$0xff]
  %v126 = vld [vmem:[%s1 + $0x368] sm:$0xff]
  %v127 = vld [vmem:[%s1 + $0x370] sm:$0xff]
  %v128 = vld [vmem:[%s1 + $0x378] sm:$0xff]
  %v129 = vld [vmem:[%s1 + $0x380] sm:$0xff]
  %v130 = vld [vmem:[%s1 + $0x388] sm:$0xff]
  %v131 = vld [vmem:[%s1 + $0x390] sm:$0xff]
  %v132 = vld [vmem:[%s1 + $0x398] sm:$0xff]
  %v133 = vld [vmem:[%s1 + $0x3a0] sm:$0xff]
  %v134 = vld [vmem:[%s1 + $0x3a8] sm:$0xff]
  %v135 = vld [vmem:[%s1 + $0x3b0] sm:$0xff]
  %v136 = vld [vmem:[%s1 + $0x3b8] sm:$0xff]
  %v137 = vld [vmem:[%s1 + $0x3c0] sm:$0xff]
  %v138 = vld [vmem:[%s1 + $0x3c8] sm:$0xff]
  %v139 = vld [vmem:[%s1 + $0x3d0] sm:$0xff]
  %v140 = vld [vmem:[%s1 + $0x3d8] sm:$0xff]
  %v141 = vld [vmem:[%s1 + $0x3e0] sm:$0xff]
  %v142 = vld [vmem:[%s1 + $0x3e8] sm:$0xff]
  %v143 = vld [vmem:[%s1 + $0x3f0] sm:$0xff]
  %v144 = vld [vmem:[%s1 + $0x3f8] sm:$0xff]
  %v145 = vld [vmem:[%s1 + $0x400] sm:$0xff]
  %v146 = vld [vmem:[%s1 + $0x408] sm:$0xff]
  %v147 = vld [vmem:[%s1 + $0x410] sm:$0xff]
  %v148 = vld [vmem:[%s1 + $0x418] sm:$0xff]
  %v149 = vld [vmem:[%s1 + $0x420] sm:$0xff]
  %v150 = vld [vmem:[%s1 + $0x428] sm:$0xff]
  %v151 = vld [vmem:[%s1 + $0x430] sm:$0xff]
  %v152 = vld [vmem:[%s1 + $0x438] sm:$0xff]
  %v153 = vld [vmem:[%s1 + $0x440] sm:$0xff]
  %v154 = vld [vmem:[%s1 + $0x448] sm:$0xff]
  %v155 = vld [vmem:[%s1 + $0x450] sm:$0xff]
  %v156 = vld [vmem:[%s1 + $0x458] sm:$0xff]
  %v157 = vld [vmem:[%s1 + $0x460] sm:$0xff]
  %v158 = vld [vmem:[%s1 + $0x468] sm:$0xff]
  %v159 = vld [vmem:[%s1 + $0x470] sm:$0xff]
  %v160 = vld [vmem:[%s1 + $0x478] sm:$0xff]
  %s161 = sld [smem:[#allocation2]]
  %v162 = vstv %s161
  %v164 = vunpack.c.l.b16 %v16
  %v165 = vunpack.c.h.b16 %v16
  %v166 = vpack.c.b16 %v164, %v164
  %v167 = vpack.c.b16 %v165, %v165
  %v313 = vunpack.c.l.b16 %v17
  %v314 = vunpack.c.h.b16 %v17
  %v315 = vunpack.c.l.b16 %v18
  %v316 = vunpack.c.h.b16 %v18
  %v317 = vunpack.c.l.b16 %v19
  %v318 = vunpack.c.h.b16 %v19
  %v319 = vunpack.c.l.b16 %v20
  %v320 = vunpack.c.h.b16 %v20
  %v321 = vunpack.c.l.b16 %v21
  %v322 = vunpack.c.h.b16 %v21
  %v323 = vunpack.c.l.b16 %v22
  %v324 = vunpack.c.h.b16 %v22
  %v325 = vunpack.c.l.b16 %v23
  %v326 = vunpack.c.h.b16 %v23
  %v327 = vunpack.c.l.b16 %v24
  %v328 = vunpack.c.h.b16 %v24
  %v329 = vunpack.c.l.b16 %v25
  %v330 = vunpack.c.h.b16 %v25
  %v331 = vunpack.c.l.b16 %v26
  %v332 = vunpack.c.h.b16 %v26
  %v333 = vunpack.c.l.b16 %v27
  %v334 = vunpack.c.h.b16 %v27
  %v335 = vunpack.c.l.b16 %v28
  %v336 = vunpack.c.h.b16 %v28
  %v337 = vunpack.c.l.b16 %v29
  %v338 = vunpack.c.h.b16 %v29
  %v339 = vunpack.c.l.b16 %v30
  %v340 = vunpack.c.h.b16 %v30
  %v341 = vunpack.c.l.b16 %v31
  %v342 = vunpack.c.h.b16 %v31
  %v343 = vunpack.c.l.b16 %v32
  %v344 = vunpack.c.h.b16 %v32
  %v345 = vunpack.c.l.b16 %v33
  %v346 = vunpack.c.h.b16 %v33
  %v347 = vunpack.c.l.b16 %v34
  %v348 = vunpack.c.h.b16 %v34
  %v349 = vunpack.c.l.b16 %v35
  %v350 = vunpack.c.h.b16 %v35
  %v351 = vunpack.c.l.b16 %v36
  %v352 = vunpack.c.h.b16 %v36
  %v353 = vunpack.c.l.b16 %v37
  %v354 = vunpack.c.h.b16 %v37
  %v355 = vunpack.c.l.b16 %v38
  %v356 = vunpack.c.h.b16 %v38
  %v357 = vunpack.c.l.b16 %v39
  %v358 = vunpack.c.h.b16 %v39
  %v359 = vunpack.c.l.b16 %v40
  %v360 = vunpack.c.h.b16 %v40
  %v361 = vunpack.c.l.b16 %v41
  %v362 = vunpack.c.h.b16 %v41
  %v363 = vunpack.c.l.b16 %v42
  %v364 = vunpack.c.h.b16 %v42
  %v365 = vunpack.c.l.b16 %v43
  %v366 = vunpack.c.h.b16 %v43
  %v367 = vunpack.c.l.b16 %v44
  %v368 = vunpack.c.h.b16 %v44
  %v369 = vunpack.c.l.b16 %v45
  %v370 = vunpack.c.h.b16 %v45
  %v371 = vunpack.c.l.b16 %v46
  %v372 = vunpack.c.h.b16 %v46
  %v373 = vunpack.c.l.b16 %v47
  %v374 = vunpack.c.h.b16 %v47
  %v375 = vunpack.c.l.b16 %v48
  %v376 = vunpack.c.h.b16 %v48
  %v377 = vunpack.c.l.b16 %v49
  %v378 = vunpack.c.h.b16 %v49
  %v379 = vunpack.c.l.b16 %v50
  %v380 = vunpack.c.h.b16 %v50
  %v381 = vunpack.c.l.b16 %v51
  %v382 = vunpack.c.h.b16 %v51
  %v383 = vunpack.c.l.b16 %v52
  %v384 = vunpack.c.h.b16 %v52
  %v385 = vunpack.c.l.b16 %v53
  %v386 = vunpack.c.h.b16 %v53
  %v387 = vunpack.c.l.b16 %v54
  %v388 = vunpack.c.h.b16 %v54
  %v389 = vunpack.c.l.b16 %v55
  %v390 = vunpack.c.h.b16 %v55
  %v391 = vunpack.c.l.b16 %v56
  %v392 = vunpack.c.h.b16 %v56
  %v393 = vunpack.c.l.b16 %v57
  %v394 = vunpack.c.h.b16 %v57
  %v395 = vunpack.c.l.b16 %v58
  %v396 = vunpack.c.h.b16 %v58
  %v397 = vunpack.c.l.b16 %v59
  %v398 = vunpack.c.h.b16 %v59
  %v399 = vunpack.c.l.b16 %v60
  %v400 = vunpack.c.h.b16 %v60
  %v401 = vunpack.c.l.b16 %v61
  %v402 = vunpack.c.h.b16 %v61
  %v403 = vunpack.c.l.b16 %v62
  %v404 = vunpack.c.h.b16 %v62
  %v405 = vunpack.c.l.b16 %v63
  %v406 = vunpack.c.h.b16 %v63
  %v407 = vunpack.c.l.b16 %v64
  %v408 = vunpack.c.h.b16 %v64
  %v409 = vunpack.c.l.b16 %v65
  %v410 = vunpack.c.h.b16 %v65
  %v411 = vunpack.c.l.b16 %v66
  %v412 = vunpack.c.h.b16 %v66
  %v413 = vunpack.c.l.b16 %v67
  %v414 = vunpack.c.h.b16 %v67
  %v415 = vunpack.c.l.b16 %v68
  %v416 = vunpack.c.h.b16 %v68
  %v417 = vunpack.c.l.b16 %v69
  %v418 = vunpack.c.h.b16 %v69
  %v419 = vunpack.c.l.b16 %v70
  %v420 = vunpack.c.h.b16 %v70
  %v421 = vunpack.c.l.b16 %v71
  %v422 = vunpack.c.h.b16 %v71
  %v423 = vunpack.c.l.b16 %v72
  %v424 = vunpack.c.h.b16 %v72
  %v425 = vunpack.c.l.b16 %v73
  %v426 = vunpack.c.h.b16 %v73
  %v427 = vunpack.c.l.b16 %v74
  %v428 = vunpack.c.h.b16 %v74
  %v429 = vunpack.c.l.b16 %v75
  %v430 = vunpack.c.h.b16 %v75
  %v431 = vunpack.c.l.b16 %v76
  %v432 = vunpack.c.h.b16 %v76
  %v433 = vunpack.c.l.b16 %v77
  %v434 = vunpack.c.h.b16 %v77
  %v435 = vunpack.c.l.b16 %v78
  %v436 = vunpack.c.h.b16 %v78
  %v437 = vunpack.c.l.b16 %v79
  %v438 = vunpack.c.h.b16 %v79
  %v439 = vunpack.c.l.b16 %v80
  %v440 = vunpack.c.h.b16 %v80
  %v441 = vunpack.c.l.b16 %v81
  %v442 = vunpack.c.h.b16 %v81
  %v443 = vunpack.c.l.b16 %v82
  %v444 = vunpack.c.h.b16 %v82
  %v445 = vunpack.c.l.b16 %v83
  %v446 = vunpack.c.h.b16 %v83
  %v447 = vunpack.c.l.b16 %v84
  %v448 = vunpack.c.h.b16 %v84
  %v449 = vunpack.c.l.b16 %v85
  %v450 = vunpack.c.h.b16 %v85
  %v451 = vunpack.c.l.b16 %v86
  %v452 = vunpack.c.h.b16 %v86
  %v453 = vunpack.c.l.b16 %v87
  %v454 = vunpack.c.h.b16 %v87
  %v455 = vunpack.c.l.b16 %v88
  %v456 = vunpack.c.h.b16 %v88
  %v457 = vunpack.c.l.b16 %v89
  %v458 = vunpack.c.h.b16 %v89
  %v459 = vunpack.c.l.b16 %v90
  %v460 = vunpack.c.h.b16 %v90
  %v461 = vunpack.c.l.b16 %v91
  %v462 = vunpack.c.h.b16 %v91
  %v463 = vunpack.c.l.b16 %v92
  %v464 = vunpack.c.h.b16 %v92
  %v465 = vunpack.c.l.b16 %v93
  %v466 = vunpack.c.h.b16 %v93
  %v467 = vunpack.c.l.b16 %v94
  %v468 = vunpack.c.h.b16 %v94
  %v469 = vunpack.c.l.b16 %v95
  %v470 = vunpack.c.h.b16 %v95
  %v471 = vunpack.c.l.b16 %v96
  %v472 = vunpack.c.h.b16 %v96
  %v473 = vunpack.c.l.b16 %v97
  %v474 = vunpack.c.h.b16 %v97
  %v475 = vunpack.c.l.b16 %v98
  %v476 = vunpack.c.h.b16 %v98
  %v477 = vunpack.c.l.b16 %v99
  %v478 = vunpack.c.h.b16 %v99
  %v479 = vunpack.c.l.b16 %v100
  %v480 = vunpack.c.h.b16 %v100
  %v481 = vunpack.c.l.b16 %v101
  %v482 = vunpack.c.h.b16 %v101
  %v483 = vunpack.c.l.b16 %v102
  %v484 = vunpack.c.h.b16 %v102
  %v485 = vunpack.c.l.b16 %v103
  %v486 = vunpack.c.h.b16 %v103
  %v487 = vunpack.c.l.b16 %v104
  %v488 = vunpack.c.h.b16 %v104
  %v489 = vunpack.c.l.b16 %v105
  %v490 = vunpack.c.h.b16 %v105
  %v491 = vunpack.c.l.b16 %v106
  %v492 = vunpack.c.h.b16 %v106
  %v493 = vunpack.c.l.b16 %v107
  %v494 = vunpack.c.h.b16 %v107
  %v495 = vunpack.c.l.b16 %v108
  %v496 = vunpack.c.h.b16 %v108
  %v497 = vunpack.c.l.b16 %v109
  %v498 = vunpack.c.h.b16 %v109
  %v499 = vunpack.c.l.b16 %v110
  %v500 = vunpack.c.h.b16 %v110
  %v501 = vunpack.c.l.b16 %v111
  %v502 = vunpack.c.h.b16 %v111
  %v503 = vunpack.c.l.b16 %v112
  %v504 = vunpack.c.h.b16 %v112
  %v505 = vunpack.c.l.b16 %v113
  %v506 = vunpack.c.h.b16 %v113
  %v507 = vunpack.c.l.b16 %v114
  %v508 = vunpack.c.h.b16 %v114
  %v509 = vunpack.c.l.b16 %v115
  %v510 = vunpack.c.h.b16 %v115
  %v511 = vunpack.c.l.b16 %v116
  %v512 = vunpack.c.h.b16 %v116
  %v513 = vunpack.c.l.b16 %v117
  %v514 = vunpack.c.h.b16 %v117
  %v515 = vunpack.c.l.b16 %v118
  %v516 = vunpack.c.h.b16 %v118
  %v517 = vunpack.c.l.b16 %v119
  %v518 = vunpack.c.h.b16 %v119
  %v519 = vunpack.c.l.b16 %v120
  %v520 = vunpack.c.h.b16 %v120
  %v521 = vunpack.c.l.b16 %v121
  %v522 = vunpack.c.h.b16 %v121
  %v523 = vunpack.c.l.b16 %v122
  %v524 = vunpack.c.h.b16 %v122
  %v525 = vunpack.c.l.b16 %v123
  %v526 = vunpack.c.h.b16 %v123
  %v527 = vunpack.c.l.b16 %v124
  %v528 = vunpack.c.h.b16 %v124
  %v529 = vunpack.c.l.b16 %v125
  %v530 = vunpack.c.h.b16 %v125
  %v531 = vunpack.c.l.b16 %v126
  %v532 = vunpack.c.h.b16 %v126
  %v533 = vunpack.c.l.b16 %v127
  %v534 = vunpack.c.h.b16 %v127
  %v535 = vunpack.c.l.b16 %v128
  %v536 = vunpack.c.h.b16 %v128
  %v537 = vunpack.c.l.b16 %v129
  %v538 = vunpack.c.h.b16 %v129
  %v539 = vunpack.c.l.b16 %v130
  %v540 = vunpack.c.h.b16 %v130
  %v541 = vunpack.c.l.b16 %v131
  %v542 = vunpack.c.h.b16 %v131
  %v543 = vunpack.c.l.b16 %v132
  %v544 = vunpack.c.h.b16 %v132
  %v545 = vunpack.c.l.b16 %v133
  %v546 = vunpack.c.h.b16 %v133
  %v547 = vunpack.c.l.b16 %v134
  %v548 = vunpack.c.h.b16 %v134
  %v549 = vunpack.c.l.b16 %v135
  %v550 = vunpack.c.h.b16 %v135
  %v551 = vunpack.c.l.b16 %v136
  %v552 = vunpack.c.h.b16 %v136
  %v553 = vunpack.c.l.b16 %v137
  %v554 = vunpack.c.h.b16 %v137
  %v555 = vunpack.c.l.b16 %v138
  %v556 = vunpack.c.h.b16 %v138
  %v557 = vunpack.c.l.b16 %v139
  %v558 = vunpack.c.h.b16 %v139
  %v559 = vunpack.c.l.b16 %v140
  %v560 = vunpack.c.h.b16 %v140
  %v561 = vunpack.c.l.b16 %v141
  %v562 = vunpack.c.h.b16 %v141
  %v563 = vunpack.c.l.b16 %v142
  %v564 = vunpack.c.h.b16 %v142
  %v565 = vunpack.c.l.b16 %v143
  %v566 = vunpack.c.h.b16 %v143
  %v567 = vunpack.c.l.b16 %v144
  %v568 = vunpack.c.h.b16 %v144
  %v569 = vunpack.c.l.b16 %v145
  %v570 = vunpack.c.h.b16 %v145
  %v571 = vunpack.c.l.b16 %v146
  %v572 = vunpack.c.h.b16 %v146
  %v573 = vunpack.c.l.b16 %v147
  %v574 = vunpack.c.h.b16 %v147
  %v575 = vunpack.c.l.b16 %v148
  %v576 = vunpack.c.h.b16 %v148
  %v577 = vunpack.c.l.b16 %v149
  %v578 = vunpack.c.h.b16 %v149
  %v579 = vunpack.c.l.b16 %v150
  %v580 = vunpack.c.h.b16 %v150
  %v581 = vunpack.c.l.b16 %v151
  %v582 = vunpack.c.h.b16 %v151
  %v583 = vunpack.c.l.b16 %v152
  %v584 = vunpack.c.h.b16 %v152
  %v585 = vunpack.c.l.b16 %v153
  %v586 = vunpack.c.h.b16 %v153
  %v587 = vunpack.c.l.b16 %v154
  %v588 = vunpack.c.h.b16 %v154
  %v589 = vunpack.c.l.b16 %v155
  %v590 = vunpack.c.h.b16 %v155
  %v591 = vunpack.c.l.b16 %v156
  %v592 = vunpack.c.h.b16 %v156
  %v593 = vunpack.c.l.b16 %v157
  %v594 = vunpack.c.h.b16 %v157
  %v595 = vunpack.c.l.b16 %v158
  %v596 = vunpack.c.h.b16 %v158
  %v597 = vunpack.c.l.b16 %v159
  %v598 = vunpack.c.h.b16 %v159
  %v599 = vunpack.c.l.b16 %v160
  %v600 = vunpack.c.h.b16 %v160
  %v601 = vpack.c.b16 %v329, %v313
  %v602 = vpack.c.b16 %v330, %v314
  %v603 = vpack.c.b16 %v331, %v315
  %v604 = vpack.c.b16 %v332, %v316
  %v605 = vpack.c.b16 %v333, %v317
  %v606 = vpack.c.b16 %v334, %v318
  %v607 = vpack.c.b16 %v335, %v319
  %v608 = vpack.c.b16 %v336, %v320
  %v609 = vpack.c.b16 %v337, %v321
  %v610 = vpack.c.b16 %v338, %v322
  %v611 = vpack.c.b16 %v339, %v323
  %v612 = vpack.c.b16 %v340, %v324
  %v613 = vpack.c.b16 %v341, %v325
  %v614 = vpack.c.b16 %v342, %v326
  %v615 = vpack.c.b16 %v343, %v327
  %v616 = vpack.c.b16 %v344, %v328
  %v617 = vpack.c.b16 %v361, %v345
  %v618 = vpack.c.b16 %v362, %v346
  %v619 = vpack.c.b16 %v363, %v347
  %v620 = vpack.c.b16 %v364, %v348
  %v621 = vpack.c.b16 %v365, %v349
  %v622 = vpack.c.b16 %v366, %v350
  %v623 = vpack.c.b16 %v367, %v351
  %v624 = vpack.c.b16 %v368, %v352
  %v625 = vpack.c.b16 %v369, %v353
  %v626 = vpack.c.b16 %v370, %v354
  %v627 = vpack.c.b16 %v371, %v355
  %v628 = vpack.c.b16 %v372, %v356
  %v629 = vpack.c.b16 %v373, %v357
  %v630 = vpack.c.b16 %v374, %v358
  %v631 = vpack.c.b16 %v375, %v359
  %v632 = vpack.c.b16 %v376, %v360
  %v633 = vpack.c.b16 %v393, %v377
  %v634 = vpack.c.b16 %v394, %v378
  %v635 = vpack.c.b16 %v395, %v379
  %v636 = vpack.c.b16 %v396, %v380
  %v637 = vpack.c.b16 %v397, %v381
  %v638 = vpack.c.b16 %v398, %v382
  %v639 = vpack.c.b16 %v399, %v383
  %v640 = vpack.c.b16 %v400, %v384
  %v641 = vpack.c.b16 %v401, %v385
  %v642 = vpack.c.b16 %v402, %v386
  %v643 = vpack.c.b16 %v403, %v387
  %v644 = vpack.c.b16 %v404, %v388
  %v645 = vpack.c.b16 %v405, %v389
  %v646 = vpack.c.b16 %v406, %v390
  %v647 = vpack.c.b16 %v407, %v391
  %v648 = vpack.c.b16 %v408, %v392
  %v649 = vpack.c.b16 %v425, %v409
  %v650 = vpack.c.b16 %v426, %v410
  %v651 = vpack.c.b16 %v427, %v411
  %v652 = vpack.c.b16 %v428, %v412
  %v653 = vpack.c.b16 %v429, %v413
  %v654 = vpack.c.b16 %v430, %v414
  %v655 = vpack.c.b16 %v431, %v415
  %v656 = vpack.c.b16 %v432, %v416
  %v657 = vpack.c.b16 %v433, %v417
  %v658 = vpack.c.b16 %v434, %v418
  %v659 = vpack.c.b16 %v435, %v419
  %v660 = vpack.c.b16 %v436, %v420
  %v661 = vpack.c.b16 %v437, %v421
  %v662 = vpack.c.b16 %v438, %v422
  %v663 = vpack.c.b16 %v439, %v423
  %v664 = vpack.c.b16 %v440, %v424
  %v665 = vpack.c.b16 %v457, %v441
  %v666 = vpack.c.b16 %v458, %v442
  %v667 = vpack.c.b16 %v459, %v443
  %v668 = vpack.c.b16 %v460, %v444
  %v669 = vpack.c.b16 %v461, %v445
  %v670 = vpack.c.b16 %v462, %v446
  %v671 = vpack.c.b16 %v463, %v447
  %v672 = vpack.c.b16 %v464, %v448
  %v673 = vpack.c.b16 %v465, %v449
  %v674 = vpack.c.b16 %v466, %v450
  %v675 = vpack.c.b16 %v467, %v451
  %v676 = vpack.c.b16 %v468, %v452
  %v677 = vpack.c.b16 %v469, %v453
  %v678 = vpack.c.b16 %v470, %v454
  %v679 = vpack.c.b16 %v471, %v455
  %v680 = vpack.c.b16 %v472, %v456
  %v681 = vpack.c.b16 %v489, %v473
  %v682 = vpack.c.b16 %v490, %v474
  %v683 = vpack.c.b16 %v491, %v475
  %v684 = vpack.c.b16 %v492, %v476
  %v685 = vpack.c.b16 %v493, %v477
  %v686 = vpack.c.b16 %v494, %v478
  %v687 = vpack.c.b16 %v495, %v479
  %v688 = vpack.c.b16 %v496, %v480
  %v689 = vpack.c.b16 %v497, %v481
  %v690 = vpack.c.b16 %v498, %v482
  %v691 = vpack.c.b16 %v499, %v483
  %v692 = vpack.c.b16 %v500, %v484
  %v693 = vpack.c.b16 %v501, %v485
  %v694 = vpack.c.b16 %v502, %v486
  %v695 = vpack.c.b16 %v503, %v487
  %v696 = vpack.c.b16 %v504, %v488
  %v697 = vpack.c.b16 %v521, %v505
  %v698 = vpack.c.b16 %v522, %v506
  %v699 = vpack.c.b16 %v523, %v507
  %v700 = vpack.c.b16 %v524, %v508
  %v701 = vpack.c.b16 %v525, %v509
  %v702 = vpack.c.b16 %v526, %v510
  %v703 = vpack.c.b16 %v527, %v511
  %v704 = vpack.c.b16 %v528, %v512
  %v705 = vpack.c.b16 %v529, %v513
  %v706 = vpack.c.b16 %v530, %v514
  %v707 = vpack.c.b16 %v531, %v515
  %v708 = vpack.c.b16 %v532, %v516
  %v709 = vpack.c.b16 %v533, %v517
  %v710 = vpack.c.b16 %v534, %v518
  %v711 = vpack.c.b16 %v535, %v519
  %v712 = vpack.c.b16 %v536, %v520
  %v713 = vpack.c.b16 %v553, %v537
  %v714 = vpack.c.b16 %v554, %v538
  %v715 = vpack.c.b16 %v555, %v539
  %v716 = vpack.c.b16 %v556, %v540
  %v717 = vpack.c.b16 %v557, %v541
  %v718 = vpack.c.b16 %v558, %v542
  %v719 = vpack.c.b16 %v559, %v543
  %v720 = vpack.c.b16 %v560, %v544
  %v721 = vpack.c.b16 %v561, %v545
  %v722 = vpack.c.b16 %v562, %v546
  %v723 = vpack.c.b16 %v563, %v547
  %v724 = vpack.c.b16 %v564, %v548
  %v725 = vpack.c.b16 %v565, %v549
  %v726 = vpack.c.b16 %v566, %v550
  %v727 = vpack.c.b16 %v567, %v551
  %v728 = vpack.c.b16 %v568, %v552
  %v729 = vpack.c.b16 %v585, %v569
  %v730 = vpack.c.b16 %v586, %v570
  %v731 = vpack.c.b16 %v587, %v571
  %v732 = vpack.c.b16 %v588, %v572
  %v733 = vpack.c.b16 %v589, %v573
  %v734 = vpack.c.b16 %v590, %v574
  %v735 = vpack.c.b16 %v591, %v575
  %v736 = vpack.c.b16 %v592, %v576
  %v737 = vpack.c.b16 %v593, %v577
  %v738 = vpack.c.b16 %v594, %v578
  %v739 = vpack.c.b16 %v595, %v579
  %v740 = vpack.c.b16 %v596, %v580
  %v741 = vpack.c.b16 %v597, %v581
  %v742 = vpack.c.b16 %v598, %v582
  %v743 = vpack.c.b16 %v599, %v583
  %v744 = vpack.c.b16 %v600, %v584
  %vm889 = vcmask 130048
  %v891 = vsel %vm889, %v167, 0
  %893 = vmatprep.subr.bf16.mxu0 %v602
  %894 = vmatpush1.bf16.msra.mxu0 %v601
  %895 = vmatprep.subr.bf16.mxu0 %v618
  %896 = vmatpush1.bf16.msra.mxu0 %v617
  %897 = vmatprep.subr.bf16.mxu0 %v634
  %898 = vmatpush1.bf16.msra.mxu0 %v633
  %899 = vmatprep.subr.bf16.mxu0 %v650
  %900 = vmatpush1.bf16.msra.mxu0 %v649
  %901 = vmatprep.subr.bf16.mxu0 %v666
  %902 = vmatpush1.bf16.msra.mxu0 %v665
  %903 = vmatprep.subr.bf16.mxu0 %v682
  %904 = vmatpush1.bf16.msra.mxu0 %v681
  %905 = vmatprep.subr.bf16.mxu0 %v698
  %906 = vmatpush1.bf16.msra.mxu0 %v697
  %907 = vmatprep.subr.bf16.mxu0 %v714
  %908 = vmatpush1.bf16.msra.mxu0 %v713
  %909 = vmatprep.subr.bf16.mxu0 %v730
  %910 = vmatpush1.bf16.msra.mxu0 %v729
  %911 = vmatprep.subr.bf16.mxu0 0
  %912 = vmatpush1.bf16.msra.mxu0 0
  %913 = vmatprep.subr.bf16.mxu0 0
  %914 = vmatpush1.bf16.msra.mxu0 0
  %915 = vmatprep.subr.bf16.mxu0 0
  %916 = vmatpush1.bf16.msra.mxu0 0
  %917 = vmatprep.subr.bf16.mxu0 0
  %918 = vmatpush1.bf16.msra.mxu0 0
  %919 = vmatprep.subr.bf16.mxu0 0
  %920 = vmatpush1.bf16.msra.mxu0 0
  %921 = vmatprep.subr.bf16.mxu0 0
  %922 = vmatpush1.bf16.msra.mxu0 0
  %923 = vmatprep.subr.bf16.mxu0 0
  %924 = vmatpush1.bf16.msra.mxu0 0
  %925 = vmatprep.mubr.bf16.mxu0 %v891
  %926 = vmatmul.mubr.bf16.gmra.mrb[0].mxu0 %v166
  %v927 = vpop.f32.mrb[0].mxu0
  %v928 = vadd.f32 %v162, %v927
  %v929 = vpop.f32.mrb[0].mxu0
  %v930 = vadd.f32 %v162, %v929
  %v931 = vpop.f32.mrb[0].mxu0
  %v932 = vpop.f32.mrb[0].mxu0
  %933 = vdwg.mxu0
  %934 = vmatprep.subr.bf16.mxu0 %v604
  %935 = vmatpush1.bf16.msra.mxu0 %v603
  %936 = vmatprep.subr.bf16.mxu0 %v620
  %937 = vmatpush1.bf16.msra.mxu0 %v619
  %938 = vmatprep.subr.bf16.mxu0 %v636
  %939 = vmatpush1.bf16.msra.mxu0 %v635
  %940 = vmatprep.subr.bf16.mxu0 %v652
  %941 = vmatpush1.bf16.msra.mxu0 %v651
  %942 = vmatprep.subr.bf16.mxu0 %v668
  %943 = vmatpush1.bf16.msra.mxu0 %v667
  %944 = vmatprep.subr.bf16.mxu0 %v684
  %945 = vmatpush1.bf16.msra.mxu0 %v683
  %946 = vmatprep.subr.bf16.mxu0 %v700
  %947 = vmatpush1.bf16.msra.mxu0 %v699
  %948 = vmatprep.subr.bf16.mxu0 %v716
  %949 = vmatpush1.bf16.msra.mxu0 %v715
  %950 = vmatprep.subr.bf16.mxu0 %v732
  %951 = vmatpush1.bf16.msra.mxu0 %v731
  %952 = vmatprep.subr.bf16.mxu0 0
  %953 = vmatpush1.bf16.msra.mxu0 0
  %954 = vmatprep.subr.bf16.mxu0 0
  %955 = vmatpush1.bf16.msra.mxu0 0
  %956 = vmatprep.subr.bf16.mxu0 0
  %957 = vmatpush1.bf16.msra.mxu0 0
  %958 = vmatprep.subr.bf16.mxu0 0
  %959 = vmatpush1.bf16.msra.mxu0 0
  %960 = vmatprep.subr.bf16.mxu0 0
  %961 = vmatpush1.bf16.msra.mxu0 0
  %962 = vmatprep.subr.bf16.mxu0 0
  %963 = vmatpush1.bf16.msra.mxu0 0
  %964 = vmatprep.subr.bf16.mxu0 0
  %965 = vmatpush1.bf16.msra.mxu0 0
  %966 = vmatprep.mubr.bf16.mxu0 %v891
  %967 = vmatmul.mubr.bf16.gmra.mrb[0].mxu0 %v166
  %v968 = vpop.f32.mrb[0].mxu0
  %v969 = vadd.f32 %v162, %v968
  %v970 = vpop.f32.mrb[0].mxu0
  %v971 = vadd.f32 %v162, %v970
  %v972 = vpop.f32.mrb[0].mxu0
  %v973 = vpop.f32.mrb[0].mxu0
  %974 = vdwg.mxu0
  %975 = vmatprep.subr.bf16.mxu0 %v606
  %976 = vmatpush1.bf16.msra.mxu0 %v605
  %977 = vmatprep.subr.bf16.mxu0 %v622
  %978 = vmatpush1.bf16.msra.mxu0 %v621
  %979 = vmatprep.subr.bf16.mxu0 %v638
  %980 = vmatpush1.bf16.msra.mxu0 %v637
  %981 = vmatprep.subr.bf16.mxu0 %v654
  %982 = vmatpush1.bf16.msra.mxu0 %v653
  %983 = vmatprep.subr.bf16.mxu0 %v670
  %984 = vmatpush1.bf16.msra.mxu0 %v669
  %985 = vmatprep.subr.bf16.mxu0 %v686
  %986 = vmatpush1.bf16.msra.mxu0 %v685
  %987 = vmatprep.subr.bf16.mxu0 %v702
  %988 = vmatpush1.bf16.msra.mxu0 %v701
  %989 = vmatprep.subr.bf16.mxu0 %v718
  %990 = vmatpush1.bf16.msra.mxu0 %v717
  %991 = vmatprep.subr.bf16.mxu0 %v734
  %992 = vmatpush1.bf16.msra.mxu0 %v733
  %993 = vmatprep.subr.bf16.mxu0 0
  %994 = vmatpush1.bf16.msra.mxu0 0
  %995 = vmatprep.subr.bf16.mxu0 0
  %996 = vmatpush1.bf16.msra.mxu0 0
  %997 = vmatprep.subr.bf16.mxu0 0
  %998 = vmatpush1.bf16.msra.mxu0 0
  %999 = vmatprep.subr.bf16.mxu0 0
  %1000 = vmatpush1.bf16.msra.mxu0 0
  %1001 = vmatprep.subr.bf16.mxu0 0
  %1002 = vmatpush1.bf16.msra.mxu0 0
  %1003 = vmatprep.subr.bf16.mxu0 0
  %1004 = vmatpush1.bf16.msra.mxu0 0
  %1005 = vmatprep.subr.bf16.mxu0 0
  %1006 = vmatpush1.bf16.msra.mxu0 0
  %1007 = vmatprep.mubr.bf16.mxu0 %v891
  %1008 = vmatmul.mubr.bf16.gmra.mrb[0].mxu0 %v166
  %v1009 = vpop.f32.mrb[0].mxu0
  %v1010 = vadd.f32 %v162, %v1009
  %v1011 = vpop.f32.mrb[0].mxu0
  %v1012 = vadd.f32 %v162, %v1011
  %v1013 = vpop.f32.mrb[0].mxu0
  %v1014 = vpop.f32.mrb[0].mxu0
  %1015 = vdwg.mxu0
  %1016 = vmatprep.subr.bf16.mxu0 %v608
  %1017 = vmatpush1.bf16.msra.mxu0 %v607
  %1018 = vmatprep.subr.bf16.mxu0 %v624
  %1019 = vmatpush1.bf16.msra.mxu0 %v623
  %1020 = vmatprep.subr.bf16.mxu0 %v640
  %1021 = vmatpush1.bf16.msra.mxu0 %v639
  %1022 = vmatprep.subr.bf16.mxu0 %v656
  %1023 = vmatpush1.bf16.msra.mxu0 %v655
  %1024 = vmatprep.subr.bf16.mxu0 %v672
  %1025 = vmatpush1.bf16.msra.mxu0 %v671
  %1026 = vmatprep.subr.bf16.mxu0 %v688
  %1027 = vmatpush1.bf16.msra.mxu0 %v687
  %1028 = vmatprep.subr.bf16.mxu0 %v704
  %1029 = vmatpush1.bf16.msra.mxu0 %v703
  %1030 = vmatprep.subr.bf16.mxu0 %v720
  %1031 = vmatpush1.bf16.msra.mxu0 %v719
  %1032 = vmatprep.subr.bf16.mxu0 %v736
  %1033 = vmatpush1.bf16.msra.mxu0 %v735
  %1034 = vmatprep.subr.bf16.mxu0 0
  %1035 = vmatpush1.bf16.msra.mxu0 0
  %1036 = vmatprep.subr.bf16.mxu0 0
  %1037 = vmatpush1.bf16.msra.mxu0 0
  %1038 = vmatprep.subr.bf16.mxu0 0
  %1039 = vmatpush1.bf16.msra.mxu0 0
  %1040 = vmatprep.subr.bf16.mxu0 0
  %1041 = vmatpush1.bf16.msra.mxu0 0
  %1042 = vmatprep.subr.bf16.mxu0 0
  %1043 = vmatpush1.bf16.msra.mxu0 0
  %1044 = vmatprep.subr.bf16.mxu0 0
  %1045 = vmatpush1.bf16.msra.mxu0 0
  %1046 = vmatprep.subr.bf16.mxu0 0
  %1047 = vmatpush1.bf16.msra.mxu0 0
  %1048 = vmatprep.mubr.bf16.mxu0 %v891
  %1049 = vmatmul.mubr.bf16.gmra.mrb[0].mxu0 %v166
  %v1050 = vpop.f32.mrb[0].mxu0
  %v1051 = vadd.f32 %v162, %v1050
  %v1052 = vpop.f32.mrb[0].mxu0
  %v1053 = vadd.f32 %v162, %v1052
  %v1054 = vpop.f32.mrb[0].mxu0
  %v1055 = vpop.f32.mrb[0].mxu0
  %1056 = vdwg.mxu0
  %1057 = vmatprep.subr.bf16.mxu0 %v610
  %1058 = vmatpush1.bf16.msra.mxu0 %v609
  %1059 = vmatprep.subr.bf16.mxu0 %v626
  %1060 = vmatpush1.bf16.msra.mxu0 %v625
  %1061 = vmatprep.subr.bf16.mxu0 %v642
  %1062 = vmatpush1.bf16.msra.mxu0 %v641
  %1063 = vmatprep.subr.bf16.mxu0 %v658
  %1064 = vmatpush1.bf16.msra.mxu0 %v657
  %1065 = vmatprep.subr.bf16.mxu0 %v674
  %1066 = vmatpush1.bf16.msra.mxu0 %v673
  %1067 = vmatprep.subr.bf16.mxu0 %v690
  %1068 = vmatpush1.bf16.msra.mxu0 %v689
  %1069 = vmatprep.subr.bf16.mxu0 %v706
  %1070 = vmatpush1.bf16.msra.mxu0 %v705
  %1071 = vmatprep.subr.bf16.mxu0 %v722
  %1072 = vmatpush1.bf16.msra.mxu0 %v721
  %1073 = vmatprep.subr.bf16.mxu0 %v738
  %1074 = vmatpush1.bf16.msra.mxu0 %v737
  %1075 = vmatprep.subr.bf16.mxu0 0
  %1076 = vmatpush1.bf16.msra.mxu0 0
  %1077 = vmatprep.subr.bf16.mxu0 0
  %1078 = vmatpush1.bf16.msra.mxu0 0
  %1079 = vmatprep.subr.bf16.mxu0 0
  %1080 = vmatpush1.bf16.msra.mxu0 0
  %1081 = vmatprep.subr.bf16.mxu0 0
  %1082 = vmatpush1.bf16.msra.mxu0 0
  %1083 = vmatprep.subr.bf16.mxu0 0
  %1084 = vmatpush1.bf16.msra.mxu0 0
  %1085 = vmatprep.subr.bf16.mxu0 0
  %1086 = vmatpush1.bf16.msra.mxu0 0
  %1087 = vmatprep.subr.bf16.mxu0 0
  %1088 = vmatpush1.bf16.msra.mxu0 0
  %1089 = vmatprep.mubr.bf16.mxu0 %v891
  %1090 = vmatmul.mubr.bf16.gmra.mrb[0].mxu0 %v166
  %v1091 = vpop.f32.mrb[0].mxu0
  %v1092 = vadd.f32 %v162, %v1091
  %v1093 = vpop.f32.mrb[0].mxu0
  %v1094 = vadd.f32 %v162, %v1093
  %v1095 = vpop.f32.mrb[0].mxu0
  %v1096 = vpop.f32.mrb[0].mxu0
  %1097 = vdwg.mxu0
  %1098 = vmatprep.subr.bf16.mxu0 %v612
  %1099 = vmatpush1.bf16.msra.mxu0 %v611
  %1100 = vmatprep.subr.bf16.mxu0 %v628
  %1101 = vmatpush1.bf16.msra.mxu0 %v627
  %1102 = vmatprep.subr.bf16.mxu0 %v644
  %1103 = vmatpush1.bf16.msra.mxu0 %v643
  %1104 = vmatprep.subr.bf16.mxu0 %v660
  %1105 = vmatpush1.bf16.msra.mxu0 %v659
  %1106 = vmatprep.subr.bf16.mxu0 %v676
  %1107 = vmatpush1.bf16.msra.mxu0 %v675
  %1108 = vmatprep.subr.bf16.mxu0 %v692
  %1109 = vmatpush1.bf16.msra.mxu0 %v691
  %1110 = vmatprep.subr.bf16.mxu0 %v708
  %1111 = vmatpush1.bf16.msra.mxu0 %v707
  %1112 = vmatprep.subr.bf16.mxu0 %v724
  %1113 = vmatpush1.bf16.msra.mxu0 %v723
  %1114 = vmatprep.subr.bf16.mxu0 %v740
  %1115 = vmatpush1.bf16.msra.mxu0 %v739
  %1116 = vmatprep.subr.bf16.mxu0 0
  %1117 = vmatpush1.bf16.msra.mxu0 0
  %1118 = vmatprep.subr.bf16.mxu0 0
  %1119 = vmatpush1.bf16.msra.mxu0 0
  %1120 = vmatprep.subr.bf16.mxu0 0
  %1121 = vmatpush1.bf16.msra.mxu0 0
  %1122 = vmatprep.subr.bf16.mxu0 0
  %1123 = vmatpush1.bf16.msra.mxu0 0
  %1124 = vmatprep.subr.bf16.mxu0 0
  %1125 = vmatpush1.bf16.msra.mxu0 0
  %1126 = vmatprep.subr.bf16.mxu0 0
  %1127 = vmatpush1.bf16.msra.mxu0 0
  %1128 = vmatprep.subr.bf16.mxu0 0
  %1129 = vmatpush1.bf16.msra.mxu0 0
  %1130 = vmatprep.mubr.bf16.mxu0 %v891
  %1131 = vmatmul.mubr.bf16.gmra.mrb[0].mxu0 %v166
  %v1132 = vpop.f32.mrb[0].mxu0
  %v1133 = vadd.f32 %v162, %v1132
  %v1134 = vpop.f32.mrb[0].mxu0
  %v1135 = vadd.f32 %v162, %v1134
  %v1136 = vpop.f32.mrb[0].mxu0
  %v1137 = vpop.f32.mrb[0].mxu0
  %1138 = vdwg.mxu0
  %1139 = vmatprep.subr.bf16.mxu0 %v614
  %1140 = vmatpush1.bf16.msra.mxu0 %v613
  %1141 = vmatprep.subr.bf16.mxu0 %v630
  %1142 = vmatpush1.bf16.msra.mxu0 %v629
  %1143 = vmatprep.subr.bf16.mxu0 %v646
  %1144 = vmatpush1.bf16.msra.mxu0 %v645
  %1145 = vmatprep.subr.bf16.mxu0 %v662
  %1146 = vmatpush1.bf16.msra.mxu0 %v661
  %1147 = vmatprep.subr.bf16.mxu0 %v678
  %1148 = vmatpush1.bf16.msra.mxu0 %v677
  %1149 = vmatprep.subr.bf16.mxu0 %v694
  %1150 = vmatpush1.bf16.msra.mxu0 %v693
  %1151 = vmatprep.subr.bf16.mxu0 %v710
  %1152 = vmatpush1.bf16.msra.mxu0 %v709
  %1153 = vmatprep.subr.bf16.mxu0 %v726
  %1154 = vmatpush1.bf16.msra.mxu0 %v725
  %1155 = vmatprep.subr.bf16.mxu0 %v742
  %1156 = vmatpush1.bf16.msra.mxu0 %v741
  %1157 = vmatprep.subr.bf16.mxu0 0
  %1158 = vmatpush1.bf16.msra.mxu0 0
  %1159 = vmatprep.subr.bf16.mxu0 0
  %1160 = vmatpush1.bf16.msra.mxu0 0
  %1161 = vmatprep.subr.bf16.mxu0 0
  %1162 = vmatpush1.bf16.msra.mxu0 0
  %1163 = vmatprep.subr.bf16.mxu0 0
  %1164 = vmatpush1.bf16.msra.mxu0 0
  %1165 = vmatprep.subr.bf16.mxu0 0
  %1166 = vmatpush1.bf16.msra.mxu0 0
  %1167 = vmatprep.subr.bf16.mxu0 0
  %1168 = vmatpush1.bf16.msra.mxu0 0
  %1169 = vmatprep.subr.bf16.mxu0 0
  %1170 = vmatpush1.bf16.msra.mxu0 0
  %1171 = vmatprep.mubr.bf16.mxu0 %v891
  %1172 = vmatmul.mubr.bf16.gmra.mrb[0].mxu0 %v166
  %v1173 = vpop.f32.mrb[0].mxu0
  %v1174 = vadd.f32 %v162, %v1173
  %v1175 = vpop.f32.mrb[0].mxu0
  %v1176 = vadd.f32 %v162, %v1175
  %v1177 = vpop.f32.mrb[0].mxu0
  %v1178 = vpop.f32.mrb[0].mxu0
  %1179 = vdwg.mxu0
  %1180 = vmatprep.subr.bf16.mxu0 %v616
  %1181 = vmatpush1.bf16.msra.mxu0 %v615
  %1182 = vmatprep.subr.bf16.mxu0 %v632
  %1183 = vmatpush1.bf16.msra.mxu0 %v631
  %1184 = vmatprep.subr.bf16.mxu0 %v648
  %1185 = vmatpush1.bf16.msra.mxu0 %v647
  %1186 = vmatprep.subr.bf16.mxu0 %v664
  %1187 = vmatpush1.bf16.msra.mxu0 %v663
  %1188 = vmatprep.subr.bf16.mxu0 %v680
  %1189 = vmatpush1.bf16.msra.mxu0 %v679
  %1190 = vmatprep.subr.bf16.mxu0 %v696
  %1191 = vmatpush1.bf16.msra.mxu0 %v695
  %1192 = vmatprep.subr.bf16.mxu0 %v712
  %1193 = vmatpush1.bf16.msra.mxu0 %v711
  %1194 = vmatprep.subr.bf16.mxu0 %v728
  %1195 = vmatpush1.bf16.msra.mxu0 %v727
  %1196 = vmatprep.subr.bf16.mxu0 %v744
  %1197 = vmatpush1.bf16.msra.mxu0 %v743
  %1198 = vmatprep.subr.bf16.mxu0 0
  %1199 = vmatpush1.bf16.msra.mxu0 0
  %1200 = vmatprep.subr.bf16.mxu0 0
  %1201 = vmatpush1.bf16.msra.mxu0 0
  %1202 = vmatprep.subr.bf16.mxu0 0
  %1203 = vmatpush1.bf16.msra.mxu0 0
  %1204 = vmatprep.subr.bf16.mxu0 0
  %1205 = vmatpush1.bf16.msra.mxu0 0
  %1206 = vmatprep.subr.bf16.mxu0 0
  %1207 = vmatpush1.bf16.msra.mxu0 0
  %1208 = vmatprep.subr.bf16.mxu0 0
  %1209 = vmatpush1.bf16.msra.mxu0 0
  %1210 = vmatprep.subr.bf16.mxu0 0
  %1211 = vmatpush1.bf16.msra.mxu0 0
  %1212 = vmatprep.mubr.bf16.mxu0 %v891
  %1213 = vmatmul.mubr.bf16.gmra.mrb[0].mxu0 %v166
  %v1214 = vpop.f32.mrb[0].mxu0
  %v1215 = vadd.f32 %v162, %v1214
  %v1216 = vpop.f32.mrb[0].mxu0
  %v1217 = vadd.f32 %v162, %v1216
  %v1218 = vpop.f32.mrb[0].mxu0
  %v1219 = vpop.f32.mrb[0].mxu0
  %1220 = vdwg.mxu0
  %v1221 = vtanh.pop %v928
  %v1222 = vtanh.pop %v930
  %v1223 = vtanh.pop %v969
  %v1224 = vtanh.pop %v971
  %v1225 = vtanh.pop %v1010
  %v1226 = vtanh.pop %v1012
  %v1227 = vtanh.pop %v1051
  %v1228 = vtanh.pop %v1053
  %v1229 = vtanh.pop %v1092
  %v1230 = vtanh.pop %v1094
  %v1231 = vtanh.pop %v1133
  %v1232 = vtanh.pop %v1135
  %v1233 = vtanh.pop %v1174
  %v1234 = vtanh.pop %v1176
  %v1235 = vtanh.pop %v1215
  %v1236 = vtanh.pop %v1217
  %v1237 = vpack.c.bf16 %v1221, %v1221
  %v1238 = vpack.c.bf16 %v1222, %v1222
  %v1239 = vpack.c.bf16 %v1223, %v1223
  %v1240 = vpack.c.bf16 %v1224, %v1224
  %v1241 = vpack.c.bf16 %v1225, %v1225
  %v1242 = vpack.c.bf16 %v1226, %v1226
  %v1243 = vpack.c.bf16 %v1227, %v1227
  %v1244 = vpack.c.bf16 %v1228, %v1228
  %v1245 = vpack.c.bf16 %v1229, %v1229
  %v1246 = vpack.c.bf16 %v1230, %v1230
  %v1247 = vpack.c.bf16 %v1231, %v1231
  %v1248 = vpack.c.bf16 %v1232, %v1232
  %v1249 = vpack.c.bf16 %v1233, %v1233
  %v1250 = vpack.c.bf16 %v1234, %v1234
  %v1251 = vpack.c.bf16 %v1235, %v1235
  %v1252 = vpack.c.bf16 %v1236, %v1236
  %v1269 = vunpack.c.l.b16 %v1237
  %v1270 = vunpack.c.l.b16 %v1238
  %v1271 = vunpack.c.l.b16 %v1239
  %v1272 = vunpack.c.l.b16 %v1240
  %v1273 = vunpack.c.l.b16 %v1241
  %v1274 = vunpack.c.l.b16 %v1242
  %v1275 = vunpack.c.l.b16 %v1243
  %v1276 = vunpack.c.l.b16 %v1244
  %v1277 = vunpack.c.l.b16 %v1245
  %v1278 = vunpack.c.l.b16 %v1246
  %v1279 = vunpack.c.l.b16 %v1247
  %v1280 = vunpack.c.l.b16 %v1248
  %v1281 = vunpack.c.l.b16 %v1249
  %v1282 = vunpack.c.l.b16 %v1250
  %v1283 = vunpack.c.l.b16 %v1251
  %v1284 = vunpack.c.l.b16 %v1252
  %v1285 = vpack.c.b16 %v1270, %v1269
  %v1286 = vpack.c.b16 %v1272, %v1271
  %v1287 = vpack.c.b16 %v1274, %v1273
  %v1288 = vpack.c.b16 %v1276, %v1275
  %v1289 = vpack.c.b16 %v1278, %v1277
  %v1290 = vpack.c.b16 %v1280, %v1279
  %v1291 = vpack.c.b16 %v1282, %v1281
  %v1292 = vpack.c.b16 %v1284, %v1283
  %1301 = vst [vmem:[%s3] sm:$0xff] %v1285
  %1302 = vst [vmem:[%s3 + $0x8] sm:$0xff] %v1286
  %1303 = vst [vmem:[%s3 + $0x10] sm:$0xff] %v1287
  %1304 = vst [vmem:[%s3 + $0x18] sm:$0xff] %v1288
  %1305 = vst [vmem:[%s3 + $0x20] sm:$0xff] %v1289
  %1306 = vst [vmem:[%s3 + $0x28] sm:$0xff] %v1290
  %1307 = vst [vmem:[%s3 + $0x30] sm:$0xff] %v1291
  %1308 = vst [vmem:[%s3 + $0x38] sm:$0xff] %v1292
  // Predicated region
  $region14: #{generator_forward.9} parent=0 // pred_check
    _
  $region15: #{generator_forward.9} parent=0 // pred_check_branch
    %1310 = sbr.rel (0) target = $region17
  $region16: #{generator_forward.9} parent=0 // pred_region
    _
  $region17: #{generator_forward.9} parent=0 // pred_fallthru
    _
  // Predicated region
  $region18: #{generator_forward.9} parent=0 // pred_check
    _
  $region19: #{generator_forward.9} parent=0 // pred_check_branch
    %1312 = sbr.rel (0) target = $region21
  $region20: #{generator_forward.9} parent=0 // pred_region
    _
  $region21: #{generator_forward.9} parent=0 // pred_fallthru
    _

</llo_original>
